<compile_context>
chip_gen: v7x
topology: tpu7x:2x2x1
jax: 0.10.0
libtpu: 0.0.40
codegen_flags: <defaults>
</compile_context>

<pallas_src>
import functools

import jax
import jax.numpy as jnp
from jax.experimental import pallas as pl
from jax.experimental.pallas import tpu as pltpu

PAD = 16                    # max padding over all branches (the dilation-16 one)
DILATIONS = (2, 4, 8, 16)   # the four 3x3 atrous branches (module defaults)


def _aspp_kernel(Wp, xf_ref, w1_ref, wd_ref, wout_ref, bb_ref, bout_ref, o_ref):
    """One batch element per grid step.

    xf_ref  : (1, Cin, Hp*Wp) zero-padded input, padded rows flattened (lanes)
    w1_ref  : (D, Cin)        1x1 branch weight
    wd_ref  : (4, D, 9*Cin)   3x3 dilated-branch weights, taps stacked along K
    wout_ref: (5, D, D)       output 1x1 conv weight, split per branch block
    bb_ref  : (5, D, 1)       per-branch conv biases
    bout_ref: (D, 1)          output conv bias
    o_ref   : (1, D, L)       flat output band, L = (H-1)*Wp + W; the wrapper
                              strips the Wp-W pad columns of each row.
    """
    xf = xf_ref[0]                          # (Cin, Hp*Wp), native dtype
    L = o_ref.shape[2]

    def tap(dy, dx):
        # Flat-row slice for kernel tap offset (dy, dx) in pixels.  For output
        # position (h, w) the accumulator index is q = h*Wp + w and
        # tap(dy, dx)[:, q] == x_pad[:, PAD + h + dy, PAD + w + dx].
        start = (PAD + dy) * Wp + (PAD + dx)
        return xf[:, start:start + L]       # (Cin, L)

    # ---- branch 0: 1x1 conv ------------------------------------------------
    y = jnp.dot(w1_ref[...], tap(0, 0),
                preferred_element_type=jnp.float32) + bb_ref[0]
    out = jnp.dot(wout_ref[0], y, preferred_element_type=jnp.float32)

    # ---- branches 1..4: 3x3 atrous convs (padding == dilation == d) ---------
    for bi, d in enumerate(DILATIONS):
        xcat = jnp.concatenate(
            [tap(d * (ky - 1), d * (kx - 1))
             for ky in range(3) for kx in range(3)],
            axis=0)                                           # (9*Cin, L)
        y = jnp.dot(wd_ref[bi], xcat,
                    preferred_element_type=jnp.float32) + bb_ref[bi + 1]
        # Output 1x1 conv applied to this branch's channel block (exact
        # reassociation of the concat + conv1x1 in the reference graph).
        out = out + jnp.dot(wout_ref[bi + 1], y,
                            preferred_element_type=jnp.float32)

    out = out + bout_ref[...]
    o_ref[0] = out.astype(o_ref.dtype)


def aspp_forward(x, params):
    """x: (B, Cin, H, W); params hold PyTorch-layout (OIHW) conv weights."""
    B, Cin, H, W = x.shape
    D = params["w1"].shape[0]
    Hp, Wp = H + 2 * PAD, W + 2 * PAD
    FLAT = Hp * Wp
    L = (H - 1) * Wp + W        # flat output band (last row needs no pad cols)

    # --- layout plumbing (XLA side): pad once for all branches, flatten rows.
    xp = jnp.pad(x, ((0, 0), (0, 0), (PAD, PAD), (PAD, PAD)))
    xf = xp.reshape(B, Cin, FLAT)

    # --- weight preprocessing (O(weights), done once): OIHW -> matmul form.
    w1 = params["w1"][:, :, 0, 0]                                    # (D, Cin)
    wd = jnp.stack(
        [params[f"w{d}"].transpose(0, 2, 3, 1).reshape(D, 9 * Cin)
         for d in DILATIONS], axis=0)                                # (4, D, 9*Cin)
    wout = params["wout"][:, :, 0, 0].reshape(D, 5, D).transpose(1, 0, 2)  # (5, D, D)
    bb = jnp.stack([params["b1"]] + [params[f"b{d}"] for d in DILATIONS],
                   axis=0)[:, :, None]                               # (5, D, 1)
    bout = params["bout"][:, None]                                   # (D, 1)

    out_flat = pl.pallas_call(
        functools.partial(_aspp_kernel, Wp),
        out_shape=jax.ShapeDtypeStruct((B, D, L), x.dtype),
        grid_spec=pltpu.PrefetchScalarGridSpec(
            num_scalar_prefetch=0,
            grid=(B,),
            in_specs=[
                pl.BlockSpec((1, Cin, FLAT), lambda b: (b, 0, 0)),
                pl.BlockSpec((D, Cin), lambda b: (0, 0)),
                pl.BlockSpec((4, D, 9 * Cin), lambda b: (0, 0, 0)),
                pl.BlockSpec((5, D, D), lambda b: (0, 0, 0)),
                pl.BlockSpec((5, D, 1), lambda b: (0, 0, 0)),
                pl.BlockSpec((D, 1), lambda b: (0, 0)),
            ],
            out_specs=pl.BlockSpec((1, D, L), lambda b: (b, 0, 0)),
        ),
        compiler_params=pltpu.CompilerParams(
            dimension_semantics=("parallel",)),
    )(xf, w1, wd, wout, bb, bout)

    # --- strip the Wp-W pad columns of each flattened row: (B,D,L)->(B,D,H,W).
    out_flat = jnp.pad(out_flat, ((0, 0), (0, 0), (0, H * Wp - L)))
    return out_flat.reshape(B, D, H, Wp)[..., :W]


def aspp_ref(x, params):
    """Pure-JAX reference implementing the literal (unfused) PyTorch forward."""
    def conv(inp, w, b, dilation, padding):
        out = jax.lax.conv_general_dilated(
            inp, w, window_strides=(1, 1),
            padding=((padding, padding), (padding, padding)),
            rhs_dilation=(dilation, dilation),
            dimension_numbers=("NCHW", "OIHW", "NCHW"),
            precision=jax.lax.Precision.HIGHEST)
        return out + b[None, :, None, None]

    ys = [conv(x, params["w1"], params["b1"], 1, 0)]
    for d in DILATIONS:
        ys.append(conv(x, params[f"w{d}"], params[f"b{d}"], d, d))
    cat = jnp.concatenate(ys, axis=1)
    return conv(cat, params["wout"], params["bout"], 1, 0)


if __name__ == "__main__":
    # Small shapes consistent with the module: in_channel->8, depth->16, and a
    # 32x32 image so even the dilation-16 taps see real pixels and the
    # flattened spatial axis stays lane-friendly.
    B, Cin, D, H, W = 2, 8, 16, 32, 32

    key = jax.random.PRNGKey(0)
    ks = jax.random.split(key, 13)

    def rnd(k, shape, scale):
        return jax.random.normal(k, shape, dtype=jnp.float32) * scale

    params = {
        "w1":  rnd(ks[0], (D, Cin, 1, 1), 0.30), "b1":  rnd(ks[1], (D,), 0.10),
        "w2":  rnd(ks[2], (D, Cin, 3, 3), 0.15), "b2":  rnd(ks[3], (D,), 0.10),
        "w4":  rnd(ks[4], (D, Cin, 3, 3), 0.15), "b4":  rnd(ks[5], (D,), 0.10),
        "w8":  rnd(ks[6], (D, Cin, 3, 3), 0.15), "b8":  rnd(ks[7], (D,), 0.10),
        "w16": rnd(ks[8], (D, Cin, 3, 3), 0.15), "b16": rnd(ks[9], (D,), 0.10),
        "wout": rnd(ks[10], (D, 5 * D, 1, 1), 0.10), "bout": rnd(ks[11], (D,), 0.10),
    }
    x = jax.random.normal(ks[12], (B, Cin, H, W), dtype=jnp.float32)

    out = jax.block_until_ready(aspp_forward(x, params))
    ref = aspp_ref(x, params)

    assert out.shape == (B, D, H, W), out.shape
    # Tolerance leaves headroom for MXU reduced-precision f32 passes vs the
    # HIGHEST-precision XLA reference.
    assert jnp.allclose(out, ref, atol=1e-2, rtol=1e-2), (
        "max abs err = %f" % float(jnp.max(jnp.abs(out - ref))))
    print("KERNEL_OK")
</pallas_src>

<mosaic_0001>
module attributes {stable_mosaic.version = 11 : i64} {
  func.func @_aspp_kernel(%arg0: i32, %arg1: memref<1x8x4096xf32, #tpu.memory_space<vmem>>, %arg2: memref<16x8xf32, #tpu.memory_space<vmem>>, %arg3: memref<4x16x72xf32, #tpu.memory_space<vmem>>, %arg4: memref<5x16x16xf32, #tpu.memory_space<vmem>>, %arg5: memref<5x16x1xf32, #tpu.memory_space<vmem>>, %arg6: memref<16x1xf32, #tpu.memory_space<vmem>>, %arg7: memref<1x16x2016xf32, #tpu.memory_space<vmem>>) attributes {dimension_semantics = [#tpu.dimension_semantics<parallel>], iteration_bounds = array<i64: 2>, scalar_prefetch = 0 : i64, scratch_operands = 0 : i64, tpu.core_type = #tpu.core_type<tc>, window_params = [{transform_indices = @transform_0, window_bounds = array<i64: 1, 8, 4096>}, {pipeline_mode = #tpu.pipeline_mode<synchronous>, transform_indices = @transform_1, window_bounds = array<i64: 16, 8>}, {pipeline_mode = #tpu.pipeline_mode<synchronous>, transform_indices = @transform_2, window_bounds = array<i64: 4, 16, 72>}, {pipeline_mode = #tpu.pipeline_mode<synchronous>, transform_indices = @transform_3, window_bounds = array<i64: 5, 16, 16>}, {pipeline_mode = #tpu.pipeline_mode<synchronous>, transform_indices = @transform_4, window_bounds = array<i64: 5, 16, 1>}, {pipeline_mode = #tpu.pipeline_mode<synchronous>, transform_indices = @transform_5, window_bounds = array<i64: 16, 1>}, {transform_indices = @transform_6, window_bounds = array<i64: 1, 16, 2016>}]} {
    %c0 = arith.constant 0 : index
    %c0_0 = arith.constant 0 : index
    %c0_1 = arith.constant 0 : index
    %0 = vector.load %arg1[%c0, %c0_0, %c0_1] : memref<1x8x4096xf32, #tpu.memory_space<vmem>>, vector<1x8x4096xf32>
    %1 = vector.shape_cast %0 : vector<1x8x4096xf32> to vector<8x4096xf32>
    %c0_2 = arith.constant 0 : index
    %c0_3 = arith.constant 0 : index
    %2 = vector.load %arg2[%c0_2, %c0_3] : memref<16x8xf32, #tpu.memory_space<vmem>>, vector<16x8xf32>
    %3 = vector.extract_strided_slice %1 {offsets = [0, 1040], sizes = [8, 2016], strides = [1, 1]} : vector<8x4096xf32> to vector<8x2016xf32>
    %cst = arith.constant dense<0.000000e+00> : vector<16x2016xf32>
    %4 = tpu.matmul %2, %3, %cst {dimension_numbers = #tpu.dot_dimension_numbers<[1], [0], [0], [1], [0, 0, 1, 1], [], []>} : vector<16x8xf32>, vector<8x2016xf32>, vector<16x2016xf32> -> vector<16x2016xf32>
    %c0_4 = arith.constant 0 : index
    %c0_5 = arith.constant 0 : index
    %c0_6 = arith.constant 0 : index
    %5 = vector.load %arg5[%c0_4, %c0_5, %c0_6] : memref<5x16x1xf32, #tpu.memory_space<vmem>>, vector<1x16x1xf32>
    %6 = vector.shape_cast %5 : vector<1x16x1xf32> to vector<16x1xf32>
    %7 = vector.broadcast %6 : vector<16x1xf32> to vector<16x2016xf32>
    %8 = arith.addf %4, %7 : vector<16x2016xf32>
    %c0_7 = arith.constant 0 : index
    %c0_8 = arith.constant 0 : index
    %c0_9 = arith.constant 0 : index
    %9 = vector.load %arg4[%c0_7, %c0_8, %c0_9] : memref<5x16x16xf32, #tpu.memory_space<vmem>>, vector<1x16x16xf32>
    %10 = vector.shape_cast %9 : vector<1x16x16xf32> to vector<16x16xf32>
    %cst_10 = arith.constant dense<0.000000e+00> : vector<16x2016xf32>
    %11 = tpu.matmul %10, %8, %cst_10 {dimension_numbers = #tpu.dot_dimension_numbers<[1], [0], [0], [1], [0, 0, 1, 1], [], []>} : vector<16x16xf32>, vector<16x2016xf32>, vector<16x2016xf32> -> vector<16x2016xf32>
    %12 = vector.extract_strided_slice %1 {offsets = [0, 910], sizes = [8, 2016], strides = [1, 1]} : vector<8x4096xf32> to vector<8x2016xf32>
    %13 = vector.extract_strided_slice %1 {offsets = [0, 912], sizes = [8, 2016], strides = [1, 1]} : vector<8x4096xf32> to vector<8x2016xf32>
    %14 = vector.extract_strided_slice %1 {offsets = [0, 914], sizes = [8, 2016], strides = [1, 1]} : vector<8x4096xf32> to vector<8x2016xf32>
    %15 = vector.extract_strided_slice %1 {offsets = [0, 1038], sizes = [8, 2016], strides = [1, 1]} : vector<8x4096xf32> to vector<8x2016xf32>
    %16 = vector.extract_strided_slice %1 {offsets = [0, 1040], sizes = [8, 2016], strides = [1, 1]} : vector<8x4096xf32> to vector<8x2016xf32>
    %17 = vector.extract_strided_slice %1 {offsets = [0, 1042], sizes = [8, 2016], strides = [1, 1]} : vector<8x4096xf32> to vector<8x2016xf32>
    %18 = vector.extract_strided_slice %1 {offsets = [0, 1166], sizes = [8, 2016], strides = [1, 1]} : vector<8x4096xf32> to vector<8x2016xf32>
    %19 = vector.extract_strided_slice %1 {offsets = [0, 1168], sizes = [8, 2016], strides = [1, 1]} : vector<8x4096xf32> to vector<8x2016xf32>
    %20 = vector.extract_strided_slice %1 {offsets = [0, 1170], sizes = [8, 2016], strides = [1, 1]} : vector<8x4096xf32> to vector<8x2016xf32>
    %21 = tpu.concatenate %12, %13, %14, %15, %16, %17, %18, %19, %20 in 0 : vector<8x2016xf32>, vector<8x2016xf32>, vector<8x2016xf32>, vector<8x2016xf32>, vector<8x2016xf32>, vector<8x2016xf32>, vector<8x2016xf32>, vector<8x2016xf32>, vector<8x2016xf32> -> vector<72x2016xf32>
    %c0_11 = arith.constant 0 : index
    %c0_12 = arith.constant 0 : index
    %c0_13 = arith.constant 0 : index
    %22 = vector.load %arg3[%c0_11, %c0_12, %c0_13] : memref<4x16x72xf32, #tpu.memory_space<vmem>>, vector<1x16x72xf32>
    %23 = vector.shape_cast %22 : vector<1x16x72xf32> to vector<16x72xf32>
    %cst_14 = arith.constant dense<0.000000e+00> : vector<16x2016xf32>
    %24 = tpu.matmul %23, %21, %cst_14 {dimension_numbers = #tpu.dot_dimension_numbers<[1], [0], [0], [1], [0, 0, 1, 1], [], []>} : vector<16x72xf32>, vector<72x2016xf32>, vector<16x2016xf32> -> vector<16x2016xf32>
    %c1 = arith.constant 1 : index
    %c0_15 = arith.constant 0 : index
    %c0_16 = arith.constant 0 : index
    %25 = vector.load %arg5[%c1, %c0_15, %c0_16] : memref<5x16x1xf32, #tpu.memory_space<vmem>>, vector<1x16x1xf32>
    %26 = vector.shape_cast %25 : vector<1x16x1xf32> to vector<16x1xf32>
    %27 = vector.broadcast %26 : vector<16x1xf32> to vector<16x2016xf32>
    %28 = arith.addf %24, %27 : vector<16x2016xf32>
    %c1_17 = arith.constant 1 : index
    %c0_18 = arith.constant 0 : index
    %c0_19 = arith.constant 0 : index
    %29 = vector.load %arg4[%c1_17, %c0_18, %c0_19] : memref<5x16x16xf32, #tpu.memory_space<vmem>>, vector<1x16x16xf32>
    %30 = vector.shape_cast %29 : vector<1x16x16xf32> to vector<16x16xf32>
    %cst_20 = arith.constant dense<0.000000e+00> : vector<16x2016xf32>
    %31 = tpu.matmul %30, %28, %cst_20 {dimension_numbers = #tpu.dot_dimension_numbers<[1], [0], [0], [1], [0, 0, 1, 1], [], []>} : vector<16x16xf32>, vector<16x2016xf32>, vector<16x2016xf32> -> vector<16x2016xf32>
    %32 = arith.addf %11, %31 : vector<16x2016xf32>
    %33 = vector.extract_strided_slice %1 {offsets = [0, 780], sizes = [8, 2016], strides = [1, 1]} : vector<8x4096xf32> to vector<8x2016xf32>
    %34 = vector.extract_strided_slice %1 {offsets = [0, 784], sizes = [8, 2016], strides = [1, 1]} : vector<8x4096xf32> to vector<8x2016xf32>
    %35 = vector.extract_strided_slice %1 {offsets = [0, 788], sizes = [8, 2016], strides = [1, 1]} : vector<8x4096xf32> to vector<8x2016xf32>
    %36 = vector.extract_strided_slice %1 {offsets = [0, 1036], sizes = [8, 2016], strides = [1, 1]} : vector<8x4096xf32> to vector<8x2016xf32>
    %37 = vector.extract_strided_slice %1 {offsets = [0, 1040], sizes = [8, 2016], strides = [1, 1]} : vector<8x4096xf32> to vector<8x2016xf32>
    %38 = vector.extract_strided_slice %1 {offsets = [0, 1044], sizes = [8, 2016], strides = [1, 1]} : vector<8x4096xf32> to vector<8x2016xf32>
    %39 = vector.extract_strided_slice %1 {offsets = [0, 1292], sizes = [8, 2016], strides = [1, 1]} : vector<8x4096xf32> to vector<8x2016xf32>
    %40 = vector.extract_strided_slice %1 {offsets = [0, 1296], sizes = [8, 2016], strides = [1, 1]} : vector<8x4096xf32> to vector<8x2016xf32>
    %41 = vector.extract_strided_slice %1 {offsets = [0, 1300], sizes = [8, 2016], strides = [1, 1]} : vector<8x4096xf32> to vector<8x2016xf32>
    %42 = tpu.concatenate %33, %34, %35, %36, %37, %38, %39, %40, %41 in 0 : vector<8x2016xf32>, vector<8x2016xf32>, vector<8x2016xf32>, vector<8x2016xf32>, vector<8x2016xf32>, vector<8x2016xf32>, vector<8x2016xf32>, vector<8x2016xf32>, vector<8x2016xf32> -> vector<72x2016xf32>
    %c1_21 = arith.constant 1 : index
    %c0_22 = arith.constant 0 : index
    %c0_23 = arith.constant 0 : index
    %43 = vector.load %arg3[%c1_21, %c0_22, %c0_23] : memref<4x16x72xf32, #tpu.memory_space<vmem>>, vector<1x16x72xf32>
    %44 = vector.shape_cast %43 : vector<1x16x72xf32> to vector<16x72xf32>
    %cst_24 = arith.constant dense<0.000000e+00> : vector<16x2016xf32>
    %45 = tpu.matmul %44, %42, %cst_24 {dimension_numbers = #tpu.dot_dimension_numbers<[1], [0], [0], [1], [0, 0, 1, 1], [], []>} : vector<16x72xf32>, vector<72x2016xf32>, vector<16x2016xf32> -> vector<16x2016xf32>
    %c2 = arith.constant 2 : index
    %c0_25 = arith.constant 0 : index
    %c0_26 = arith.constant 0 : index
    %46 = vector.load %arg5[%c2, %c0_25, %c0_26] : memref<5x16x1xf32, #tpu.memory_space<vmem>>, vector<1x16x1xf32>
    %47 = vector.shape_cast %46 : vector<1x16x1xf32> to vector<16x1xf32>
    %48 = vector.broadcast %47 : vector<16x1xf32> to vector<16x2016xf32>
    %49 = arith.addf %45, %48 : vector<16x2016xf32>
    %c2_27 = arith.constant 2 : index
    %c0_28 = arith.constant 0 : index
    %c0_29 = arith.constant 0 : index
    %50 = vector.load %arg4[%c2_27, %c0_28, %c0_29] : memref<5x16x16xf32, #tpu.memory_space<vmem>>, vector<1x16x16xf32>
    %51 = vector.shape_cast %50 : vector<1x16x16xf32> to vector<16x16xf32>
    %cst_30 = arith.constant dense<0.000000e+00> : vector<16x2016xf32>
    %52 = tpu.matmul %51, %49, %cst_30 {dimension_numbers = #tpu.dot_dimension_numbers<[1], [0], [0], [1], [0, 0, 1, 1], [], []>} : vector<16x16xf32>, vector<16x2016xf32>, vector<16x2016xf32> -> vector<16x2016xf32>
    %53 = arith.addf %32, %52 : vector<16x2016xf32>
    %54 = vector.extract_strided_slice %1 {offsets = [0, 520], sizes = [8, 2016], strides = [1, 1]} : vector<8x4096xf32> to vector<8x2016xf32>
    %55 = vector.extract_strided_slice %1 {offsets = [0, 528], sizes = [8, 2016], strides = [1, 1]} : vector<8x4096xf32> to vector<8x2016xf32>
    %56 = vector.extract_strided_slice %1 {offsets = [0, 536], sizes = [8, 2016], strides = [1, 1]} : vector<8x4096xf32> to vector<8x2016xf32>
    %57 = vector.extract_strided_slice %1 {offsets = [0, 1032], sizes = [8, 2016], strides = [1, 1]} : vector<8x4096xf32> to vector<8x2016xf32>
    %58 = vector.extract_strided_slice %1 {offsets = [0, 1040], sizes = [8, 2016], strides = [1, 1]} : vector<8x4096xf32> to vector<8x2016xf32>
    %59 = vector.extract_strided_slice %1 {offsets = [0, 1048], sizes = [8, 2016], strides = [1, 1]} : vector<8x4096xf32> to vector<8x2016xf32>
    %60 = vector.extract_strided_slice %1 {offsets = [0, 1544], sizes = [8, 2016], strides = [1, 1]} : vector<8x4096xf32> to vector<8x2016xf32>
    %61 = vector.extract_strided_slice %1 {offsets = [0, 1552], sizes = [8, 2016], strides = [1, 1]} : vector<8x4096xf32> to vector<8x2016xf32>
    %62 = vector.extract_strided_slice %1 {offsets = [0, 1560], sizes = [8, 2016], strides = [1, 1]} : vector<8x4096xf32> to vector<8x2016xf32>
    %63 = tpu.concatenate %54, %55, %56, %57, %58, %59, %60, %61, %62 in 0 : vector<8x2016xf32>, vector<8x2016xf32>, vector<8x2016xf32>, vector<8x2016xf32>, vector<8x2016xf32>, vector<8x2016xf32>, vector<8x2016xf32>, vector<8x2016xf32>, vector<8x2016xf32> -> vector<72x2016xf32>
    %c2_31 = arith.constant 2 : index
    %c0_32 = arith.constant 0 : index
    %c0_33 = arith.constant 0 : index
    %64 = vector.load %arg3[%c2_31, %c0_32, %c0_33] : memref<4x16x72xf32, #tpu.memory_space<vmem>>, vector<1x16x72xf32>
    %65 = vector.shape_cast %64 : vector<1x16x72xf32> to vector<16x72xf32>
    %cst_34 = arith.constant dense<0.000000e+00> : vector<16x2016xf32>
    %66 = tpu.matmul %65, %63, %cst_34 {dimension_numbers = #tpu.dot_dimension_numbers<[1], [0], [0], [1], [0, 0, 1, 1], [], []>} : vector<16x72xf32>, vector<72x2016xf32>, vector<16x2016xf32> -> vector<16x2016xf32>
    %c3 = arith.constant 3 : index
    %c0_35 = arith.constant 0 : index
    %c0_36 = arith.constant 0 : index
    %67 = vector.load %arg5[%c3, %c0_35, %c0_36] : memref<5x16x1xf32, #tpu.memory_space<vmem>>, vector<1x16x1xf32>
    %68 = vector.shape_cast %67 : vector<1x16x1xf32> to vector<16x1xf32>
    %69 = vector.broadcast %68 : vector<16x1xf32> to vector<16x2016xf32>
    %70 = arith.addf %66, %69 : vector<16x2016xf32>
    %c3_37 = arith.constant 3 : index
    %c0_38 = arith.constant 0 : index
    %c0_39 = arith.constant 0 : index
    %71 = vector.load %arg4[%c3_37, %c0_38, %c0_39] : memref<5x16x16xf32, #tpu.memory_space<vmem>>, vector<1x16x16xf32>
    %72 = vector.shape_cast %71 : vector<1x16x16xf32> to vector<16x16xf32>
    %cst_40 = arith.constant dense<0.000000e+00> : vector<16x2016xf32>
    %73 = tpu.matmul %72, %70, %cst_40 {dimension_numbers = #tpu.dot_dimension_numbers<[1], [0], [0], [1], [0, 0, 1, 1], [], []>} : vector<16x16xf32>, vector<16x2016xf32>, vector<16x2016xf32> -> vector<16x2016xf32>
    %74 = arith.addf %53, %73 : vector<16x2016xf32>
    %75 = vector.extract_strided_slice %1 {offsets = [0, 0], sizes = [8, 2016], strides = [1, 1]} : vector<8x4096xf32> to vector<8x2016xf32>
    %76 = vector.extract_strided_slice %1 {offsets = [0, 16], sizes = [8, 2016], strides = [1, 1]} : vector<8x4096xf32> to vector<8x2016xf32>
    %77 = vector.extract_strided_slice %1 {offsets = [0, 32], sizes = [8, 2016], strides = [1, 1]} : vector<8x4096xf32> to vector<8x2016xf32>
    %78 = vector.extract_strided_slice %1 {offsets = [0, 1024], sizes = [8, 2016], strides = [1, 1]} : vector<8x4096xf32> to vector<8x2016xf32>
    %79 = vector.extract_strided_slice %1 {offsets = [0, 1040], sizes = [8, 2016], strides = [1, 1]} : vector<8x4096xf32> to vector<8x2016xf32>
    %80 = vector.extract_strided_slice %1 {offsets = [0, 1056], sizes = [8, 2016], strides = [1, 1]} : vector<8x4096xf32> to vector<8x2016xf32>
    %81 = vector.extract_strided_slice %1 {offsets = [0, 2048], sizes = [8, 2016], strides = [1, 1]} : vector<8x4096xf32> to vector<8x2016xf32>
    %82 = vector.extract_strided_slice %1 {offsets = [0, 2064], sizes = [8, 2016], strides = [1, 1]} : vector<8x4096xf32> to vector<8x2016xf32>
    %83 = vector.extract_strided_slice %1 {offsets = [0, 2080], sizes = [8, 2016], strides = [1, 1]} : vector<8x4096xf32> to vector<8x2016xf32>
    %84 = tpu.concatenate %75, %76, %77, %78, %79, %80, %81, %82, %83 in 0 : vector<8x2016xf32>, vector<8x2016xf32>, vector<8x2016xf32>, vector<8x2016xf32>, vector<8x2016xf32>, vector<8x2016xf32>, vector<8x2016xf32>, vector<8x2016xf32>, vector<8x2016xf32> -> vector<72x2016xf32>
    %c3_41 = arith.constant 3 : index
    %c0_42 = arith.constant 0 : index
    %c0_43 = arith.constant 0 : index
    %85 = vector.load %arg3[%c3_41, %c0_42, %c0_43] : memref<4x16x72xf32, #tpu.memory_space<vmem>>, vector<1x16x72xf32>
    %86 = vector.shape_cast %85 : vector<1x16x72xf32> to vector<16x72xf32>
    %cst_44 = arith.constant dense<0.000000e+00> : vector<16x2016xf32>
    %87 = tpu.matmul %86, %84, %cst_44 {dimension_numbers = #tpu.dot_dimension_numbers<[1], [0], [0], [1], [0, 0, 1, 1], [], []>} : vector<16x72xf32>, vector<72x2016xf32>, vector<16x2016xf32> -> vector<16x2016xf32>
    %c4 = arith.constant 4 : index
    %c0_45 = arith.constant 0 : index
    %c0_46 = arith.constant 0 : index
    %88 = vector.load %arg5[%c4, %c0_45, %c0_46] : memref<5x16x1xf32, #tpu.memory_space<vmem>>, vector<1x16x1xf32>
    %89 = vector.shape_cast %88 : vector<1x16x1xf32> to vector<16x1xf32>
    %90 = vector.broadcast %89 : vector<16x1xf32> to vector<16x2016xf32>
    %91 = arith.addf %87, %90 : vector<16x2016xf32>
    %c4_47 = arith.constant 4 : index
    %c0_48 = arith.constant 0 : index
    %c0_49 = arith.constant 0 : index
    %92 = vector.load %arg4[%c4_47, %c0_48, %c0_49] : memref<5x16x16xf32, #tpu.memory_space<vmem>>, vector<1x16x16xf32>
    %93 = vector.shape_cast %92 : vector<1x16x16xf32> to vector<16x16xf32>
    %cst_50 = arith.constant dense<0.000000e+00> : vector<16x2016xf32>
    %94 = tpu.matmul %93, %91, %cst_50 {dimension_numbers = #tpu.dot_dimension_numbers<[1], [0], [0], [1], [0, 0, 1, 1], [], []>} : vector<16x16xf32>, vector<16x2016xf32>, vector<16x2016xf32> -> vector<16x2016xf32>
    %95 = arith.addf %74, %94 : vector<16x2016xf32>
    %c0_51 = arith.constant 0 : index
    %c0_52 = arith.constant 0 : index
    %96 = vector.load %arg6[%c0_51, %c0_52] : memref<16x1xf32, #tpu.memory_space<vmem>>, vector<16x1xf32>
    %97 = vector.broadcast %96 : vector<16x1xf32> to vector<16x2016xf32>
    %98 = arith.addf %95, %97 : vector<16x2016xf32>
    %c0_53 = arith.constant 0 : index
    %c0_54 = arith.constant 0 : index
    %c0_55 = arith.constant 0 : index
    %99 = vector.load %arg7[%c0_53, %c0_54, %c0_55] : memref<1x16x2016xf32, #tpu.memory_space<vmem>>, vector<1x16x2016xf32>
    %100 = vector.shape_cast %99 : vector<1x16x2016xf32> to vector<16x2016xf32>
    %101 = vector.shape_cast %98 : vector<16x2016xf32> to vector<1x16x2016xf32>
    tpu.vector_store %arg7[%c0_53, %c0_54, %c0_55], %101 {strides = array<i32>} : memref<1x16x2016xf32, #tpu.memory_space<vmem>>, vector<1x16x2016xf32>,
    return
  }
  func.func @transform_0(%arg0: i32) -> (i32, i32, i32) {
    %c0_i32 = arith.constant 0 : i32
    %c0_i32_0 = arith.constant 0 : i32
    %c0_i32_1 = arith.constant 0 : i32
    return %arg0, %c0_i32, %c0_i32_0 : i32, i32, i32
  }
  func.func @transform_1(%arg0: i32) -> (i32, i32) {
    %c0_i32 = arith.constant 0 : i32
    %c0_i32_0 = arith.constant 0 : i32
    %c0_i32_1 = arith.constant 0 : i32
    return %c0_i32, %c0_i32_0 : i32, i32
  }
  func.func @transform_2(%arg0: i32) -> (i32, i32, i32) {
    %c0_i32 = arith.constant 0 : i32
    %c0_i32_0 = arith.constant 0 : i32
    %c0_i32_1 = arith.constant 0 : i32
    %c0_i32_2 = arith.constant 0 : i32
    return %c0_i32, %c0_i32_0, %c0_i32_1 : i32, i32, i32
  }
  func.func @transform_3(%arg0: i32) -> (i32, i32, i32) {
    %c0_i32 = arith.constant 0 : i32
    %c0_i32_0 = arith.constant 0 : i32
    %c0_i32_1 = arith.constant 0 : i32
    %c0_i32_2 = arith.constant 0 : i32
    return %c0_i32, %c0_i32_0, %c0_i32_1 : i32, i32, i32
  }
  func.func @transform_4(%arg0: i32) -> (i32, i32, i32) {
    %c0_i32 = arith.constant 0 : i32
    %c0_i32_0 = arith.constant 0 : i32
    %c0_i32_1 = arith.constant 0 : i32
    %c0_i32_2 = arith.constant 0 : i32
    return %c0_i32, %c0_i32_0, %c0_i32_1 : i32, i32, i32
  }
  func.func @transform_5(%arg0: i32) -> (i32, i32) {
    %c0_i32 = arith.constant 0 : i32
    %c0_i32_0 = arith.constant 0 : i32
    %c0_i32_1 = arith.constant 0 : i32
    return %c0_i32, %c0_i32_0 : i32, i32
  }
  func.func @transform_6(%arg0: i32) -> (i32, i32, i32) {
    %c0_i32 = arith.constant 0 : i32
    %c0_i32_0 = arith.constant 0 : i32
    %c0_i32_1 = arith.constant 0 : i32
    return %arg0, %c0_i32, %c0_i32_0 : i32, i32, i32
  }
}

</mosaic_0001>

<llo_original>
// kernel: tpu_custom_call.1
$region0: #{tpu_custom_call.1}
  #allocation0 [shape = 'u32[]', space=smem, size = 0x4, offset = 0x4, fixed_abs, tag = 'smem constant byte address 0x4 - core index']
  #allocation1 [shape = 'u32[144,128]{1,0:T(1,128)}', space=vmem, size = 0x12000, scoped, tag = 'internal scratch']
  %s0 = inlined_call_operand.hbm [shape: f32[2,8,4096], index: 0, kind: input, shape index: {}]
  %s1 = inlined_call_operand.vmem [shape: f32[16,8], index: 1, kind: input, shape index: {}]
  %s2 = inlined_call_operand.hbm [shape: f32[4,16,72], index: 2, kind: input, shape index: {}]
  %s3 = inlined_call_operand.vmem [shape: f32[5,16,16], index: 3, kind: input, shape index: {}]
  %s4 = inlined_call_operand.vmem [shape: f32[5,16,1], index: 4, kind: input, shape index: {}]
  %s5 = inlined_call_operand.vmem [shape: f32[16,1], index: 5, kind: input, shape index: {}]
  %s6 = inlined_call_operand.hbm [shape: f32[2,16,2016], index: 6, kind: output, shape index: {}]
  %s7 = sld [smem:[#allocation0]]
  $region65: #{tpu_custom_call.1} parent=0
    _
  %s9 = ssub.s32 1, %s7
  %s10 = scalar_select 0, %s9, %s7
  $region1: #{tpu_custom_call.1} parent=0
    #allocation2 [shape = 'u8[262144]{0}', space=vmem, size = 0x40000, scoped, tag = 'input window, operand 0']
    #allocation3 [shape = 's32[2]{0}', space=sflag, size = 0x8, scoped, tag = 'scoped memory for tpu_custom_call.1']
    #allocation4 [shape = 's32[2]{0}', space=sflag, size = 0x8, scoped, tag = 'scoped memory for tpu_custom_call.1']
    #allocation5 [shape = 'u8[32768]{0}', space=vmem, size = 0x8000, scoped, tag = 'input window, operand 2, single buffered']
    #allocation6 [shape = 's32[1]{0}', space=sflag, size = 0x4, scoped, tag = 'scoped memory for tpu_custom_call.1']
    #allocation7 [shape = 'u8[262144]{0}', space=vmem, size = 0x40000, scoped, tag = 'output window, operand 0']
    %11 = vsyncpa [#allocation3], 0
    %s12 = scalar_lea.sflag [#allocation3], 1
    %13 = vsyncpa %s12, 0
    %14 = vsyncpa [#allocation6], 0
    %15 = vsyncpa [#allocation4], 0
    %s16 = scalar_lea.sflag [#allocation4], 1
    %17 = vsyncpa %s16, 0
    loop: start=0, step=1, limit=4
    $region2: #{tpu_custom_call.1} parent=1 // loop_pre_header
      _
    $region3: #{tpu_custom_call.1} parent=1 // loop_header
      %s19 = sphi 0, %s23
      %p20 = scmp.ge.s32.totalorder %s19, 4
      %s29 = sphi 0, %s31
      %s32 = sphi 0, %s29
      %s33 = sphi 0, %s32
      %s49 = sphi 0, %s33
      %s53 = sphi 0, %s53
      %s55 = sphi 0, %s53
      %s56 = sphi 0, %s55
      %s70 = sphi 0, %s56
      %s74 = sphi 0, %s74
      %s76 = sphi 0, %s74
      %s77 = sphi 0, %s76
      %s91 = sphi 0, %s77
      %s95 = sphi 0, %s95
      %s97 = sphi 0, %s95
      %s98 = sphi 0, %s97
      %s112 = sphi 0, %s98
      %s116 = sphi 0, %s116
      %s118 = sphi 0, %s116
      %s119 = sphi 0, %s118
      %s133 = sphi 0, %s119
      %s137 = sphi 0, %s137
      %s139 = sphi 0, %s137
      %s140 = sphi 0, %s139
      %s154 = sphi 0, %s140
      %s160 = sphi 0, %s162
      %s163 = sphi 0, %s160
      %s164 = sphi 0, %s163
      %s180 = sphi 0, %s164
    $region4: #{tpu_custom_call.1} parent=1 // loop_header_branch
      %22 = sbr.rel (%p20) target = $region8
    $region5: #{tpu_custom_call.1} parent=1 // loop_body
      %s24 = ssub.s32 %s19, 1
      %s25 = ssub.s32 %s19, 2
      %s26 = sadd.s32 %s19, 1
      %s27 = ssub.s32 %s19, %s26
      %p28 = scmp.eq.s32.totalorder %s27, 0
      %s30 = sadd.s32 %s29, 1
      %s31 = scalar_select %p28, %s29, %s30
      %p34 = pneg %p28
      %p35 = scmp.eq.s32.totalorder %s19, 1
      %p36 = por %p34, %p35
      %p37 = scmp.ne.s32.totalorder %s29, %s32
      %p38 = scmp.eq.s32.totalorder %s19, 0
      %p39 = por %p37, %p38
      %p40 = scmp.ne.s32.totalorder %s29, %s32
      %p41 = scmp.eq.s32.totalorder %s24, 1
      %p42 = por %p40, %p41
      %p43 = scmp.ne.s32.totalorder %s32, %s33
      %p44 = scmp.eq.s32.totalorder %s24, 0
      %p45 = por %p43, %p44
      %p46 = scmp.ne.s32.totalorder %s32, %s33
      %p47 = scmp.eq.s32.totalorder %s25, 1
      %p48 = por %p46, %p47
      %p50 = scmp.ne.s32.totalorder %s33, %s49
      %p51 = scmp.eq.s32.totalorder %s25, 0
      %p52 = por %p50, %p51
      %s54 = sadd.s32 %s53, 1
      %p57 = scmp.eq.s32.totalorder %s19, 1
      %p58 = scmp.ne.s32.totalorder %s53, %s55
      %p59 = scmp.eq.s32.totalorder %s19, 0
      %p60 = por %p58, %p59
      %p61 = scmp.ne.s32.totalorder %s53, %s55
      %p62 = scmp.eq.s32.totalorder %s24, 1
      %p63 = por %p61, %p62
      %p64 = scmp.ne.s32.totalorder %s55, %s56
      %p65 = scmp.eq.s32.totalorder %s24, 0
      %p66 = por %p64, %p65
      %p67 = scmp.ne.s32.totalorder %s55, %s56
      %p68 = scmp.eq.s32.totalorder %s25, 1
      %p69 = por %p67, %p68
      %p71 = scmp.ne.s32.totalorder %s56, %s70
      %p72 = scmp.eq.s32.totalorder %s25, 0
      %p73 = por %p71, %p72
      %s75 = sadd.s32 %s74, 1
      %p78 = scmp.eq.s32.totalorder %s19, 1
      %p79 = scmp.ne.s32.totalorder %s74, %s76
      %p80 = scmp.eq.s32.totalorder %s19, 0
      %p81 = por %p79, %p80
      %p82 = scmp.ne.s32.totalorder %s74, %s76
      %p83 = scmp.eq.s32.totalorder %s24, 1
      %p84 = por %p82, %p83
      %p85 = scmp.ne.s32.totalorder %s76, %s77
      %p86 = scmp.eq.s32.totalorder %s24, 0
      %p87 = por %p85, %p86
      %p88 = scmp.ne.s32.totalorder %s76, %s77
      %p89 = scmp.eq.s32.totalorder %s25, 1
      %p90 = por %p88, %p89
      %p92 = scmp.ne.s32.totalorder %s77, %s91
      %p93 = scmp.eq.s32.totalorder %s25, 0
      %p94 = por %p92, %p93
      %s96 = sadd.s32 %s95, 1
      %p99 = scmp.eq.s32.totalorder %s19, 1
      %p100 = scmp.ne.s32.totalorder %s95, %s97
      %p101 = scmp.eq.s32.totalorder %s19, 0
      %p102 = por %p100, %p101
      %p103 = scmp.ne.s32.totalorder %s95, %s97
      %p104 = scmp.eq.s32.totalorder %s24, 1
      %p105 = por %p103, %p104
      %p106 = scmp.ne.s32.totalorder %s97, %s98
      %p107 = scmp.eq.s32.totalorder %s24, 0
      %p108 = por %p106, %p107
      %p109 = scmp.ne.s32.totalorder %s97, %s98
      %p110 = scmp.eq.s32.totalorder %s25, 1
      %p111 = por %p109, %p110
      %p113 = scmp.ne.s32.totalorder %s98, %s112
      %p114 = scmp.eq.s32.totalorder %s25, 0
      %p115 = por %p113, %p114
      %s117 = sadd.s32 %s116, 1
      %p120 = scmp.eq.s32.totalorder %s19, 1
      %p121 = scmp.ne.s32.totalorder %s116, %s118
      %p122 = scmp.eq.s32.totalorder %s19, 0
      %p123 = por %p121, %p122
      %p124 = scmp.ne.s32.totalorder %s116, %s118
      %p125 = scmp.eq.s32.totalorder %s24, 1
      %p126 = por %p124, %p125
      %p127 = scmp.ne.s32.totalorder %s118, %s119
      %p128 = scmp.eq.s32.totalorder %s24, 0
      %p129 = por %p127, %p128
      %p130 = scmp.ne.s32.totalorder %s118, %s119
      %p131 = scmp.eq.s32.totalorder %s25, 1
      %p132 = por %p130, %p131
      %p134 = scmp.ne.s32.totalorder %s119, %s133
      %p135 = scmp.eq.s32.totalorder %s25, 0
      %p136 = por %p134, %p135
      %s138 = sadd.s32 %s137, 1
      %p141 = scmp.eq.s32.totalorder %s19, 1
      %p142 = scmp.ne.s32.totalorder %s137, %s139
      %p143 = scmp.eq.s32.totalorder %s19, 0
      %p144 = por %p142, %p143
      %p145 = scmp.ne.s32.totalorder %s137, %s139
      %p146 = scmp.eq.s32.totalorder %s24, 1
      %p147 = por %p145, %p146
      %p148 = scmp.ne.s32.totalorder %s139, %s140
      %p149 = scmp.eq.s32.totalorder %s24, 0
      %p150 = por %p148, %p149
      %p151 = scmp.ne.s32.totalorder %s139, %s140
      %p152 = scmp.eq.s32.totalorder %s25, 1
      %p153 = por %p151, %p152
      %p155 = scmp.ne.s32.totalorder %s140, %s154
      %p156 = scmp.eq.s32.totalorder %s25, 0
      %p157 = por %p155, %p156
      %s158 = ssub.s32 %s19, %s26
      %p159 = scmp.eq.s32.totalorder %s158, 0
      %s161 = sadd.s32 %s160, 1
      %s162 = scalar_select %p159, %s160, %s161
      %p165 = pneg %p159
      %p166 = scmp.eq.s32.totalorder %s19, 1
      %p167 = por %p165, %p166
      %p168 = scmp.ne.s32.totalorder %s160, %s163
      %p169 = scmp.eq.s32.totalorder %s19, 0
      %p170 = por %p168, %p169
      %p171 = scmp.ne.s32.totalorder %s160, %s163
      %p172 = scmp.eq.s32.totalorder %s24, 1
      %p173 = por %p171, %p172
      %p174 = scmp.ne.s32.totalorder %s163, %s164
      %p175 = scmp.eq.s32.totalorder %s24, 0
      %p176 = por %p174, %p175
      %p177 = scmp.ne.s32.totalorder %s163, %s164
      %p178 = scmp.eq.s32.totalorder %s25, 1
      %p179 = por %p177, %p178
      %p181 = scmp.ne.s32.totalorder %s164, %s180
      %p182 = scmp.eq.s32.totalorder %s25, 0
      %p183 = por %p181, %p182
      %p184 = scmp.le.s32.totalorder 1, %s19
      %p185 = scmp.lt.s32.totalorder %s19, 3
      %p186 = pnand %p184, %p185
      %p187 = pneg %p186
      // Predicated region
      $region9: #{tpu_custom_call.1} parent=5 // pred_check
        _
      $region10: #{tpu_custom_call.1} parent=5 // pred_check_branch
        %189 = sbr.rel (%p186) target = $region12
      $region11: #{tpu_custom_call.1} parent=5 // pred_region
        %s190 = ssub.s32 %s19, 1
        // Predicated region
        $region13: #{tpu_custom_call.1} parent=11 // pred_check
          %p191 = pneg %p66
        $region14: #{tpu_custom_call.1} parent=11 // pred_check_branch
          %193 = sbr.rel (%p191) target = $region16
        $region15: #{tpu_custom_call.1} parent=11 // pred_region
          _
        $region16: #{tpu_custom_call.1} parent=11 // pred_fallthru
          _
        // Predicated region
        $region17: #{tpu_custom_call.1} parent=11 // pred_check
          %p194 = pneg %p87
        $region18: #{tpu_custom_call.1} parent=11 // pred_check_branch
          %196 = sbr.rel (%p194) target = $region20
        $region19: #{tpu_custom_call.1} parent=11 // pred_region
          %s198 = ssub.s32 1024, 1024
          %199 = vsyncadd [#allocation6], %s198
          %s200 = sshll.u32 [#allocation5], 4
          %s201 = int_to_ptr.vmem [resolvable:$true] %s200
          %206 = dma.hbm_to_vmem [thread:$0]  %s2, 1024, %s201, [#allocation6], 128, 128, 8
        $region20: #{tpu_custom_call.1} parent=11 // pred_fallthru
          _
        // Predicated region
        $region21: #{tpu_custom_call.1} parent=11 // pred_check
          %p207 = pneg %p108
        $region22: #{tpu_custom_call.1} parent=11 // pred_check_branch
          %209 = sbr.rel (%p207) target = $region24
        $region23: #{tpu_custom_call.1} parent=11 // pred_region
          _
        $region24: #{tpu_custom_call.1} parent=11 // pred_fallthru
          _
        // Predicated region
        $region25: #{tpu_custom_call.1} parent=11 // pred_check
          %p210 = pneg %p129
        $region26: #{tpu_custom_call.1} parent=11 // pred_check_branch
          %212 = sbr.rel (%p210) target = $region28
        $region27: #{tpu_custom_call.1} parent=11 // pred_region
          _
        $region28: #{tpu_custom_call.1} parent=11 // pred_fallthru
          _
        // Predicated region
        $region29: #{tpu_custom_call.1} parent=11 // pred_check
          %p213 = pneg %p150
        $region30: #{tpu_custom_call.1} parent=11 // pred_check_branch
          %215 = sbr.rel (%p213) target = $region32
        $region31: #{tpu_custom_call.1} parent=11 // pred_region
          _
        $region32: #{tpu_custom_call.1} parent=11 // pred_fallthru
          _
      $region12: #{tpu_custom_call.1} parent=5 // pred_fallthru
        _
      %p216 = scmp.lt.s32.totalorder %s19, 2
      // Predicated region
      $region33: #{tpu_custom_call.1} parent=5 // pred_check
        %p217 = pneg %p216
      $region34: #{tpu_custom_call.1} parent=5 // pred_check_branch
        %219 = sbr.rel (%p217) target = $region36
      $region35: #{tpu_custom_call.1} parent=5 // pred_region
        // Predicated region
        $region37: #{tpu_custom_call.1} parent=35 // pred_check
          %p220 = pneg %p39
        $region38: #{tpu_custom_call.1} parent=35 // pred_check_branch
          %222 = sbr.rel (%p220) target = $region40
        $region39: #{tpu_custom_call.1} parent=35 // pred_region
          %s223 = sand.u32 %s29, 1
          %s224 = scalar_lea.sflag [#allocation3], %s223
          %s225 = sand.u32 %s29, 1
          %s226 = smul.addr %s225, 256
          %s227 = scalar_lea.vmem [#allocation2], %s226
          %s229 = ssub.s32 4096, 4096
          %230 = vsyncadd %s224, %s229
          %s231 = smul.addr %s19, 32
          %s232 = smul.addr %s231, 128
          %s233 = scalar_lea.hbm %s0, %s232
          %s235 = sshll.u32 %s227, 4
          %s236 = int_to_ptr.vmem [resolvable:$true] %s235
          %238 = dma.hbm_to_vmem [thread:$0]  %s233, 4096, %s236, %s224
        $region40: #{tpu_custom_call.1} parent=35 // pred_fallthru
          _
      $region36: #{tpu_custom_call.1} parent=5 // pred_fallthru
        _
      %p239 = scmp.le.s32.totalorder 1, %s19
      %p240 = scmp.lt.s32.totalorder %s19, 3
      %p241 = pnand %p239, %p240
      %p242 = pneg %p241
      // Predicated region
      $region41: #{tpu_custom_call.1} parent=5 // pred_check
        _
      $region42: #{tpu_custom_call.1} parent=5 // pred_check_branch
        %244 = sbr.rel (%p241) target = $region44
      $region43: #{tpu_custom_call.1} parent=5 // pred_region
        %s245 = ssub.s32 %s19, 1
        %s246 = sand.u32 %s32, 1
        %s247 = scalar_lea.sflag [#allocation3], %s246
        %s248 = sand.u32 %s32, 1
        %s249 = smul.addr %s248, 256
        %s250 = scalar_lea.vmem [#allocation2], %s249
        // Predicated region
        $region45: #{tpu_custom_call.1} parent=43 // pred_check
          %p251 = pneg %p45
        $region46: #{tpu_custom_call.1} parent=43 // pred_check_branch
          %253 = sbr.rel (%p251) target = $region48
        $region47: #{tpu_custom_call.1} parent=43 // pred_region
          %254 = dma.done %s247, 4096
        $region48: #{tpu_custom_call.1} parent=43 // pred_fallthru
          _
        // Predicated region
        $region49: #{tpu_custom_call.1} parent=43 // pred_check
          %p255 = pneg %p87
        $region50: #{tpu_custom_call.1} parent=43 // pred_check_branch
          %257 = sbr.rel (%p255) target = $region52
        $region51: #{tpu_custom_call.1} parent=43 // pred_region
          %258 = dma.done [#allocation6], 1024
        $region52: #{tpu_custom_call.1} parent=43 // pred_fallthru
          _
        %s259 = sand.u32 %s32, 1
        %s260 = scalar_lea.sflag [#allocation3], %s259
        %s261 = sand.u32 %s32, 1
        %s262 = smul.addr %s261, 256
        %s263 = scalar_lea.vmem [#allocation2], %s262
        %p264 = pneg %p45
        %p265 = pneg %p42
        %p266 = pneg %p66
        %p267 = pneg %p63
        %p268 = pneg %p87
        %p269 = pneg %p84
        %p270 = pneg %p108
        %p271 = pneg %p105
        %p272 = pneg %p129
        %p273 = pneg %p126
        %p274 = pneg %p150
        %p275 = pneg %p147
        %p276 = pneg %p176
        %p277 = pneg %p173
        %s278 = sand.u32 %s163, 1
        %s279 = scalar_lea.sflag [#allocation4], %s278
        %s280 = sand.u32 %s163, 1
        %s281 = smul.addr %s280, 256
        %s282 = scalar_lea.vmem [#allocation7], %s281
        %v283 = vld [vmem:[%s250] sm:$0xff]
        %v284 = vld [vmem:[%s250 + $0x8] sm:$0xff]
        %v285 = vld [vmem:[%s250 + $0x10] sm:$0xff]
        %v286 = vld [vmem:[%s250 + $0x18] sm:$0xff]
        %v287 = vld [vmem:[%s250 + $0x20] sm:$0xff]
        %v288 = vld [vmem:[%s250 + $0x28] sm:$0xff]
        %v289 = vld [vmem:[%s250 + $0x30] sm:$0xff]
        %v290 = vld [vmem:[%s250 + $0x38] sm:$0xff]
        %v291 = vld [vmem:[%s250 + $0x40] sm:$0xff]
        %v292 = vld [vmem:[%s250 + $0x48] sm:$0xff]
        %v293 = vld [vmem:[%s250 + $0x50] sm:$0xff]
        %v294 = vld [vmem:[%s250 + $0x58] sm:$0xff]
        %v295 = vld [vmem:[%s250 + $0x60] sm:$0xff]
        %v296 = vld [vmem:[%s250 + $0x68] sm:$0xff]
        %v297 = vld [vmem:[%s250 + $0x70] sm:$0xff]
        %v298 = vld [vmem:[%s250 + $0x78] sm:$0xff]
        %v299 = vld [vmem:[%s250 + $0x80] sm:$0xff]
        %v300 = vld [vmem:[%s250 + $0x88] sm:$0xff]
        %v301 = vld [vmem:[%s250 + $0x90] sm:$0xff]
        %v302 = vld [vmem:[%s250 + $0x98] sm:$0xff]
        %v303 = vld [vmem:[%s250 + $0xa0] sm:$0xff]
        %v304 = vld [vmem:[%s250 + $0xa8] sm:$0xff]
        %v305 = vld [vmem:[%s250 + $0xb0] sm:$0xff]
        %v306 = vld [vmem:[%s250 + $0xb8] sm:$0xff]
        %v307 = vld [vmem:[%s250 + $0xc0] sm:$0xff]
        %v308 = vld [vmem:[%s250 + $0xc8] sm:$0xff]
        %v309 = vld [vmem:[%s250 + $0xd0] sm:$0xff]
        %v310 = vld [vmem:[%s250 + $0xd8] sm:$0xff]
        %v311 = vld [vmem:[%s250 + $0xe0] sm:$0xff]
        %v312 = vld [vmem:[%s250 + $0xe8] sm:$0xff]
        %v313 = vld [vmem:[%s250 + $0xf0] sm:$0xff]
        %v314 = vld [vmem:[%s250 + $0xf8] sm:$0xff]
        %v315 = vld [vmem:[%s1] sm:$0xff]
        %v316 = vld [vmem:[%s1 + $0x8] sm:$0xff]
        %v317 = vld [vmem:[%s4] sm:$0xff]
        %v318 = vld [vmem:[%s4 + $0x8] sm:$0xff]
        %320 = vset.pattern.permute.xlu0 0
        %321 = vperm.xlu0 %320, %v317
        %v322 = vpop.permute.xlu0 %321
        %325 = vset.pattern.permute.xlu0 0
        %326 = vperm.xlu0 %325, %v318
        %v327 = vpop.permute.xlu0 %326
        %345 = vrot.lane.b32.xlu0 %v291, 112
        %v346 = vpop.permute.xlu0 %345
        %347 = vrot.lane.b32.xlu0 %v292, 112
        %v348 = vpop.permute.xlu0 %347
        %349 = vrot.lane.b32.xlu0 %v293, 112
        %v350 = vpop.permute.xlu0 %349
        %351 = vrot.lane.b32.xlu0 %v294, 112
        %v352 = vpop.permute.xlu0 %351
        %353 = vrot.lane.b32.xlu0 %v295, 112
        %v354 = vpop.permute.xlu0 %353
        %355 = vrot.lane.b32.xlu0 %v296, 112
        %v356 = vpop.permute.xlu0 %355
        %357 = vrot.lane.b32.xlu0 %v297, 112
        %v358 = vpop.permute.xlu0 %357
        %359 = vrot.lane.b32.xlu0 %v298, 112
        %v360 = vpop.permute.xlu0 %359
        %361 = vrot.lane.b32.xlu0 %v299, 112
        %v362 = vpop.permute.xlu0 %361
        %363 = vrot.lane.b32.xlu0 %v300, 112
        %v364 = vpop.permute.xlu0 %363
        %365 = vrot.lane.b32.xlu0 %v301, 112
        %v366 = vpop.permute.xlu0 %365
        %367 = vrot.lane.b32.xlu0 %v302, 112
        %v368 = vpop.permute.xlu0 %367
        %369 = vrot.lane.b32.xlu0 %v303, 112
        %v370 = vpop.permute.xlu0 %369
        %371 = vrot.lane.b32.xlu0 %v304, 112
        %v372 = vpop.permute.xlu0 %371
        %373 = vrot.lane.b32.xlu0 %v305, 112
        %v374 = vpop.permute.xlu0 %373
        %375 = vrot.lane.b32.xlu0 %v306, 112
        %v376 = vpop.permute.xlu0 %375
        %vm377 = vcmask 916480
        %v378 = vsel %vm377, %v346, %v348
        %v379 = vsel %vm377, %v348, %v350
        %v380 = vsel %vm377, %v350, %v352
        %v381 = vsel %vm377, %v352, %v354
        %v382 = vsel %vm377, %v354, %v356
        %v383 = vsel %vm377, %v356, %v358
        %v384 = vsel %vm377, %v358, %v360
        %v385 = vsel %vm377, %v360, %v362
        %v386 = vsel %vm377, %v362, %v364
        %v387 = vsel %vm377, %v364, %v366
        %v388 = vsel %vm377, %v366, %v368
        %v389 = vsel %vm377, %v368, %v370
        %v390 = vsel %vm377, %v370, %v372
        %v391 = vsel %vm377, %v372, %v374
        %v392 = vsel %vm377, %v374, %v376
        %vm409 = vcmask 64512
        %v411 = vsel %vm409, %v315, 0
        %v414 = vsel %vm409, %v316, 0
        %416 = vmatprep.subr.mxu0 %v379
        %417 = vmatpush1.msra.mxu0 %v378
        %418 = vmatprep.subr.mxu0 0.0
        %419 = vmatpush1.msra.mxu0 0.0
        %420 = vmatprep.subr.mxu0 0.0
        %421 = vmatpush1.msra.mxu0 0.0
        %422 = vmatprep.subr.mxu0 0.0
        %423 = vmatpush1.msra.mxu0 0.0
        %424 = vmatprep.subr.mxu0 0.0
        %425 = vmatpush1.msra.mxu0 0.0
        %426 = vmatprep.subr.mxu0 0.0
        %427 = vmatpush1.msra.mxu0 0.0
        %428 = vmatprep.subr.mxu0 0.0
        %429 = vmatpush1.msra.mxu0 0.0
        %430 = vmatprep.subr.mxu0 0.0
        %431 = vmatpush1.msra.mxu0 0.0
        %432 = vmatprep.subr.mxu0 0.0
        %433 = vmatpush1.msra.mxu0 0.0
        %434 = vmatprep.subr.mxu0 0.0
        %435 = vmatpush1.msra.mxu0 0.0
        %436 = vmatprep.subr.mxu0 0.0
        %437 = vmatpush1.msra.mxu0 0.0
        %438 = vmatprep.subr.mxu0 0.0
        %439 = vmatpush1.msra.mxu0 0.0
        %440 = vmatprep.subr.mxu0 0.0
        %441 = vmatpush1.msra.mxu0 0.0
        %442 = vmatprep.subr.mxu0 0.0
        %443 = vmatpush1.msra.mxu0 0.0
        %444 = vmatprep.subr.mxu0 0.0
        %445 = vmatpush1.msra.mxu0 0.0
        %446 = vmatprep.subr.mxu0 0.0
        %447 = vmatpush1.msra.mxu0 0.0
        %448 = vmatprep.subr.mxu0 0.0
        %449 = vmatpush1.msra.mxu0 0.0
        %450 = vmatprep.subr.mxu0 0.0
        %451 = vmatpush1.msra.mxu0 0.0
        %452 = vmatprep.subr.mxu0 0.0
        %453 = vmatpush1.msra.mxu0 0.0
        %454 = vmatprep.subr.mxu0 0.0
        %455 = vmatpush1.msra.mxu0 0.0
        %456 = vmatprep.subr.mxu0 0.0
        %457 = vmatpush1.msra.mxu0 0.0
        %458 = vmatprep.subr.mxu0 0.0
        %459 = vmatpush1.msra.mxu0 0.0
        %460 = vmatprep.subr.mxu0 0.0
        %461 = vmatpush1.msra.mxu0 0.0
        %462 = vmatprep.subr.mxu0 0.0
        %463 = vmatpush1.msra.mxu0 0.0
        %464 = vmatprep.subr.mxu0 0.0
        %465 = vmatpush1.msra.mxu0 0.0
        %466 = vmatprep.subr.mxu0 0.0
        %467 = vmatpush1.msra.mxu0 0.0
        %468 = vmatprep.subr.mxu0 0.0
        %469 = vmatpush1.msra.mxu0 0.0
        %470 = vmatprep.subr.mxu0 0.0
        %471 = vmatpush1.msra.mxu0 0.0
        %472 = vmatprep.subr.mxu0 0.0
        %473 = vmatpush1.msra.mxu0 0.0
        %474 = vmatprep.subr.mxu0 0.0
        %475 = vmatpush1.msra.mxu0 0.0
        %476 = vmatprep.subr.mxu0 0.0
        %477 = vmatpush1.msra.mxu0 0.0
        %478 = vmatprep.subr.mxu0 0.0
        %479 = vmatpush1.msra.mxu0 0.0
        %480 = vmatprep.mubr.f32.mxu0 0.0
        %481 = vmatmul.mubr.f32.gmra.mrb[0].mxu0 %v411
        %v482 = vpop.f32.mrb[0].mxu0
        %v483 = vadd.f32 %v322, %v482
        %v484 = vpop.f32.mrb[0].mxu0
        %v485 = vadd.f32 %v322, %v484
        %486 = vmatprep.mubr.f32.mxu0 0.0
        %487 = vmatmul.mubr.f32.gmra.mrb[0].mxu0 %v414
        %v488 = vpop.f32.mrb[0].mxu0
        %v489 = vadd.f32 %v327, %v488
        %v490 = vpop.f32.mrb[0].mxu0
        %v491 = vadd.f32 %v327, %v490
        %492 = vdwg.mxu0
        %493 = vmatprep.subr.mxu0 %v381
        %494 = vmatpush1.msra.mxu0 %v380
        %495 = vmatprep.subr.mxu0 0.0
        %496 = vmatpush1.msra.mxu0 0.0
        %497 = vmatprep.subr.mxu0 0.0
        %498 = vmatpush1.msra.mxu0 0.0
        %499 = vmatprep.subr.mxu0 0.0
        %500 = vmatpush1.msra.mxu0 0.0
        %501 = vmatprep.subr.mxu0 0.0
        %502 = vmatpush1.msra.mxu0 0.0
        %503 = vmatprep.subr.mxu0 0.0
        %504 = vmatpush1.msra.mxu0 0.0
        %505 = vmatprep.subr.mxu0 0.0
        %506 = vmatpush1.msra.mxu0 0.0
        %507 = vmatprep.subr.mxu0 0.0
        %508 = vmatpush1.msra.mxu0 0.0
        %509 = vmatprep.subr.mxu0 0.0
        %510 = vmatpush1.msra.mxu0 0.0
        %511 = vmatprep.subr.mxu0 0.0
        %512 = vmatpush1.msra.mxu0 0.0
        %513 = vmatprep.subr.mxu0 0.0
        %514 = vmatpush1.msra.mxu0 0.0
        %515 = vmatprep.subr.mxu0 0.0
        %516 = vmatpush1.msra.mxu0 0.0
        %517 = vmatprep.subr.mxu0 0.0
        %518 = vmatpush1.msra.mxu0 0.0
        %519 = vmatprep.subr.mxu0 0.0
        %520 = vmatpush1.msra.mxu0 0.0
        %521 = vmatprep.subr.mxu0 0.0
        %522 = vmatpush1.msra.mxu0 0.0
        %523 = vmatprep.subr.mxu0 0.0
        %524 = vmatpush1.msra.mxu0 0.0
        %525 = vmatprep.subr.mxu0 0.0
        %526 = vmatpush1.msra.mxu0 0.0
        %527 = vmatprep.subr.mxu0 0.0
        %528 = vmatpush1.msra.mxu0 0.0
        %529 = vmatprep.subr.mxu0 0.0
        %530 = vmatpush1.msra.mxu0 0.0
        %531 = vmatprep.subr.mxu0 0.0
        %532 = vmatpush1.msra.mxu0 0.0
        %533 = vmatprep.subr.mxu0 0.0
        %534 = vmatpush1.msra.mxu0 0.0
        %535 = vmatprep.subr.mxu0 0.0
        %536 = vmatpush1.msra.mxu0 0.0
        %537 = vmatprep.subr.mxu0 0.0
        %538 = vmatpush1.msra.mxu0 0.0
        %539 = vmatprep.subr.mxu0 0.0
        %540 = vmatpush1.msra.mxu0 0.0
        %541 = vmatprep.subr.mxu0 0.0
        %542 = vmatpush1.msra.mxu0 0.0
        %543 = vmatprep.subr.mxu0 0.0
        %544 = vmatpush1.msra.mxu0 0.0
        %545 = vmatprep.subr.mxu0 0.0
        %546 = vmatpush1.msra.mxu0 0.0
        %547 = vmatprep.subr.mxu0 0.0
        %548 = vmatpush1.msra.mxu0 0.0
        %549 = vmatprep.subr.mxu0 0.0
        %550 = vmatpush1.msra.mxu0 0.0
        %551 = vmatprep.subr.mxu0 0.0
        %552 = vmatpush1.msra.mxu0 0.0
        %553 = vmatprep.subr.mxu0 0.0
        %554 = vmatpush1.msra.mxu0 0.0
        %555 = vmatprep.subr.mxu0 0.0
        %556 = vmatpush1.msra.mxu0 0.0
        %557 = vmatprep.mubr.f32.mxu0 0.0
        %558 = vmatmul.mubr.f32.gmra.mrb[0].mxu0 %v411
        %v559 = vpop.f32.mrb[0].mxu0
        %v560 = vadd.f32 %v322, %v559
        %v561 = vpop.f32.mrb[0].mxu0
        %v562 = vadd.f32 %v322, %v561
        %563 = vmatprep.mubr.f32.mxu0 0.0
        %564 = vmatmul.mubr.f32.gmra.mrb[0].mxu0 %v414
        %v565 = vpop.f32.mrb[0].mxu0
        %v566 = vadd.f32 %v327, %v565
        %v567 = vpop.f32.mrb[0].mxu0
        %v568 = vadd.f32 %v327, %v567
        %569 = vdwg.mxu0
        %570 = vmatprep.subr.mxu0 %v383
        %571 = vmatpush1.msra.mxu0 %v382
        %572 = vmatprep.subr.mxu0 0.0
        %573 = vmatpush1.msra.mxu0 0.0
        %574 = vmatprep.subr.mxu0 0.0
        %575 = vmatpush1.msra.mxu0 0.0
        %576 = vmatprep.subr.mxu0 0.0
        %577 = vmatpush1.msra.mxu0 0.0
        %578 = vmatprep.subr.mxu0 0.0
        %579 = vmatpush1.msra.mxu0 0.0
        %580 = vmatprep.subr.mxu0 0.0
        %581 = vmatpush1.msra.mxu0 0.0
        %582 = vmatprep.subr.mxu0 0.0
        %583 = vmatpush1.msra.mxu0 0.0
        %584 = vmatprep.subr.mxu0 0.0
        %585 = vmatpush1.msra.mxu0 0.0
        %586 = vmatprep.subr.mxu0 0.0
        %587 = vmatpush1.msra.mxu0 0.0
        %588 = vmatprep.subr.mxu0 0.0
        %589 = vmatpush1.msra.mxu0 0.0
        %590 = vmatprep.subr.mxu0 0.0
        %591 = vmatpush1.msra.mxu0 0.0
        %592 = vmatprep.subr.mxu0 0.0
        %593 = vmatpush1.msra.mxu0 0.0
        %594 = vmatprep.subr.mxu0 0.0
        %595 = vmatpush1.msra.mxu0 0.0
        %596 = vmatprep.subr.mxu0 0.0
        %597 = vmatpush1.msra.mxu0 0.0
        %598 = vmatprep.subr.mxu0 0.0
        %599 = vmatpush1.msra.mxu0 0.0
        %600 = vmatprep.subr.mxu0 0.0
        %601 = vmatpush1.msra.mxu0 0.0
        %602 = vmatprep.subr.mxu0 0.0
        %603 = vmatpush1.msra.mxu0 0.0
        %604 = vmatprep.subr.mxu0 0.0
        %605 = vmatpush1.msra.mxu0 0.0
        %606 = vmatprep.subr.mxu0 0.0
        %607 = vmatpush1.msra.mxu0 0.0
        %608 = vmatprep.subr.mxu0 0.0
        %609 = vmatpush1.msra.mxu0 0.0
        %610 = vmatprep.subr.mxu0 0.0
        %611 = vmatpush1.msra.mxu0 0.0
        %612 = vmatprep.subr.mxu0 0.0
        %613 = vmatpush1.msra.mxu0 0.0
        %614 = vmatprep.subr.mxu0 0.0
        %615 = vmatpush1.msra.mxu0 0.0
        %616 = vmatprep.subr.mxu0 0.0
        %617 = vmatpush1.msra.mxu0 0.0
        %618 = vmatprep.subr.mxu0 0.0
        %619 = vmatpush1.msra.mxu0 0.0
        %620 = vmatprep.subr.mxu0 0.0
        %621 = vmatpush1.msra.mxu0 0.0
        %622 = vmatprep.subr.mxu0 0.0
        %623 = vmatpush1.msra.mxu0 0.0
        %624 = vmatprep.subr.mxu0 0.0
        %625 = vmatpush1.msra.mxu0 0.0
        %626 = vmatprep.subr.mxu0 0.0
        %627 = vmatpush1.msra.mxu0 0.0
        %628 = vmatprep.subr.mxu0 0.0
        %629 = vmatpush1.msra.mxu0 0.0
        %630 = vmatprep.subr.mxu0 0.0
        %631 = vmatpush1.msra.mxu0 0.0
        %632 = vmatprep.subr.mxu0 0.0
        %633 = vmatpush1.msra.mxu0 0.0
        %634 = vmatprep.mubr.f32.mxu0 0.0
        %635 = vmatmul.mubr.f32.gmra.mrb[0].mxu0 %v411
        %v636 = vpop.f32.mrb[0].mxu0
        %v637 = vadd.f32 %v322, %v636
        %v638 = vpop.f32.mrb[0].mxu0
        %v639 = vadd.f32 %v322, %v638
        %640 = vmatprep.mubr.f32.mxu0 0.0
        %641 = vmatmul.mubr.f32.gmra.mrb[0].mxu0 %v414
        %v642 = vpop.f32.mrb[0].mxu0
        %v643 = vadd.f32 %v327, %v642
        %v644 = vpop.f32.mrb[0].mxu0
        %v645 = vadd.f32 %v327, %v644
        %646 = vdwg.mxu0
        %647 = vmatprep.subr.mxu0 %v385
        %648 = vmatpush1.msra.mxu0 %v384
        %649 = vmatprep.subr.mxu0 0.0
        %650 = vmatpush1.msra.mxu0 0.0
        %651 = vmatprep.subr.mxu0 0.0
        %652 = vmatpush1.msra.mxu0 0.0
        %653 = vmatprep.subr.mxu0 0.0
        %654 = vmatpush1.msra.mxu0 0.0
        %655 = vmatprep.subr.mxu0 0.0
        %656 = vmatpush1.msra.mxu0 0.0
        %657 = vmatprep.subr.mxu0 0.0
        %658 = vmatpush1.msra.mxu0 0.0
        %659 = vmatprep.subr.mxu0 0.0
        %660 = vmatpush1.msra.mxu0 0.0
        %661 = vmatprep.subr.mxu0 0.0
        %662 = vmatpush1.msra.mxu0 0.0
        %663 = vmatprep.subr.mxu0 0.0
        %664 = vmatpush1.msra.mxu0 0.0
        %665 = vmatprep.subr.mxu0 0.0
        %666 = vmatpush1.msra.mxu0 0.0
        %667 = vmatprep.subr.mxu0 0.0
        %668 = vmatpush1.msra.mxu0 0.0
        %669 = vmatprep.subr.mxu0 0.0
        %670 = vmatpush1.msra.mxu0 0.0
        %671 = vmatprep.subr.mxu0 0.0
        %672 = vmatpush1.msra.mxu0 0.0
        %673 = vmatprep.subr.mxu0 0.0
        %674 = vmatpush1.msra.mxu0 0.0
        %675 = vmatprep.subr.mxu0 0.0
        %676 = vmatpush1.msra.mxu0 0.0
        %677 = vmatprep.subr.mxu0 0.0
        %678 = vmatpush1.msra.mxu0 0.0
        %679 = vmatprep.subr.mxu0 0.0
        %680 = vmatpush1.msra.mxu0 0.0
        %681 = vmatprep.subr.mxu0 0.0
        %682 = vmatpush1.msra.mxu0 0.0
        %683 = vmatprep.subr.mxu0 0.0
        %684 = vmatpush1.msra.mxu0 0.0
        %685 = vmatprep.subr.mxu0 0.0
        %686 = vmatpush1.msra.mxu0 0.0
        %687 = vmatprep.subr.mxu0 0.0
        %688 = vmatpush1.msra.mxu0 0.0
        %689 = vmatprep.subr.mxu0 0.0
        %690 = vmatpush1.msra.mxu0 0.0
        %691 = vmatprep.subr.mxu0 0.0
        %692 = vmatpush1.msra.mxu0 0.0
        %693 = vmatprep.subr.mxu0 0.0
        %694 = vmatpush1.msra.mxu0 0.0
        %695 = vmatprep.subr.mxu0 0.0
        %696 = vmatpush1.msra.mxu0 0.0
        %697 = vmatprep.subr.mxu0 0.0
        %698 = vmatpush1.msra.mxu0 0.0
        %699 = vmatprep.subr.mxu0 0.0
        %700 = vmatpush1.msra.mxu0 0.0
        %701 = vmatprep.subr.mxu0 0.0
        %702 = vmatpush1.msra.mxu0 0.0
        %703 = vmatprep.subr.mxu0 0.0
        %704 = vmatpush1.msra.mxu0 0.0
        %705 = vmatprep.subr.mxu0 0.0
        %706 = vmatpush1.msra.mxu0 0.0
        %707 = vmatprep.subr.mxu0 0.0
        %708 = vmatpush1.msra.mxu0 0.0
        %709 = vmatprep.subr.mxu0 0.0
        %710 = vmatpush1.msra.mxu0 0.0
        %711 = vmatprep.mubr.f32.mxu0 0.0
        %712 = vmatmul.mubr.f32.gmra.mrb[0].mxu0 %v411
        %v713 = vpop.f32.mrb[0].mxu0
        %v714 = vadd.f32 %v322, %v713
        %v715 = vpop.f32.mrb[0].mxu0
        %v716 = vadd.f32 %v322, %v715
        %717 = vmatprep.mubr.f32.mxu0 0.0
        %718 = vmatmul.mubr.f32.gmra.mrb[0].mxu0 %v414
        %v719 = vpop.f32.mrb[0].mxu0
        %v720 = vadd.f32 %v327, %v719
        %v721 = vpop.f32.mrb[0].mxu0
        %v722 = vadd.f32 %v327, %v721
        %723 = vdwg.mxu0
        %724 = vmatprep.subr.mxu0 %v387
        %725 = vmatpush1.msra.mxu0 %v386
        %726 = vmatprep.subr.mxu0 0.0
        %727 = vmatpush1.msra.mxu0 0.0
        %728 = vmatprep.subr.mxu0 0.0
        %729 = vmatpush1.msra.mxu0 0.0
        %730 = vmatprep.subr.mxu0 0.0
        %731 = vmatpush1.msra.mxu0 0.0
        %732 = vmatprep.subr.mxu0 0.0
        %733 = vmatpush1.msra.mxu0 0.0
        %734 = vmatprep.subr.mxu0 0.0
        %735 = vmatpush1.msra.mxu0 0.0
        %736 = vmatprep.subr.mxu0 0.0
        %737 = vmatpush1.msra.mxu0 0.0
        %738 = vmatprep.subr.mxu0 0.0
        %739 = vmatpush1.msra.mxu0 0.0
        %740 = vmatprep.subr.mxu0 0.0
        %741 = vmatpush1.msra.mxu0 0.0
        %742 = vmatprep.subr.mxu0 0.0
        %743 = vmatpush1.msra.mxu0 0.0
        %744 = vmatprep.subr.mxu0 0.0
        %745 = vmatpush1.msra.mxu0 0.0
        %746 = vmatprep.subr.mxu0 0.0
        %747 = vmatpush1.msra.mxu0 0.0
        %748 = vmatprep.subr.mxu0 0.0
        %749 = vmatpush1.msra.mxu0 0.0
        %750 = vmatprep.subr.mxu0 0.0
        %751 = vmatpush1.msra.mxu0 0.0
        %752 = vmatprep.subr.mxu0 0.0
        %753 = vmatpush1.msra.mxu0 0.0
        %754 = vmatprep.subr.mxu0 0.0
        %755 = vmatpush1.msra.mxu0 0.0
        %756 = vmatprep.subr.mxu0 0.0
        %757 = vmatpush1.msra.mxu0 0.0
        %758 = vmatprep.subr.mxu0 0.0
        %759 = vmatpush1.msra.mxu0 0.0
        %760 = vmatprep.subr.mxu0 0.0
        %761 = vmatpush1.msra.mxu0 0.0
        %762 = vmatprep.subr.mxu0 0.0
        %763 = vmatpush1.msra.mxu0 0.0
        %764 = vmatprep.subr.mxu0 0.0
        %765 = vmatpush1.msra.mxu0 0.0
        %766 = vmatprep.subr.mxu0 0.0
        %767 = vmatpush1.msra.mxu0 0.0
        %768 = vmatprep.subr.mxu0 0.0
        %769 = vmatpush1.msra.mxu0 0.0
        %770 = vmatprep.subr.mxu0 0.0
        %771 = vmatpush1.msra.mxu0 0.0
        %772 = vmatprep.subr.mxu0 0.0
        %773 = vmatpush1.msra.mxu0 0.0
        %774 = vmatprep.subr.mxu0 0.0
        %775 = vmatpush1.msra.mxu0 0.0
        %776 = vmatprep.subr.mxu0 0.0
        %777 = vmatpush1.msra.mxu0 0.0
        %778 = vmatprep.subr.mxu0 0.0
        %779 = vmatpush1.msra.mxu0 0.0
        %780 = vmatprep.subr.mxu0 0.0
        %781 = vmatpush1.msra.mxu0 0.0
        %782 = vmatprep.subr.mxu0 0.0
        %783 = vmatpush1.msra.mxu0 0.0
        %784 = vmatprep.subr.mxu0 0.0
        %785 = vmatpush1.msra.mxu0 0.0
        %786 = vmatprep.subr.mxu0 0.0
        %787 = vmatpush1.msra.mxu0 0.0
        %788 = vmatprep.mubr.f32.mxu0 0.0
        %789 = vmatmul.mubr.f32.gmra.mrb[0].mxu0 %v411
        %v790 = vpop.f32.mrb[0].mxu0
        %v791 = vadd.f32 %v322, %v790
        %v792 = vpop.f32.mrb[0].mxu0
        %v793 = vadd.f32 %v322, %v792
        %794 = vmatprep.mubr.f32.mxu0 0.0
        %795 = vmatmul.mubr.f32.gmra.mrb[0].mxu0 %v414
        %v796 = vpop.f32.mrb[0].mxu0
        %v797 = vadd.f32 %v327, %v796
        %v798 = vpop.f32.mrb[0].mxu0
        %v799 = vadd.f32 %v327, %v798
        %800 = vdwg.mxu0
        %801 = vmatprep.subr.mxu0 %v389
        %802 = vmatpush1.msra.mxu0 %v388
        %803 = vmatprep.subr.mxu0 0.0
        %804 = vmatpush1.msra.mxu0 0.0
        %805 = vmatprep.subr.mxu0 0.0
        %806 = vmatpush1.msra.mxu0 0.0
        %807 = vmatprep.subr.mxu0 0.0
        %808 = vmatpush1.msra.mxu0 0.0
        %809 = vmatprep.subr.mxu0 0.0
        %810 = vmatpush1.msra.mxu0 0.0
        %811 = vmatprep.subr.mxu0 0.0
        %812 = vmatpush1.msra.mxu0 0.0
        %813 = vmatprep.subr.mxu0 0.0
        %814 = vmatpush1.msra.mxu0 0.0
        %815 = vmatprep.subr.mxu0 0.0
        %816 = vmatpush1.msra.mxu0 0.0
        %817 = vmatprep.subr.mxu0 0.0
        %818 = vmatpush1.msra.mxu0 0.0
        %819 = vmatprep.subr.mxu0 0.0
        %820 = vmatpush1.msra.mxu0 0.0
        %821 = vmatprep.subr.mxu0 0.0
        %822 = vmatpush1.msra.mxu0 0.0
        %823 = vmatprep.subr.mxu0 0.0
        %824 = vmatpush1.msra.mxu0 0.0
        %825 = vmatprep.subr.mxu0 0.0
        %826 = vmatpush1.msra.mxu0 0.0
        %827 = vmatprep.subr.mxu0 0.0
        %828 = vmatpush1.msra.mxu0 0.0
        %829 = vmatprep.subr.mxu0 0.0
        %830 = vmatpush1.msra.mxu0 0.0
        %831 = vmatprep.subr.mxu0 0.0
        %832 = vmatpush1.msra.mxu0 0.0
        %833 = vmatprep.subr.mxu0 0.0
        %834 = vmatpush1.msra.mxu0 0.0
        %835 = vmatprep.subr.mxu0 0.0
        %836 = vmatpush1.msra.mxu0 0.0
        %837 = vmatprep.subr.mxu0 0.0
        %838 = vmatpush1.msra.mxu0 0.0
        %839 = vmatprep.subr.mxu0 0.0
        %840 = vmatpush1.msra.mxu0 0.0
        %841 = vmatprep.subr.mxu0 0.0
        %842 = vmatpush1.msra.mxu0 0.0
        %843 = vmatprep.subr.mxu0 0.0
        %844 = vmatpush1.msra.mxu0 0.0
        %845 = vmatprep.subr.mxu0 0.0
        %846 = vmatpush1.msra.mxu0 0.0
        %847 = vmatprep.subr.mxu0 0.0
        %848 = vmatpush1.msra.mxu0 0.0
        %849 = vmatprep.subr.mxu0 0.0
        %850 = vmatpush1.msra.mxu0 0.0
        %851 = vmatprep.subr.mxu0 0.0
        %852 = vmatpush1.msra.mxu0 0.0
        %853 = vmatprep.subr.mxu0 0.0
        %854 = vmatpush1.msra.mxu0 0.0
        %855 = vmatprep.subr.mxu0 0.0
        %856 = vmatpush1.msra.mxu0 0.0
        %857 = vmatprep.subr.mxu0 0.0
        %858 = vmatpush1.msra.mxu0 0.0
        %859 = vmatprep.subr.mxu0 0.0
        %860 = vmatpush1.msra.mxu0 0.0
        %861 = vmatprep.subr.mxu0 0.0
        %862 = vmatpush1.msra.mxu0 0.0
        %863 = vmatprep.subr.mxu0 0.0
        %864 = vmatpush1.msra.mxu0 0.0
        %865 = vmatprep.mubr.f32.mxu0 0.0
        %866 = vmatmul.mubr.f32.gmra.mrb[0].mxu0 %v411
        %v867 = vpop.f32.mrb[0].mxu0
        %v868 = vadd.f32 %v322, %v867
        %v869 = vpop.f32.mrb[0].mxu0
        %v870 = vadd.f32 %v322, %v869
        %871 = vmatprep.mubr.f32.mxu0 0.0
        %872 = vmatmul.mubr.f32.gmra.mrb[0].mxu0 %v414
        %v873 = vpop.f32.mrb[0].mxu0
        %v874 = vadd.f32 %v327, %v873
        %v875 = vpop.f32.mrb[0].mxu0
        %v876 = vadd.f32 %v327, %v875
        %877 = vdwg.mxu0
        %878 = vmatprep.subr.mxu0 %v391
        %879 = vmatpush1.msra.mxu0 %v390
        %880 = vmatprep.subr.mxu0 0.0
        %881 = vmatpush1.msra.mxu0 0.0
        %882 = vmatprep.subr.mxu0 0.0
        %883 = vmatpush1.msra.mxu0 0.0
        %884 = vmatprep.subr.mxu0 0.0
        %885 = vmatpush1.msra.mxu0 0.0
        %886 = vmatprep.subr.mxu0 0.0
        %887 = vmatpush1.msra.mxu0 0.0
        %888 = vmatprep.subr.mxu0 0.0
        %889 = vmatpush1.msra.mxu0 0.0
        %890 = vmatprep.subr.mxu0 0.0
        %891 = vmatpush1.msra.mxu0 0.0
        %892 = vmatprep.subr.mxu0 0.0
        %893 = vmatpush1.msra.mxu0 0.0
        %894 = vmatprep.subr.mxu0 0.0
        %895 = vmatpush1.msra.mxu0 0.0
        %896 = vmatprep.subr.mxu0 0.0
        %897 = vmatpush1.msra.mxu0 0.0
        %898 = vmatprep.subr.mxu0 0.0
        %899 = vmatpush1.msra.mxu0 0.0
        %900 = vmatprep.subr.mxu0 0.0
        %901 = vmatpush1.msra.mxu0 0.0
        %902 = vmatprep.subr.mxu0 0.0
        %903 = vmatpush1.msra.mxu0 0.0
        %904 = vmatprep.subr.mxu0 0.0
        %905 = vmatpush1.msra.mxu0 0.0
        %906 = vmatprep.subr.mxu0 0.0
        %907 = vmatpush1.msra.mxu0 0.0
        %908 = vmatprep.subr.mxu0 0.0
        %909 = vmatpush1.msra.mxu0 0.0
        %910 = vmatprep.subr.mxu0 0.0
        %911 = vmatpush1.msra.mxu0 0.0
        %912 = vmatprep.subr.mxu0 0.0
        %913 = vmatpush1.msra.mxu0 0.0
        %914 = vmatprep.subr.mxu0 0.0
        %915 = vmatpush1.msra.mxu0 0.0
        %916 = vmatprep.subr.mxu0 0.0
        %917 = vmatpush1.msra.mxu0 0.0
        %918 = vmatprep.subr.mxu0 0.0
        %919 = vmatpush1.msra.mxu0 0.0
        %920 = vmatprep.subr.mxu0 0.0
        %921 = vmatpush1.msra.mxu0 0.0
        %922 = vmatprep.subr.mxu0 0.0
        %923 = vmatpush1.msra.mxu0 0.0
        %924 = vmatprep.subr.mxu0 0.0
        %925 = vmatpush1.msra.mxu0 0.0
        %926 = vmatprep.subr.mxu0 0.0
        %927 = vmatpush1.msra.mxu0 0.0
        %928 = vmatprep.subr.mxu0 0.0
        %929 = vmatpush1.msra.mxu0 0.0
        %930 = vmatprep.subr.mxu0 0.0
        %931 = vmatpush1.msra.mxu0 0.0
        %932 = vmatprep.subr.mxu0 0.0
        %933 = vmatpush1.msra.mxu0 0.0
        %934 = vmatprep.subr.mxu0 0.0
        %935 = vmatpush1.msra.mxu0 0.0
        %936 = vmatprep.subr.mxu0 0.0
        %937 = vmatpush1.msra.mxu0 0.0
        %938 = vmatprep.subr.mxu0 0.0
        %939 = vmatpush1.msra.mxu0 0.0
        %940 = vmatprep.subr.mxu0 0.0
        %941 = vmatpush1.msra.mxu0 0.0
        %942 = vmatprep.mubr.f32.mxu0 0.0
        %943 = vmatmul.mubr.f32.gmra.mrb[0].mxu0 %v411
        %v944 = vpop.f32.mrb[0].mxu0
        %v945 = vadd.f32 %v322, %v944
        %v946 = vpop.f32.mrb[0].mxu0
        %v947 = vadd.f32 %v322, %v946
        %948 = vmatprep.mubr.f32.mxu0 0.0
        %949 = vmatmul.mubr.f32.gmra.mrb[0].mxu0 %v414
        %v950 = vpop.f32.mrb[0].mxu0
        %v951 = vadd.f32 %v327, %v950
        %v952 = vpop.f32.mrb[0].mxu0
        %v953 = vadd.f32 %v327, %v952
        %954 = vdwg.mxu0
        %955 = vmatprep.subr.mxu0 %v376
        %956 = vmatpush1.msra.mxu0 %v392
        %957 = vmatprep.subr.mxu0 0.0
        %958 = vmatpush1.msra.mxu0 0.0
        %959 = vmatprep.subr.mxu0 0.0
        %960 = vmatpush1.msra.mxu0 0.0
        %961 = vmatprep.subr.mxu0 0.0
        %962 = vmatpush1.msra.mxu0 0.0
        %963 = vmatprep.subr.mxu0 0.0
        %964 = vmatpush1.msra.mxu0 0.0
        %965 = vmatprep.subr.mxu0 0.0
        %966 = vmatpush1.msra.mxu0 0.0
        %967 = vmatprep.subr.mxu0 0.0
        %968 = vmatpush1.msra.mxu0 0.0
        %969 = vmatprep.subr.mxu0 0.0
        %970 = vmatpush1.msra.mxu0 0.0
        %971 = vmatprep.subr.mxu0 0.0
        %972 = vmatpush1.msra.mxu0 0.0
        %973 = vmatprep.subr.mxu0 0.0
        %974 = vmatpush1.msra.mxu0 0.0
        %975 = vmatprep.subr.mxu0 0.0
        %976 = vmatpush1.msra.mxu0 0.0
        %977 = vmatprep.subr.mxu0 0.0
        %978 = vmatpush1.msra.mxu0 0.0
        %979 = vmatprep.subr.mxu0 0.0
        %980 = vmatpush1.msra.mxu0 0.0
        %981 = vmatprep.subr.mxu0 0.0
        %982 = vmatpush1.msra.mxu0 0.0
        %983 = vmatprep.subr.mxu0 0.0
        %984 = vmatpush1.msra.mxu0 0.0
        %985 = vmatprep.subr.mxu0 0.0
        %986 = vmatpush1.msra.mxu0 0.0
        %987 = vmatprep.subr.mxu0 0.0
        %988 = vmatpush1.msra.mxu0 0.0
        %989 = vmatprep.subr.mxu0 0.0
        %990 = vmatpush1.msra.mxu0 0.0
        %991 = vmatprep.subr.mxu0 0.0
        %992 = vmatpush1.msra.mxu0 0.0
        %993 = vmatprep.subr.mxu0 0.0
        %994 = vmatpush1.msra.mxu0 0.0
        %995 = vmatprep.subr.mxu0 0.0
        %996 = vmatpush1.msra.mxu0 0.0
        %997 = vmatprep.subr.mxu0 0.0
        %998 = vmatpush1.msra.mxu0 0.0
        %999 = vmatprep.subr.mxu0 0.0
        %1000 = vmatpush1.msra.mxu0 0.0
        %1001 = vmatprep.subr.mxu0 0.0
        %1002 = vmatpush1.msra.mxu0 0.0
        %1003 = vmatprep.subr.mxu0 0.0
        %1004 = vmatpush1.msra.mxu0 0.0
        %1005 = vmatprep.subr.mxu0 0.0
        %1006 = vmatpush1.msra.mxu0 0.0
        %1007 = vmatprep.subr.mxu0 0.0
        %1008 = vmatpush1.msra.mxu0 0.0
        %1009 = vmatprep.subr.mxu0 0.0
        %1010 = vmatpush1.msra.mxu0 0.0
        %1011 = vmatprep.subr.mxu0 0.0
        %1012 = vmatpush1.msra.mxu0 0.0
        %1013 = vmatprep.subr.mxu0 0.0
        %1014 = vmatpush1.msra.mxu0 0.0
        %1015 = vmatprep.subr.mxu0 0.0
        %1016 = vmatpush1.msra.mxu0 0.0
        %1017 = vmatprep.subr.mxu0 0.0
        %1018 = vmatpush1.msra.mxu0 0.0
        %1019 = vmatprep.mubr.f32.mxu0 0.0
        %1020 = vmatmul.mubr.f32.gmra.mrb[0].mxu0 %v411
        %v1021 = vpop.f32.mrb[0].mxu0
        %v1022 = vadd.f32 %v322, %v1021
        %v1023 = vpop.f32.mrb[0].mxu0
        %v1024 = vadd.f32 %v322, %v1023
        %1025 = vmatprep.mubr.f32.mxu0 0.0
        %1026 = vmatmul.mubr.f32.gmra.mrb[0].mxu0 %v414
        %v1027 = vpop.f32.mrb[0].mxu0
        %v1028 = vadd.f32 %v327, %v1027
        %v1029 = vpop.f32.mrb[0].mxu0
        %v1030 = vadd.f32 %v327, %v1029
        %1031 = vdwg.mxu0
        %v1032 = vld [vmem:[%s3] sm:$0xff]
        %v1033 = vld [vmem:[%s3 + $0x8] sm:$0xff]
        %1035 = vrot.lane.b32.xlu0 %v290, 126
        %v1036 = vpop.permute.xlu0 %1035
        %1037 = vrot.lane.b32.xlu0 %v291, 126
        %v1038 = vpop.permute.xlu0 %1037
        %1039 = vrot.lane.b32.xlu0 %v292, 126
        %v1040 = vpop.permute.xlu0 %1039
        %1041 = vrot.lane.b32.xlu0 %v293, 126
        %v1042 = vpop.permute.xlu0 %1041
        %1043 = vrot.lane.b32.xlu0 %v294, 126
        %v1044 = vpop.permute.xlu0 %1043
        %1045 = vrot.lane.b32.xlu0 %v295, 126
        %v1046 = vpop.permute.xlu0 %1045
        %1047 = vrot.lane.b32.xlu0 %v296, 126
        %v1048 = vpop.permute.xlu0 %1047
        %1049 = vrot.lane.b32.xlu0 %v297, 126
        %v1050 = vpop.permute.xlu0 %1049
        %1051 = vrot.lane.b32.xlu0 %v298, 126
        %v1052 = vpop.permute.xlu0 %1051
        %1053 = vrot.lane.b32.xlu0 %v299, 126
        %v1054 = vpop.permute.xlu0 %1053
        %1055 = vrot.lane.b32.xlu0 %v300, 126
        %v1056 = vpop.permute.xlu0 %1055
        %1057 = vrot.lane.b32.xlu0 %v301, 126
        %v1058 = vpop.permute.xlu0 %1057
        %1059 = vrot.lane.b32.xlu0 %v302, 126
        %v1060 = vpop.permute.xlu0 %1059
        %1061 = vrot.lane.b32.xlu0 %v303, 126
        %v1062 = vpop.permute.xlu0 %1061
        %1063 = vrot.lane.b32.xlu0 %v304, 126
        %v1064 = vpop.permute.xlu0 %1063
        %1065 = vrot.lane.b32.xlu0 %v305, 126
        %v1066 = vpop.permute.xlu0 %1065
        %vm1067 = vcmask 1031168
        %v1068 = vsel %vm1067, %v1036, %v1038
        %v1069 = vsel %vm1067, %v1038, %v1040
        %v1070 = vsel %vm1067, %v1040, %v1042
        %v1071 = vsel %vm1067, %v1042, %v1044
        %v1072 = vsel %vm1067, %v1044, %v1046
        %v1073 = vsel %vm1067, %v1046, %v1048
        %v1074 = vsel %vm1067, %v1048, %v1050
        %v1075 = vsel %vm1067, %v1050, %v1052
        %v1076 = vsel %vm1067, %v1052, %v1054
        %v1077 = vsel %vm1067, %v1054, %v1056
        %v1078 = vsel %vm1067, %v1056, %v1058
        %v1079 = vsel %vm1067, %v1058, %v1060
        %v1080 = vsel %vm1067, %v1060, %v1062
        %v1081 = vsel %vm1067, %v1062, %v1064
        %v1082 = vsel %vm1067, %v1064, %v1066
        %1083 = vrot.lane.b32.xlu0 %v290, 124
        %v1084 = vpop.permute.xlu0 %1083
        %1085 = vrot.lane.b32.xlu0 %v291, 124
        %v1086 = vpop.permute.xlu0 %1085
        %1087 = vrot.lane.b32.xlu0 %v292, 124
        %v1088 = vpop.permute.xlu0 %1087
        %1089 = vrot.lane.b32.xlu0 %v293, 124
        %v1090 = vpop.permute.xlu0 %1089
        %1091 = vrot.lane.b32.xlu0 %v294, 124
        %v1092 = vpop.permute.xlu0 %1091
        %1093 = vrot.lane.b32.xlu0 %v295, 124
        %v1094 = vpop.permute.xlu0 %1093
        %1095 = vrot.lane.b32.xlu0 %v296, 124
        %v1096 = vpop.permute.xlu0 %1095
        %1097 = vrot.lane.b32.xlu0 %v297, 124
        %v1098 = vpop.permute.xlu0 %1097
        %1099 = vrot.lane.b32.xlu0 %v298, 124
        %v1100 = vpop.permute.xlu0 %1099
        %1101 = vrot.lane.b32.xlu0 %v299, 124
        %v1102 = vpop.permute.xlu0 %1101
        %1103 = vrot.lane.b32.xlu0 %v300, 124
        %v1104 = vpop.permute.xlu0 %1103
        %1105 = vrot.lane.b32.xlu0 %v301, 124
        %v1106 = vpop.permute.xlu0 %1105
        %1107 = vrot.lane.b32.xlu0 %v302, 124
        %v1108 = vpop.permute.xlu0 %1107
        %1109 = vrot.lane.b32.xlu0 %v303, 124
        %v1110 = vpop.permute.xlu0 %1109
        %1111 = vrot.lane.b32.xlu0 %v304, 124
        %v1112 = vpop.permute.xlu0 %1111
        %1113 = vrot.lane.b32.xlu0 %v305, 124
        %v1114 = vpop.permute.xlu0 %1113
        %vm1115 = vcmask 1014784
        %v1116 = vsel %vm1115, %v1084, %v1086
        %v1117 = vsel %vm1115, %v1086, %v1088
        %v1118 = vsel %vm1115, %v1088, %v1090
        %v1119 = vsel %vm1115, %v1090, %v1092
        %v1120 = vsel %vm1115, %v1092, %v1094
        %v1121 = vsel %vm1115, %v1094, %v1096
        %v1122 = vsel %vm1115, %v1096, %v1098
        %v1123 = vsel %vm1115, %v1098, %v1100
        %v1124 = vsel %vm1115, %v1100, %v1102
        %v1125 = vsel %vm1115, %v1102, %v1104
        %v1126 = vsel %vm1115, %v1104, %v1106
        %v1127 = vsel %vm1115, %v1106, %v1108
        %v1128 = vsel %vm1115, %v1108, %v1110
        %v1129 = vsel %vm1115, %v1110, %v1112
        %v1130 = vsel %vm1115, %v1112, %v1114
        %1131 = vrot.lane.b32.xlu0 %v306, 126
        %v1132 = vpop.permute.xlu0 %1131
        %v1133 = vsel %vm1067, %v1066, %v1132
        %1134 = vrot.lane.b32.xlu0 %v306, 124
        %v1135 = vpop.permute.xlu0 %1134
        %v1136 = vsel %vm1115, %v1114, %v1135
        %1138 = vrot.lane.b32.xlu0 %v307, 126
        %v1139 = vpop.permute.xlu0 %1138
        %v1140 = vsel %vm1067, %v1132, %v1139
        %1141 = vrot.lane.b32.xlu0 %v307, 124
        %v1142 = vpop.permute.xlu0 %1141
        %v1143 = vsel %vm1115, %v1135, %v1142
        %v1144 = vld [vmem:[#allocation5] sm:$0xff]
        %v1145 = vld [vmem:[#allocation5 + $0x8] sm:$0xff]
        %s1146 = scalar_lea.vmem %s4, 16
        %v1147 = vld [vmem:[%s1146] sm:$0xff]
        %v1148 = vld [vmem:[%s1146 + $0x8] sm:$0xff]
        %1150 = vset.pattern.permute.xlu0 0
        %1151 = vperm.xlu0 %1150, %v1147
        %v1152 = vpop.permute.xlu0 %1151
        %1155 = vset.pattern.permute.xlu0 0
        %1156 = vperm.xlu0 %1155, %v1148
        %v1157 = vpop.permute.xlu0 %1156
        %1159 = vrot.lane.b32.xlu0 %v290, 114
        %v1160 = vpop.permute.xlu0 %1159
        %1161 = vrot.lane.b32.xlu0 %v291, 114
        %v1162 = vpop.permute.xlu0 %1161
        %1163 = vrot.lane.b32.xlu0 %v292, 114
        %v1164 = vpop.permute.xlu0 %1163
        %1165 = vrot.lane.b32.xlu0 %v293, 114
        %v1166 = vpop.permute.xlu0 %1165
        %1167 = vrot.lane.b32.xlu0 %v294, 114
        %v1168 = vpop.permute.xlu0 %1167
        %1169 = vrot.lane.b32.xlu0 %v295, 114
        %v1170 = vpop.permute.xlu0 %1169
        %1171 = vrot.lane.b32.xlu0 %v296, 114
        %v1172 = vpop.permute.xlu0 %1171
        %1173 = vrot.lane.b32.xlu0 %v297, 114
        %v1174 = vpop.permute.xlu0 %1173
        %1175 = vrot.lane.b32.xlu0 %v298, 114
        %v1176 = vpop.permute.xlu0 %1175
        %1177 = vrot.lane.b32.xlu0 %v299, 114
        %v1178 = vpop.permute.xlu0 %1177
        %1179 = vrot.lane.b32.xlu0 %v300, 114
        %v1180 = vpop.permute.xlu0 %1179
        %1181 = vrot.lane.b32.xlu0 %v301, 114
        %v1182 = vpop.permute.xlu0 %1181
        %1183 = vrot.lane.b32.xlu0 %v302, 114
        %v1184 = vpop.permute.xlu0 %1183
        %1185 = vrot.lane.b32.xlu0 %v303, 114
        %v1186 = vpop.permute.xlu0 %1185
        %1187 = vrot.lane.b32.xlu0 %v304, 114
        %v1188 = vpop.permute.xlu0 %1187
        %1189 = vrot.lane.b32.xlu0 %v305, 114
        %v1190 = vpop.permute.xlu0 %1189
        %1191 = vrot.lane.b32.xlu0 %v1068, 114
        %v1192 = vpop.permute.xlu0 %1191
        %1193 = vrot.lane.b32.xlu0 %v1069, 114
        %v1194 = vpop.permute.xlu0 %1193
        %1195 = vrot.lane.b32.xlu0 %v1070, 114
        %v1196 = vpop.permute.xlu0 %1195
        %1197 = vrot.lane.b32.xlu0 %v1071, 114
        %v1198 = vpop.permute.xlu0 %1197
        %1199 = vrot.lane.b32.xlu0 %v1072, 114
        %v1200 = vpop.permute.xlu0 %1199
        %1201 = vrot.lane.b32.xlu0 %v1073, 114
        %v1202 = vpop.permute.xlu0 %1201
        %1203 = vrot.lane.b32.xlu0 %v1074, 114
        %v1204 = vpop.permute.xlu0 %1203
        %1205 = vrot.lane.b32.xlu0 %v1075, 114
        %v1206 = vpop.permute.xlu0 %1205
        %1207 = vrot.lane.b32.xlu0 %v1076, 114
        %v1208 = vpop.permute.xlu0 %1207
        %1209 = vrot.lane.b32.xlu0 %v1077, 114
        %v1210 = vpop.permute.xlu0 %1209
        %1211 = vrot.lane.b32.xlu0 %v1078, 114
        %v1212 = vpop.permute.xlu0 %1211
        %1213 = vrot.lane.b32.xlu0 %v1079, 114
        %v1214 = vpop.permute.xlu0 %1213
        %1215 = vrot.lane.b32.xlu0 %v1080, 114
        %v1216 = vpop.permute.xlu0 %1215
        %1217 = vrot.lane.b32.xlu0 %v1081, 114
        %v1218 = vpop.permute.xlu0 %1217
        %1219 = vrot.lane.b32.xlu0 %v1082, 114
        %v1220 = vpop.permute.xlu0 %1219
        %1221 = vrot.lane.b32.xlu0 %v1066, 114
        %v1222 = vpop.permute.xlu0 %1221
        %1223 = vrot.lane.b32.xlu0 %v1116, 114
        %v1224 = vpop.permute.xlu0 %1223
        %1225 = vrot.lane.b32.xlu0 %v1117, 114
        %v1226 = vpop.permute.xlu0 %1225
        %1227 = vrot.lane.b32.xlu0 %v1118, 114
        %v1228 = vpop.permute.xlu0 %1227
        %1229 = vrot.lane.b32.xlu0 %v1119, 114
        %v1230 = vpop.permute.xlu0 %1229
        %1231 = vrot.lane.b32.xlu0 %v1120, 114
        %v1232 = vpop.permute.xlu0 %1231
        %1233 = vrot.lane.b32.xlu0 %v1121, 114
        %v1234 = vpop.permute.xlu0 %1233
        %1235 = vrot.lane.b32.xlu0 %v1122, 114
        %v1236 = vpop.permute.xlu0 %1235
        %1237 = vrot.lane.b32.xlu0 %v1123, 114
        %v1238 = vpop.permute.xlu0 %1237
        %1239 = vrot.lane.b32.xlu0 %v1124, 114
        %v1240 = vpop.permute.xlu0 %1239
        %1241 = vrot.lane.b32.xlu0 %v1125, 114
        %v1242 = vpop.permute.xlu0 %1241
        %1243 = vrot.lane.b32.xlu0 %v1126, 114
        %v1244 = vpop.permute.xlu0 %1243
        %1245 = vrot.lane.b32.xlu0 %v1127, 114
        %v1246 = vpop.permute.xlu0 %1245
        %1247 = vrot.lane.b32.xlu0 %v1128, 114
        %v1248 = vpop.permute.xlu0 %1247
        %1249 = vrot.lane.b32.xlu0 %v1129, 114
        %v1250 = vpop.permute.xlu0 %1249
        %1251 = vrot.lane.b32.xlu0 %v1130, 114
        %v1252 = vpop.permute.xlu0 %1251
        %1253 = vrot.lane.b32.xlu0 %v1114, 114
        %v1254 = vpop.permute.xlu0 %1253
        %1255 = vrot.lane.b32.xlu0 %v306, 114
        %v1256 = vpop.permute.xlu0 %1255
        %1257 = vrot.lane.b32.xlu0 %v1133, 114
        %v1258 = vpop.permute.xlu0 %1257
        %1259 = vrot.lane.b32.xlu0 %v1132, 114
        %v1260 = vpop.permute.xlu0 %1259
        %1261 = vrot.lane.b32.xlu0 %v1136, 114
        %v1262 = vpop.permute.xlu0 %1261
        %1263 = vrot.lane.b32.xlu0 %v1135, 114
        %v1264 = vpop.permute.xlu0 %1263
        %1265 = vrot.lane.b32.xlu0 %v307, 114
        %v1266 = vpop.permute.xlu0 %1265
        %1267 = vrot.lane.b32.xlu0 %v1140, 114
        %v1268 = vpop.permute.xlu0 %1267
        %1269 = vrot.lane.b32.xlu0 %v1139, 114
        %v1270 = vpop.permute.xlu0 %1269
        %1271 = vrot.lane.b32.xlu0 %v1143, 114
        %v1272 = vpop.permute.xlu0 %1271
        %1273 = vrot.lane.b32.xlu0 %v1142, 114
        %v1274 = vpop.permute.xlu0 %1273
        %vm1275 = vcmask 932864
        %v1276 = vsel %vm1275, %v1160, %v1162
        %v1277 = vsel %vm1275, %v1162, %v1164
        %v1278 = vsel %vm1275, %v1164, %v1166
        %v1279 = vsel %vm1275, %v1166, %v1168
        %v1280 = vsel %vm1275, %v1168, %v1170
        %v1281 = vsel %vm1275, %v1170, %v1172
        %v1282 = vsel %vm1275, %v1172, %v1174
        %v1283 = vsel %vm1275, %v1174, %v1176
        %v1284 = vsel %vm1275, %v1176, %v1178
        %v1285 = vsel %vm1275, %v1178, %v1180
        %v1286 = vsel %vm1275, %v1180, %v1182
        %v1287 = vsel %vm1275, %v1182, %v1184
        %v1288 = vsel %vm1275, %v1184, %v1186
        %v1289 = vsel %vm1275, %v1186, %v1188
        %v1290 = vsel %vm1275, %v1188, %v1190
        %v1291 = vsel %vm1275, %v1192, %v1194
        %v1292 = vsel %vm1275, %v1194, %v1196
        %v1293 = vsel %vm1275, %v1196, %v1198
        %v1294 = vsel %vm1275, %v1198, %v1200
        %v1295 = vsel %vm1275, %v1200, %v1202
        %v1296 = vsel %vm1275, %v1202, %v1204
        %v1297 = vsel %vm1275, %v1204, %v1206
        %v1298 = vsel %vm1275, %v1206, %v1208
        %v1299 = vsel %vm1275, %v1208, %v1210
        %v1300 = vsel %vm1275, %v1210, %v1212
        %v1301 = vsel %vm1275, %v1212, %v1214
        %v1302 = vsel %vm1275, %v1214, %v1216
        %v1303 = vsel %vm1275, %v1216, %v1218
        %v1304 = vsel %vm1275, %v1218, %v1220
        %v1305 = vsel %vm1275, %v1220, %v1222
        %v1306 = vsel %vm1275, %v1224, %v1226
        %v1307 = vsel %vm1275, %v1226, %v1228
        %v1308 = vsel %vm1275, %v1228, %v1230
        %v1309 = vsel %vm1275, %v1230, %v1232
        %v1310 = vsel %vm1275, %v1232, %v1234
        %v1311 = vsel %vm1275, %v1234, %v1236
        %v1312 = vsel %vm1275, %v1236, %v1238
        %v1313 = vsel %vm1275, %v1238, %v1240
        %v1314 = vsel %vm1275, %v1240, %v1242
        %v1315 = vsel %vm1275, %v1242, %v1244
        %v1316 = vsel %vm1275, %v1244, %v1246
        %v1317 = vsel %vm1275, %v1246, %v1248
        %v1318 = vsel %vm1275, %v1248, %v1250
        %v1319 = vsel %vm1275, %v1250, %v1252
        %v1320 = vsel %vm1275, %v1252, %v1254
        %v1321 = vsel %vm1275, %v1190, %v1256
        %v1322 = vsel %vm1275, %v1220, %v1258
        %v1323 = vsel %vm1275, %v1258, %v1260
        %v1324 = vsel %vm1275, %v1252, %v1262
        %v1325 = vsel %vm1275, %v1262, %v1264
        %v1326 = vsel %vm1275, %v1256, %v1266
        %v1327 = vsel %vm1275, %v1258, %v1268
        %v1328 = vsel %vm1275, %v1268, %v1270
        %v1329 = vsel %vm1275, %v1262, %v1272
        %v1330 = vsel %vm1275, %v1272, %v1274
        %vm1395 = vcmask 588800
        %v1397 = vsel %vm1395, %v1144, 0
        %v1400 = vsel %vm1395, %v1145, 0
        %1402 = vmatprep.subr.mxu0 %v1277
        %1403 = vmatpush1.msra.mxu0 %v1276
        %1404 = vmatprep.subr.mxu0 %v1292
        %1405 = vmatpush1.msra.mxu0 %v1291
        %1406 = vmatprep.subr.mxu0 %v1307
        %1407 = vmatpush1.msra.mxu0 %v1306
        %1408 = vmatprep.subr.mxu0 %v1278
        %1409 = vmatpush1.msra.mxu0 %v1277
        %1410 = vmatprep.subr.mxu0 %v1293
        %1411 = vmatpush1.msra.mxu0 %v1292
        %1412 = vmatprep.subr.mxu0 %v1308
        %1413 = vmatpush1.msra.mxu0 %v1307
        %1414 = vmatprep.subr.mxu0 %v1279
        %1415 = vmatpush1.msra.mxu0 %v1278
        %1416 = vmatprep.subr.mxu0 %v1294
        %1417 = vmatpush1.msra.mxu0 %v1293
        %1418 = vmatprep.subr.mxu0 %v1309
        %1419 = vmatpush1.msra.mxu0 %v1308
        %1420 = vmatprep.subr.mxu0 0.0
        %1421 = vmatpush1.msra.mxu0 0.0
        %1422 = vmatprep.subr.mxu0 0.0
        %1423 = vmatpush1.msra.mxu0 0.0
        %1424 = vmatprep.subr.mxu0 0.0
        %1425 = vmatpush1.msra.mxu0 0.0
        %1426 = vmatprep.subr.mxu0 0.0
        %1427 = vmatpush1.msra.mxu0 0.0
        %1428 = vmatprep.subr.mxu0 0.0
        %1429 = vmatpush1.msra.mxu0 0.0
        %1430 = vmatprep.subr.mxu0 0.0
        %1431 = vmatpush1.msra.mxu0 0.0
        %1432 = vmatprep.subr.mxu0 0.0
        %1433 = vmatpush1.msra.mxu0 0.0
        %1434 = vmatprep.subr.mxu0 0.0
        %1435 = vmatpush1.msra.mxu0 0.0
        %1436 = vmatprep.subr.mxu0 0.0
        %1437 = vmatpush1.msra.mxu0 0.0
        %1438 = vmatprep.subr.mxu0 0.0
        %1439 = vmatpush1.msra.mxu0 0.0
        %1440 = vmatprep.subr.mxu0 0.0
        %1441 = vmatpush1.msra.mxu0 0.0
        %1442 = vmatprep.subr.mxu0 0.0
        %1443 = vmatpush1.msra.mxu0 0.0
        %1444 = vmatprep.subr.mxu0 0.0
        %1445 = vmatpush1.msra.mxu0 0.0
        %1446 = vmatprep.subr.mxu0 0.0
        %1447 = vmatpush1.msra.mxu0 0.0
        %1448 = vmatprep.subr.mxu0 0.0
        %1449 = vmatpush1.msra.mxu0 0.0
        %1450 = vmatprep.subr.mxu0 0.0
        %1451 = vmatpush1.msra.mxu0 0.0
        %1452 = vmatprep.subr.mxu0 0.0
        %1453 = vmatpush1.msra.mxu0 0.0
        %1454 = vmatprep.subr.mxu0 0.0
        %1455 = vmatpush1.msra.mxu0 0.0
        %1456 = vmatprep.subr.mxu0 0.0
        %1457 = vmatpush1.msra.mxu0 0.0
        %1458 = vmatprep.subr.mxu0 0.0
        %1459 = vmatpush1.msra.mxu0 0.0
        %1460 = vmatprep.subr.mxu0 0.0
        %1461 = vmatpush1.msra.mxu0 0.0
        %1462 = vmatprep.subr.mxu0 0.0
        %1463 = vmatpush1.msra.mxu0 0.0
        %1464 = vmatprep.subr.mxu0 0.0
        %1465 = vmatpush1.msra.mxu0 0.0
        %1466 = vmatprep.mubr.f32.mxu0 0.0
        %1467 = vmatmul.mubr.f32.gmra.mrb[0].mxu0 %v1397
        %v1468 = vpop.f32.mrb[0].mxu0
        %v1469 = vadd.f32 %v1152, %v1468
        %v1470 = vpop.f32.mrb[0].mxu0
        %v1471 = vadd.f32 %v1152, %v1470
        %1472 = vmatprep.mubr.f32.mxu0 0.0
        %1473 = vmatmul.mubr.f32.gmra.mrb[0].mxu0 %v1400
        %v1474 = vpop.f32.mrb[0].mxu0
        %v1475 = vadd.f32 %v1157, %v1474
        %v1476 = vpop.f32.mrb[0].mxu0
        %v1477 = vadd.f32 %v1157, %v1476
        %1478 = vdwg.mxu0
        %1479 = vmatprep.subr.mxu0 %v1279
        %1480 = vmatpush1.msra.mxu0 %v1278
        %1481 = vmatprep.subr.mxu0 %v1294
        %1482 = vmatpush1.msra.mxu0 %v1293
        %1483 = vmatprep.subr.mxu0 %v1309
        %1484 = vmatpush1.msra.mxu0 %v1308
        %1485 = vmatprep.subr.mxu0 %v1280
        %1486 = vmatpush1.msra.mxu0 %v1279
        %1487 = vmatprep.subr.mxu0 %v1295
        %1488 = vmatpush1.msra.mxu0 %v1294
        %1489 = vmatprep.subr.mxu0 %v1310
        %1490 = vmatpush1.msra.mxu0 %v1309
        %1491 = vmatprep.subr.mxu0 %v1281
        %1492 = vmatpush1.msra.mxu0 %v1280
        %1493 = vmatprep.subr.mxu0 %v1296
        %1494 = vmatpush1.msra.mxu0 %v1295
        %1495 = vmatprep.subr.mxu0 %v1311
        %1496 = vmatpush1.msra.mxu0 %v1310
        %1497 = vmatprep.subr.mxu0 0.0
        %1498 = vmatpush1.msra.mxu0 0.0
        %1499 = vmatprep.subr.mxu0 0.0
        %1500 = vmatpush1.msra.mxu0 0.0
        %1501 = vmatprep.subr.mxu0 0.0
        %1502 = vmatpush1.msra.mxu0 0.0
        %1503 = vmatprep.subr.mxu0 0.0
        %1504 = vmatpush1.msra.mxu0 0.0
        %1505 = vmatprep.subr.mxu0 0.0
        %1506 = vmatpush1.msra.mxu0 0.0
        %1507 = vmatprep.subr.mxu0 0.0
        %1508 = vmatpush1.msra.mxu0 0.0
        %1509 = vmatprep.subr.mxu0 0.0
        %1510 = vmatpush1.msra.mxu0 0.0
        %1511 = vmatprep.subr.mxu0 0.0
        %1512 = vmatpush1.msra.mxu0 0.0
        %1513 = vmatprep.subr.mxu0 0.0
        %1514 = vmatpush1.msra.mxu0 0.0
        %1515 = vmatprep.subr.mxu0 0.0
        %1516 = vmatpush1.msra.mxu0 0.0
        %1517 = vmatprep.subr.mxu0 0.0
        %1518 = vmatpush1.msra.mxu0 0.0
        %1519 = vmatprep.subr.mxu0 0.0
        %1520 = vmatpush1.msra.mxu0 0.0
        %1521 = vmatprep.subr.mxu0 0.0
        %1522 = vmatpush1.msra.mxu0 0.0
        %1523 = vmatprep.subr.mxu0 0.0
        %1524 = vmatpush1.msra.mxu0 0.0
        %1525 = vmatprep.subr.mxu0 0.0
        %1526 = vmatpush1.msra.mxu0 0.0
        %1527 = vmatprep.subr.mxu0 0.0
        %1528 = vmatpush1.msra.mxu0 0.0
        %1529 = vmatprep.subr.mxu0 0.0
        %1530 = vmatpush1.msra.mxu0 0.0
        %1531 = vmatprep.subr.mxu0 0.0
        %1532 = vmatpush1.msra.mxu0 0.0
        %1533 = vmatprep.subr.mxu0 0.0
        %1534 = vmatpush1.msra.mxu0 0.0
        %1535 = vmatprep.subr.mxu0 0.0
        %1536 = vmatpush1.msra.mxu0 0.0
        %1537 = vmatprep.subr.mxu0 0.0
        %1538 = vmatpush1.msra.mxu0 0.0
        %1539 = vmatprep.subr.mxu0 0.0
        %1540 = vmatpush1.msra.mxu0 0.0
        %1541 = vmatprep.subr.mxu0 0.0
        %1542 = vmatpush1.msra.mxu0 0.0
        %1543 = vmatprep.mubr.f32.mxu0 0.0
        %1544 = vmatmul.mubr.f32.gmra.mrb[0].mxu0 %v1397
        %v1545 = vpop.f32.mrb[0].mxu0
        %v1546 = vadd.f32 %v1152, %v1545
        %v1547 = vpop.f32.mrb[0].mxu0
        %v1548 = vadd.f32 %v1152, %v1547
        %1549 = vmatprep.mubr.f32.mxu0 0.0
        %1550 = vmatmul.mubr.f32.gmra.mrb[0].mxu0 %v1400
        %v1551 = vpop.f32.mrb[0].mxu0
        %v1552 = vadd.f32 %v1157, %v1551
        %v1553 = vpop.f32.mrb[0].mxu0
        %v1554 = vadd.f32 %v1157, %v1553
        %1555 = vdwg.mxu0
        %1556 = vmatprep.subr.mxu0 %v1281
        %1557 = vmatpush1.msra.mxu0 %v1280
        %1558 = vmatprep.subr.mxu0 %v1296
        %1559 = vmatpush1.msra.mxu0 %v1295
        %1560 = vmatprep.subr.mxu0 %v1311
        %1561 = vmatpush1.msra.mxu0 %v1310
        %1562 = vmatprep.subr.mxu0 %v1282
        %1563 = vmatpush1.msra.mxu0 %v1281
        %1564 = vmatprep.subr.mxu0 %v1297
        %1565 = vmatpush1.msra.mxu0 %v1296
        %1566 = vmatprep.subr.mxu0 %v1312
        %1567 = vmatpush1.msra.mxu0 %v1311
        %1568 = vmatprep.subr.mxu0 %v1283
        %1569 = vmatpush1.msra.mxu0 %v1282
        %1570 = vmatprep.subr.mxu0 %v1298
        %1571 = vmatpush1.msra.mxu0 %v1297
        %1572 = vmatprep.subr.mxu0 %v1313
        %1573 = vmatpush1.msra.mxu0 %v1312
        %1574 = vmatprep.subr.mxu0 0.0
        %1575 = vmatpush1.msra.mxu0 0.0
        %1576 = vmatprep.subr.mxu0 0.0
        %1577 = vmatpush1.msra.mxu0 0.0
        %1578 = vmatprep.subr.mxu0 0.0
        %1579 = vmatpush1.msra.mxu0 0.0
        %1580 = vmatprep.subr.mxu0 0.0
        %1581 = vmatpush1.msra.mxu0 0.0
        %1582 = vmatprep.subr.mxu0 0.0
        %1583 = vmatpush1.msra.mxu0 0.0
        %1584 = vmatprep.subr.mxu0 0.0
        %1585 = vmatpush1.msra.mxu0 0.0
        %1586 = vmatprep.subr.mxu0 0.0
        %1587 = vmatpush1.msra.mxu0 0.0
        %1588 = vmatprep.subr.mxu0 0.0
        %1589 = vmatpush1.msra.mxu0 0.0
        %1590 = vmatprep.subr.mxu0 0.0
        %1591 = vmatpush1.msra.mxu0 0.0
        %1592 = vmatprep.subr.mxu0 0.0
        %1593 = vmatpush1.msra.mxu0 0.0
        %1594 = vmatprep.subr.mxu0 0.0
        %1595 = vmatpush1.msra.mxu0 0.0
        %1596 = vmatprep.subr.mxu0 0.0
        %1597 = vmatpush1.msra.mxu0 0.0
        %1598 = vmatprep.subr.mxu0 0.0
        %1599 = vmatpush1.msra.mxu0 0.0
        %1600 = vmatprep.subr.mxu0 0.0
        %1601 = vmatpush1.msra.mxu0 0.0
        %1602 = vmatprep.subr.mxu0 0.0
        %1603 = vmatpush1.msra.mxu0 0.0
        %1604 = vmatprep.subr.mxu0 0.0
        %1605 = vmatpush1.msra.mxu0 0.0
        %1606 = vmatprep.subr.mxu0 0.0
        %1607 = vmatpush1.msra.mxu0 0.0
        %1608 = vmatprep.subr.mxu0 0.0
        %1609 = vmatpush1.msra.mxu0 0.0
        %1610 = vmatprep.subr.mxu0 0.0
        %1611 = vmatpush1.msra.mxu0 0.0
        %1612 = vmatprep.subr.mxu0 0.0
        %1613 = vmatpush1.msra.mxu0 0.0
        %1614 = vmatprep.subr.mxu0 0.0
        %1615 = vmatpush1.msra.mxu0 0.0
        %1616 = vmatprep.subr.mxu0 0.0
        %1617 = vmatpush1.msra.mxu0 0.0
        %1618 = vmatprep.subr.mxu0 0.0
        %1619 = vmatpush1.msra.mxu0 0.0
        %1620 = vmatprep.mubr.f32.mxu0 0.0
        %1621 = vmatmul.mubr.f32.gmra.mrb[0].mxu0 %v1397
        %v1622 = vpop.f32.mrb[0].mxu0
        %v1623 = vadd.f32 %v1152, %v1622
        %v1624 = vpop.f32.mrb[0].mxu0
        %v1625 = vadd.f32 %v1152, %v1624
        %1626 = vmatprep.mubr.f32.mxu0 0.0
        %1627 = vmatmul.mubr.f32.gmra.mrb[0].mxu0 %v1400
        %v1628 = vpop.f32.mrb[0].mxu0
        %v1629 = vadd.f32 %v1157, %v1628
        %v1630 = vpop.f32.mrb[0].mxu0
        %v1631 = vadd.f32 %v1157, %v1630
        %1632 = vdwg.mxu0
        %1633 = vmatprep.subr.mxu0 %v1283
        %1634 = vmatpush1.msra.mxu0 %v1282
        %1635 = vmatprep.subr.mxu0 %v1298
        %1636 = vmatpush1.msra.mxu0 %v1297
        %1637 = vmatprep.subr.mxu0 %v1313
        %1638 = vmatpush1.msra.mxu0 %v1312
        %1639 = vmatprep.subr.mxu0 %v1284
        %1640 = vmatpush1.msra.mxu0 %v1283
        %1641 = vmatprep.subr.mxu0 %v1299
        %1642 = vmatpush1.msra.mxu0 %v1298
        %1643 = vmatprep.subr.mxu0 %v1314
        %1644 = vmatpush1.msra.mxu0 %v1313
        %1645 = vmatprep.subr.mxu0 %v1285
        %1646 = vmatpush1.msra.mxu0 %v1284
        %1647 = vmatprep.subr.mxu0 %v1300
        %1648 = vmatpush1.msra.mxu0 %v1299
        %1649 = vmatprep.subr.mxu0 %v1315
        %1650 = vmatpush1.msra.mxu0 %v1314
        %1651 = vmatprep.subr.mxu0 0.0
        %1652 = vmatpush1.msra.mxu0 0.0
        %1653 = vmatprep.subr.mxu0 0.0
        %1654 = vmatpush1.msra.mxu0 0.0
        %1655 = vmatprep.subr.mxu0 0.0
        %1656 = vmatpush1.msra.mxu0 0.0
        %1657 = vmatprep.subr.mxu0 0.0
        %1658 = vmatpush1.msra.mxu0 0.0
        %1659 = vmatprep.subr.mxu0 0.0
        %1660 = vmatpush1.msra.mxu0 0.0
        %1661 = vmatprep.subr.mxu0 0.0
        %1662 = vmatpush1.msra.mxu0 0.0
        %1663 = vmatprep.subr.mxu0 0.0
        %1664 = vmatpush1.msra.mxu0 0.0
        %1665 = vmatprep.subr.mxu0 0.0
        %1666 = vmatpush1.msra.mxu0 0.0
        %1667 = vmatprep.subr.mxu0 0.0
        %1668 = vmatpush1.msra.mxu0 0.0
        %1669 = vmatprep.subr.mxu0 0.0
        %1670 = vmatpush1.msra.mxu0 0.0
        %1671 = vmatprep.subr.mxu0 0.0
        %1672 = vmatpush1.msra.mxu0 0.0
        %1673 = vmatprep.subr.mxu0 0.0
        %1674 = vmatpush1.msra.mxu0 0.0
        %1675 = vmatprep.subr.mxu0 0.0
        %1676 = vmatpush1.msra.mxu0 0.0
        %1677 = vmatprep.subr.mxu0 0.0
        %1678 = vmatpush1.msra.mxu0 0.0
        %1679 = vmatprep.subr.mxu0 0.0
        %1680 = vmatpush1.msra.mxu0 0.0
        %1681 = vmatprep.subr.mxu0 0.0
        %1682 = vmatpush1.msra.mxu0 0.0
        %1683 = vmatprep.subr.mxu0 0.0
        %1684 = vmatpush1.msra.mxu0 0.0
        %1685 = vmatprep.subr.mxu0 0.0
        %1686 = vmatpush1.msra.mxu0 0.0
        %1687 = vmatprep.subr.mxu0 0.0
        %1688 = vmatpush1.msra.mxu0 0.0
        %1689 = vmatprep.subr.mxu0 0.0
        %1690 = vmatpush1.msra.mxu0 0.0
        %1691 = vmatprep.subr.mxu0 0.0
        %1692 = vmatpush1.msra.mxu0 0.0
        %1693 = vmatprep.subr.mxu0 0.0
        %1694 = vmatpush1.msra.mxu0 0.0
        %1695 = vmatprep.subr.mxu0 0.0
        %1696 = vmatpush1.msra.mxu0 0.0
        %1697 = vmatprep.mubr.f32.mxu0 0.0
        %1698 = vmatmul.mubr.f32.gmra.mrb[0].mxu0 %v1397
        %v1699 = vpop.f32.mrb[0].mxu0
        %v1700 = vadd.f32 %v1152, %v1699
        %v1701 = vpop.f32.mrb[0].mxu0
        %v1702 = vadd.f32 %v1152, %v1701
        %1703 = vmatprep.mubr.f32.mxu0 0.0
        %1704 = vmatmul.mubr.f32.gmra.mrb[0].mxu0 %v1400
        %v1705 = vpop.f32.mrb[0].mxu0
        %v1706 = vadd.f32 %v1157, %v1705
        %v1707 = vpop.f32.mrb[0].mxu0
        %v1708 = vadd.f32 %v1157, %v1707
        %1709 = vdwg.mxu0
        %1710 = vmatprep.subr.mxu0 %v1285
        %1711 = vmatpush1.msra.mxu0 %v1284
        %1712 = vmatprep.subr.mxu0 %v1300
        %1713 = vmatpush1.msra.mxu0 %v1299
        %1714 = vmatprep.subr.mxu0 %v1315
        %1715 = vmatpush1.msra.mxu0 %v1314
        %1716 = vmatprep.subr.mxu0 %v1286
        %1717 = vmatpush1.msra.mxu0 %v1285
        %1718 = vmatprep.subr.mxu0 %v1301
        %1719 = vmatpush1.msra.mxu0 %v1300
        %1720 = vmatprep.subr.mxu0 %v1316
        %1721 = vmatpush1.msra.mxu0 %v1315
        %1722 = vmatprep.subr.mxu0 %v1287
        %1723 = vmatpush1.msra.mxu0 %v1286
        %1724 = vmatprep.subr.mxu0 %v1302
        %1725 = vmatpush1.msra.mxu0 %v1301
        %1726 = vmatprep.subr.mxu0 %v1317
        %1727 = vmatpush1.msra.mxu0 %v1316
        %1728 = vmatprep.subr.mxu0 0.0
        %1729 = vmatpush1.msra.mxu0 0.0
        %1730 = vmatprep.subr.mxu0 0.0
        %1731 = vmatpush1.msra.mxu0 0.0
        %1732 = vmatprep.subr.mxu0 0.0
        %1733 = vmatpush1.msra.mxu0 0.0
        %1734 = vmatprep.subr.mxu0 0.0
        %1735 = vmatpush1.msra.mxu0 0.0
        %1736 = vmatprep.subr.mxu0 0.0
        %1737 = vmatpush1.msra.mxu0 0.0
        %1738 = vmatprep.subr.mxu0 0.0
        %1739 = vmatpush1.msra.mxu0 0.0
        %1740 = vmatprep.subr.mxu0 0.0
        %1741 = vmatpush1.msra.mxu0 0.0
        %1742 = vmatprep.subr.mxu0 0.0
        %1743 = vmatpush1.msra.mxu0 0.0
        %1744 = vmatprep.subr.mxu0 0.0
        %1745 = vmatpush1.msra.mxu0 0.0
        %1746 = vmatprep.subr.mxu0 0.0
        %1747 = vmatpush1.msra.mxu0 0.0
        %1748 = vmatprep.subr.mxu0 0.0
        %1749 = vmatpush1.msra.mxu0 0.0
        %1750 = vmatprep.subr.mxu0 0.0
        %1751 = vmatpush1.msra.mxu0 0.0
        %1752 = vmatprep.subr.mxu0 0.0
        %1753 = vmatpush1.msra.mxu0 0.0
        %1754 = vmatprep.subr.mxu0 0.0
        %1755 = vmatpush1.msra.mxu0 0.0
        %1756 = vmatprep.subr.mxu0 0.0
        %1757 = vmatpush1.msra.mxu0 0.0
        %1758 = vmatprep.subr.mxu0 0.0
        %1759 = vmatpush1.msra.mxu0 0.0
        %1760 = vmatprep.subr.mxu0 0.0
        %1761 = vmatpush1.msra.mxu0 0.0
        %1762 = vmatprep.subr.mxu0 0.0
        %1763 = vmatpush1.msra.mxu0 0.0
        %1764 = vmatprep.subr.mxu0 0.0
        %1765 = vmatpush1.msra.mxu0 0.0
        %1766 = vmatprep.subr.mxu0 0.0
        %1767 = vmatpush1.msra.mxu0 0.0
        %1768 = vmatprep.subr.mxu0 0.0
        %1769 = vmatpush1.msra.mxu0 0.0
        %1770 = vmatprep.subr.mxu0 0.0
        %1771 = vmatpush1.msra.mxu0 0.0
        %1772 = vmatprep.subr.mxu0 0.0
        %1773 = vmatpush1.msra.mxu0 0.0
        %1774 = vmatprep.mubr.f32.mxu0 0.0
        %1775 = vmatmul.mubr.f32.gmra.mrb[0].mxu0 %v1397
        %v1776 = vpop.f32.mrb[0].mxu0
        %v1777 = vadd.f32 %v1152, %v1776
        %v1778 = vpop.f32.mrb[0].mxu0
        %v1779 = vadd.f32 %v1152, %v1778
        %1780 = vmatprep.mubr.f32.mxu0 0.0
        %1781 = vmatmul.mubr.f32.gmra.mrb[0].mxu0 %v1400
        %v1782 = vpop.f32.mrb[0].mxu0
        %v1783 = vadd.f32 %v1157, %v1782
        %v1784 = vpop.f32.mrb[0].mxu0
        %v1785 = vadd.f32 %v1157, %v1784
        %1786 = vdwg.mxu0
        %1787 = vmatprep.subr.mxu0 %v1287
        %1788 = vmatpush1.msra.mxu0 %v1286
        %1789 = vmatprep.subr.mxu0 %v1302
        %1790 = vmatpush1.msra.mxu0 %v1301
        %1791 = vmatprep.subr.mxu0 %v1317
        %1792 = vmatpush1.msra.mxu0 %v1316
        %1793 = vmatprep.subr.mxu0 %v1288
        %1794 = vmatpush1.msra.mxu0 %v1287
        %1795 = vmatprep.subr.mxu0 %v1303
        %1796 = vmatpush1.msra.mxu0 %v1302
        %1797 = vmatprep.subr.mxu0 %v1318
        %1798 = vmatpush1.msra.mxu0 %v1317
        %1799 = vmatprep.subr.mxu0 %v1289
        %1800 = vmatpush1.msra.mxu0 %v1288
        %1801 = vmatprep.subr.mxu0 %v1304
        %1802 = vmatpush1.msra.mxu0 %v1303
        %1803 = vmatprep.subr.mxu0 %v1319
        %1804 = vmatpush1.msra.mxu0 %v1318
        %1805 = vmatprep.subr.mxu0 0.0
        %1806 = vmatpush1.msra.mxu0 0.0
        %1807 = vmatprep.subr.mxu0 0.0
        %1808 = vmatpush1.msra.mxu0 0.0
        %1809 = vmatprep.subr.mxu0 0.0
        %1810 = vmatpush1.msra.mxu0 0.0
        %1811 = vmatprep.subr.mxu0 0.0
        %1812 = vmatpush1.msra.mxu0 0.0
        %1813 = vmatprep.subr.mxu0 0.0
        %1814 = vmatpush1.msra.mxu0 0.0
        %1815 = vmatprep.subr.mxu0 0.0
        %1816 = vmatpush1.msra.mxu0 0.0
        %1817 = vmatprep.subr.mxu0 0.0
        %1818 = vmatpush1.msra.mxu0 0.0
        %1819 = vmatprep.subr.mxu0 0.0
        %1820 = vmatpush1.msra.mxu0 0.0
        %1821 = vmatprep.subr.mxu0 0.0
        %1822 = vmatpush1.msra.mxu0 0.0
        %1823 = vmatprep.subr.mxu0 0.0
        %1824 = vmatpush1.msra.mxu0 0.0
        %1825 = vmatprep.subr.mxu0 0.0
        %1826 = vmatpush1.msra.mxu0 0.0
        %1827 = vmatprep.subr.mxu0 0.0
        %1828 = vmatpush1.msra.mxu0 0.0
        %1829 = vmatprep.subr.mxu0 0.0
        %1830 = vmatpush1.msra.mxu0 0.0
        %1831 = vmatprep.subr.mxu0 0.0
        %1832 = vmatpush1.msra.mxu0 0.0
        %1833 = vmatprep.subr.mxu0 0.0
        %1834 = vmatpush1.msra.mxu0 0.0
        %1835 = vmatprep.subr.mxu0 0.0
        %1836 = vmatpush1.msra.mxu0 0.0
        %1837 = vmatprep.subr.mxu0 0.0
        %1838 = vmatpush1.msra.mxu0 0.0
        %1839 = vmatprep.subr.mxu0 0.0
        %1840 = vmatpush1.msra.mxu0 0.0
        %1841 = vmatprep.subr.mxu0 0.0
        %1842 = vmatpush1.msra.mxu0 0.0
        %1843 = vmatprep.subr.mxu0 0.0
        %1844 = vmatpush1.msra.mxu0 0.0
        %1845 = vmatprep.subr.mxu0 0.0
        %1846 = vmatpush1.msra.mxu0 0.0
        %1847 = vmatprep.subr.mxu0 0.0
        %1848 = vmatpush1.msra.mxu0 0.0
        %1849 = vmatprep.subr.mxu0 0.0
        %1850 = vmatpush1.msra.mxu0 0.0
        %1851 = vmatprep.mubr.f32.mxu0 0.0
        %1852 = vmatmul.mubr.f32.gmra.mrb[0].mxu0 %v1397
        %v1853 = vpop.f32.mrb[0].mxu0
        %v1854 = vadd.f32 %v1152, %v1853
        %v1855 = vpop.f32.mrb[0].mxu0
        %v1856 = vadd.f32 %v1152, %v1855
        %1857 = vmatprep.mubr.f32.mxu0 0.0
        %1858 = vmatmul.mubr.f32.gmra.mrb[0].mxu0 %v1400
        %v1859 = vpop.f32.mrb[0].mxu0
        %v1860 = vadd.f32 %v1157, %v1859
        %v1861 = vpop.f32.mrb[0].mxu0
        %v1862 = vadd.f32 %v1157, %v1861
        %1863 = vdwg.mxu0
        %1864 = vmatprep.subr.mxu0 %v1289
        %1865 = vmatpush1.msra.mxu0 %v1288
        %1866 = vmatprep.subr.mxu0 %v1304
        %1867 = vmatpush1.msra.mxu0 %v1303
        %1868 = vmatprep.subr.mxu0 %v1319
        %1869 = vmatpush1.msra.mxu0 %v1318
        %1870 = vmatprep.subr.mxu0 %v1290
        %1871 = vmatpush1.msra.mxu0 %v1289
        %1872 = vmatprep.subr.mxu0 %v1322
        %1873 = vmatpush1.msra.mxu0 %v1304
        %1874 = vmatprep.subr.mxu0 %v1324
        %1875 = vmatpush1.msra.mxu0 %v1319
        %1876 = vmatprep.subr.mxu0 %v1321
        %1877 = vmatpush1.msra.mxu0 %v1290
        %1878 = vmatprep.subr.mxu0 %v1327
        %1879 = vmatpush1.msra.mxu0 %v1322
        %1880 = vmatprep.subr.mxu0 %v1329
        %1881 = vmatpush1.msra.mxu0 %v1324
        %1882 = vmatprep.subr.mxu0 0.0
        %1883 = vmatpush1.msra.mxu0 0.0
        %1884 = vmatprep.subr.mxu0 0.0
        %1885 = vmatpush1.msra.mxu0 0.0
        %1886 = vmatprep.subr.mxu0 0.0
        %1887 = vmatpush1.msra.mxu0 0.0
        %1888 = vmatprep.subr.mxu0 0.0
        %1889 = vmatpush1.msra.mxu0 0.0
        %1890 = vmatprep.subr.mxu0 0.0
        %1891 = vmatpush1.msra.mxu0 0.0
        %1892 = vmatprep.subr.mxu0 0.0
        %1893 = vmatpush1.msra.mxu0 0.0
        %1894 = vmatprep.subr.mxu0 0.0
        %1895 = vmatpush1.msra.mxu0 0.0
        %1896 = vmatprep.subr.mxu0 0.0
        %1897 = vmatpush1.msra.mxu0 0.0
        %1898 = vmatprep.subr.mxu0 0.0
        %1899 = vmatpush1.msra.mxu0 0.0
        %1900 = vmatprep.subr.mxu0 0.0
        %1901 = vmatpush1.msra.mxu0 0.0
        %1902 = vmatprep.subr.mxu0 0.0
        %1903 = vmatpush1.msra.mxu0 0.0
        %1904 = vmatprep.subr.mxu0 0.0
        %1905 = vmatpush1.msra.mxu0 0.0
        %1906 = vmatprep.subr.mxu0 0.0
        %1907 = vmatpush1.msra.mxu0 0.0
        %1908 = vmatprep.subr.mxu0 0.0
        %1909 = vmatpush1.msra.mxu0 0.0
        %1910 = vmatprep.subr.mxu0 0.0
        %1911 = vmatpush1.msra.mxu0 0.0
        %1912 = vmatprep.subr.mxu0 0.0
        %1913 = vmatpush1.msra.mxu0 0.0
        %1914 = vmatprep.subr.mxu0 0.0
        %1915 = vmatpush1.msra.mxu0 0.0
        %1916 = vmatprep.subr.mxu0 0.0
        %1917 = vmatpush1.msra.mxu0 0.0
        %1918 = vmatprep.subr.mxu0 0.0
        %1919 = vmatpush1.msra.mxu0 0.0
        %1920 = vmatprep.subr.mxu0 0.0
        %1921 = vmatpush1.msra.mxu0 0.0
        %1922 = vmatprep.subr.mxu0 0.0
        %1923 = vmatpush1.msra.mxu0 0.0
        %1924 = vmatprep.subr.mxu0 0.0
        %1925 = vmatpush1.msra.mxu0 0.0
        %1926 = vmatprep.subr.mxu0 0.0
        %1927 = vmatpush1.msra.mxu0 0.0
        %1928 = vmatprep.mubr.f32.mxu0 0.0
        %1929 = vmatmul.mubr.f32.gmra.mrb[0].mxu0 %v1397
        %v1930 = vpop.f32.mrb[0].mxu0
        %v1931 = vadd.f32 %v1152, %v1930
        %v1932 = vpop.f32.mrb[0].mxu0
        %v1933 = vadd.f32 %v1152, %v1932
        %1934 = vmatprep.mubr.f32.mxu0 0.0
        %1935 = vmatmul.mubr.f32.gmra.mrb[0].mxu0 %v1400
        %v1936 = vpop.f32.mrb[0].mxu0
        %v1937 = vadd.f32 %v1157, %v1936
        %v1938 = vpop.f32.mrb[0].mxu0
        %v1939 = vadd.f32 %v1157, %v1938
        %1940 = vdwg.mxu0
        %1941 = vmatprep.subr.mxu0 %v1190
        %1942 = vmatpush1.msra.mxu0 %v1290
        %1943 = vmatprep.subr.mxu0 %v1222
        %1944 = vmatpush1.msra.mxu0 %v1305
        %1945 = vmatprep.subr.mxu0 %v1254
        %1946 = vmatpush1.msra.mxu0 %v1320
        %1947 = vmatprep.subr.mxu0 %v1256
        %1948 = vmatpush1.msra.mxu0 %v1321
        %1949 = vmatprep.subr.mxu0 %v1260
        %1950 = vmatpush1.msra.mxu0 %v1323
        %1951 = vmatprep.subr.mxu0 %v1264
        %1952 = vmatpush1.msra.mxu0 %v1325
        %1953 = vmatprep.subr.mxu0 %v1266
        %1954 = vmatpush1.msra.mxu0 %v1326
        %1955 = vmatprep.subr.mxu0 %v1270
        %1956 = vmatpush1.msra.mxu0 %v1328
        %1957 = vmatprep.subr.mxu0 %v1274
        %1958 = vmatpush1.msra.mxu0 %v1330
        %1959 = vmatprep.subr.mxu0 0.0
        %1960 = vmatpush1.msra.mxu0 0.0
        %1961 = vmatprep.subr.mxu0 0.0
        %1962 = vmatpush1.msra.mxu0 0.0
        %1963 = vmatprep.subr.mxu0 0.0
        %1964 = vmatpush1.msra.mxu0 0.0
        %1965 = vmatprep.subr.mxu0 0.0
        %1966 = vmatpush1.msra.mxu0 0.0
        %1967 = vmatprep.subr.mxu0 0.0
        %1968 = vmatpush1.msra.mxu0 0.0
        %1969 = vmatprep.subr.mxu0 0.0
        %1970 = vmatpush1.msra.mxu0 0.0
        %1971 = vmatprep.subr.mxu0 0.0
        %1972 = vmatpush1.msra.mxu0 0.0
        %1973 = vmatprep.subr.mxu0 0.0
        %1974 = vmatpush1.msra.mxu0 0.0
        %1975 = vmatprep.subr.mxu0 0.0
        %1976 = vmatpush1.msra.mxu0 0.0
        %1977 = vmatprep.subr.mxu0 0.0
        %1978 = vmatpush1.msra.mxu0 0.0
        %1979 = vmatprep.subr.mxu0 0.0
        %1980 = vmatpush1.msra.mxu0 0.0
        %1981 = vmatprep.subr.mxu0 0.0
        %1982 = vmatpush1.msra.mxu0 0.0
        %1983 = vmatprep.subr.mxu0 0.0
        %1984 = vmatpush1.msra.mxu0 0.0
        %1985 = vmatprep.subr.mxu0 0.0
        %1986 = vmatpush1.msra.mxu0 0.0
        %1987 = vmatprep.subr.mxu0 0.0
        %1988 = vmatpush1.msra.mxu0 0.0
        %1989 = vmatprep.subr.mxu0 0.0
        %1990 = vmatpush1.msra.mxu0 0.0
        %1991 = vmatprep.subr.mxu0 0.0
        %1992 = vmatpush1.msra.mxu0 0.0
        %1993 = vmatprep.subr.mxu0 0.0
        %1994 = vmatpush1.msra.mxu0 0.0
        %1995 = vmatprep.subr.mxu0 0.0
        %1996 = vmatpush1.msra.mxu0 0.0
        %1997 = vmatprep.subr.mxu0 0.0
        %1998 = vmatpush1.msra.mxu0 0.0
        %1999 = vmatprep.subr.mxu0 0.0
        %2000 = vmatpush1.msra.mxu0 0.0
        %2001 = vmatprep.subr.mxu0 0.0
        %2002 = vmatpush1.msra.mxu0 0.0
        %2003 = vmatprep.subr.mxu0 0.0
        %2004 = vmatpush1.msra.mxu0 0.0
        %2005 = vmatprep.mubr.f32.mxu0 0.0
        %2006 = vmatmul.mubr.f32.gmra.mrb[0].mxu0 %v1397
        %v2007 = vpop.f32.mrb[0].mxu0
        %v2008 = vadd.f32 %v1152, %v2007
        %v2009 = vpop.f32.mrb[0].mxu0
        %v2010 = vadd.f32 %v1152, %v2009
        %2011 = vmatprep.mubr.f32.mxu0 0.0
        %2012 = vmatmul.mubr.f32.gmra.mrb[0].mxu0 %v1400
        %v2013 = vpop.f32.mrb[0].mxu0
        %v2014 = vadd.f32 %v1157, %v2013
        %v2015 = vpop.f32.mrb[0].mxu0
        %v2016 = vadd.f32 %v1157, %v2015
        %2017 = vdwg.mxu0
        %s2018 = scalar_lea.vmem %s3, 16
        %v2019 = vld [vmem:[%s2018] sm:$0xff]
        %v2020 = vld [vmem:[%s2018 + $0x8] sm:$0xff]
        %vm2021 = vcmask 130048
        %v2023 = vsel %vm2021, %v2019, 0
        %v2026 = vsel %vm2021, %v2020, 0
        %2028 = vmatprep.subr.mxu0 %v1471
        %2029 = vmatpush1.msra.mxu0 %v1469
        %2030 = vmatprep.subr.mxu0 %v1477
        %2031 = vmatpush1.msra.mxu0 %v1475
        %2032 = vmatprep.subr.mxu0 0.0
        %2033 = vmatpush1.msra.mxu0 0.0
        %2034 = vmatprep.subr.mxu0 0.0
        %2035 = vmatpush1.msra.mxu0 0.0
        %2036 = vmatprep.subr.mxu0 0.0
        %2037 = vmatpush1.msra.mxu0 0.0
        %2038 = vmatprep.subr.mxu0 0.0
        %2039 = vmatpush1.msra.mxu0 0.0
        %2040 = vmatprep.subr.mxu0 0.0
        %2041 = vmatpush1.msra.mxu0 0.0
        %2042 = vmatprep.subr.mxu0 0.0
        %2043 = vmatpush1.msra.mxu0 0.0
        %2044 = vmatprep.subr.mxu0 0.0
        %2045 = vmatpush1.msra.mxu0 0.0
        %2046 = vmatprep.subr.mxu0 0.0
        %2047 = vmatpush1.msra.mxu0 0.0
        %2048 = vmatprep.subr.mxu0 0.0
        %2049 = vmatpush1.msra.mxu0 0.0
        %2050 = vmatprep.subr.mxu0 0.0
        %2051 = vmatpush1.msra.mxu0 0.0
        %2052 = vmatprep.subr.mxu0 0.0
        %2053 = vmatpush1.msra.mxu0 0.0
        %2054 = vmatprep.subr.mxu0 0.0
        %2055 = vmatpush1.msra.mxu0 0.0
        %2056 = vmatprep.subr.mxu0 0.0
        %2057 = vmatpush1.msra.mxu0 0.0
        %2058 = vmatprep.subr.mxu0 0.0
        %2059 = vmatpush1.msra.mxu0 0.0
        %2060 = vmatprep.subr.mxu0 0.0
        %2061 = vmatpush1.msra.mxu0 0.0
        %2062 = vmatprep.subr.mxu0 0.0
        %2063 = vmatpush1.msra.mxu0 0.0
        %2064 = vmatprep.subr.mxu0 0.0
        %2065 = vmatpush1.msra.mxu0 0.0
        %2066 = vmatprep.subr.mxu0 0.0
        %2067 = vmatpush1.msra.mxu0 0.0
        %2068 = vmatprep.subr.mxu0 0.0
        %2069 = vmatpush1.msra.mxu0 0.0
        %2070 = vmatprep.subr.mxu0 0.0
        %2071 = vmatpush1.msra.mxu0 0.0
        %2072 = vmatprep.subr.mxu0 0.0
        %2073 = vmatpush1.msra.mxu0 0.0
        %2074 = vmatprep.subr.mxu0 0.0
        %2075 = vmatpush1.msra.mxu0 0.0
        %2076 = vmatprep.subr.mxu0 0.0
        %2077 = vmatpush1.msra.mxu0 0.0
        %2078 = vmatprep.subr.mxu0 0.0
        %2079 = vmatpush1.msra.mxu0 0.0
        %2080 = vmatprep.subr.mxu0 0.0
        %2081 = vmatpush1.msra.mxu0 0.0
        %2082 = vmatprep.subr.mxu0 0.0
        %2083 = vmatpush1.msra.mxu0 0.0
        %2084 = vmatprep.subr.mxu0 0.0
        %2085 = vmatpush1.msra.mxu0 0.0
        %2086 = vmatprep.subr.mxu0 0.0
        %2087 = vmatpush1.msra.mxu0 0.0
        %2088 = vmatprep.subr.mxu0 0.0
        %2089 = vmatpush1.msra.mxu0 0.0
        %2090 = vmatprep.subr.mxu0 0.0
        %2091 = vmatpush1.msra.mxu0 0.0
        %2092 = vmatprep.mubr.f32.mxu0 0.0
        %2093 = vmatmul.mubr.f32.gmra.mrb[0].mxu0 %v2023
        %v2094 = vpop.f32.mrb[0].mxu0
        %v2095 = vadd.f32 0.0, %v2094
        %v2096 = vpop.f32.mrb[0].mxu0
        %v2097 = vadd.f32 0.0, %v2096
        %2098 = vmatprep.mubr.f32.mxu0 0.0
        %2099 = vmatmul.mubr.f32.gmra.mrb[0].mxu0 %v2026
        %v2100 = vpop.f32.mrb[0].mxu0
        %v2101 = vadd.f32 0.0, %v2100
        %v2102 = vpop.f32.mrb[0].mxu0
        %v2103 = vadd.f32 0.0, %v2102
        %2104 = vdwg.mxu0
        %2105 = vmatprep.subr.mxu0 %v1548
        %2106 = vmatpush1.msra.mxu0 %v1546
        %2107 = vmatprep.subr.mxu0 %v1554
        %2108 = vmatpush1.msra.mxu0 %v1552
        %2109 = vmatprep.subr.mxu0 0.0
        %2110 = vmatpush1.msra.mxu0 0.0
        %2111 = vmatprep.subr.mxu0 0.0
        %2112 = vmatpush1.msra.mxu0 0.0
        %2113 = vmatprep.subr.mxu0 0.0
        %2114 = vmatpush1.msra.mxu0 0.0
        %2115 = vmatprep.subr.mxu0 0.0
        %2116 = vmatpush1.msra.mxu0 0.0
        %2117 = vmatprep.subr.mxu0 0.0
        %2118 = vmatpush1.msra.mxu0 0.0
        %2119 = vmatprep.subr.mxu0 0.0
        %2120 = vmatpush1.msra.mxu0 0.0
        %2121 = vmatprep.subr.mxu0 0.0
        %2122 = vmatpush1.msra.mxu0 0.0
        %2123 = vmatprep.subr.mxu0 0.0
        %2124 = vmatpush1.msra.mxu0 0.0
        %2125 = vmatprep.subr.mxu0 0.0
        %2126 = vmatpush1.msra.mxu0 0.0
        %2127 = vmatprep.subr.mxu0 0.0
        %2128 = vmatpush1.msra.mxu0 0.0
        %2129 = vmatprep.subr.mxu0 0.0
        %2130 = vmatpush1.msra.mxu0 0.0
        %2131 = vmatprep.subr.mxu0 0.0
        %2132 = vmatpush1.msra.mxu0 0.0
        %2133 = vmatprep.subr.mxu0 0.0
        %2134 = vmatpush1.msra.mxu0 0.0
        %2135 = vmatprep.subr.mxu0 0.0
        %2136 = vmatpush1.msra.mxu0 0.0
        %2137 = vmatprep.subr.mxu0 0.0
        %2138 = vmatpush1.msra.mxu0 0.0
        %2139 = vmatprep.subr.mxu0 0.0
        %2140 = vmatpush1.msra.mxu0 0.0
        %2141 = vmatprep.subr.mxu0 0.0
        %2142 = vmatpush1.msra.mxu0 0.0
        %2143 = vmatprep.subr.mxu0 0.0
        %2144 = vmatpush1.msra.mxu0 0.0
        %2145 = vmatprep.subr.mxu0 0.0
        %2146 = vmatpush1.msra.mxu0 0.0
        %2147 = vmatprep.subr.mxu0 0.0
        %2148 = vmatpush1.msra.mxu0 0.0
        %2149 = vmatprep.subr.mxu0 0.0
        %2150 = vmatpush1.msra.mxu0 0.0
        %2151 = vmatprep.subr.mxu0 0.0
        %2152 = vmatpush1.msra.mxu0 0.0
        %2153 = vmatprep.subr.mxu0 0.0
        %2154 = vmatpush1.msra.mxu0 0.0
        %2155 = vmatprep.subr.mxu0 0.0
        %2156 = vmatpush1.msra.mxu0 0.0
        %2157 = vmatprep.subr.mxu0 0.0
        %2158 = vmatpush1.msra.mxu0 0.0
        %2159 = vmatprep.subr.mxu0 0.0
        %2160 = vmatpush1.msra.mxu0 0.0
        %2161 = vmatprep.subr.mxu0 0.0
        %2162 = vmatpush1.msra.mxu0 0.0
        %2163 = vmatprep.subr.mxu0 0.0
        %2164 = vmatpush1.msra.mxu0 0.0
        %2165 = vmatprep.subr.mxu0 0.0
        %2166 = vmatpush1.msra.mxu0 0.0
        %2167 = vmatprep.subr.mxu0 0.0
        %2168 = vmatpush1.msra.mxu0 0.0
        %2169 = vmatprep.mubr.f32.mxu0 0.0
        %2170 = vmatmul.mubr.f32.gmra.mrb[0].mxu0 %v2023
        %v2171 = vpop.f32.mrb[0].mxu0
        %v2172 = vadd.f32 0.0, %v2171
        %v2173 = vpop.f32.mrb[0].mxu0
        %v2174 = vadd.f32 0.0, %v2173
        %2175 = vmatprep.mubr.f32.mxu0 0.0
        %2176 = vmatmul.mubr.f32.gmra.mrb[0].mxu0 %v2026
        %v2177 = vpop.f32.mrb[0].mxu0
        %v2178 = vadd.f32 0.0, %v2177
        %v2179 = vpop.f32.mrb[0].mxu0
        %v2180 = vadd.f32 0.0, %v2179
        %2181 = vdwg.mxu0
        %2182 = vmatprep.subr.mxu0 %v1625
        %2183 = vmatpush1.msra.mxu0 %v1623
        %2184 = vmatprep.subr.mxu0 %v1631
        %2185 = vmatpush1.msra.mxu0 %v1629
        %2186 = vmatprep.subr.mxu0 0.0
        %2187 = vmatpush1.msra.mxu0 0.0
        %2188 = vmatprep.subr.mxu0 0.0
        %2189 = vmatpush1.msra.mxu0 0.0
        %2190 = vmatprep.subr.mxu0 0.0
        %2191 = vmatpush1.msra.mxu0 0.0
        %2192 = vmatprep.subr.mxu0 0.0
        %2193 = vmatpush1.msra.mxu0 0.0
        %2194 = vmatprep.subr.mxu0 0.0
        %2195 = vmatpush1.msra.mxu0 0.0
        %2196 = vmatprep.subr.mxu0 0.0
        %2197 = vmatpush1.msra.mxu0 0.0
        %2198 = vmatprep.subr.mxu0 0.0
        %2199 = vmatpush1.msra.mxu0 0.0
        %2200 = vmatprep.subr.mxu0 0.0
        %2201 = vmatpush1.msra.mxu0 0.0
        %2202 = vmatprep.subr.mxu0 0.0
        %2203 = vmatpush1.msra.mxu0 0.0
        %2204 = vmatprep.subr.mxu0 0.0
        %2205 = vmatpush1.msra.mxu0 0.0
        %2206 = vmatprep.subr.mxu0 0.0
        %2207 = vmatpush1.msra.mxu0 0.0
        %2208 = vmatprep.subr.mxu0 0.0
        %2209 = vmatpush1.msra.mxu0 0.0
        %2210 = vmatprep.subr.mxu0 0.0
        %2211 = vmatpush1.msra.mxu0 0.0
        %2212 = vmatprep.subr.mxu0 0.0
        %2213 = vmatpush1.msra.mxu0 0.0
        %2214 = vmatprep.subr.mxu0 0.0
        %2215 = vmatpush1.msra.mxu0 0.0
        %2216 = vmatprep.subr.mxu0 0.0
        %2217 = vmatpush1.msra.mxu0 0.0
        %2218 = vmatprep.subr.mxu0 0.0
        %2219 = vmatpush1.msra.mxu0 0.0
        %2220 = vmatprep.subr.mxu0 0.0
        %2221 = vmatpush1.msra.mxu0 0.0
        %2222 = vmatprep.subr.mxu0 0.0
        %2223 = vmatpush1.msra.mxu0 0.0
        %2224 = vmatprep.subr.mxu0 0.0
        %2225 = vmatpush1.msra.mxu0 0.0
        %2226 = vmatprep.subr.mxu0 0.0
        %2227 = vmatpush1.msra.mxu0 0.0
        %2228 = vmatprep.subr.mxu0 0.0
        %2229 = vmatpush1.msra.mxu0 0.0
        %2230 = vmatprep.subr.mxu0 0.0
        %2231 = vmatpush1.msra.mxu0 0.0
        %2232 = vmatprep.subr.mxu0 0.0
        %2233 = vmatpush1.msra.mxu0 0.0
        %2234 = vmatprep.subr.mxu0 0.0
        %2235 = vmatpush1.msra.mxu0 0.0
        %2236 = vmatprep.subr.mxu0 0.0
        %2237 = vmatpush1.msra.mxu0 0.0
        %2238 = vmatprep.subr.mxu0 0.0
        %2239 = vmatpush1.msra.mxu0 0.0
        %2240 = vmatprep.subr.mxu0 0.0
        %2241 = vmatpush1.msra.mxu0 0.0
        %2242 = vmatprep.subr.mxu0 0.0
        %2243 = vmatpush1.msra.mxu0 0.0
        %2244 = vmatprep.subr.mxu0 0.0
        %2245 = vmatpush1.msra.mxu0 0.0
        %2246 = vmatprep.mubr.f32.mxu0 0.0
        %2247 = vmatmul.mubr.f32.gmra.mrb[0].mxu0 %v2023
        %v2248 = vpop.f32.mrb[0].mxu0
        %v2249 = vadd.f32 0.0, %v2248
        %v2250 = vpop.f32.mrb[0].mxu0
        %v2251 = vadd.f32 0.0, %v2250
        %2252 = vmatprep.mubr.f32.mxu0 0.0
        %2253 = vmatmul.mubr.f32.gmra.mrb[0].mxu0 %v2026
        %v2254 = vpop.f32.mrb[0].mxu0
        %v2255 = vadd.f32 0.0, %v2254
        %v2256 = vpop.f32.mrb[0].mxu0
        %v2257 = vadd.f32 0.0, %v2256
        %2258 = vdwg.mxu0
        %2259 = vmatprep.subr.mxu0 %v1702
        %2260 = vmatpush1.msra.mxu0 %v1700
        %2261 = vmatprep.subr.mxu0 %v1708
        %2262 = vmatpush1.msra.mxu0 %v1706
        %2263 = vmatprep.subr.mxu0 0.0
        %2264 = vmatpush1.msra.mxu0 0.0
        %2265 = vmatprep.subr.mxu0 0.0
        %2266 = vmatpush1.msra.mxu0 0.0
        %2267 = vmatprep.subr.mxu0 0.0
        %2268 = vmatpush1.msra.mxu0 0.0
        %2269 = vmatprep.subr.mxu0 0.0
        %2270 = vmatpush1.msra.mxu0 0.0
        %2271 = vmatprep.subr.mxu0 0.0
        %2272 = vmatpush1.msra.mxu0 0.0
        %2273 = vmatprep.subr.mxu0 0.0
        %2274 = vmatpush1.msra.mxu0 0.0
        %2275 = vmatprep.subr.mxu0 0.0
        %2276 = vmatpush1.msra.mxu0 0.0
        %2277 = vmatprep.subr.mxu0 0.0
        %2278 = vmatpush1.msra.mxu0 0.0
        %2279 = vmatprep.subr.mxu0 0.0
        %2280 = vmatpush1.msra.mxu0 0.0
        %2281 = vmatprep.subr.mxu0 0.0
        %2282 = vmatpush1.msra.mxu0 0.0
        %2283 = vmatprep.subr.mxu0 0.0
        %2284 = vmatpush1.msra.mxu0 0.0
        %2285 = vmatprep.subr.mxu0 0.0
        %2286 = vmatpush1.msra.mxu0 0.0
        %2287 = vmatprep.subr.mxu0 0.0
        %2288 = vmatpush1.msra.mxu0 0.0
        %2289 = vmatprep.subr.mxu0 0.0
        %2290 = vmatpush1.msra.mxu0 0.0
        %2291 = vmatprep.subr.mxu0 0.0
        %2292 = vmatpush1.msra.mxu0 0.0
        %2293 = vmatprep.subr.mxu0 0.0
        %2294 = vmatpush1.msra.mxu0 0.0
        %2295 = vmatprep.subr.mxu0 0.0
        %2296 = vmatpush1.msra.mxu0 0.0
        %2297 = vmatprep.subr.mxu0 0.0
        %2298 = vmatpush1.msra.mxu0 0.0
        %2299 = vmatprep.subr.mxu0 0.0
        %2300 = vmatpush1.msra.mxu0 0.0
        %2301 = vmatprep.subr.mxu0 0.0
        %2302 = vmatpush1.msra.mxu0 0.0
        %2303 = vmatprep.subr.mxu0 0.0
        %2304 = vmatpush1.msra.mxu0 0.0
        %2305 = vmatprep.subr.mxu0 0.0
        %2306 = vmatpush1.msra.mxu0 0.0
        %2307 = vmatprep.subr.mxu0 0.0
        %2308 = vmatpush1.msra.mxu0 0.0
        %2309 = vmatprep.subr.mxu0 0.0
        %2310 = vmatpush1.msra.mxu0 0.0
        %2311 = vmatprep.subr.mxu0 0.0
        %2312 = vmatpush1.msra.mxu0 0.0
        %2313 = vmatprep.subr.mxu0 0.0
        %2314 = vmatpush1.msra.mxu0 0.0
        %2315 = vmatprep.subr.mxu0 0.0
        %2316 = vmatpush1.msra.mxu0 0.0
        %2317 = vmatprep.subr.mxu0 0.0
        %2318 = vmatpush1.msra.mxu0 0.0
        %2319 = vmatprep.subr.mxu0 0.0
        %2320 = vmatpush1.msra.mxu0 0.0
        %2321 = vmatprep.subr.mxu0 0.0
        %2322 = vmatpush1.msra.mxu0 0.0
        %2323 = vmatprep.mubr.f32.mxu0 0.0
        %2324 = vmatmul.mubr.f32.gmra.mrb[0].mxu0 %v2023
        %v2325 = vpop.f32.mrb[0].mxu0
        %v2326 = vadd.f32 0.0, %v2325
        %v2327 = vpop.f32.mrb[0].mxu0
        %v2328 = vadd.f32 0.0, %v2327
        %2329 = vmatprep.mubr.f32.mxu0 0.0
        %2330 = vmatmul.mubr.f32.gmra.mrb[0].mxu0 %v2026
        %v2331 = vpop.f32.mrb[0].mxu0
        %v2332 = vadd.f32 0.0, %v2331
        %v2333 = vpop.f32.mrb[0].mxu0
        %v2334 = vadd.f32 0.0, %v2333
        %2335 = vdwg.mxu0
        %2336 = vmatprep.subr.mxu0 %v1779
        %2337 = vmatpush1.msra.mxu0 %v1777
        %2338 = vmatprep.subr.mxu0 %v1785
        %2339 = vmatpush1.msra.mxu0 %v1783
        %2340 = vmatprep.subr.mxu0 0.0
        %2341 = vmatpush1.msra.mxu0 0.0
        %2342 = vmatprep.subr.mxu0 0.0
        %2343 = vmatpush1.msra.mxu0 0.0
        %2344 = vmatprep.subr.mxu0 0.0
        %2345 = vmatpush1.msra.mxu0 0.0
        %2346 = vmatprep.subr.mxu0 0.0
        %2347 = vmatpush1.msra.mxu0 0.0
        %2348 = vmatprep.subr.mxu0 0.0
        %2349 = vmatpush1.msra.mxu0 0.0
        %2350 = vmatprep.subr.mxu0 0.0
        %2351 = vmatpush1.msra.mxu0 0.0
        %2352 = vmatprep.subr.mxu0 0.0
        %2353 = vmatpush1.msra.mxu0 0.0
        %2354 = vmatprep.subr.mxu0 0.0
        %2355 = vmatpush1.msra.mxu0 0.0
        %2356 = vmatprep.subr.mxu0 0.0
        %2357 = vmatpush1.msra.mxu0 0.0
        %2358 = vmatprep.subr.mxu0 0.0
        %2359 = vmatpush1.msra.mxu0 0.0
        %2360 = vmatprep.subr.mxu0 0.0
        %2361 = vmatpush1.msra.mxu0 0.0
        %2362 = vmatprep.subr.mxu0 0.0
        %2363 = vmatpush1.msra.mxu0 0.0
        %2364 = vmatprep.subr.mxu0 0.0
        %2365 = vmatpush1.msra.mxu0 0.0
        %2366 = vmatprep.subr.mxu0 0.0
        %2367 = vmatpush1.msra.mxu0 0.0
        %2368 = vmatprep.subr.mxu0 0.0
        %2369 = vmatpush1.msra.mxu0 0.0
        %2370 = vmatprep.subr.mxu0 0.0
        %2371 = vmatpush1.msra.mxu0 0.0
        %2372 = vmatprep.subr.mxu0 0.0
        %2373 = vmatpush1.msra.mxu0 0.0
        %2374 = vmatprep.subr.mxu0 0.0
        %2375 = vmatpush1.msra.mxu0 0.0
        %2376 = vmatprep.subr.mxu0 0.0
        %2377 = vmatpush1.msra.mxu0 0.0
        %2378 = vmatprep.subr.mxu0 0.0
        %2379 = vmatpush1.msra.mxu0 0.0
        %2380 = vmatprep.subr.mxu0 0.0
        %2381 = vmatpush1.msra.mxu0 0.0
        %2382 = vmatprep.subr.mxu0 0.0
        %2383 = vmatpush1.msra.mxu0 0.0
        %2384 = vmatprep.subr.mxu0 0.0
        %2385 = vmatpush1.msra.mxu0 0.0
        %2386 = vmatprep.subr.mxu0 0.0
        %2387 = vmatpush1.msra.mxu0 0.0
        %2388 = vmatprep.subr.mxu0 0.0
        %2389 = vmatpush1.msra.mxu0 0.0
        %2390 = vmatprep.subr.mxu0 0.0
        %2391 = vmatpush1.msra.mxu0 0.0
        %2392 = vmatprep.subr.mxu0 0.0
        %2393 = vmatpush1.msra.mxu0 0.0
        %2394 = vmatprep.subr.mxu0 0.0
        %2395 = vmatpush1.msra.mxu0 0.0
        %2396 = vmatprep.subr.mxu0 0.0
        %2397 = vmatpush1.msra.mxu0 0.0
        %2398 = vmatprep.subr.mxu0 0.0
        %2399 = vmatpush1.msra.mxu0 0.0
        %2400 = vmatprep.mubr.f32.mxu0 0.0
        %2401 = vmatmul.mubr.f32.gmra.mrb[0].mxu0 %v2023
        %v2402 = vpop.f32.mrb[0].mxu0
        %v2403 = vadd.f32 0.0, %v2402
        %v2404 = vpop.f32.mrb[0].mxu0
        %v2405 = vadd.f32 0.0, %v2404
        %2406 = vmatprep.mubr.f32.mxu0 0.0
        %2407 = vmatmul.mubr.f32.gmra.mrb[0].mxu0 %v2026
        %v2408 = vpop.f32.mrb[0].mxu0
        %v2409 = vadd.f32 0.0, %v2408
        %v2410 = vpop.f32.mrb[0].mxu0
        %v2411 = vadd.f32 0.0, %v2410
        %2412 = vdwg.mxu0
        %2413 = vmatprep.subr.mxu0 %v1856
        %2414 = vmatpush1.msra.mxu0 %v1854
        %2415 = vmatprep.subr.mxu0 %v1862
        %2416 = vmatpush1.msra.mxu0 %v1860
        %2417 = vmatprep.subr.mxu0 0.0
        %2418 = vmatpush1.msra.mxu0 0.0
        %2419 = vmatprep.subr.mxu0 0.0
        %2420 = vmatpush1.msra.mxu0 0.0
        %2421 = vmatprep.subr.mxu0 0.0
        %2422 = vmatpush1.msra.mxu0 0.0
        %2423 = vmatprep.subr.mxu0 0.0
        %2424 = vmatpush1.msra.mxu0 0.0
        %2425 = vmatprep.subr.mxu0 0.0
        %2426 = vmatpush1.msra.mxu0 0.0
        %2427 = vmatprep.subr.mxu0 0.0
        %2428 = vmatpush1.msra.mxu0 0.0
        %2429 = vmatprep.subr.mxu0 0.0
        %2430 = vmatpush1.msra.mxu0 0.0
        %2431 = vmatprep.subr.mxu0 0.0
        %2432 = vmatpush1.msra.mxu0 0.0
        %2433 = vmatprep.subr.mxu0 0.0
        %2434 = vmatpush1.msra.mxu0 0.0
        %2435 = vmatprep.subr.mxu0 0.0
        %2436 = vmatpush1.msra.mxu0 0.0
        %2437 = vmatprep.subr.mxu0 0.0
        %2438 = vmatpush1.msra.mxu0 0.0
        %2439 = vmatprep.subr.mxu0 0.0
        %2440 = vmatpush1.msra.mxu0 0.0
        %2441 = vmatprep.subr.mxu0 0.0
        %2442 = vmatpush1.msra.mxu0 0.0
        %2443 = vmatprep.subr.mxu0 0.0
        %2444 = vmatpush1.msra.mxu0 0.0
        %2445 = vmatprep.subr.mxu0 0.0
        %2446 = vmatpush1.msra.mxu0 0.0
        %2447 = vmatprep.subr.mxu0 0.0
        %2448 = vmatpush1.msra.mxu0 0.0
        %2449 = vmatprep.subr.mxu0 0.0
        %2450 = vmatpush1.msra.mxu0 0.0
        %2451 = vmatprep.subr.mxu0 0.0
        %2452 = vmatpush1.msra.mxu0 0.0
        %2453 = vmatprep.subr.mxu0 0.0
        %2454 = vmatpush1.msra.mxu0 0.0
        %2455 = vmatprep.subr.mxu0 0.0
        %2456 = vmatpush1.msra.mxu0 0.0
        %2457 = vmatprep.subr.mxu0 0.0
        %2458 = vmatpush1.msra.mxu0 0.0
        %2459 = vmatprep.subr.mxu0 0.0
        %2460 = vmatpush1.msra.mxu0 0.0
        %2461 = vmatprep.subr.mxu0 0.0
        %2462 = vmatpush1.msra.mxu0 0.0
        %2463 = vmatprep.subr.mxu0 0.0
        %2464 = vmatpush1.msra.mxu0 0.0
        %2465 = vmatprep.subr.mxu0 0.0
        %2466 = vmatpush1.msra.mxu0 0.0
        %2467 = vmatprep.subr.mxu0 0.0
        %2468 = vmatpush1.msra.mxu0 0.0
        %2469 = vmatprep.subr.mxu0 0.0
        %2470 = vmatpush1.msra.mxu0 0.0
        %2471 = vmatprep.subr.mxu0 0.0
        %2472 = vmatpush1.msra.mxu0 0.0
        %2473 = vmatprep.subr.mxu0 0.0
        %2474 = vmatpush1.msra.mxu0 0.0
        %2475 = vmatprep.subr.mxu0 0.0
        %2476 = vmatpush1.msra.mxu0 0.0
        %2477 = vmatprep.mubr.f32.mxu0 0.0
        %2478 = vmatmul.mubr.f32.gmra.mrb[0].mxu0 %v2023
        %v2479 = vpop.f32.mrb[0].mxu0
        %v2480 = vadd.f32 0.0, %v2479
        %v2481 = vpop.f32.mrb[0].mxu0
        %v2482 = vadd.f32 0.0, %v2481
        %2483 = vmatprep.mubr.f32.mxu0 0.0
        %2484 = vmatmul.mubr.f32.gmra.mrb[0].mxu0 %v2026
        %v2485 = vpop.f32.mrb[0].mxu0
        %v2486 = vadd.f32 0.0, %v2485
        %v2487 = vpop.f32.mrb[0].mxu0
        %v2488 = vadd.f32 0.0, %v2487
        %2489 = vdwg.mxu0
        %2490 = vmatprep.subr.mxu0 %v1933
        %2491 = vmatpush1.msra.mxu0 %v1931
        %2492 = vmatprep.subr.mxu0 %v1939
        %2493 = vmatpush1.msra.mxu0 %v1937
        %2494 = vmatprep.subr.mxu0 0.0
        %2495 = vmatpush1.msra.mxu0 0.0
        %2496 = vmatprep.subr.mxu0 0.0
        %2497 = vmatpush1.msra.mxu0 0.0
        %2498 = vmatprep.subr.mxu0 0.0
        %2499 = vmatpush1.msra.mxu0 0.0
        %2500 = vmatprep.subr.mxu0 0.0
        %2501 = vmatpush1.msra.mxu0 0.0
        %2502 = vmatprep.subr.mxu0 0.0
        %2503 = vmatpush1.msra.mxu0 0.0
        %2504 = vmatprep.subr.mxu0 0.0
        %2505 = vmatpush1.msra.mxu0 0.0
        %2506 = vmatprep.subr.mxu0 0.0
        %2507 = vmatpush1.msra.mxu0 0.0
        %2508 = vmatprep.subr.mxu0 0.0
        %2509 = vmatpush1.msra.mxu0 0.0
        %2510 = vmatprep.subr.mxu0 0.0
        %2511 = vmatpush1.msra.mxu0 0.0
        %2512 = vmatprep.subr.mxu0 0.0
        %2513 = vmatpush1.msra.mxu0 0.0
        %2514 = vmatprep.subr.mxu0 0.0
        %2515 = vmatpush1.msra.mxu0 0.0
        %2516 = vmatprep.subr.mxu0 0.0
        %2517 = vmatpush1.msra.mxu0 0.0
        %2518 = vmatprep.subr.mxu0 0.0
        %2519 = vmatpush1.msra.mxu0 0.0
        %2520 = vmatprep.subr.mxu0 0.0
        %2521 = vmatpush1.msra.mxu0 0.0
        %2522 = vmatprep.subr.mxu0 0.0
        %2523 = vmatpush1.msra.mxu0 0.0
        %2524 = vmatprep.subr.mxu0 0.0
        %2525 = vmatpush1.msra.mxu0 0.0
        %2526 = vmatprep.subr.mxu0 0.0
        %2527 = vmatpush1.msra.mxu0 0.0
        %2528 = vmatprep.subr.mxu0 0.0
        %2529 = vmatpush1.msra.mxu0 0.0
        %2530 = vmatprep.subr.mxu0 0.0
        %2531 = vmatpush1.msra.mxu0 0.0
        %2532 = vmatprep.subr.mxu0 0.0
        %2533 = vmatpush1.msra.mxu0 0.0
        %2534 = vmatprep.subr.mxu0 0.0
        %2535 = vmatpush1.msra.mxu0 0.0
        %2536 = vmatprep.subr.mxu0 0.0
        %2537 = vmatpush1.msra.mxu0 0.0
        %2538 = vmatprep.subr.mxu0 0.0
        %2539 = vmatpush1.msra.mxu0 0.0
        %2540 = vmatprep.subr.mxu0 0.0
        %2541 = vmatpush1.msra.mxu0 0.0
        %2542 = vmatprep.subr.mxu0 0.0
        %2543 = vmatpush1.msra.mxu0 0.0
        %2544 = vmatprep.subr.mxu0 0.0
        %2545 = vmatpush1.msra.mxu0 0.0
        %2546 = vmatprep.subr.mxu0 0.0
        %2547 = vmatpush1.msra.mxu0 0.0
        %2548 = vmatprep.subr.mxu0 0.0
        %2549 = vmatpush1.msra.mxu0 0.0
        %2550 = vmatprep.subr.mxu0 0.0
        %2551 = vmatpush1.msra.mxu0 0.0
        %2552 = vmatprep.subr.mxu0 0.0
        %2553 = vmatpush1.msra.mxu0 0.0
        %2554 = vmatprep.mubr.f32.mxu0 0.0
        %2555 = vmatmul.mubr.f32.gmra.mrb[0].mxu0 %v2023
        %v2556 = vpop.f32.mrb[0].mxu0
        %v2557 = vadd.f32 0.0, %v2556
        %v2558 = vpop.f32.mrb[0].mxu0
        %v2559 = vadd.f32 0.0, %v2558
        %2560 = vmatprep.mubr.f32.mxu0 0.0
        %2561 = vmatmul.mubr.f32.gmra.mrb[0].mxu0 %v2026
        %v2562 = vpop.f32.mrb[0].mxu0
        %v2563 = vadd.f32 0.0, %v2562
        %v2564 = vpop.f32.mrb[0].mxu0
        %v2565 = vadd.f32 0.0, %v2564
        %2566 = vdwg.mxu0
        %2567 = vmatprep.subr.mxu0 %v2010
        %2568 = vmatpush1.msra.mxu0 %v2008
        %2569 = vmatprep.subr.mxu0 %v2016
        %2570 = vmatpush1.msra.mxu0 %v2014
        %2571 = vmatprep.subr.mxu0 0.0
        %2572 = vmatpush1.msra.mxu0 0.0
        %2573 = vmatprep.subr.mxu0 0.0
        %2574 = vmatpush1.msra.mxu0 0.0
        %2575 = vmatprep.subr.mxu0 0.0
        %2576 = vmatpush1.msra.mxu0 0.0
        %2577 = vmatprep.subr.mxu0 0.0
        %2578 = vmatpush1.msra.mxu0 0.0
        %2579 = vmatprep.subr.mxu0 0.0
        %2580 = vmatpush1.msra.mxu0 0.0
        %2581 = vmatprep.subr.mxu0 0.0
        %2582 = vmatpush1.msra.mxu0 0.0
        %2583 = vmatprep.subr.mxu0 0.0
        %2584 = vmatpush1.msra.mxu0 0.0
        %2585 = vmatprep.subr.mxu0 0.0
        %2586 = vmatpush1.msra.mxu0 0.0
        %2587 = vmatprep.subr.mxu0 0.0
        %2588 = vmatpush1.msra.mxu0 0.0
        %2589 = vmatprep.subr.mxu0 0.0
        %2590 = vmatpush1.msra.mxu0 0.0
        %2591 = vmatprep.subr.mxu0 0.0
        %2592 = vmatpush1.msra.mxu0 0.0
        %2593 = vmatprep.subr.mxu0 0.0
        %2594 = vmatpush1.msra.mxu0 0.0
        %2595 = vmatprep.subr.mxu0 0.0
        %2596 = vmatpush1.msra.mxu0 0.0
        %2597 = vmatprep.subr.mxu0 0.0
        %2598 = vmatpush1.msra.mxu0 0.0
        %2599 = vmatprep.subr.mxu0 0.0
        %2600 = vmatpush1.msra.mxu0 0.0
        %2601 = vmatprep.subr.mxu0 0.0
        %2602 = vmatpush1.msra.mxu0 0.0
        %2603 = vmatprep.subr.mxu0 0.0
        %2604 = vmatpush1.msra.mxu0 0.0
        %2605 = vmatprep.subr.mxu0 0.0
        %2606 = vmatpush1.msra.mxu0 0.0
        %2607 = vmatprep.subr.mxu0 0.0
        %2608 = vmatpush1.msra.mxu0 0.0
        %2609 = vmatprep.subr.mxu0 0.0
        %2610 = vmatpush1.msra.mxu0 0.0
        %2611 = vmatprep.subr.mxu0 0.0
        %2612 = vmatpush1.msra.mxu0 0.0
        %2613 = vmatprep.subr.mxu0 0.0
        %2614 = vmatpush1.msra.mxu0 0.0
        %2615 = vmatprep.subr.mxu0 0.0
        %2616 = vmatpush1.msra.mxu0 0.0
        %2617 = vmatprep.subr.mxu0 0.0
        %2618 = vmatpush1.msra.mxu0 0.0
        %2619 = vmatprep.subr.mxu0 0.0
        %2620 = vmatpush1.msra.mxu0 0.0
        %2621 = vmatprep.subr.mxu0 0.0
        %2622 = vmatpush1.msra.mxu0 0.0
        %2623 = vmatprep.subr.mxu0 0.0
        %2624 = vmatpush1.msra.mxu0 0.0
        %2625 = vmatprep.subr.mxu0 0.0
        %2626 = vmatpush1.msra.mxu0 0.0
        %2627 = vmatprep.subr.mxu0 0.0
        %2628 = vmatpush1.msra.mxu0 0.0
        %2629 = vmatprep.subr.mxu0 0.0
        %2630 = vmatpush1.msra.mxu0 0.0
        %2631 = vmatprep.mubr.f32.mxu0 0.0
        %2632 = vmatmul.mubr.f32.gmra.mrb[0].mxu0 %v2023
        %v2633 = vpop.f32.mrb[0].mxu0
        %v2634 = vadd.f32 0.0, %v2633
        %v2635 = vpop.f32.mrb[0].mxu0
        %v2636 = vadd.f32 0.0, %v2635
        %2637 = vmatprep.mubr.f32.mxu0 0.0
        %2638 = vmatmul.mubr.f32.gmra.mrb[0].mxu0 %v2026
        %v2639 = vpop.f32.mrb[0].mxu0
        %v2640 = vadd.f32 0.0, %v2639
        %v2641 = vpop.f32.mrb[0].mxu0
        %v2642 = vadd.f32 0.0, %v2641
        %2643 = vdwg.mxu0
        %v2645 = vsel %vm2021, %v1032, 0
        %v2648 = vsel %vm2021, %v1033, 0
        %2650 = vmatprep.subr.mxu0 %v485
        %2651 = vmatpush1.msra.mxu0 %v483
        %2652 = vmatprep.subr.mxu0 %v491
        %2653 = vmatpush1.msra.mxu0 %v489
        %2654 = vmatprep.subr.mxu0 0.0
        %2655 = vmatpush1.msra.mxu0 0.0
        %2656 = vmatprep.subr.mxu0 0.0
        %2657 = vmatpush1.msra.mxu0 0.0
        %2658 = vmatprep.subr.mxu0 0.0
        %2659 = vmatpush1.msra.mxu0 0.0
        %2660 = vmatprep.subr.mxu0 0.0
        %2661 = vmatpush1.msra.mxu0 0.0
        %2662 = vmatprep.subr.mxu0 0.0
        %2663 = vmatpush1.msra.mxu0 0.0
        %2664 = vmatprep.subr.mxu0 0.0
        %2665 = vmatpush1.msra.mxu0 0.0
        %2666 = vmatprep.subr.mxu0 0.0
        %2667 = vmatpush1.msra.mxu0 0.0
        %2668 = vmatprep.subr.mxu0 0.0
        %2669 = vmatpush1.msra.mxu0 0.0
        %2670 = vmatprep.subr.mxu0 0.0
        %2671 = vmatpush1.msra.mxu0 0.0
        %2672 = vmatprep.subr.mxu0 0.0
        %2673 = vmatpush1.msra.mxu0 0.0
        %2674 = vmatprep.subr.mxu0 0.0
        %2675 = vmatpush1.msra.mxu0 0.0
        %2676 = vmatprep.subr.mxu0 0.0
        %2677 = vmatpush1.msra.mxu0 0.0
        %2678 = vmatprep.subr.mxu0 0.0
        %2679 = vmatpush1.msra.mxu0 0.0
        %2680 = vmatprep.subr.mxu0 0.0
        %2681 = vmatpush1.msra.mxu0 0.0
        %2682 = vmatprep.subr.mxu0 0.0
        %2683 = vmatpush1.msra.mxu0 0.0
        %2684 = vmatprep.subr.mxu0 0.0
        %2685 = vmatpush1.msra.mxu0 0.0
        %2686 = vmatprep.subr.mxu0 0.0
        %2687 = vmatpush1.msra.mxu0 0.0
        %2688 = vmatprep.subr.mxu0 0.0
        %2689 = vmatpush1.msra.mxu0 0.0
        %2690 = vmatprep.subr.mxu0 0.0
        %2691 = vmatpush1.msra.mxu0 0.0
        %2692 = vmatprep.subr.mxu0 0.0
        %2693 = vmatpush1.msra.mxu0 0.0
        %2694 = vmatprep.subr.mxu0 0.0
        %2695 = vmatpush1.msra.mxu0 0.0
        %2696 = vmatprep.subr.mxu0 0.0
        %2697 = vmatpush1.msra.mxu0 0.0
        %2698 = vmatprep.subr.mxu0 0.0
        %2699 = vmatpush1.msra.mxu0 0.0
        %2700 = vmatprep.subr.mxu0 0.0
        %2701 = vmatpush1.msra.mxu0 0.0
        %2702 = vmatprep.subr.mxu0 0.0
        %2703 = vmatpush1.msra.mxu0 0.0
        %2704 = vmatprep.subr.mxu0 0.0
        %2705 = vmatpush1.msra.mxu0 0.0
        %2706 = vmatprep.subr.mxu0 0.0
        %2707 = vmatpush1.msra.mxu0 0.0
        %2708 = vmatprep.subr.mxu0 0.0
        %2709 = vmatpush1.msra.mxu0 0.0
        %2710 = vmatprep.subr.mxu0 0.0
        %2711 = vmatpush1.msra.mxu0 0.0
        %2712 = vmatprep.subr.mxu0 0.0
        %2713 = vmatpush1.msra.mxu0 0.0
        %2714 = vmatprep.mubr.f32.mxu0 0.0
        %2715 = vmatmul.mubr.f32.gmra.mrb[0].mxu0 %v2645
        %v2716 = vpop.f32.mrb[0].mxu0
        %v2717 = vadd.f32 %v2095, %v2716
        %v2718 = vpop.f32.mrb[0].mxu0
        %v2719 = vadd.f32 %v2097, %v2718
        %2720 = vmatprep.mubr.f32.mxu0 0.0
        %2721 = vmatmul.mubr.f32.gmra.mrb[0].mxu0 %v2648
        %v2722 = vpop.f32.mrb[0].mxu0
        %v2723 = vadd.f32 %v2101, %v2722
        %v2724 = vpop.f32.mrb[0].mxu0
        %v2725 = vadd.f32 %v2103, %v2724
        %2726 = vdwg.mxu0
        %2727 = vmatprep.subr.mxu0 %v562
        %2728 = vmatpush1.msra.mxu0 %v560
        %2729 = vmatprep.subr.mxu0 %v568
        %2730 = vmatpush1.msra.mxu0 %v566
        %2731 = vmatprep.subr.mxu0 0.0
        %2732 = vmatpush1.msra.mxu0 0.0
        %2733 = vmatprep.subr.mxu0 0.0
        %2734 = vmatpush1.msra.mxu0 0.0
        %2735 = vmatprep.subr.mxu0 0.0
        %2736 = vmatpush1.msra.mxu0 0.0
        %2737 = vmatprep.subr.mxu0 0.0
        %2738 = vmatpush1.msra.mxu0 0.0
        %2739 = vmatprep.subr.mxu0 0.0
        %2740 = vmatpush1.msra.mxu0 0.0
        %2741 = vmatprep.subr.mxu0 0.0
        %2742 = vmatpush1.msra.mxu0 0.0
        %2743 = vmatprep.subr.mxu0 0.0
        %2744 = vmatpush1.msra.mxu0 0.0
        %2745 = vmatprep.subr.mxu0 0.0
        %2746 = vmatpush1.msra.mxu0 0.0
        %2747 = vmatprep.subr.mxu0 0.0
        %2748 = vmatpush1.msra.mxu0 0.0
        %2749 = vmatprep.subr.mxu0 0.0
        %2750 = vmatpush1.msra.mxu0 0.0
        %2751 = vmatprep.subr.mxu0 0.0
        %2752 = vmatpush1.msra.mxu0 0.0
        %2753 = vmatprep.subr.mxu0 0.0
        %2754 = vmatpush1.msra.mxu0 0.0
        %2755 = vmatprep.subr.mxu0 0.0
        %2756 = vmatpush1.msra.mxu0 0.0
        %2757 = vmatprep.subr.mxu0 0.0
        %2758 = vmatpush1.msra.mxu0 0.0
        %2759 = vmatprep.subr.mxu0 0.0
        %2760 = vmatpush1.msra.mxu0 0.0
        %2761 = vmatprep.subr.mxu0 0.0
        %2762 = vmatpush1.msra.mxu0 0.0
        %2763 = vmatprep.subr.mxu0 0.0
        %2764 = vmatpush1.msra.mxu0 0.0
        %2765 = vmatprep.subr.mxu0 0.0
        %2766 = vmatpush1.msra.mxu0 0.0
        %2767 = vmatprep.subr.mxu0 0.0
        %2768 = vmatpush1.msra.mxu0 0.0
        %2769 = vmatprep.subr.mxu0 0.0
        %2770 = vmatpush1.msra.mxu0 0.0
        %2771 = vmatprep.subr.mxu0 0.0
        %2772 = vmatpush1.msra.mxu0 0.0
        %2773 = vmatprep.subr.mxu0 0.0
        %2774 = vmatpush1.msra.mxu0 0.0
        %2775 = vmatprep.subr.mxu0 0.0
        %2776 = vmatpush1.msra.mxu0 0.0
        %2777 = vmatprep.subr.mxu0 0.0
        %2778 = vmatpush1.msra.mxu0 0.0
        %2779 = vmatprep.subr.mxu0 0.0
        %2780 = vmatpush1.msra.mxu0 0.0
        %2781 = vmatprep.subr.mxu0 0.0
        %2782 = vmatpush1.msra.mxu0 0.0
        %2783 = vmatprep.subr.mxu0 0.0
        %2784 = vmatpush1.msra.mxu0 0.0
        %2785 = vmatprep.subr.mxu0 0.0
        %2786 = vmatpush1.msra.mxu0 0.0
        %2787 = vmatprep.subr.mxu0 0.0
        %2788 = vmatpush1.msra.mxu0 0.0
        %2789 = vmatprep.subr.mxu0 0.0
        %2790 = vmatpush1.msra.mxu0 0.0
        %2791 = vmatprep.mubr.f32.mxu0 0.0
        %2792 = vmatmul.mubr.f32.gmra.mrb[0].mxu0 %v2645
        %v2793 = vpop.f32.mrb[0].mxu0
        %v2794 = vadd.f32 %v2172, %v2793
        %v2795 = vpop.f32.mrb[0].mxu0
        %v2796 = vadd.f32 %v2174, %v2795
        %2797 = vmatprep.mubr.f32.mxu0 0.0
        %2798 = vmatmul.mubr.f32.gmra.mrb[0].mxu0 %v2648
        %v2799 = vpop.f32.mrb[0].mxu0
        %v2800 = vadd.f32 %v2178, %v2799
        %v2801 = vpop.f32.mrb[0].mxu0
        %v2802 = vadd.f32 %v2180, %v2801
        %2803 = vdwg.mxu0
        %2804 = vmatprep.subr.mxu0 %v639
        %2805 = vmatpush1.msra.mxu0 %v637
        %2806 = vmatprep.subr.mxu0 %v645
        %2807 = vmatpush1.msra.mxu0 %v643
        %2808 = vmatprep.subr.mxu0 0.0
        %2809 = vmatpush1.msra.mxu0 0.0
        %2810 = vmatprep.subr.mxu0 0.0
        %2811 = vmatpush1.msra.mxu0 0.0
        %2812 = vmatprep.subr.mxu0 0.0
        %2813 = vmatpush1.msra.mxu0 0.0
        %2814 = vmatprep.subr.mxu0 0.0
        %2815 = vmatpush1.msra.mxu0 0.0
        %2816 = vmatprep.subr.mxu0 0.0
        %2817 = vmatpush1.msra.mxu0 0.0
        %2818 = vmatprep.subr.mxu0 0.0
        %2819 = vmatpush1.msra.mxu0 0.0
        %2820 = vmatprep.subr.mxu0 0.0
        %2821 = vmatpush1.msra.mxu0 0.0
        %2822 = vmatprep.subr.mxu0 0.0
        %2823 = vmatpush1.msra.mxu0 0.0
        %2824 = vmatprep.subr.mxu0 0.0
        %2825 = vmatpush1.msra.mxu0 0.0
        %2826 = vmatprep.subr.mxu0 0.0
        %2827 = vmatpush1.msra.mxu0 0.0
        %2828 = vmatprep.subr.mxu0 0.0
        %2829 = vmatpush1.msra.mxu0 0.0
        %2830 = vmatprep.subr.mxu0 0.0
        %2831 = vmatpush1.msra.mxu0 0.0
        %2832 = vmatprep.subr.mxu0 0.0
        %2833 = vmatpush1.msra.mxu0 0.0
        %2834 = vmatprep.subr.mxu0 0.0
        %2835 = vmatpush1.msra.mxu0 0.0
        %2836 = vmatprep.subr.mxu0 0.0
        %2837 = vmatpush1.msra.mxu0 0.0
        %2838 = vmatprep.subr.mxu0 0.0
        %2839 = vmatpush1.msra.mxu0 0.0
        %2840 = vmatprep.subr.mxu0 0.0
        %2841 = vmatpush1.msra.mxu0 0.0
        %2842 = vmatprep.subr.mxu0 0.0
        %2843 = vmatpush1.msra.mxu0 0.0
        %2844 = vmatprep.subr.mxu0 0.0
        %2845 = vmatpush1.msra.mxu0 0.0
        %2846 = vmatprep.subr.mxu0 0.0
        %2847 = vmatpush1.msra.mxu0 0.0
        %2848 = vmatprep.subr.mxu0 0.0
        %2849 = vmatpush1.msra.mxu0 0.0
        %2850 = vmatprep.subr.mxu0 0.0
        %2851 = vmatpush1.msra.mxu0 0.0
        %2852 = vmatprep.subr.mxu0 0.0
        %2853 = vmatpush1.msra.mxu0 0.0
        %2854 = vmatprep.subr.mxu0 0.0
        %2855 = vmatpush1.msra.mxu0 0.0
        %2856 = vmatprep.subr.mxu0 0.0
        %2857 = vmatpush1.msra.mxu0 0.0
        %2858 = vmatprep.subr.mxu0 0.0
        %2859 = vmatpush1.msra.mxu0 0.0
        %2860 = vmatprep.subr.mxu0 0.0
        %2861 = vmatpush1.msra.mxu0 0.0
        %2862 = vmatprep.subr.mxu0 0.0
        %2863 = vmatpush1.msra.mxu0 0.0
        %2864 = vmatprep.subr.mxu0 0.0
        %2865 = vmatpush1.msra.mxu0 0.0
        %2866 = vmatprep.subr.mxu0 0.0
        %2867 = vmatpush1.msra.mxu0 0.0
        %2868 = vmatprep.mubr.f32.mxu0 0.0
        %2869 = vmatmul.mubr.f32.gmra.mrb[0].mxu0 %v2645
        %v2870 = vpop.f32.mrb[0].mxu0
        %v2871 = vadd.f32 %v2249, %v2870
        %v2872 = vpop.f32.mrb[0].mxu0
        %v2873 = vadd.f32 %v2251, %v2872
        %2874 = vmatprep.mubr.f32.mxu0 0.0
        %2875 = vmatmul.mubr.f32.gmra.mrb[0].mxu0 %v2648
        %v2876 = vpop.f32.mrb[0].mxu0
        %v2877 = vadd.f32 %v2255, %v2876
        %v2878 = vpop.f32.mrb[0].mxu0
        %v2879 = vadd.f32 %v2257, %v2878
        %2880 = vdwg.mxu0
        %2881 = vmatprep.subr.mxu0 %v716
        %2882 = vmatpush1.msra.mxu0 %v714
        %2883 = vmatprep.subr.mxu0 %v722
        %2884 = vmatpush1.msra.mxu0 %v720
        %2885 = vmatprep.subr.mxu0 0.0
        %2886 = vmatpush1.msra.mxu0 0.0
        %2887 = vmatprep.subr.mxu0 0.0
        %2888 = vmatpush1.msra.mxu0 0.0
        %2889 = vmatprep.subr.mxu0 0.0
        %2890 = vmatpush1.msra.mxu0 0.0
        %2891 = vmatprep.subr.mxu0 0.0
        %2892 = vmatpush1.msra.mxu0 0.0
        %2893 = vmatprep.subr.mxu0 0.0
        %2894 = vmatpush1.msra.mxu0 0.0
        %2895 = vmatprep.subr.mxu0 0.0
        %2896 = vmatpush1.msra.mxu0 0.0
        %2897 = vmatprep.subr.mxu0 0.0
        %2898 = vmatpush1.msra.mxu0 0.0
        %2899 = vmatprep.subr.mxu0 0.0
        %2900 = vmatpush1.msra.mxu0 0.0
        %2901 = vmatprep.subr.mxu0 0.0
        %2902 = vmatpush1.msra.mxu0 0.0
        %2903 = vmatprep.subr.mxu0 0.0
        %2904 = vmatpush1.msra.mxu0 0.0
        %2905 = vmatprep.subr.mxu0 0.0
        %2906 = vmatpush1.msra.mxu0 0.0
        %2907 = vmatprep.subr.mxu0 0.0
        %2908 = vmatpush1.msra.mxu0 0.0
        %2909 = vmatprep.subr.mxu0 0.0
        %2910 = vmatpush1.msra.mxu0 0.0
        %2911 = vmatprep.subr.mxu0 0.0
        %2912 = vmatpush1.msra.mxu0 0.0
        %2913 = vmatprep.subr.mxu0 0.0
        %2914 = vmatpush1.msra.mxu0 0.0
        %2915 = vmatprep.subr.mxu0 0.0
        %2916 = vmatpush1.msra.mxu0 0.0
        %2917 = vmatprep.subr.mxu0 0.0
        %2918 = vmatpush1.msra.mxu0 0.0
        %2919 = vmatprep.subr.mxu0 0.0
        %2920 = vmatpush1.msra.mxu0 0.0
        %2921 = vmatprep.subr.mxu0 0.0
        %2922 = vmatpush1.msra.mxu0 0.0
        %2923 = vmatprep.subr.mxu0 0.0
        %2924 = vmatpush1.msra.mxu0 0.0
        %2925 = vmatprep.subr.mxu0 0.0
        %2926 = vmatpush1.msra.mxu0 0.0
        %2927 = vmatprep.subr.mxu0 0.0
        %2928 = vmatpush1.msra.mxu0 0.0
        %2929 = vmatprep.subr.mxu0 0.0
        %2930 = vmatpush1.msra.mxu0 0.0
        %2931 = vmatprep.subr.mxu0 0.0
        %2932 = vmatpush1.msra.mxu0 0.0
        %2933 = vmatprep.subr.mxu0 0.0
        %2934 = vmatpush1.msra.mxu0 0.0
        %2935 = vmatprep.subr.mxu0 0.0
        %2936 = vmatpush1.msra.mxu0 0.0
        %2937 = vmatprep.subr.mxu0 0.0
        %2938 = vmatpush1.msra.mxu0 0.0
        %2939 = vmatprep.subr.mxu0 0.0
        %2940 = vmatpush1.msra.mxu0 0.0
        %2941 = vmatprep.subr.mxu0 0.0
        %2942 = vmatpush1.msra.mxu0 0.0
        %2943 = vmatprep.subr.mxu0 0.0
        %2944 = vmatpush1.msra.mxu0 0.0
        %2945 = vmatprep.mubr.f32.mxu0 0.0
        %2946 = vmatmul.mubr.f32.gmra.mrb[0].mxu0 %v2645
        %v2947 = vpop.f32.mrb[0].mxu0
        %v2948 = vadd.f32 %v2326, %v2947
        %v2949 = vpop.f32.mrb[0].mxu0
        %v2950 = vadd.f32 %v2328, %v2949
        %2951 = vmatprep.mubr.f32.mxu0 0.0
        %2952 = vmatmul.mubr.f32.gmra.mrb[0].mxu0 %v2648
        %v2953 = vpop.f32.mrb[0].mxu0
        %v2954 = vadd.f32 %v2332, %v2953
        %v2955 = vpop.f32.mrb[0].mxu0
        %v2956 = vadd.f32 %v2334, %v2955
        %2957 = vdwg.mxu0
        %2958 = vmatprep.subr.mxu0 %v793
        %2959 = vmatpush1.msra.mxu0 %v791
        %2960 = vmatprep.subr.mxu0 %v799
        %2961 = vmatpush1.msra.mxu0 %v797
        %2962 = vmatprep.subr.mxu0 0.0
        %2963 = vmatpush1.msra.mxu0 0.0
        %2964 = vmatprep.subr.mxu0 0.0
        %2965 = vmatpush1.msra.mxu0 0.0
        %2966 = vmatprep.subr.mxu0 0.0
        %2967 = vmatpush1.msra.mxu0 0.0
        %2968 = vmatprep.subr.mxu0 0.0
        %2969 = vmatpush1.msra.mxu0 0.0
        %2970 = vmatprep.subr.mxu0 0.0
        %2971 = vmatpush1.msra.mxu0 0.0
        %2972 = vmatprep.subr.mxu0 0.0
        %2973 = vmatpush1.msra.mxu0 0.0
        %2974 = vmatprep.subr.mxu0 0.0
        %2975 = vmatpush1.msra.mxu0 0.0
        %2976 = vmatprep.subr.mxu0 0.0
        %2977 = vmatpush1.msra.mxu0 0.0
        %2978 = vmatprep.subr.mxu0 0.0
        %2979 = vmatpush1.msra.mxu0 0.0
        %2980 = vmatprep.subr.mxu0 0.0
        %2981 = vmatpush1.msra.mxu0 0.0
        %2982 = vmatprep.subr.mxu0 0.0
        %2983 = vmatpush1.msra.mxu0 0.0
        %2984 = vmatprep.subr.mxu0 0.0
        %2985 = vmatpush1.msra.mxu0 0.0
        %2986 = vmatprep.subr.mxu0 0.0
        %2987 = vmatpush1.msra.mxu0 0.0
        %2988 = vmatprep.subr.mxu0 0.0
        %2989 = vmatpush1.msra.mxu0 0.0
        %2990 = vmatprep.subr.mxu0 0.0
        %2991 = vmatpush1.msra.mxu0 0.0
        %2992 = vmatprep.subr.mxu0 0.0
        %2993 = vmatpush1.msra.mxu0 0.0
        %2994 = vmatprep.subr.mxu0 0.0
        %2995 = vmatpush1.msra.mxu0 0.0
        %2996 = vmatprep.subr.mxu0 0.0
        %2997 = vmatpush1.msra.mxu0 0.0
        %2998 = vmatprep.subr.mxu0 0.0
        %2999 = vmatpush1.msra.mxu0 0.0
        %3000 = vmatprep.subr.mxu0 0.0
        %3001 = vmatpush1.msra.mxu0 0.0
        %3002 = vmatprep.subr.mxu0 0.0
        %3003 = vmatpush1.msra.mxu0 0.0
        %3004 = vmatprep.subr.mxu0 0.0
        %3005 = vmatpush1.msra.mxu0 0.0
        %3006 = vmatprep.subr.mxu0 0.0
        %3007 = vmatpush1.msra.mxu0 0.0
        %3008 = vmatprep.subr.mxu0 0.0
        %3009 = vmatpush1.msra.mxu0 0.0
        %3010 = vmatprep.subr.mxu0 0.0
        %3011 = vmatpush1.msra.mxu0 0.0
        %3012 = vmatprep.subr.mxu0 0.0
        %3013 = vmatpush1.msra.mxu0 0.0
        %3014 = vmatprep.subr.mxu0 0.0
        %3015 = vmatpush1.msra.mxu0 0.0
        %3016 = vmatprep.subr.mxu0 0.0
        %3017 = vmatpush1.msra.mxu0 0.0
        %3018 = vmatprep.subr.mxu0 0.0
        %3019 = vmatpush1.msra.mxu0 0.0
        %3020 = vmatprep.subr.mxu0 0.0
        %3021 = vmatpush1.msra.mxu0 0.0
        %3022 = vmatprep.mubr.f32.mxu0 0.0
        %3023 = vmatmul.mubr.f32.gmra.mrb[0].mxu0 %v2645
        %v3024 = vpop.f32.mrb[0].mxu0
        %v3025 = vadd.f32 %v2403, %v3024
        %v3026 = vpop.f32.mrb[0].mxu0
        %v3027 = vadd.f32 %v2405, %v3026
        %3028 = vmatprep.mubr.f32.mxu0 0.0
        %3029 = vmatmul.mubr.f32.gmra.mrb[0].mxu0 %v2648
        %v3030 = vpop.f32.mrb[0].mxu0
        %v3031 = vadd.f32 %v2409, %v3030
        %v3032 = vpop.f32.mrb[0].mxu0
        %v3033 = vadd.f32 %v2411, %v3032
        %3034 = vdwg.mxu0
        %3035 = vmatprep.subr.mxu0 %v870
        %3036 = vmatpush1.msra.mxu0 %v868
        %3037 = vmatprep.subr.mxu0 %v876
        %3038 = vmatpush1.msra.mxu0 %v874
        %3039 = vmatprep.subr.mxu0 0.0
        %3040 = vmatpush1.msra.mxu0 0.0
        %3041 = vmatprep.subr.mxu0 0.0
        %3042 = vmatpush1.msra.mxu0 0.0
        %3043 = vmatprep.subr.mxu0 0.0
        %3044 = vmatpush1.msra.mxu0 0.0
        %3045 = vmatprep.subr.mxu0 0.0
        %3046 = vmatpush1.msra.mxu0 0.0
        %3047 = vmatprep.subr.mxu0 0.0
        %3048 = vmatpush1.msra.mxu0 0.0
        %3049 = vmatprep.subr.mxu0 0.0
        %3050 = vmatpush1.msra.mxu0 0.0
        %3051 = vmatprep.subr.mxu0 0.0
        %3052 = vmatpush1.msra.mxu0 0.0
        %3053 = vmatprep.subr.mxu0 0.0
        %3054 = vmatpush1.msra.mxu0 0.0
        %3055 = vmatprep.subr.mxu0 0.0
        %3056 = vmatpush1.msra.mxu0 0.0
        %3057 = vmatprep.subr.mxu0 0.0
        %3058 = vmatpush1.msra.mxu0 0.0
        %3059 = vmatprep.subr.mxu0 0.0
        %3060 = vmatpush1.msra.mxu0 0.0
        %3061 = vmatprep.subr.mxu0 0.0
        %3062 = vmatpush1.msra.mxu0 0.0
        %3063 = vmatprep.subr.mxu0 0.0
        %3064 = vmatpush1.msra.mxu0 0.0
        %3065 = vmatprep.subr.mxu0 0.0
        %3066 = vmatpush1.msra.mxu0 0.0
        %3067 = vmatprep.subr.mxu0 0.0
        %3068 = vmatpush1.msra.mxu0 0.0
        %3069 = vmatprep.subr.mxu0 0.0
        %3070 = vmatpush1.msra.mxu0 0.0
        %3071 = vmatprep.subr.mxu0 0.0
        %3072 = vmatpush1.msra.mxu0 0.0
        %3073 = vmatprep.subr.mxu0 0.0
        %3074 = vmatpush1.msra.mxu0 0.0
        %3075 = vmatprep.subr.mxu0 0.0
        %3076 = vmatpush1.msra.mxu0 0.0
        %3077 = vmatprep.subr.mxu0 0.0
        %3078 = vmatpush1.msra.mxu0 0.0
        %3079 = vmatprep.subr.mxu0 0.0
        %3080 = vmatpush1.msra.mxu0 0.0
        %3081 = vmatprep.subr.mxu0 0.0
        %3082 = vmatpush1.msra.mxu0 0.0
        %3083 = vmatprep.subr.mxu0 0.0
        %3084 = vmatpush1.msra.mxu0 0.0
        %3085 = vmatprep.subr.mxu0 0.0
        %3086 = vmatpush1.msra.mxu0 0.0
        %3087 = vmatprep.subr.mxu0 0.0
        %3088 = vmatpush1.msra.mxu0 0.0
        %3089 = vmatprep.subr.mxu0 0.0
        %3090 = vmatpush1.msra.mxu0 0.0
        %3091 = vmatprep.subr.mxu0 0.0
        %3092 = vmatpush1.msra.mxu0 0.0
        %3093 = vmatprep.subr.mxu0 0.0
        %3094 = vmatpush1.msra.mxu0 0.0
        %3095 = vmatprep.subr.mxu0 0.0
        %3096 = vmatpush1.msra.mxu0 0.0
        %3097 = vmatprep.subr.mxu0 0.0
        %3098 = vmatpush1.msra.mxu0 0.0
        %3099 = vmatprep.mubr.f32.mxu0 0.0
        %3100 = vmatmul.mubr.f32.gmra.mrb[0].mxu0 %v2645
        %v3101 = vpop.f32.mrb[0].mxu0
        %v3102 = vadd.f32 %v2480, %v3101
        %v3103 = vpop.f32.mrb[0].mxu0
        %v3104 = vadd.f32 %v2482, %v3103
        %3105 = vmatprep.mubr.f32.mxu0 0.0
        %3106 = vmatmul.mubr.f32.gmra.mrb[0].mxu0 %v2648
        %v3107 = vpop.f32.mrb[0].mxu0
        %v3108 = vadd.f32 %v2486, %v3107
        %v3109 = vpop.f32.mrb[0].mxu0
        %v3110 = vadd.f32 %v2488, %v3109
        %3111 = vdwg.mxu0
        %3112 = vmatprep.subr.mxu0 %v947
        %3113 = vmatpush1.msra.mxu0 %v945
        %3114 = vmatprep.subr.mxu0 %v953
        %3115 = vmatpush1.msra.mxu0 %v951
        %3116 = vmatprep.subr.mxu0 0.0
        %3117 = vmatpush1.msra.mxu0 0.0
        %3118 = vmatprep.subr.mxu0 0.0
        %3119 = vmatpush1.msra.mxu0 0.0
        %3120 = vmatprep.subr.mxu0 0.0
        %3121 = vmatpush1.msra.mxu0 0.0
        %3122 = vmatprep.subr.mxu0 0.0
        %3123 = vmatpush1.msra.mxu0 0.0
        %3124 = vmatprep.subr.mxu0 0.0
        %3125 = vmatpush1.msra.mxu0 0.0
        %3126 = vmatprep.subr.mxu0 0.0
        %3127 = vmatpush1.msra.mxu0 0.0
        %3128 = vmatprep.subr.mxu0 0.0
        %3129 = vmatpush1.msra.mxu0 0.0
        %3130 = vmatprep.subr.mxu0 0.0
        %3131 = vmatpush1.msra.mxu0 0.0
        %3132 = vmatprep.subr.mxu0 0.0
        %3133 = vmatpush1.msra.mxu0 0.0
        %3134 = vmatprep.subr.mxu0 0.0
        %3135 = vmatpush1.msra.mxu0 0.0
        %3136 = vmatprep.subr.mxu0 0.0
        %3137 = vmatpush1.msra.mxu0 0.0
        %3138 = vmatprep.subr.mxu0 0.0
        %3139 = vmatpush1.msra.mxu0 0.0
        %3140 = vmatprep.subr.mxu0 0.0
        %3141 = vmatpush1.msra.mxu0 0.0
        %3142 = vmatprep.subr.mxu0 0.0
        %3143 = vmatpush1.msra.mxu0 0.0
        %3144 = vmatprep.subr.mxu0 0.0
        %3145 = vmatpush1.msra.mxu0 0.0
        %3146 = vmatprep.subr.mxu0 0.0
        %3147 = vmatpush1.msra.mxu0 0.0
        %3148 = vmatprep.subr.mxu0 0.0
        %3149 = vmatpush1.msra.mxu0 0.0
        %3150 = vmatprep.subr.mxu0 0.0
        %3151 = vmatpush1.msra.mxu0 0.0
        %3152 = vmatprep.subr.mxu0 0.0
        %3153 = vmatpush1.msra.mxu0 0.0
        %3154 = vmatprep.subr.mxu0 0.0
        %3155 = vmatpush1.msra.mxu0 0.0
        %3156 = vmatprep.subr.mxu0 0.0
        %3157 = vmatpush1.msra.mxu0 0.0
        %3158 = vmatprep.subr.mxu0 0.0
        %3159 = vmatpush1.msra.mxu0 0.0
        %3160 = vmatprep.subr.mxu0 0.0
        %3161 = vmatpush1.msra.mxu0 0.0
        %3162 = vmatprep.subr.mxu0 0.0
        %3163 = vmatpush1.msra.mxu0 0.0
        %3164 = vmatprep.subr.mxu0 0.0
        %3165 = vmatpush1.msra.mxu0 0.0
        %3166 = vmatprep.subr.mxu0 0.0
        %3167 = vmatpush1.msra.mxu0 0.0
        %3168 = vmatprep.subr.mxu0 0.0
        %3169 = vmatpush1.msra.mxu0 0.0
        %3170 = vmatprep.subr.mxu0 0.0
        %3171 = vmatpush1.msra.mxu0 0.0
        %3172 = vmatprep.subr.mxu0 0.0
        %3173 = vmatpush1.msra.mxu0 0.0
        %3174 = vmatprep.subr.mxu0 0.0
        %3175 = vmatpush1.msra.mxu0 0.0
        %3176 = vmatprep.mubr.f32.mxu0 0.0
        %3177 = vmatmul.mubr.f32.gmra.mrb[0].mxu0 %v2645
        %v3178 = vpop.f32.mrb[0].mxu0
        %v3179 = vadd.f32 %v2557, %v3178
        %v3180 = vpop.f32.mrb[0].mxu0
        %v3181 = vadd.f32 %v2559, %v3180
        %3182 = vmatprep.mubr.f32.mxu0 0.0
        %3183 = vmatmul.mubr.f32.gmra.mrb[0].mxu0 %v2648
        %v3184 = vpop.f32.mrb[0].mxu0
        %v3185 = vadd.f32 %v2563, %v3184
        %v3186 = vpop.f32.mrb[0].mxu0
        %v3187 = vadd.f32 %v2565, %v3186
        %3188 = vdwg.mxu0
        %3189 = vmatprep.subr.mxu0 %v1024
        %3190 = vmatpush1.msra.mxu0 %v1022
        %3191 = vmatprep.subr.mxu0 %v1030
        %3192 = vmatpush1.msra.mxu0 %v1028
        %3193 = vmatprep.subr.mxu0 0.0
        %3194 = vmatpush1.msra.mxu0 0.0
        %3195 = vmatprep.subr.mxu0 0.0
        %3196 = vmatpush1.msra.mxu0 0.0
        %3197 = vmatprep.subr.mxu0 0.0
        %3198 = vmatpush1.msra.mxu0 0.0
        %3199 = vmatprep.subr.mxu0 0.0
        %3200 = vmatpush1.msra.mxu0 0.0
        %3201 = vmatprep.subr.mxu0 0.0
        %3202 = vmatpush1.msra.mxu0 0.0
        %3203 = vmatprep.subr.mxu0 0.0
        %3204 = vmatpush1.msra.mxu0 0.0
        %3205 = vmatprep.subr.mxu0 0.0
        %3206 = vmatpush1.msra.mxu0 0.0
        %3207 = vmatprep.subr.mxu0 0.0
        %3208 = vmatpush1.msra.mxu0 0.0
        %3209 = vmatprep.subr.mxu0 0.0
        %3210 = vmatpush1.msra.mxu0 0.0
        %3211 = vmatprep.subr.mxu0 0.0
        %3212 = vmatpush1.msra.mxu0 0.0
        %3213 = vmatprep.subr.mxu0 0.0
        %3214 = vmatpush1.msra.mxu0 0.0
        %3215 = vmatprep.subr.mxu0 0.0
        %3216 = vmatpush1.msra.mxu0 0.0
        %3217 = vmatprep.subr.mxu0 0.0
        %3218 = vmatpush1.msra.mxu0 0.0
        %3219 = vmatprep.subr.mxu0 0.0
        %3220 = vmatpush1.msra.mxu0 0.0
        %3221 = vmatprep.subr.mxu0 0.0
        %3222 = vmatpush1.msra.mxu0 0.0
        %3223 = vmatprep.subr.mxu0 0.0
        %3224 = vmatpush1.msra.mxu0 0.0
        %3225 = vmatprep.subr.mxu0 0.0
        %3226 = vmatpush1.msra.mxu0 0.0
        %3227 = vmatprep.subr.mxu0 0.0
        %3228 = vmatpush1.msra.mxu0 0.0
        %3229 = vmatprep.subr.mxu0 0.0
        %3230 = vmatpush1.msra.mxu0 0.0
        %3231 = vmatprep.subr.mxu0 0.0
        %3232 = vmatpush1.msra.mxu0 0.0
        %3233 = vmatprep.subr.mxu0 0.0
        %3234 = vmatpush1.msra.mxu0 0.0
        %3235 = vmatprep.subr.mxu0 0.0
        %3236 = vmatpush1.msra.mxu0 0.0
        %3237 = vmatprep.subr.mxu0 0.0
        %3238 = vmatpush1.msra.mxu0 0.0
        %3239 = vmatprep.subr.mxu0 0.0
        %3240 = vmatpush1.msra.mxu0 0.0
        %3241 = vmatprep.subr.mxu0 0.0
        %3242 = vmatpush1.msra.mxu0 0.0
        %3243 = vmatprep.subr.mxu0 0.0
        %3244 = vmatpush1.msra.mxu0 0.0
        %3245 = vmatprep.subr.mxu0 0.0
        %3246 = vmatpush1.msra.mxu0 0.0
        %3247 = vmatprep.subr.mxu0 0.0
        %3248 = vmatpush1.msra.mxu0 0.0
        %3249 = vmatprep.subr.mxu0 0.0
        %3250 = vmatpush1.msra.mxu0 0.0
        %3251 = vmatprep.subr.mxu0 0.0
        %3252 = vmatpush1.msra.mxu0 0.0
        %3253 = vmatprep.mubr.f32.mxu0 0.0
        %3254 = vmatmul.mubr.f32.gmra.mrb[0].mxu0 %v2645
        %v3255 = vpop.f32.mrb[0].mxu0
        %v3256 = vadd.f32 %v2634, %v3255
        %v3257 = vpop.f32.mrb[0].mxu0
        %v3258 = vadd.f32 %v2636, %v3257
        %3259 = vmatprep.mubr.f32.mxu0 0.0
        %3260 = vmatmul.mubr.f32.gmra.mrb[0].mxu0 %v2648
        %v3261 = vpop.f32.mrb[0].mxu0
        %v3262 = vadd.f32 %v2640, %v3261
        %v3263 = vpop.f32.mrb[0].mxu0
        %v3264 = vadd.f32 %v2642, %v3263
        %3265 = vdwg.mxu0
        %3267 = vrot.lane.b32.xlu0 %v289, 124
        %v3268 = vpop.permute.xlu0 %3267
        %v3269 = vsel %vm1115, %v3268, %v1084
        %3270 = vrot.lane.b32.xlu0 %v289, 120
        %v3271 = vpop.permute.xlu0 %3270
        %3272 = vrot.lane.b32.xlu0 %v290, 120
        %v3273 = vpop.permute.xlu0 %3272
        %3274 = vrot.lane.b32.xlu0 %v291, 120
        %v3275 = vpop.permute.xlu0 %3274
        %3276 = vrot.lane.b32.xlu0 %v292, 120
        %v3277 = vpop.permute.xlu0 %3276
        %3278 = vrot.lane.b32.xlu0 %v293, 120
        %v3279 = vpop.permute.xlu0 %3278
        %3280 = vrot.lane.b32.xlu0 %v294, 120
        %v3281 = vpop.permute.xlu0 %3280
        %3282 = vrot.lane.b32.xlu0 %v295, 120
        %v3283 = vpop.permute.xlu0 %3282
        %3284 = vrot.lane.b32.xlu0 %v296, 120
        %v3285 = vpop.permute.xlu0 %3284
        %3286 = vrot.lane.b32.xlu0 %v297, 120
        %v3287 = vpop.permute.xlu0 %3286
        %3288 = vrot.lane.b32.xlu0 %v298, 120
        %v3289 = vpop.permute.xlu0 %3288
        %3290 = vrot.lane.b32.xlu0 %v299, 120
        %v3291 = vpop.permute.xlu0 %3290
        %3292 = vrot.lane.b32.xlu0 %v300, 120
        %v3293 = vpop.permute.xlu0 %3292
        %3294 = vrot.lane.b32.xlu0 %v301, 120
        %v3295 = vpop.permute.xlu0 %3294
        %3296 = vrot.lane.b32.xlu0 %v302, 120
        %v3297 = vpop.permute.xlu0 %3296
        %3298 = vrot.lane.b32.xlu0 %v303, 120
        %v3299 = vpop.permute.xlu0 %3298
        %3300 = vrot.lane.b32.xlu0 %v304, 120
        %v3301 = vpop.permute.xlu0 %3300
        %vm3302 = vcmask 982016
        %v3303 = vsel %vm3302, %v3271, %v3273
        %v3304 = vsel %vm3302, %v3273, %v3275
        %v3305 = vsel %vm3302, %v3275, %v3277
        %v3306 = vsel %vm3302, %v3277, %v3279
        %v3307 = vsel %vm3302, %v3279, %v3281
        %v3308 = vsel %vm3302, %v3281, %v3283
        %v3309 = vsel %vm3302, %v3283, %v3285
        %v3310 = vsel %vm3302, %v3285, %v3287
        %v3311 = vsel %vm3302, %v3287, %v3289
        %v3312 = vsel %vm3302, %v3289, %v3291
        %v3313 = vsel %vm3302, %v3291, %v3293
        %v3314 = vsel %vm3302, %v3293, %v3295
        %v3315 = vsel %vm3302, %v3295, %v3297
        %v3316 = vsel %vm3302, %v3297, %v3299
        %v3317 = vsel %vm3302, %v3299, %v3301
        %3318 = vrot.lane.b32.xlu0 %v305, 120
        %v3319 = vpop.permute.xlu0 %3318
        %3320 = vrot.lane.b32.xlu0 %v306, 120
        %v3321 = vpop.permute.xlu0 %3320
        %v3322 = vsel %vm3302, %v3301, %v3319
        %v3323 = vsel %vm3302, %v3319, %v3321
        %3325 = vrot.lane.b32.xlu0 %v308, 124
        %v3326 = vpop.permute.xlu0 %3325
        %v3327 = vsel %vm1115, %v1142, %v3326
        %3328 = vrot.lane.b32.xlu0 %v307, 120
        %v3329 = vpop.permute.xlu0 %3328
        %3330 = vrot.lane.b32.xlu0 %v308, 120
        %v3331 = vpop.permute.xlu0 %3330
        %v3332 = vsel %vm3302, %v3321, %v3329
        %v3333 = vsel %vm3302, %v3329, %v3331
        %s3334 = scalar_lea.vmem [#allocation5], 16
        %v3335 = vld [vmem:[%s3334] sm:$0xff]
        %v3336 = vld [vmem:[%s3334 + $0x8] sm:$0xff]
        %s3337 = scalar_lea.vmem %s4, 32
        %v3338 = vld [vmem:[%s3337] sm:$0xff]
        %v3339 = vld [vmem:[%s3337 + $0x8] sm:$0xff]
        %3341 = vset.pattern.permute.xlu0 0
        %3342 = vperm.xlu0 %3341, %v3338
        %v3343 = vpop.permute.xlu0 %3342
        %3346 = vset.pattern.permute.xlu0 0
        %3347 = vperm.xlu0 %3346, %v3339
        %v3348 = vpop.permute.xlu0 %3347
        %3350 = vrot.lane.b32.xlu0 %v289, 116
        %v3351 = vpop.permute.xlu0 %3350
        %3352 = vrot.lane.b32.xlu0 %v290, 116
        %v3353 = vpop.permute.xlu0 %3352
        %3354 = vrot.lane.b32.xlu0 %v291, 116
        %v3355 = vpop.permute.xlu0 %3354
        %3356 = vrot.lane.b32.xlu0 %v292, 116
        %v3357 = vpop.permute.xlu0 %3356
        %3358 = vrot.lane.b32.xlu0 %v293, 116
        %v3359 = vpop.permute.xlu0 %3358
        %3360 = vrot.lane.b32.xlu0 %v294, 116
        %v3361 = vpop.permute.xlu0 %3360
        %3362 = vrot.lane.b32.xlu0 %v295, 116
        %v3363 = vpop.permute.xlu0 %3362
        %3364 = vrot.lane.b32.xlu0 %v296, 116
        %v3365 = vpop.permute.xlu0 %3364
        %3366 = vrot.lane.b32.xlu0 %v297, 116
        %v3367 = vpop.permute.xlu0 %3366
        %3368 = vrot.lane.b32.xlu0 %v298, 116
        %v3369 = vpop.permute.xlu0 %3368
        %3370 = vrot.lane.b32.xlu0 %v299, 116
        %v3371 = vpop.permute.xlu0 %3370
        %3372 = vrot.lane.b32.xlu0 %v300, 116
        %v3373 = vpop.permute.xlu0 %3372
        %3374 = vrot.lane.b32.xlu0 %v301, 116
        %v3375 = vpop.permute.xlu0 %3374
        %3376 = vrot.lane.b32.xlu0 %v302, 116
        %v3377 = vpop.permute.xlu0 %3376
        %3378 = vrot.lane.b32.xlu0 %v303, 116
        %v3379 = vpop.permute.xlu0 %3378
        %3380 = vrot.lane.b32.xlu0 %v304, 116
        %v3381 = vpop.permute.xlu0 %3380
        %3382 = vrot.lane.b32.xlu0 %v3269, 116
        %v3383 = vpop.permute.xlu0 %3382
        %3384 = vrot.lane.b32.xlu0 %v1116, 116
        %v3385 = vpop.permute.xlu0 %3384
        %3386 = vrot.lane.b32.xlu0 %v1117, 116
        %v3387 = vpop.permute.xlu0 %3386
        %3388 = vrot.lane.b32.xlu0 %v1118, 116
        %v3389 = vpop.permute.xlu0 %3388
        %3390 = vrot.lane.b32.xlu0 %v1119, 116
        %v3391 = vpop.permute.xlu0 %3390
        %3392 = vrot.lane.b32.xlu0 %v1120, 116
        %v3393 = vpop.permute.xlu0 %3392
        %3394 = vrot.lane.b32.xlu0 %v1121, 116
        %v3395 = vpop.permute.xlu0 %3394
        %3396 = vrot.lane.b32.xlu0 %v1122, 116
        %v3397 = vpop.permute.xlu0 %3396
        %3398 = vrot.lane.b32.xlu0 %v1123, 116
        %v3399 = vpop.permute.xlu0 %3398
        %3400 = vrot.lane.b32.xlu0 %v1124, 116
        %v3401 = vpop.permute.xlu0 %3400
        %3402 = vrot.lane.b32.xlu0 %v1125, 116
        %v3403 = vpop.permute.xlu0 %3402
        %3404 = vrot.lane.b32.xlu0 %v1126, 116
        %v3405 = vpop.permute.xlu0 %3404
        %3406 = vrot.lane.b32.xlu0 %v1127, 116
        %v3407 = vpop.permute.xlu0 %3406
        %3408 = vrot.lane.b32.xlu0 %v1128, 116
        %v3409 = vpop.permute.xlu0 %3408
        %3410 = vrot.lane.b32.xlu0 %v1129, 116
        %v3411 = vpop.permute.xlu0 %3410
        %3412 = vrot.lane.b32.xlu0 %v1112, 116
        %v3413 = vpop.permute.xlu0 %3412
        %3414 = vrot.lane.b32.xlu0 %v3303, 116
        %v3415 = vpop.permute.xlu0 %3414
        %3416 = vrot.lane.b32.xlu0 %v3304, 116
        %v3417 = vpop.permute.xlu0 %3416
        %3418 = vrot.lane.b32.xlu0 %v3305, 116
        %v3419 = vpop.permute.xlu0 %3418
        %3420 = vrot.lane.b32.xlu0 %v3306, 116
        %v3421 = vpop.permute.xlu0 %3420
        %3422 = vrot.lane.b32.xlu0 %v3307, 116
        %v3423 = vpop.permute.xlu0 %3422
        %3424 = vrot.lane.b32.xlu0 %v3308, 116
        %v3425 = vpop.permute.xlu0 %3424
        %3426 = vrot.lane.b32.xlu0 %v3309, 116
        %v3427 = vpop.permute.xlu0 %3426
        %3428 = vrot.lane.b32.xlu0 %v3310, 116
        %v3429 = vpop.permute.xlu0 %3428
        %3430 = vrot.lane.b32.xlu0 %v3311, 116
        %v3431 = vpop.permute.xlu0 %3430
        %3432 = vrot.lane.b32.xlu0 %v3312, 116
        %v3433 = vpop.permute.xlu0 %3432
        %3434 = vrot.lane.b32.xlu0 %v3313, 116
        %v3435 = vpop.permute.xlu0 %3434
        %3436 = vrot.lane.b32.xlu0 %v3314, 116
        %v3437 = vpop.permute.xlu0 %3436
        %3438 = vrot.lane.b32.xlu0 %v3315, 116
        %v3439 = vpop.permute.xlu0 %3438
        %3440 = vrot.lane.b32.xlu0 %v3316, 116
        %v3441 = vpop.permute.xlu0 %3440
        %3442 = vrot.lane.b32.xlu0 %v3317, 116
        %v3443 = vpop.permute.xlu0 %3442
        %3444 = vrot.lane.b32.xlu0 %v3301, 116
        %v3445 = vpop.permute.xlu0 %3444
        %3446 = vrot.lane.b32.xlu0 %v305, 116
        %v3447 = vpop.permute.xlu0 %3446
        %3448 = vrot.lane.b32.xlu0 %v306, 116
        %v3449 = vpop.permute.xlu0 %3448
        %3450 = vrot.lane.b32.xlu0 %v1130, 116
        %v3451 = vpop.permute.xlu0 %3450
        %3452 = vrot.lane.b32.xlu0 %v1136, 116
        %v3453 = vpop.permute.xlu0 %3452
        %3454 = vrot.lane.b32.xlu0 %v1135, 116
        %v3455 = vpop.permute.xlu0 %3454
        %3456 = vrot.lane.b32.xlu0 %v3322, 116
        %v3457 = vpop.permute.xlu0 %3456
        %3458 = vrot.lane.b32.xlu0 %v3323, 116
        %v3459 = vpop.permute.xlu0 %3458
        %3460 = vrot.lane.b32.xlu0 %v3321, 116
        %v3461 = vpop.permute.xlu0 %3460
        %3462 = vrot.lane.b32.xlu0 %v307, 116
        %v3463 = vpop.permute.xlu0 %3462
        %3464 = vrot.lane.b32.xlu0 %v308, 116
        %v3465 = vpop.permute.xlu0 %3464
        %3466 = vrot.lane.b32.xlu0 %v1143, 116
        %v3467 = vpop.permute.xlu0 %3466
        %3468 = vrot.lane.b32.xlu0 %v3327, 116
        %v3469 = vpop.permute.xlu0 %3468
        %3470 = vrot.lane.b32.xlu0 %v3326, 116
        %v3471 = vpop.permute.xlu0 %3470
        %3472 = vrot.lane.b32.xlu0 %v3332, 116
        %v3473 = vpop.permute.xlu0 %3472
        %3474 = vrot.lane.b32.xlu0 %v3333, 116
        %v3475 = vpop.permute.xlu0 %3474
        %3476 = vrot.lane.b32.xlu0 %v3331, 116
        %v3477 = vpop.permute.xlu0 %3476
        %vm3478 = vcmask 949248
        %v3479 = vsel %vm3478, %v3351, %v3353
        %v3480 = vsel %vm3478, %v3353, %v3355
        %v3481 = vsel %vm3478, %v3355, %v3357
        %v3482 = vsel %vm3478, %v3357, %v3359
        %v3483 = vsel %vm3478, %v3359, %v3361
        %v3484 = vsel %vm3478, %v3361, %v3363
        %v3485 = vsel %vm3478, %v3363, %v3365
        %v3486 = vsel %vm3478, %v3365, %v3367
        %v3487 = vsel %vm3478, %v3367, %v3369
        %v3488 = vsel %vm3478, %v3369, %v3371
        %v3489 = vsel %vm3478, %v3371, %v3373
        %v3490 = vsel %vm3478, %v3373, %v3375
        %v3491 = vsel %vm3478, %v3375, %v3377
        %v3492 = vsel %vm3478, %v3377, %v3379
        %v3493 = vsel %vm3478, %v3379, %v3381
        %v3494 = vsel %vm3478, %v3383, %v3385
        %v3495 = vsel %vm3478, %v3385, %v3387
        %v3496 = vsel %vm3478, %v3387, %v3389
        %v3497 = vsel %vm3478, %v3389, %v3391
        %v3498 = vsel %vm3478, %v3391, %v3393
        %v3499 = vsel %vm3478, %v3393, %v3395
        %v3500 = vsel %vm3478, %v3395, %v3397
        %v3501 = vsel %vm3478, %v3397, %v3399
        %v3502 = vsel %vm3478, %v3399, %v3401
        %v3503 = vsel %vm3478, %v3401, %v3403
        %v3504 = vsel %vm3478, %v3403, %v3405
        %v3505 = vsel %vm3478, %v3405, %v3407
        %v3506 = vsel %vm3478, %v3407, %v3409
        %v3507 = vsel %vm3478, %v3409, %v3411
        %v3508 = vsel %vm3478, %v3411, %v3413
        %v3509 = vsel %vm3478, %v3415, %v3417
        %v3510 = vsel %vm3478, %v3417, %v3419
        %v3511 = vsel %vm3478, %v3419, %v3421
        %v3512 = vsel %vm3478, %v3421, %v3423
        %v3513 = vsel %vm3478, %v3423, %v3425
        %v3514 = vsel %vm3478, %v3425, %v3427
        %v3515 = vsel %vm3478, %v3427, %v3429
        %v3516 = vsel %vm3478, %v3429, %v3431
        %v3517 = vsel %vm3478, %v3431, %v3433
        %v3518 = vsel %vm3478, %v3433, %v3435
        %v3519 = vsel %vm3478, %v3435, %v3437
        %v3520 = vsel %vm3478, %v3437, %v3439
        %v3521 = vsel %vm3478, %v3439, %v3441
        %v3522 = vsel %vm3478, %v3441, %v3443
        %v3523 = vsel %vm3478, %v3443, %v3445
        %v3524 = vsel %vm3478, %v3381, %v3447
        %v3525 = vsel %vm3478, %v3447, %v3449
        %v3526 = vsel %vm3478, %v3411, %v3451
        %v3527 = vsel %vm3478, %v3451, %v3453
        %v3528 = vsel %vm3478, %v3453, %v3455
        %v3529 = vsel %vm3478, %v3443, %v3457
        %v3530 = vsel %vm3478, %v3457, %v3459
        %v3531 = vsel %vm3478, %v3459, %v3461
        %v3532 = vsel %vm3478, %v3449, %v3463
        %v3533 = vsel %vm3478, %v3463, %v3465
        %v3534 = vsel %vm3478, %v3453, %v3467
        %v3535 = vsel %vm3478, %v3467, %v3469
        %v3536 = vsel %vm3478, %v3469, %v3471
        %v3537 = vsel %vm3478, %v3459, %v3473
        %v3538 = vsel %vm3478, %v3473, %v3475
        %v3539 = vsel %vm3478, %v3475, %v3477
        %v3611 = vsel %vm1395, %v3335, 0
        %v3614 = vsel %vm1395, %v3336, 0
        %3616 = vmatprep.subr.mxu0 %v3480
        %3617 = vmatpush1.msra.mxu0 %v3479
        %3618 = vmatprep.subr.mxu0 %v3495
        %3619 = vmatpush1.msra.mxu0 %v3494
        %3620 = vmatprep.subr.mxu0 %v3510
        %3621 = vmatpush1.msra.mxu0 %v3509
        %3622 = vmatprep.subr.mxu0 %v3482
        %3623 = vmatpush1.msra.mxu0 %v3481
        %3624 = vmatprep.subr.mxu0 %v3497
        %3625 = vmatpush1.msra.mxu0 %v3496
        %3626 = vmatprep.subr.mxu0 %v3512
        %3627 = vmatpush1.msra.mxu0 %v3511
        %3628 = vmatprep.subr.mxu0 %v3484
        %3629 = vmatpush1.msra.mxu0 %v3483
        %3630 = vmatprep.subr.mxu0 %v3499
        %3631 = vmatpush1.msra.mxu0 %v3498
        %3632 = vmatprep.subr.mxu0 %v3514
        %3633 = vmatpush1.msra.mxu0 %v3513
        %3634 = vmatprep.subr.mxu0 0.0
        %3635 = vmatpush1.msra.mxu0 0.0
        %3636 = vmatprep.subr.mxu0 0.0
        %3637 = vmatpush1.msra.mxu0 0.0
        %3638 = vmatprep.subr.mxu0 0.0
        %3639 = vmatpush1.msra.mxu0 0.0
        %3640 = vmatprep.subr.mxu0 0.0
        %3641 = vmatpush1.msra.mxu0 0.0
        %3642 = vmatprep.subr.mxu0 0.0
        %3643 = vmatpush1.msra.mxu0 0.0
        %3644 = vmatprep.subr.mxu0 0.0
        %3645 = vmatpush1.msra.mxu0 0.0
        %3646 = vmatprep.subr.mxu0 0.0
        %3647 = vmatpush1.msra.mxu0 0.0
        %3648 = vmatprep.subr.mxu0 0.0
        %3649 = vmatpush1.msra.mxu0 0.0
        %3650 = vmatprep.subr.mxu0 0.0
        %3651 = vmatpush1.msra.mxu0 0.0
        %3652 = vmatprep.subr.mxu0 0.0
        %3653 = vmatpush1.msra.mxu0 0.0
        %3654 = vmatprep.subr.mxu0 0.0
        %3655 = vmatpush1.msra.mxu0 0.0
        %3656 = vmatprep.subr.mxu0 0.0
        %3657 = vmatpush1.msra.mxu0 0.0
        %3658 = vmatprep.subr.mxu0 0.0
        %3659 = vmatpush1.msra.mxu0 0.0
        %3660 = vmatprep.subr.mxu0 0.0
        %3661 = vmatpush1.msra.mxu0 0.0
        %3662 = vmatprep.subr.mxu0 0.0
        %3663 = vmatpush1.msra.mxu0 0.0
        %3664 = vmatprep.subr.mxu0 0.0
        %3665 = vmatpush1.msra.mxu0 0.0
        %3666 = vmatprep.subr.mxu0 0.0
        %3667 = vmatpush1.msra.mxu0 0.0
        %3668 = vmatprep.subr.mxu0 0.0
        %3669 = vmatpush1.msra.mxu0 0.0
        %3670 = vmatprep.subr.mxu0 0.0
        %3671 = vmatpush1.msra.mxu0 0.0
        %3672 = vmatprep.subr.mxu0 0.0
        %3673 = vmatpush1.msra.mxu0 0.0
        %3674 = vmatprep.subr.mxu0 0.0
        %3675 = vmatpush1.msra.mxu0 0.0
        %3676 = vmatprep.subr.mxu0 0.0
        %3677 = vmatpush1.msra.mxu0 0.0
        %3678 = vmatprep.subr.mxu0 0.0
        %3679 = vmatpush1.msra.mxu0 0.0
        %3680 = vmatprep.mubr.f32.mxu0 0.0
        %3681 = vmatmul.mubr.f32.gmra.mrb[0].mxu0 %v3611
        %v3682 = vpop.f32.mrb[0].mxu0
        %v3683 = vadd.f32 %v3343, %v3682
        %v3684 = vpop.f32.mrb[0].mxu0
        %v3685 = vadd.f32 %v3343, %v3684
        %3686 = vmatprep.mubr.f32.mxu0 0.0
        %3687 = vmatmul.mubr.f32.gmra.mrb[0].mxu0 %v3614
        %v3688 = vpop.f32.mrb[0].mxu0
        %v3689 = vadd.f32 %v3348, %v3688
        %v3690 = vpop.f32.mrb[0].mxu0
        %v3691 = vadd.f32 %v3348, %v3690
        %3692 = vdwg.mxu0
        %3693 = vmatprep.subr.mxu0 %v3482
        %3694 = vmatpush1.msra.mxu0 %v3481
        %3695 = vmatprep.subr.mxu0 %v3497
        %3696 = vmatpush1.msra.mxu0 %v3496
        %3697 = vmatprep.subr.mxu0 %v3512
        %3698 = vmatpush1.msra.mxu0 %v3511
        %3699 = vmatprep.subr.mxu0 %v3484
        %3700 = vmatpush1.msra.mxu0 %v3483
        %3701 = vmatprep.subr.mxu0 %v3499
        %3702 = vmatpush1.msra.mxu0 %v3498
        %3703 = vmatprep.subr.mxu0 %v3514
        %3704 = vmatpush1.msra.mxu0 %v3513
        %3705 = vmatprep.subr.mxu0 %v3486
        %3706 = vmatpush1.msra.mxu0 %v3485
        %3707 = vmatprep.subr.mxu0 %v3501
        %3708 = vmatpush1.msra.mxu0 %v3500
        %3709 = vmatprep.subr.mxu0 %v3516
        %3710 = vmatpush1.msra.mxu0 %v3515
        %3711 = vmatprep.subr.mxu0 0.0
        %3712 = vmatpush1.msra.mxu0 0.0
        %3713 = vmatprep.subr.mxu0 0.0
        %3714 = vmatpush1.msra.mxu0 0.0
        %3715 = vmatprep.subr.mxu0 0.0
        %3716 = vmatpush1.msra.mxu0 0.0
        %3717 = vmatprep.subr.mxu0 0.0
        %3718 = vmatpush1.msra.mxu0 0.0
        %3719 = vmatprep.subr.mxu0 0.0
        %3720 = vmatpush1.msra.mxu0 0.0
        %3721 = vmatprep.subr.mxu0 0.0
        %3722 = vmatpush1.msra.mxu0 0.0
        %3723 = vmatprep.subr.mxu0 0.0
        %3724 = vmatpush1.msra.mxu0 0.0
        %3725 = vmatprep.subr.mxu0 0.0
        %3726 = vmatpush1.msra.mxu0 0.0
        %3727 = vmatprep.subr.mxu0 0.0
        %3728 = vmatpush1.msra.mxu0 0.0
        %3729 = vmatprep.subr.mxu0 0.0
        %3730 = vmatpush1.msra.mxu0 0.0
        %3731 = vmatprep.subr.mxu0 0.0
        %3732 = vmatpush1.msra.mxu0 0.0
        %3733 = vmatprep.subr.mxu0 0.0
        %3734 = vmatpush1.msra.mxu0 0.0
        %3735 = vmatprep.subr.mxu0 0.0
        %3736 = vmatpush1.msra.mxu0 0.0
        %3737 = vmatprep.subr.mxu0 0.0
        %3738 = vmatpush1.msra.mxu0 0.0
        %3739 = vmatprep.subr.mxu0 0.0
        %3740 = vmatpush1.msra.mxu0 0.0
        %3741 = vmatprep.subr.mxu0 0.0
        %3742 = vmatpush1.msra.mxu0 0.0
        %3743 = vmatprep.subr.mxu0 0.0
        %3744 = vmatpush1.msra.mxu0 0.0
        %3745 = vmatprep.subr.mxu0 0.0
        %3746 = vmatpush1.msra.mxu0 0.0
        %3747 = vmatprep.subr.mxu0 0.0
        %3748 = vmatpush1.msra.mxu0 0.0
        %3749 = vmatprep.subr.mxu0 0.0
        %3750 = vmatpush1.msra.mxu0 0.0
        %3751 = vmatprep.subr.mxu0 0.0
        %3752 = vmatpush1.msra.mxu0 0.0
        %3753 = vmatprep.subr.mxu0 0.0
        %3754 = vmatpush1.msra.mxu0 0.0
        %3755 = vmatprep.subr.mxu0 0.0
        %3756 = vmatpush1.msra.mxu0 0.0
        %3757 = vmatprep.mubr.f32.mxu0 0.0
        %3758 = vmatmul.mubr.f32.gmra.mrb[0].mxu0 %v3611
        %v3759 = vpop.f32.mrb[0].mxu0
        %v3760 = vadd.f32 %v3343, %v3759
        %v3761 = vpop.f32.mrb[0].mxu0
        %v3762 = vadd.f32 %v3343, %v3761
        %3763 = vmatprep.mubr.f32.mxu0 0.0
        %3764 = vmatmul.mubr.f32.gmra.mrb[0].mxu0 %v3614
        %v3765 = vpop.f32.mrb[0].mxu0
        %v3766 = vadd.f32 %v3348, %v3765
        %v3767 = vpop.f32.mrb[0].mxu0
        %v3768 = vadd.f32 %v3348, %v3767
        %3769 = vdwg.mxu0
        %3770 = vmatprep.subr.mxu0 %v3484
        %3771 = vmatpush1.msra.mxu0 %v3483
        %3772 = vmatprep.subr.mxu0 %v3499
        %3773 = vmatpush1.msra.mxu0 %v3498
        %3774 = vmatprep.subr.mxu0 %v3514
        %3775 = vmatpush1.msra.mxu0 %v3513
        %3776 = vmatprep.subr.mxu0 %v3486
        %3777 = vmatpush1.msra.mxu0 %v3485
        %3778 = vmatprep.subr.mxu0 %v3501
        %3779 = vmatpush1.msra.mxu0 %v3500
        %3780 = vmatprep.subr.mxu0 %v3516
        %3781 = vmatpush1.msra.mxu0 %v3515
        %3782 = vmatprep.subr.mxu0 %v3488
        %3783 = vmatpush1.msra.mxu0 %v3487
        %3784 = vmatprep.subr.mxu0 %v3503
        %3785 = vmatpush1.msra.mxu0 %v3502
        %3786 = vmatprep.subr.mxu0 %v3518
        %3787 = vmatpush1.msra.mxu0 %v3517
        %3788 = vmatprep.subr.mxu0 0.0
        %3789 = vmatpush1.msra.mxu0 0.0
        %3790 = vmatprep.subr.mxu0 0.0
        %3791 = vmatpush1.msra.mxu0 0.0
        %3792 = vmatprep.subr.mxu0 0.0
        %3793 = vmatpush1.msra.mxu0 0.0
        %3794 = vmatprep.subr.mxu0 0.0
        %3795 = vmatpush1.msra.mxu0 0.0
        %3796 = vmatprep.subr.mxu0 0.0
        %3797 = vmatpush1.msra.mxu0 0.0
        %3798 = vmatprep.subr.mxu0 0.0
        %3799 = vmatpush1.msra.mxu0 0.0
        %3800 = vmatprep.subr.mxu0 0.0
        %3801 = vmatpush1.msra.mxu0 0.0
        %3802 = vmatprep.subr.mxu0 0.0
        %3803 = vmatpush1.msra.mxu0 0.0
        %3804 = vmatprep.subr.mxu0 0.0
        %3805 = vmatpush1.msra.mxu0 0.0
        %3806 = vmatprep.subr.mxu0 0.0
        %3807 = vmatpush1.msra.mxu0 0.0
        %3808 = vmatprep.subr.mxu0 0.0
        %3809 = vmatpush1.msra.mxu0 0.0
        %3810 = vmatprep.subr.mxu0 0.0
        %3811 = vmatpush1.msra.mxu0 0.0
        %3812 = vmatprep.subr.mxu0 0.0
        %3813 = vmatpush1.msra.mxu0 0.0
        %3814 = vmatprep.subr.mxu0 0.0
        %3815 = vmatpush1.msra.mxu0 0.0
        %3816 = vmatprep.subr.mxu0 0.0
        %3817 = vmatpush1.msra.mxu0 0.0
        %3818 = vmatprep.subr.mxu0 0.0
        %3819 = vmatpush1.msra.mxu0 0.0
        %3820 = vmatprep.subr.mxu0 0.0
        %3821 = vmatpush1.msra.mxu0 0.0
        %3822 = vmatprep.subr.mxu0 0.0
        %3823 = vmatpush1.msra.mxu0 0.0
        %3824 = vmatprep.subr.mxu0 0.0
        %3825 = vmatpush1.msra.mxu0 0.0
        %3826 = vmatprep.subr.mxu0 0.0
        %3827 = vmatpush1.msra.mxu0 0.0
        %3828 = vmatprep.subr.mxu0 0.0
        %3829 = vmatpush1.msra.mxu0 0.0
        %3830 = vmatprep.subr.mxu0 0.0
        %3831 = vmatpush1.msra.mxu0 0.0
        %3832 = vmatprep.subr.mxu0 0.0
        %3833 = vmatpush1.msra.mxu0 0.0
        %3834 = vmatprep.mubr.f32.mxu0 0.0
        %3835 = vmatmul.mubr.f32.gmra.mrb[0].mxu0 %v3611
        %v3836 = vpop.f32.mrb[0].mxu0
        %v3837 = vadd.f32 %v3343, %v3836
        %v3838 = vpop.f32.mrb[0].mxu0
        %v3839 = vadd.f32 %v3343, %v3838
        %3840 = vmatprep.mubr.f32.mxu0 0.0
        %3841 = vmatmul.mubr.f32.gmra.mrb[0].mxu0 %v3614
        %v3842 = vpop.f32.mrb[0].mxu0
        %v3843 = vadd.f32 %v3348, %v3842
        %v3844 = vpop.f32.mrb[0].mxu0
        %v3845 = vadd.f32 %v3348, %v3844
        %3846 = vdwg.mxu0
        %3847 = vmatprep.subr.mxu0 %v3486
        %3848 = vmatpush1.msra.mxu0 %v3485
        %3849 = vmatprep.subr.mxu0 %v3501
        %3850 = vmatpush1.msra.mxu0 %v3500
        %3851 = vmatprep.subr.mxu0 %v3516
        %3852 = vmatpush1.msra.mxu0 %v3515
        %3853 = vmatprep.subr.mxu0 %v3488
        %3854 = vmatpush1.msra.mxu0 %v3487
        %3855 = vmatprep.subr.mxu0 %v3503
        %3856 = vmatpush1.msra.mxu0 %v3502
        %3857 = vmatprep.subr.mxu0 %v3518
        %3858 = vmatpush1.msra.mxu0 %v3517
        %3859 = vmatprep.subr.mxu0 %v3490
        %3860 = vmatpush1.msra.mxu0 %v3489
        %3861 = vmatprep.subr.mxu0 %v3505
        %3862 = vmatpush1.msra.mxu0 %v3504
        %3863 = vmatprep.subr.mxu0 %v3520
        %3864 = vmatpush1.msra.mxu0 %v3519
        %3865 = vmatprep.subr.mxu0 0.0
        %3866 = vmatpush1.msra.mxu0 0.0
        %3867 = vmatprep.subr.mxu0 0.0
        %3868 = vmatpush1.msra.mxu0 0.0
        %3869 = vmatprep.subr.mxu0 0.0
        %3870 = vmatpush1.msra.mxu0 0.0
        %3871 = vmatprep.subr.mxu0 0.0
        %3872 = vmatpush1.msra.mxu0 0.0
        %3873 = vmatprep.subr.mxu0 0.0
        %3874 = vmatpush1.msra.mxu0 0.0
        %3875 = vmatprep.subr.mxu0 0.0
        %3876 = vmatpush1.msra.mxu0 0.0
        %3877 = vmatprep.subr.mxu0 0.0
        %3878 = vmatpush1.msra.mxu0 0.0
        %3879 = vmatprep.subr.mxu0 0.0
        %3880 = vmatpush1.msra.mxu0 0.0
        %3881 = vmatprep.subr.mxu0 0.0
        %3882 = vmatpush1.msra.mxu0 0.0
        %3883 = vmatprep.subr.mxu0 0.0
        %3884 = vmatpush1.msra.mxu0 0.0
        %3885 = vmatprep.subr.mxu0 0.0
        %3886 = vmatpush1.msra.mxu0 0.0
        %3887 = vmatprep.subr.mxu0 0.0
        %3888 = vmatpush1.msra.mxu0 0.0
        %3889 = vmatprep.subr.mxu0 0.0
        %3890 = vmatpush1.msra.mxu0 0.0
        %3891 = vmatprep.subr.mxu0 0.0
        %3892 = vmatpush1.msra.mxu0 0.0
        %3893 = vmatprep.subr.mxu0 0.0
        %3894 = vmatpush1.msra.mxu0 0.0
        %3895 = vmatprep.subr.mxu0 0.0
        %3896 = vmatpush1.msra.mxu0 0.0
        %3897 = vmatprep.subr.mxu0 0.0
        %3898 = vmatpush1.msra.mxu0 0.0
        %3899 = vmatprep.subr.mxu0 0.0
        %3900 = vmatpush1.msra.mxu0 0.0
        %3901 = vmatprep.subr.mxu0 0.0
        %3902 = vmatpush1.msra.mxu0 0.0
        %3903 = vmatprep.subr.mxu0 0.0
        %3904 = vmatpush1.msra.mxu0 0.0
        %3905 = vmatprep.subr.mxu0 0.0
        %3906 = vmatpush1.msra.mxu0 0.0
        %3907 = vmatprep.subr.mxu0 0.0
        %3908 = vmatpush1.msra.mxu0 0.0
        %3909 = vmatprep.subr.mxu0 0.0
        %3910 = vmatpush1.msra.mxu0 0.0
        %3911 = vmatprep.mubr.f32.mxu0 0.0
        %3912 = vmatmul.mubr.f32.gmra.mrb[0].mxu0 %v3611
        %v3913 = vpop.f32.mrb[0].mxu0
        %v3914 = vadd.f32 %v3343, %v3913
        %v3915 = vpop.f32.mrb[0].mxu0
        %v3916 = vadd.f32 %v3343, %v3915
        %3917 = vmatprep.mubr.f32.mxu0 0.0
        %3918 = vmatmul.mubr.f32.gmra.mrb[0].mxu0 %v3614
        %v3919 = vpop.f32.mrb[0].mxu0
        %v3920 = vadd.f32 %v3348, %v3919
        %v3921 = vpop.f32.mrb[0].mxu0
        %v3922 = vadd.f32 %v3348, %v3921
        %3923 = vdwg.mxu0
        %3924 = vmatprep.subr.mxu0 %v3488
        %3925 = vmatpush1.msra.mxu0 %v3487
        %3926 = vmatprep.subr.mxu0 %v3503
        %3927 = vmatpush1.msra.mxu0 %v3502
        %3928 = vmatprep.subr.mxu0 %v3518
        %3929 = vmatpush1.msra.mxu0 %v3517
        %3930 = vmatprep.subr.mxu0 %v3490
        %3931 = vmatpush1.msra.mxu0 %v3489
        %3932 = vmatprep.subr.mxu0 %v3505
        %3933 = vmatpush1.msra.mxu0 %v3504
        %3934 = vmatprep.subr.mxu0 %v3520
        %3935 = vmatpush1.msra.mxu0 %v3519
        %3936 = vmatprep.subr.mxu0 %v3492
        %3937 = vmatpush1.msra.mxu0 %v3491
        %3938 = vmatprep.subr.mxu0 %v3507
        %3939 = vmatpush1.msra.mxu0 %v3506
        %3940 = vmatprep.subr.mxu0 %v3522
        %3941 = vmatpush1.msra.mxu0 %v3521
        %3942 = vmatprep.subr.mxu0 0.0
        %3943 = vmatpush1.msra.mxu0 0.0
        %3944 = vmatprep.subr.mxu0 0.0
        %3945 = vmatpush1.msra.mxu0 0.0
        %3946 = vmatprep.subr.mxu0 0.0
        %3947 = vmatpush1.msra.mxu0 0.0
        %3948 = vmatprep.subr.mxu0 0.0
        %3949 = vmatpush1.msra.mxu0 0.0
        %3950 = vmatprep.subr.mxu0 0.0
        %3951 = vmatpush1.msra.mxu0 0.0
        %3952 = vmatprep.subr.mxu0 0.0
        %3953 = vmatpush1.msra.mxu0 0.0
        %3954 = vmatprep.subr.mxu0 0.0
        %3955 = vmatpush1.msra.mxu0 0.0
        %3956 = vmatprep.subr.mxu0 0.0
        %3957 = vmatpush1.msra.mxu0 0.0
        %3958 = vmatprep.subr.mxu0 0.0
        %3959 = vmatpush1.msra.mxu0 0.0
        %3960 = vmatprep.subr.mxu0 0.0
        %3961 = vmatpush1.msra.mxu0 0.0
        %3962 = vmatprep.subr.mxu0 0.0
        %3963 = vmatpush1.msra.mxu0 0.0
        %3964 = vmatprep.subr.mxu0 0.0
        %3965 = vmatpush1.msra.mxu0 0.0
        %3966 = vmatprep.subr.mxu0 0.0
        %3967 = vmatpush1.msra.mxu0 0.0
        %3968 = vmatprep.subr.mxu0 0.0
        %3969 = vmatpush1.msra.mxu0 0.0
        %3970 = vmatprep.subr.mxu0 0.0
        %3971 = vmatpush1.msra.mxu0 0.0
        %3972 = vmatprep.subr.mxu0 0.0
        %3973 = vmatpush1.msra.mxu0 0.0
        %3974 = vmatprep.subr.mxu0 0.0
        %3975 = vmatpush1.msra.mxu0 0.0
        %3976 = vmatprep.subr.mxu0 0.0
        %3977 = vmatpush1.msra.mxu0 0.0
        %3978 = vmatprep.subr.mxu0 0.0
        %3979 = vmatpush1.msra.mxu0 0.0
        %3980 = vmatprep.subr.mxu0 0.0
        %3981 = vmatpush1.msra.mxu0 0.0
        %3982 = vmatprep.subr.mxu0 0.0
        %3983 = vmatpush1.msra.mxu0 0.0
        %3984 = vmatprep.subr.mxu0 0.0
        %3985 = vmatpush1.msra.mxu0 0.0
        %3986 = vmatprep.subr.mxu0 0.0
        %3987 = vmatpush1.msra.mxu0 0.0
        %3988 = vmatprep.mubr.f32.mxu0 0.0
        %3989 = vmatmul.mubr.f32.gmra.mrb[0].mxu0 %v3611
        %v3990 = vpop.f32.mrb[0].mxu0
        %v3991 = vadd.f32 %v3343, %v3990
        %v3992 = vpop.f32.mrb[0].mxu0
        %v3993 = vadd.f32 %v3343, %v3992
        %3994 = vmatprep.mubr.f32.mxu0 0.0
        %3995 = vmatmul.mubr.f32.gmra.mrb[0].mxu0 %v3614
        %v3996 = vpop.f32.mrb[0].mxu0
        %v3997 = vadd.f32 %v3348, %v3996
        %v3998 = vpop.f32.mrb[0].mxu0
        %v3999 = vadd.f32 %v3348, %v3998
        %4000 = vdwg.mxu0
        %4001 = vmatprep.subr.mxu0 %v3490
        %4002 = vmatpush1.msra.mxu0 %v3489
        %4003 = vmatprep.subr.mxu0 %v3505
        %4004 = vmatpush1.msra.mxu0 %v3504
        %4005 = vmatprep.subr.mxu0 %v3520
        %4006 = vmatpush1.msra.mxu0 %v3519
        %4007 = vmatprep.subr.mxu0 %v3492
        %4008 = vmatpush1.msra.mxu0 %v3491
        %4009 = vmatprep.subr.mxu0 %v3507
        %4010 = vmatpush1.msra.mxu0 %v3506
        %4011 = vmatprep.subr.mxu0 %v3522
        %4012 = vmatpush1.msra.mxu0 %v3521
        %4013 = vmatprep.subr.mxu0 %v3524
        %4014 = vmatpush1.msra.mxu0 %v3493
        %4015 = vmatprep.subr.mxu0 %v3527
        %4016 = vmatpush1.msra.mxu0 %v3526
        %4017 = vmatprep.subr.mxu0 %v3530
        %4018 = vmatpush1.msra.mxu0 %v3529
        %4019 = vmatprep.subr.mxu0 0.0
        %4020 = vmatpush1.msra.mxu0 0.0
        %4021 = vmatprep.subr.mxu0 0.0
        %4022 = vmatpush1.msra.mxu0 0.0
        %4023 = vmatprep.subr.mxu0 0.0
        %4024 = vmatpush1.msra.mxu0 0.0
        %4025 = vmatprep.subr.mxu0 0.0
        %4026 = vmatpush1.msra.mxu0 0.0
        %4027 = vmatprep.subr.mxu0 0.0
        %4028 = vmatpush1.msra.mxu0 0.0
        %4029 = vmatprep.subr.mxu0 0.0
        %4030 = vmatpush1.msra.mxu0 0.0
        %4031 = vmatprep.subr.mxu0 0.0
        %4032 = vmatpush1.msra.mxu0 0.0
        %4033 = vmatprep.subr.mxu0 0.0
        %4034 = vmatpush1.msra.mxu0 0.0
        %4035 = vmatprep.subr.mxu0 0.0
        %4036 = vmatpush1.msra.mxu0 0.0
        %4037 = vmatprep.subr.mxu0 0.0
        %4038 = vmatpush1.msra.mxu0 0.0
        %4039 = vmatprep.subr.mxu0 0.0
        %4040 = vmatpush1.msra.mxu0 0.0
        %4041 = vmatprep.subr.mxu0 0.0
        %4042 = vmatpush1.msra.mxu0 0.0
        %4043 = vmatprep.subr.mxu0 0.0
        %4044 = vmatpush1.msra.mxu0 0.0
        %4045 = vmatprep.subr.mxu0 0.0
        %4046 = vmatpush1.msra.mxu0 0.0
        %4047 = vmatprep.subr.mxu0 0.0
        %4048 = vmatpush1.msra.mxu0 0.0
        %4049 = vmatprep.subr.mxu0 0.0
        %4050 = vmatpush1.msra.mxu0 0.0
        %4051 = vmatprep.subr.mxu0 0.0
        %4052 = vmatpush1.msra.mxu0 0.0
        %4053 = vmatprep.subr.mxu0 0.0
        %4054 = vmatpush1.msra.mxu0 0.0
        %4055 = vmatprep.subr.mxu0 0.0
        %4056 = vmatpush1.msra.mxu0 0.0
        %4057 = vmatprep.subr.mxu0 0.0
        %4058 = vmatpush1.msra.mxu0 0.0
        %4059 = vmatprep.subr.mxu0 0.0
        %4060 = vmatpush1.msra.mxu0 0.0
        %4061 = vmatprep.subr.mxu0 0.0
        %4062 = vmatpush1.msra.mxu0 0.0
        %4063 = vmatprep.subr.mxu0 0.0
        %4064 = vmatpush1.msra.mxu0 0.0
        %4065 = vmatprep.mubr.f32.mxu0 0.0
        %4066 = vmatmul.mubr.f32.gmra.mrb[0].mxu0 %v3611
        %v4067 = vpop.f32.mrb[0].mxu0
        %v4068 = vadd.f32 %v3343, %v4067
        %v4069 = vpop.f32.mrb[0].mxu0
        %v4070 = vadd.f32 %v3343, %v4069
        %4071 = vmatprep.mubr.f32.mxu0 0.0
        %4072 = vmatmul.mubr.f32.gmra.mrb[0].mxu0 %v3614
        %v4073 = vpop.f32.mrb[0].mxu0
        %v4074 = vadd.f32 %v3348, %v4073
        %v4075 = vpop.f32.mrb[0].mxu0
        %v4076 = vadd.f32 %v3348, %v4075
        %4077 = vdwg.mxu0
        %4078 = vmatprep.subr.mxu0 %v3492
        %4079 = vmatpush1.msra.mxu0 %v3491
        %4080 = vmatprep.subr.mxu0 %v3507
        %4081 = vmatpush1.msra.mxu0 %v3506
        %4082 = vmatprep.subr.mxu0 %v3522
        %4083 = vmatpush1.msra.mxu0 %v3521
        %4084 = vmatprep.subr.mxu0 %v3524
        %4085 = vmatpush1.msra.mxu0 %v3493
        %4086 = vmatprep.subr.mxu0 %v3527
        %4087 = vmatpush1.msra.mxu0 %v3526
        %4088 = vmatprep.subr.mxu0 %v3530
        %4089 = vmatpush1.msra.mxu0 %v3529
        %4090 = vmatprep.subr.mxu0 %v3532
        %4091 = vmatpush1.msra.mxu0 %v3525
        %4092 = vmatprep.subr.mxu0 %v3535
        %4093 = vmatpush1.msra.mxu0 %v3534
        %4094 = vmatprep.subr.mxu0 %v3538
        %4095 = vmatpush1.msra.mxu0 %v3537
        %4096 = vmatprep.subr.mxu0 0.0
        %4097 = vmatpush1.msra.mxu0 0.0
        %4098 = vmatprep.subr.mxu0 0.0
        %4099 = vmatpush1.msra.mxu0 0.0
        %4100 = vmatprep.subr.mxu0 0.0
        %4101 = vmatpush1.msra.mxu0 0.0
        %4102 = vmatprep.subr.mxu0 0.0
        %4103 = vmatpush1.msra.mxu0 0.0
        %4104 = vmatprep.subr.mxu0 0.0
        %4105 = vmatpush1.msra.mxu0 0.0
        %4106 = vmatprep.subr.mxu0 0.0
        %4107 = vmatpush1.msra.mxu0 0.0
        %4108 = vmatprep.subr.mxu0 0.0
        %4109 = vmatpush1.msra.mxu0 0.0
        %4110 = vmatprep.subr.mxu0 0.0
        %4111 = vmatpush1.msra.mxu0 0.0
        %4112 = vmatprep.subr.mxu0 0.0
        %4113 = vmatpush1.msra.mxu0 0.0
        %4114 = vmatprep.subr.mxu0 0.0
        %4115 = vmatpush1.msra.mxu0 0.0
        %4116 = vmatprep.subr.mxu0 0.0
        %4117 = vmatpush1.msra.mxu0 0.0
        %4118 = vmatprep.subr.mxu0 0.0
        %4119 = vmatpush1.msra.mxu0 0.0
        %4120 = vmatprep.subr.mxu0 0.0
        %4121 = vmatpush1.msra.mxu0 0.0
        %4122 = vmatprep.subr.mxu0 0.0
        %4123 = vmatpush1.msra.mxu0 0.0
        %4124 = vmatprep.subr.mxu0 0.0
        %4125 = vmatpush1.msra.mxu0 0.0
        %4126 = vmatprep.subr.mxu0 0.0
        %4127 = vmatpush1.msra.mxu0 0.0
        %4128 = vmatprep.subr.mxu0 0.0
        %4129 = vmatpush1.msra.mxu0 0.0
        %4130 = vmatprep.subr.mxu0 0.0
        %4131 = vmatpush1.msra.mxu0 0.0
        %4132 = vmatprep.subr.mxu0 0.0
        %4133 = vmatpush1.msra.mxu0 0.0
        %4134 = vmatprep.subr.mxu0 0.0
        %4135 = vmatpush1.msra.mxu0 0.0
        %4136 = vmatprep.subr.mxu0 0.0
        %4137 = vmatpush1.msra.mxu0 0.0
        %4138 = vmatprep.subr.mxu0 0.0
        %4139 = vmatpush1.msra.mxu0 0.0
        %4140 = vmatprep.subr.mxu0 0.0
        %4141 = vmatpush1.msra.mxu0 0.0
        %4142 = vmatprep.mubr.f32.mxu0 0.0
        %4143 = vmatmul.mubr.f32.gmra.mrb[0].mxu0 %v3611
        %v4144 = vpop.f32.mrb[0].mxu0
        %v4145 = vadd.f32 %v3343, %v4144
        %v4146 = vpop.f32.mrb[0].mxu0
        %v4147 = vadd.f32 %v3343, %v4146
        %4148 = vmatprep.mubr.f32.mxu0 0.0
        %4149 = vmatmul.mubr.f32.gmra.mrb[0].mxu0 %v3614
        %v4150 = vpop.f32.mrb[0].mxu0
        %v4151 = vadd.f32 %v3348, %v4150
        %v4152 = vpop.f32.mrb[0].mxu0
        %v4153 = vadd.f32 %v3348, %v4152
        %4154 = vdwg.mxu0
        %4155 = vmatprep.subr.mxu0 %v3381
        %4156 = vmatpush1.msra.mxu0 %v3493
        %4157 = vmatprep.subr.mxu0 %v3413
        %4158 = vmatpush1.msra.mxu0 %v3508
        %4159 = vmatprep.subr.mxu0 %v3445
        %4160 = vmatpush1.msra.mxu0 %v3523
        %4161 = vmatprep.subr.mxu0 %v3449
        %4162 = vmatpush1.msra.mxu0 %v3525
        %4163 = vmatprep.subr.mxu0 %v3455
        %4164 = vmatpush1.msra.mxu0 %v3528
        %4165 = vmatprep.subr.mxu0 %v3461
        %4166 = vmatpush1.msra.mxu0 %v3531
        %4167 = vmatprep.subr.mxu0 %v3465
        %4168 = vmatpush1.msra.mxu0 %v3533
        %4169 = vmatprep.subr.mxu0 %v3471
        %4170 = vmatpush1.msra.mxu0 %v3536
        %4171 = vmatprep.subr.mxu0 %v3477
        %4172 = vmatpush1.msra.mxu0 %v3539
        %4173 = vmatprep.subr.mxu0 0.0
        %4174 = vmatpush1.msra.mxu0 0.0
        %4175 = vmatprep.subr.mxu0 0.0
        %4176 = vmatpush1.msra.mxu0 0.0
        %4177 = vmatprep.subr.mxu0 0.0
        %4178 = vmatpush1.msra.mxu0 0.0
        %4179 = vmatprep.subr.mxu0 0.0
        %4180 = vmatpush1.msra.mxu0 0.0
        %4181 = vmatprep.subr.mxu0 0.0
        %4182 = vmatpush1.msra.mxu0 0.0
        %4183 = vmatprep.subr.mxu0 0.0
        %4184 = vmatpush1.msra.mxu0 0.0
        %4185 = vmatprep.subr.mxu0 0.0
        %4186 = vmatpush1.msra.mxu0 0.0
        %4187 = vmatprep.subr.mxu0 0.0
        %4188 = vmatpush1.msra.mxu0 0.0
        %4189 = vmatprep.subr.mxu0 0.0
        %4190 = vmatpush1.msra.mxu0 0.0
        %4191 = vmatprep.subr.mxu0 0.0
        %4192 = vmatpush1.msra.mxu0 0.0
        %4193 = vmatprep.subr.mxu0 0.0
        %4194 = vmatpush1.msra.mxu0 0.0
        %4195 = vmatprep.subr.mxu0 0.0
        %4196 = vmatpush1.msra.mxu0 0.0
        %4197 = vmatprep.subr.mxu0 0.0
        %4198 = vmatpush1.msra.mxu0 0.0
        %4199 = vmatprep.subr.mxu0 0.0
        %4200 = vmatpush1.msra.mxu0 0.0
        %4201 = vmatprep.subr.mxu0 0.0
        %4202 = vmatpush1.msra.mxu0 0.0
        %4203 = vmatprep.subr.mxu0 0.0
        %4204 = vmatpush1.msra.mxu0 0.0
        %4205 = vmatprep.subr.mxu0 0.0
        %4206 = vmatpush1.msra.mxu0 0.0
        %4207 = vmatprep.subr.mxu0 0.0
        %4208 = vmatpush1.msra.mxu0 0.0
        %4209 = vmatprep.subr.mxu0 0.0
        %4210 = vmatpush1.msra.mxu0 0.0
        %4211 = vmatprep.subr.mxu0 0.0
        %4212 = vmatpush1.msra.mxu0 0.0
        %4213 = vmatprep.subr.mxu0 0.0
        %4214 = vmatpush1.msra.mxu0 0.0
        %4215 = vmatprep.subr.mxu0 0.0
        %4216 = vmatpush1.msra.mxu0 0.0
        %4217 = vmatprep.subr.mxu0 0.0
        %4218 = vmatpush1.msra.mxu0 0.0
        %4219 = vmatprep.mubr.f32.mxu0 0.0
        %4220 = vmatmul.mubr.f32.gmra.mrb[0].mxu0 %v3611
        %v4221 = vpop.f32.mrb[0].mxu0
        %v4222 = vadd.f32 %v3343, %v4221
        %v4223 = vpop.f32.mrb[0].mxu0
        %v4224 = vadd.f32 %v3343, %v4223
        %4225 = vmatprep.mubr.f32.mxu0 0.0
        %4226 = vmatmul.mubr.f32.gmra.mrb[0].mxu0 %v3614
        %v4227 = vpop.f32.mrb[0].mxu0
        %v4228 = vadd.f32 %v3348, %v4227
        %v4229 = vpop.f32.mrb[0].mxu0
        %v4230 = vadd.f32 %v3348, %v4229
        %4231 = vdwg.mxu0
        %s4232 = scalar_lea.vmem %s3, 32
        %v4233 = vld [vmem:[%s4232] sm:$0xff]
        %v4234 = vld [vmem:[%s4232 + $0x8] sm:$0xff]
        %v4236 = vsel %vm2021, %v4233, 0
        %v4239 = vsel %vm2021, %v4234, 0
        %4241 = vmatprep.subr.mxu0 %v3685
        %4242 = vmatpush1.msra.mxu0 %v3683
        %4243 = vmatprep.subr.mxu0 %v3691
        %4244 = vmatpush1.msra.mxu0 %v3689
        %4245 = vmatprep.subr.mxu0 0.0
        %4246 = vmatpush1.msra.mxu0 0.0
        %4247 = vmatprep.subr.mxu0 0.0
        %4248 = vmatpush1.msra.mxu0 0.0
        %4249 = vmatprep.subr.mxu0 0.0
        %4250 = vmatpush1.msra.mxu0 0.0
        %4251 = vmatprep.subr.mxu0 0.0
        %4252 = vmatpush1.msra.mxu0 0.0
        %4253 = vmatprep.subr.mxu0 0.0
        %4254 = vmatpush1.msra.mxu0 0.0
        %4255 = vmatprep.subr.mxu0 0.0
        %4256 = vmatpush1.msra.mxu0 0.0
        %4257 = vmatprep.subr.mxu0 0.0
        %4258 = vmatpush1.msra.mxu0 0.0
        %4259 = vmatprep.subr.mxu0 0.0
        %4260 = vmatpush1.msra.mxu0 0.0
        %4261 = vmatprep.subr.mxu0 0.0
        %4262 = vmatpush1.msra.mxu0 0.0
        %4263 = vmatprep.subr.mxu0 0.0
        %4264 = vmatpush1.msra.mxu0 0.0
        %4265 = vmatprep.subr.mxu0 0.0
        %4266 = vmatpush1.msra.mxu0 0.0
        %4267 = vmatprep.subr.mxu0 0.0
        %4268 = vmatpush1.msra.mxu0 0.0
        %4269 = vmatprep.subr.mxu0 0.0
        %4270 = vmatpush1.msra.mxu0 0.0
        %4271 = vmatprep.subr.mxu0 0.0
        %4272 = vmatpush1.msra.mxu0 0.0
        %4273 = vmatprep.subr.mxu0 0.0
        %4274 = vmatpush1.msra.mxu0 0.0
        %4275 = vmatprep.subr.mxu0 0.0
        %4276 = vmatpush1.msra.mxu0 0.0
        %4277 = vmatprep.subr.mxu0 0.0
        %4278 = vmatpush1.msra.mxu0 0.0
        %4279 = vmatprep.subr.mxu0 0.0
        %4280 = vmatpush1.msra.mxu0 0.0
        %4281 = vmatprep.subr.mxu0 0.0
        %4282 = vmatpush1.msra.mxu0 0.0
        %4283 = vmatprep.subr.mxu0 0.0
        %4284 = vmatpush1.msra.mxu0 0.0
        %4285 = vmatprep.subr.mxu0 0.0
        %4286 = vmatpush1.msra.mxu0 0.0
        %4287 = vmatprep.subr.mxu0 0.0
        %4288 = vmatpush1.msra.mxu0 0.0
        %4289 = vmatprep.subr.mxu0 0.0
        %4290 = vmatpush1.msra.mxu0 0.0
        %4291 = vmatprep.subr.mxu0 0.0
        %4292 = vmatpush1.msra.mxu0 0.0
        %4293 = vmatprep.subr.mxu0 0.0
        %4294 = vmatpush1.msra.mxu0 0.0
        %4295 = vmatprep.subr.mxu0 0.0
        %4296 = vmatpush1.msra.mxu0 0.0
        %4297 = vmatprep.subr.mxu0 0.0
        %4298 = vmatpush1.msra.mxu0 0.0
        %4299 = vmatprep.subr.mxu0 0.0
        %4300 = vmatpush1.msra.mxu0 0.0
        %4301 = vmatprep.subr.mxu0 0.0
        %4302 = vmatpush1.msra.mxu0 0.0
        %4303 = vmatprep.subr.mxu0 0.0
        %4304 = vmatpush1.msra.mxu0 0.0
        %4305 = vmatprep.mubr.f32.mxu0 0.0
        %4306 = vmatmul.mubr.f32.gmra.mrb[0].mxu0 %v4236
        %v4307 = vpop.f32.mrb[0].mxu0
        %v4308 = vadd.f32 0.0, %v4307
        %v4309 = vpop.f32.mrb[0].mxu0
        %v4310 = vadd.f32 0.0, %v4309
        %4311 = vmatprep.mubr.f32.mxu0 0.0
        %4312 = vmatmul.mubr.f32.gmra.mrb[0].mxu0 %v4239
        %v4313 = vpop.f32.mrb[0].mxu0
        %v4314 = vadd.f32 0.0, %v4313
        %v4315 = vpop.f32.mrb[0].mxu0
        %v4316 = vadd.f32 0.0, %v4315
        %4317 = vdwg.mxu0
        %4318 = vmatprep.subr.mxu0 %v3762
        %4319 = vmatpush1.msra.mxu0 %v3760
        %4320 = vmatprep.subr.mxu0 %v3768
        %4321 = vmatpush1.msra.mxu0 %v3766
        %4322 = vmatprep.subr.mxu0 0.0
        %4323 = vmatpush1.msra.mxu0 0.0
        %4324 = vmatprep.subr.mxu0 0.0
        %4325 = vmatpush1.msra.mxu0 0.0
        %4326 = vmatprep.subr.mxu0 0.0
        %4327 = vmatpush1.msra.mxu0 0.0
        %4328 = vmatprep.subr.mxu0 0.0
        %4329 = vmatpush1.msra.mxu0 0.0
        %4330 = vmatprep.subr.mxu0 0.0
        %4331 = vmatpush1.msra.mxu0 0.0
        %4332 = vmatprep.subr.mxu0 0.0
        %4333 = vmatpush1.msra.mxu0 0.0
        %4334 = vmatprep.subr.mxu0 0.0
        %4335 = vmatpush1.msra.mxu0 0.0
        %4336 = vmatprep.subr.mxu0 0.0
        %4337 = vmatpush1.msra.mxu0 0.0
        %4338 = vmatprep.subr.mxu0 0.0
        %4339 = vmatpush1.msra.mxu0 0.0
        %4340 = vmatprep.subr.mxu0 0.0
        %4341 = vmatpush1.msra.mxu0 0.0
        %4342 = vmatprep.subr.mxu0 0.0
        %4343 = vmatpush1.msra.mxu0 0.0
        %4344 = vmatprep.subr.mxu0 0.0
        %4345 = vmatpush1.msra.mxu0 0.0
        %4346 = vmatprep.subr.mxu0 0.0
        %4347 = vmatpush1.msra.mxu0 0.0
        %4348 = vmatprep.subr.mxu0 0.0
        %4349 = vmatpush1.msra.mxu0 0.0
        %4350 = vmatprep.subr.mxu0 0.0
        %4351 = vmatpush1.msra.mxu0 0.0
        %4352 = vmatprep.subr.mxu0 0.0
        %4353 = vmatpush1.msra.mxu0 0.0
        %4354 = vmatprep.subr.mxu0 0.0
        %4355 = vmatpush1.msra.mxu0 0.0
        %4356 = vmatprep.subr.mxu0 0.0
        %4357 = vmatpush1.msra.mxu0 0.0
        %4358 = vmatprep.subr.mxu0 0.0
        %4359 = vmatpush1.msra.mxu0 0.0
        %4360 = vmatprep.subr.mxu0 0.0
        %4361 = vmatpush1.msra.mxu0 0.0
        %4362 = vmatprep.subr.mxu0 0.0
        %4363 = vmatpush1.msra.mxu0 0.0
        %4364 = vmatprep.subr.mxu0 0.0
        %4365 = vmatpush1.msra.mxu0 0.0
        %4366 = vmatprep.subr.mxu0 0.0
        %4367 = vmatpush1.msra.mxu0 0.0
        %4368 = vmatprep.subr.mxu0 0.0
        %4369 = vmatpush1.msra.mxu0 0.0
        %4370 = vmatprep.subr.mxu0 0.0
        %4371 = vmatpush1.msra.mxu0 0.0
        %4372 = vmatprep.subr.mxu0 0.0
        %4373 = vmatpush1.msra.mxu0 0.0
        %4374 = vmatprep.subr.mxu0 0.0
        %4375 = vmatpush1.msra.mxu0 0.0
        %4376 = vmatprep.subr.mxu0 0.0
        %4377 = vmatpush1.msra.mxu0 0.0
        %4378 = vmatprep.subr.mxu0 0.0
        %4379 = vmatpush1.msra.mxu0 0.0
        %4380 = vmatprep.subr.mxu0 0.0
        %4381 = vmatpush1.msra.mxu0 0.0
        %4382 = vmatprep.mubr.f32.mxu0 0.0
        %4383 = vmatmul.mubr.f32.gmra.mrb[0].mxu0 %v4236
        %v4384 = vpop.f32.mrb[0].mxu0
        %v4385 = vadd.f32 0.0, %v4384
        %v4386 = vpop.f32.mrb[0].mxu0
        %v4387 = vadd.f32 0.0, %v4386
        %4388 = vmatprep.mubr.f32.mxu0 0.0
        %4389 = vmatmul.mubr.f32.gmra.mrb[0].mxu0 %v4239
        %v4390 = vpop.f32.mrb[0].mxu0
        %v4391 = vadd.f32 0.0, %v4390
        %v4392 = vpop.f32.mrb[0].mxu0
        %v4393 = vadd.f32 0.0, %v4392
        %4394 = vdwg.mxu0
        %4395 = vmatprep.subr.mxu0 %v3839
        %4396 = vmatpush1.msra.mxu0 %v3837
        %4397 = vmatprep.subr.mxu0 %v3845
        %4398 = vmatpush1.msra.mxu0 %v3843
        %4399 = vmatprep.subr.mxu0 0.0
        %4400 = vmatpush1.msra.mxu0 0.0
        %4401 = vmatprep.subr.mxu0 0.0
        %4402 = vmatpush1.msra.mxu0 0.0
        %4403 = vmatprep.subr.mxu0 0.0
        %4404 = vmatpush1.msra.mxu0 0.0
        %4405 = vmatprep.subr.mxu0 0.0
        %4406 = vmatpush1.msra.mxu0 0.0
        %4407 = vmatprep.subr.mxu0 0.0
        %4408 = vmatpush1.msra.mxu0 0.0
        %4409 = vmatprep.subr.mxu0 0.0
        %4410 = vmatpush1.msra.mxu0 0.0
        %4411 = vmatprep.subr.mxu0 0.0
        %4412 = vmatpush1.msra.mxu0 0.0
        %4413 = vmatprep.subr.mxu0 0.0
        %4414 = vmatpush1.msra.mxu0 0.0
        %4415 = vmatprep.subr.mxu0 0.0
        %4416 = vmatpush1.msra.mxu0 0.0
        %4417 = vmatprep.subr.mxu0 0.0
        %4418 = vmatpush1.msra.mxu0 0.0
        %4419 = vmatprep.subr.mxu0 0.0
        %4420 = vmatpush1.msra.mxu0 0.0
        %4421 = vmatprep.subr.mxu0 0.0
        %4422 = vmatpush1.msra.mxu0 0.0
        %4423 = vmatprep.subr.mxu0 0.0
        %4424 = vmatpush1.msra.mxu0 0.0
        %4425 = vmatprep.subr.mxu0 0.0
        %4426 = vmatpush1.msra.mxu0 0.0
        %4427 = vmatprep.subr.mxu0 0.0
        %4428 = vmatpush1.msra.mxu0 0.0
        %4429 = vmatprep.subr.mxu0 0.0
        %4430 = vmatpush1.msra.mxu0 0.0
        %4431 = vmatprep.subr.mxu0 0.0
        %4432 = vmatpush1.msra.mxu0 0.0
        %4433 = vmatprep.subr.mxu0 0.0
        %4434 = vmatpush1.msra.mxu0 0.0
        %4435 = vmatprep.subr.mxu0 0.0
        %4436 = vmatpush1.msra.mxu0 0.0
        %4437 = vmatprep.subr.mxu0 0.0
        %4438 = vmatpush1.msra.mxu0 0.0
        %4439 = vmatprep.subr.mxu0 0.0
        %4440 = vmatpush1.msra.mxu0 0.0
        %4441 = vmatprep.subr.mxu0 0.0
        %4442 = vmatpush1.msra.mxu0 0.0
        %4443 = vmatprep.subr.mxu0 0.0
        %4444 = vmatpush1.msra.mxu0 0.0
        %4445 = vmatprep.subr.mxu0 0.0
        %4446 = vmatpush1.msra.mxu0 0.0
        %4447 = vmatprep.subr.mxu0 0.0
        %4448 = vmatpush1.msra.mxu0 0.0
        %4449 = vmatprep.subr.mxu0 0.0
        %4450 = vmatpush1.msra.mxu0 0.0
        %4451 = vmatprep.subr.mxu0 0.0
        %4452 = vmatpush1.msra.mxu0 0.0
        %4453 = vmatprep.subr.mxu0 0.0
        %4454 = vmatpush1.msra.mxu0 0.0
        %4455 = vmatprep.subr.mxu0 0.0
        %4456 = vmatpush1.msra.mxu0 0.0
        %4457 = vmatprep.subr.mxu0 0.0
        %4458 = vmatpush1.msra.mxu0 0.0
        %4459 = vmatprep.mubr.f32.mxu0 0.0
        %4460 = vmatmul.mubr.f32.gmra.mrb[0].mxu0 %v4236
        %v4461 = vpop.f32.mrb[0].mxu0
        %v4462 = vadd.f32 0.0, %v4461
        %v4463 = vpop.f32.mrb[0].mxu0
        %v4464 = vadd.f32 0.0, %v4463
        %4465 = vmatprep.mubr.f32.mxu0 0.0
        %4466 = vmatmul.mubr.f32.gmra.mrb[0].mxu0 %v4239
        %v4467 = vpop.f32.mrb[0].mxu0
        %v4468 = vadd.f32 0.0, %v4467
        %v4469 = vpop.f32.mrb[0].mxu0
        %v4470 = vadd.f32 0.0, %v4469
        %4471 = vdwg.mxu0
        %4472 = vmatprep.subr.mxu0 %v3916
        %4473 = vmatpush1.msra.mxu0 %v3914
        %4474 = vmatprep.subr.mxu0 %v3922
        %4475 = vmatpush1.msra.mxu0 %v3920
        %4476 = vmatprep.subr.mxu0 0.0
        %4477 = vmatpush1.msra.mxu0 0.0
        %4478 = vmatprep.subr.mxu0 0.0
        %4479 = vmatpush1.msra.mxu0 0.0
        %4480 = vmatprep.subr.mxu0 0.0
        %4481 = vmatpush1.msra.mxu0 0.0
        %4482 = vmatprep.subr.mxu0 0.0
        %4483 = vmatpush1.msra.mxu0 0.0
        %4484 = vmatprep.subr.mxu0 0.0
        %4485 = vmatpush1.msra.mxu0 0.0
        %4486 = vmatprep.subr.mxu0 0.0
        %4487 = vmatpush1.msra.mxu0 0.0
        %4488 = vmatprep.subr.mxu0 0.0
        %4489 = vmatpush1.msra.mxu0 0.0
        %4490 = vmatprep.subr.mxu0 0.0
        %4491 = vmatpush1.msra.mxu0 0.0
        %4492 = vmatprep.subr.mxu0 0.0
        %4493 = vmatpush1.msra.mxu0 0.0
        %4494 = vmatprep.subr.mxu0 0.0
        %4495 = vmatpush1.msra.mxu0 0.0
        %4496 = vmatprep.subr.mxu0 0.0
        %4497 = vmatpush1.msra.mxu0 0.0
        %4498 = vmatprep.subr.mxu0 0.0
        %4499 = vmatpush1.msra.mxu0 0.0
        %4500 = vmatprep.subr.mxu0 0.0
        %4501 = vmatpush1.msra.mxu0 0.0
        %4502 = vmatprep.subr.mxu0 0.0
        %4503 = vmatpush1.msra.mxu0 0.0
        %4504 = vmatprep.subr.mxu0 0.0
        %4505 = vmatpush1.msra.mxu0 0.0
        %4506 = vmatprep.subr.mxu0 0.0
        %4507 = vmatpush1.msra.mxu0 0.0
        %4508 = vmatprep.subr.mxu0 0.0
        %4509 = vmatpush1.msra.mxu0 0.0
        %4510 = vmatprep.subr.mxu0 0.0
        %4511 = vmatpush1.msra.mxu0 0.0
        %4512 = vmatprep.subr.mxu0 0.0
        %4513 = vmatpush1.msra.mxu0 0.0
        %4514 = vmatprep.subr.mxu0 0.0
        %4515 = vmatpush1.msra.mxu0 0.0
        %4516 = vmatprep.subr.mxu0 0.0
        %4517 = vmatpush1.msra.mxu0 0.0
        %4518 = vmatprep.subr.mxu0 0.0
        %4519 = vmatpush1.msra.mxu0 0.0
        %4520 = vmatprep.subr.mxu0 0.0
        %4521 = vmatpush1.msra.mxu0 0.0
        %4522 = vmatprep.subr.mxu0 0.0
        %4523 = vmatpush1.msra.mxu0 0.0
        %4524 = vmatprep.subr.mxu0 0.0
        %4525 = vmatpush1.msra.mxu0 0.0
        %4526 = vmatprep.subr.mxu0 0.0
        %4527 = vmatpush1.msra.mxu0 0.0
        %4528 = vmatprep.subr.mxu0 0.0
        %4529 = vmatpush1.msra.mxu0 0.0
        %4530 = vmatprep.subr.mxu0 0.0
        %4531 = vmatpush1.msra.mxu0 0.0
        %4532 = vmatprep.subr.mxu0 0.0
        %4533 = vmatpush1.msra.mxu0 0.0
        %4534 = vmatprep.subr.mxu0 0.0
        %4535 = vmatpush1.msra.mxu0 0.0
        %4536 = vmatprep.mubr.f32.mxu0 0.0
        %4537 = vmatmul.mubr.f32.gmra.mrb[0].mxu0 %v4236
        %v4538 = vpop.f32.mrb[0].mxu0
        %v4539 = vadd.f32 0.0, %v4538
        %v4540 = vpop.f32.mrb[0].mxu0
        %v4541 = vadd.f32 0.0, %v4540
        %4542 = vmatprep.mubr.f32.mxu0 0.0
        %4543 = vmatmul.mubr.f32.gmra.mrb[0].mxu0 %v4239
        %v4544 = vpop.f32.mrb[0].mxu0
        %v4545 = vadd.f32 0.0, %v4544
        %v4546 = vpop.f32.mrb[0].mxu0
        %v4547 = vadd.f32 0.0, %v4546
        %4548 = vdwg.mxu0
        %4549 = vmatprep.subr.mxu0 %v3993
        %4550 = vmatpush1.msra.mxu0 %v3991
        %4551 = vmatprep.subr.mxu0 %v3999
        %4552 = vmatpush1.msra.mxu0 %v3997
        %4553 = vmatprep.subr.mxu0 0.0
        %4554 = vmatpush1.msra.mxu0 0.0
        %4555 = vmatprep.subr.mxu0 0.0
        %4556 = vmatpush1.msra.mxu0 0.0
        %4557 = vmatprep.subr.mxu0 0.0
        %4558 = vmatpush1.msra.mxu0 0.0
        %4559 = vmatprep.subr.mxu0 0.0
        %4560 = vmatpush1.msra.mxu0 0.0
        %4561 = vmatprep.subr.mxu0 0.0
        %4562 = vmatpush1.msra.mxu0 0.0
        %4563 = vmatprep.subr.mxu0 0.0
        %4564 = vmatpush1.msra.mxu0 0.0
        %4565 = vmatprep.subr.mxu0 0.0
        %4566 = vmatpush1.msra.mxu0 0.0
        %4567 = vmatprep.subr.mxu0 0.0
        %4568 = vmatpush1.msra.mxu0 0.0
        %4569 = vmatprep.subr.mxu0 0.0
        %4570 = vmatpush1.msra.mxu0 0.0
        %4571 = vmatprep.subr.mxu0 0.0
        %4572 = vmatpush1.msra.mxu0 0.0
        %4573 = vmatprep.subr.mxu0 0.0
        %4574 = vmatpush1.msra.mxu0 0.0
        %4575 = vmatprep.subr.mxu0 0.0
        %4576 = vmatpush1.msra.mxu0 0.0
        %4577 = vmatprep.subr.mxu0 0.0
        %4578 = vmatpush1.msra.mxu0 0.0
        %4579 = vmatprep.subr.mxu0 0.0
        %4580 = vmatpush1.msra.mxu0 0.0
        %4581 = vmatprep.subr.mxu0 0.0
        %4582 = vmatpush1.msra.mxu0 0.0
        %4583 = vmatprep.subr.mxu0 0.0
        %4584 = vmatpush1.msra.mxu0 0.0
        %4585 = vmatprep.subr.mxu0 0.0
        %4586 = vmatpush1.msra.mxu0 0.0
        %4587 = vmatprep.subr.mxu0 0.0
        %4588 = vmatpush1.msra.mxu0 0.0
        %4589 = vmatprep.subr.mxu0 0.0
        %4590 = vmatpush1.msra.mxu0 0.0
        %4591 = vmatprep.subr.mxu0 0.0
        %4592 = vmatpush1.msra.mxu0 0.0
        %4593 = vmatprep.subr.mxu0 0.0
        %4594 = vmatpush1.msra.mxu0 0.0
        %4595 = vmatprep.subr.mxu0 0.0
        %4596 = vmatpush1.msra.mxu0 0.0
        %4597 = vmatprep.subr.mxu0 0.0
        %4598 = vmatpush1.msra.mxu0 0.0
        %4599 = vmatprep.subr.mxu0 0.0
        %4600 = vmatpush1.msra.mxu0 0.0
        %4601 = vmatprep.subr.mxu0 0.0
        %4602 = vmatpush1.msra.mxu0 0.0
        %4603 = vmatprep.subr.mxu0 0.0
        %4604 = vmatpush1.msra.mxu0 0.0
        %4605 = vmatprep.subr.mxu0 0.0
        %4606 = vmatpush1.msra.mxu0 0.0
        %4607 = vmatprep.subr.mxu0 0.0
        %4608 = vmatpush1.msra.mxu0 0.0
        %4609 = vmatprep.subr.mxu0 0.0
        %4610 = vmatpush1.msra.mxu0 0.0
        %4611 = vmatprep.subr.mxu0 0.0
        %4612 = vmatpush1.msra.mxu0 0.0
        %4613 = vmatprep.mubr.f32.mxu0 0.0
        %4614 = vmatmul.mubr.f32.gmra.mrb[0].mxu0 %v4236
        %v4615 = vpop.f32.mrb[0].mxu0
        %v4616 = vadd.f32 0.0, %v4615
        %v4617 = vpop.f32.mrb[0].mxu0
        %v4618 = vadd.f32 0.0, %v4617
        %4619 = vmatprep.mubr.f32.mxu0 0.0
        %4620 = vmatmul.mubr.f32.gmra.mrb[0].mxu0 %v4239
        %v4621 = vpop.f32.mrb[0].mxu0
        %v4622 = vadd.f32 0.0, %v4621
        %v4623 = vpop.f32.mrb[0].mxu0
        %v4624 = vadd.f32 0.0, %v4623
        %4625 = vdwg.mxu0
        %4626 = vmatprep.subr.mxu0 %v4070
        %4627 = vmatpush1.msra.mxu0 %v4068
        %4628 = vmatprep.subr.mxu0 %v4076
        %4629 = vmatpush1.msra.mxu0 %v4074
        %4630 = vmatprep.subr.mxu0 0.0
        %4631 = vmatpush1.msra.mxu0 0.0
        %4632 = vmatprep.subr.mxu0 0.0
        %4633 = vmatpush1.msra.mxu0 0.0
        %4634 = vmatprep.subr.mxu0 0.0
        %4635 = vmatpush1.msra.mxu0 0.0
        %4636 = vmatprep.subr.mxu0 0.0
        %4637 = vmatpush1.msra.mxu0 0.0
        %4638 = vmatprep.subr.mxu0 0.0
        %4639 = vmatpush1.msra.mxu0 0.0
        %4640 = vmatprep.subr.mxu0 0.0
        %4641 = vmatpush1.msra.mxu0 0.0
        %4642 = vmatprep.subr.mxu0 0.0
        %4643 = vmatpush1.msra.mxu0 0.0
        %4644 = vmatprep.subr.mxu0 0.0
        %4645 = vmatpush1.msra.mxu0 0.0
        %4646 = vmatprep.subr.mxu0 0.0
        %4647 = vmatpush1.msra.mxu0 0.0
        %4648 = vmatprep.subr.mxu0 0.0
        %4649 = vmatpush1.msra.mxu0 0.0
        %4650 = vmatprep.subr.mxu0 0.0
        %4651 = vmatpush1.msra.mxu0 0.0
        %4652 = vmatprep.subr.mxu0 0.0
        %4653 = vmatpush1.msra.mxu0 0.0
        %4654 = vmatprep.subr.mxu0 0.0
        %4655 = vmatpush1.msra.mxu0 0.0
        %4656 = vmatprep.subr.mxu0 0.0
        %4657 = vmatpush1.msra.mxu0 0.0
        %4658 = vmatprep.subr.mxu0 0.0
        %4659 = vmatpush1.msra.mxu0 0.0
        %4660 = vmatprep.subr.mxu0 0.0
        %4661 = vmatpush1.msra.mxu0 0.0
        %4662 = vmatprep.subr.mxu0 0.0
        %4663 = vmatpush1.msra.mxu0 0.0
        %4664 = vmatprep.subr.mxu0 0.0
        %4665 = vmatpush1.msra.mxu0 0.0
        %4666 = vmatprep.subr.mxu0 0.0
        %4667 = vmatpush1.msra.mxu0 0.0
        %4668 = vmatprep.subr.mxu0 0.0
        %4669 = vmatpush1.msra.mxu0 0.0
        %4670 = vmatprep.subr.mxu0 0.0
        %4671 = vmatpush1.msra.mxu0 0.0
        %4672 = vmatprep.subr.mxu0 0.0
        %4673 = vmatpush1.msra.mxu0 0.0
        %4674 = vmatprep.subr.mxu0 0.0
        %4675 = vmatpush1.msra.mxu0 0.0
        %4676 = vmatprep.subr.mxu0 0.0
        %4677 = vmatpush1.msra.mxu0 0.0
        %4678 = vmatprep.subr.mxu0 0.0
        %4679 = vmatpush1.msra.mxu0 0.0
        %4680 = vmatprep.subr.mxu0 0.0
        %4681 = vmatpush1.msra.mxu0 0.0
        %4682 = vmatprep.subr.mxu0 0.0
        %4683 = vmatpush1.msra.mxu0 0.0
        %4684 = vmatprep.subr.mxu0 0.0
        %4685 = vmatpush1.msra.mxu0 0.0
        %4686 = vmatprep.subr.mxu0 0.0
        %4687 = vmatpush1.msra.mxu0 0.0
        %4688 = vmatprep.subr.mxu0 0.0
        %4689 = vmatpush1.msra.mxu0 0.0
        %4690 = vmatprep.mubr.f32.mxu0 0.0
        %4691 = vmatmul.mubr.f32.gmra.mrb[0].mxu0 %v4236
        %v4692 = vpop.f32.mrb[0].mxu0
        %v4693 = vadd.f32 0.0, %v4692
        %v4694 = vpop.f32.mrb[0].mxu0
        %v4695 = vadd.f32 0.0, %v4694
        %4696 = vmatprep.mubr.f32.mxu0 0.0
        %4697 = vmatmul.mubr.f32.gmra.mrb[0].mxu0 %v4239
        %v4698 = vpop.f32.mrb[0].mxu0
        %v4699 = vadd.f32 0.0, %v4698
        %v4700 = vpop.f32.mrb[0].mxu0
        %v4701 = vadd.f32 0.0, %v4700
        %4702 = vdwg.mxu0
        %4703 = vmatprep.subr.mxu0 %v4147
        %4704 = vmatpush1.msra.mxu0 %v4145
        %4705 = vmatprep.subr.mxu0 %v4153
        %4706 = vmatpush1.msra.mxu0 %v4151
        %4707 = vmatprep.subr.mxu0 0.0
        %4708 = vmatpush1.msra.mxu0 0.0
        %4709 = vmatprep.subr.mxu0 0.0
        %4710 = vmatpush1.msra.mxu0 0.0
        %4711 = vmatprep.subr.mxu0 0.0
        %4712 = vmatpush1.msra.mxu0 0.0
        %4713 = vmatprep.subr.mxu0 0.0
        %4714 = vmatpush1.msra.mxu0 0.0
        %4715 = vmatprep.subr.mxu0 0.0
        %4716 = vmatpush1.msra.mxu0 0.0
        %4717 = vmatprep.subr.mxu0 0.0
        %4718 = vmatpush1.msra.mxu0 0.0
        %4719 = vmatprep.subr.mxu0 0.0
        %4720 = vmatpush1.msra.mxu0 0.0
        %4721 = vmatprep.subr.mxu0 0.0
        %4722 = vmatpush1.msra.mxu0 0.0
        %4723 = vmatprep.subr.mxu0 0.0
        %4724 = vmatpush1.msra.mxu0 0.0
        %4725 = vmatprep.subr.mxu0 0.0
        %4726 = vmatpush1.msra.mxu0 0.0
        %4727 = vmatprep.subr.mxu0 0.0
        %4728 = vmatpush1.msra.mxu0 0.0
        %4729 = vmatprep.subr.mxu0 0.0
        %4730 = vmatpush1.msra.mxu0 0.0
        %4731 = vmatprep.subr.mxu0 0.0
        %4732 = vmatpush1.msra.mxu0 0.0
        %4733 = vmatprep.subr.mxu0 0.0
        %4734 = vmatpush1.msra.mxu0 0.0
        %4735 = vmatprep.subr.mxu0 0.0
        %4736 = vmatpush1.msra.mxu0 0.0
        %4737 = vmatprep.subr.mxu0 0.0
        %4738 = vmatpush1.msra.mxu0 0.0
        %4739 = vmatprep.subr.mxu0 0.0
        %4740 = vmatpush1.msra.mxu0 0.0
        %4741 = vmatprep.subr.mxu0 0.0
        %4742 = vmatpush1.msra.mxu0 0.0
        %4743 = vmatprep.subr.mxu0 0.0
        %4744 = vmatpush1.msra.mxu0 0.0
        %4745 = vmatprep.subr.mxu0 0.0
        %4746 = vmatpush1.msra.mxu0 0.0
        %4747 = vmatprep.subr.mxu0 0.0
        %4748 = vmatpush1.msra.mxu0 0.0
        %4749 = vmatprep.subr.mxu0 0.0
        %4750 = vmatpush1.msra.mxu0 0.0
        %4751 = vmatprep.subr.mxu0 0.0
        %4752 = vmatpush1.msra.mxu0 0.0
        %4753 = vmatprep.subr.mxu0 0.0
        %4754 = vmatpush1.msra.mxu0 0.0
        %4755 = vmatprep.subr.mxu0 0.0
        %4756 = vmatpush1.msra.mxu0 0.0
        %4757 = vmatprep.subr.mxu0 0.0
        %4758 = vmatpush1.msra.mxu0 0.0
        %4759 = vmatprep.subr.mxu0 0.0
        %4760 = vmatpush1.msra.mxu0 0.0
        %4761 = vmatprep.subr.mxu0 0.0
        %4762 = vmatpush1.msra.mxu0 0.0
        %4763 = vmatprep.subr.mxu0 0.0
        %4764 = vmatpush1.msra.mxu0 0.0
        %4765 = vmatprep.subr.mxu0 0.0
        %4766 = vmatpush1.msra.mxu0 0.0
        %4767 = vmatprep.mubr.f32.mxu0 0.0
        %4768 = vmatmul.mubr.f32.gmra.mrb[0].mxu0 %v4236
        %v4769 = vpop.f32.mrb[0].mxu0
        %v4770 = vadd.f32 0.0, %v4769
        %v4771 = vpop.f32.mrb[0].mxu0
        %v4772 = vadd.f32 0.0, %v4771
        %4773 = vmatprep.mubr.f32.mxu0 0.0
        %4774 = vmatmul.mubr.f32.gmra.mrb[0].mxu0 %v4239
        %v4775 = vpop.f32.mrb[0].mxu0
        %v4776 = vadd.f32 0.0, %v4775
        %v4777 = vpop.f32.mrb[0].mxu0
        %v4778 = vadd.f32 0.0, %v4777
        %4779 = vdwg.mxu0
        %4780 = vmatprep.subr.mxu0 %v4224
        %4781 = vmatpush1.msra.mxu0 %v4222
        %4782 = vmatprep.subr.mxu0 %v4230
        %4783 = vmatpush1.msra.mxu0 %v4228
        %4784 = vmatprep.subr.mxu0 0.0
        %4785 = vmatpush1.msra.mxu0 0.0
        %4786 = vmatprep.subr.mxu0 0.0
        %4787 = vmatpush1.msra.mxu0 0.0
        %4788 = vmatprep.subr.mxu0 0.0
        %4789 = vmatpush1.msra.mxu0 0.0
        %4790 = vmatprep.subr.mxu0 0.0
        %4791 = vmatpush1.msra.mxu0 0.0
        %4792 = vmatprep.subr.mxu0 0.0
        %4793 = vmatpush1.msra.mxu0 0.0
        %4794 = vmatprep.subr.mxu0 0.0
        %4795 = vmatpush1.msra.mxu0 0.0
        %4796 = vmatprep.subr.mxu0 0.0
        %4797 = vmatpush1.msra.mxu0 0.0
        %4798 = vmatprep.subr.mxu0 0.0
        %4799 = vmatpush1.msra.mxu0 0.0
        %4800 = vmatprep.subr.mxu0 0.0
        %4801 = vmatpush1.msra.mxu0 0.0
        %4802 = vmatprep.subr.mxu0 0.0
        %4803 = vmatpush1.msra.mxu0 0.0
        %4804 = vmatprep.subr.mxu0 0.0
        %4805 = vmatpush1.msra.mxu0 0.0
        %4806 = vmatprep.subr.mxu0 0.0
        %4807 = vmatpush1.msra.mxu0 0.0
        %4808 = vmatprep.subr.mxu0 0.0
        %4809 = vmatpush1.msra.mxu0 0.0
        %4810 = vmatprep.subr.mxu0 0.0
        %4811 = vmatpush1.msra.mxu0 0.0
        %4812 = vmatprep.subr.mxu0 0.0
        %4813 = vmatpush1.msra.mxu0 0.0
        %4814 = vmatprep.subr.mxu0 0.0
        %4815 = vmatpush1.msra.mxu0 0.0
        %4816 = vmatprep.subr.mxu0 0.0
        %4817 = vmatpush1.msra.mxu0 0.0
        %4818 = vmatprep.subr.mxu0 0.0
        %4819 = vmatpush1.msra.mxu0 0.0
        %4820 = vmatprep.subr.mxu0 0.0
        %4821 = vmatpush1.msra.mxu0 0.0
        %4822 = vmatprep.subr.mxu0 0.0
        %4823 = vmatpush1.msra.mxu0 0.0
        %4824 = vmatprep.subr.mxu0 0.0
        %4825 = vmatpush1.msra.mxu0 0.0
        %4826 = vmatprep.subr.mxu0 0.0
        %4827 = vmatpush1.msra.mxu0 0.0
        %4828 = vmatprep.subr.mxu0 0.0
        %4829 = vmatpush1.msra.mxu0 0.0
        %4830 = vmatprep.subr.mxu0 0.0
        %4831 = vmatpush1.msra.mxu0 0.0
        %4832 = vmatprep.subr.mxu0 0.0
        %4833 = vmatpush1.msra.mxu0 0.0
        %4834 = vmatprep.subr.mxu0 0.0
        %4835 = vmatpush1.msra.mxu0 0.0
        %4836 = vmatprep.subr.mxu0 0.0
        %4837 = vmatpush1.msra.mxu0 0.0
        %4838 = vmatprep.subr.mxu0 0.0
        %4839 = vmatpush1.msra.mxu0 0.0
        %4840 = vmatprep.subr.mxu0 0.0
        %4841 = vmatpush1.msra.mxu0 0.0
        %4842 = vmatprep.subr.mxu0 0.0
        %4843 = vmatpush1.msra.mxu0 0.0
        %4844 = vmatprep.mubr.f32.mxu0 0.0
        %4845 = vmatmul.mubr.f32.gmra.mrb[0].mxu0 %v4236
        %v4846 = vpop.f32.mrb[0].mxu0
        %v4847 = vadd.f32 0.0, %v4846
        %v4848 = vpop.f32.mrb[0].mxu0
        %v4849 = vadd.f32 0.0, %v4848
        %4850 = vmatprep.mubr.f32.mxu0 0.0
        %4851 = vmatmul.mubr.f32.gmra.mrb[0].mxu0 %v4239
        %v4852 = vpop.f32.mrb[0].mxu0
        %v4853 = vadd.f32 0.0, %v4852
        %v4854 = vpop.f32.mrb[0].mxu0
        %v4855 = vadd.f32 0.0, %v4854
        %4856 = vdwg.mxu0
        %v4857 = vadd.f32 %v2717, %v4308
        %v4858 = vadd.f32 %v2719, %v4310
        %v4859 = vadd.f32 %v2794, %v4385
        %v4860 = vadd.f32 %v2796, %v4387
        %v4861 = vadd.f32 %v2871, %v4462
        %v4862 = vadd.f32 %v2873, %v4464
        %v4863 = vadd.f32 %v2948, %v4539
        %v4864 = vadd.f32 %v2950, %v4541
        %v4865 = vadd.f32 %v3025, %v4616
        %v4866 = vadd.f32 %v3027, %v4618
        %v4867 = vadd.f32 %v3102, %v4693
        %v4868 = vadd.f32 %v3104, %v4695
        %v4869 = vadd.f32 %v3179, %v4770
        %v4870 = vadd.f32 %v3181, %v4772
        %v4871 = vadd.f32 %v3256, %v4847
        %v4872 = vadd.f32 %v3258, %v4849
        %v4873 = vadd.f32 %v2723, %v4314
        %v4874 = vadd.f32 %v2725, %v4316
        %v4875 = vadd.f32 %v2800, %v4391
        %v4876 = vadd.f32 %v2802, %v4393
        %v4877 = vadd.f32 %v2877, %v4468
        %v4878 = vadd.f32 %v2879, %v4470
        %v4879 = vadd.f32 %v2954, %v4545
        %v4880 = vadd.f32 %v2956, %v4547
        %v4881 = vadd.f32 %v3031, %v4622
        %v4882 = vadd.f32 %v3033, %v4624
        %v4883 = vadd.f32 %v3108, %v4699
        %v4884 = vadd.f32 %v3110, %v4701
        %v4885 = vadd.f32 %v3185, %v4776
        %v4886 = vadd.f32 %v3187, %v4778
        %v4887 = vadd.f32 %v3262, %v4853
        %v4888 = vadd.f32 %v3264, %v4855
        %4891 = vrot.lane.b32.xlu0 %v287, 120
        %v4892 = vpop.permute.xlu0 %4891
        %4893 = vrot.lane.b32.xlu0 %v288, 120
        %v4894 = vpop.permute.xlu0 %4893
        %v4895 = vsel %vm3302, %v4892, %v4894
        %v4896 = vsel %vm3302, %v4894, %v3271
        %4897 = vrot.lane.b32.xlu0 %v287, 112
        %v4898 = vpop.permute.xlu0 %4897
        %4899 = vrot.lane.b32.xlu0 %v288, 112
        %v4900 = vpop.permute.xlu0 %4899
        %4901 = vrot.lane.b32.xlu0 %v289, 112
        %v4902 = vpop.permute.xlu0 %4901
        %4903 = vrot.lane.b32.xlu0 %v290, 112
        %v4904 = vpop.permute.xlu0 %4903
        %v4905 = vsel %vm377, %v4898, %v4900
        %v4906 = vsel %vm377, %v4900, %v4902
        %v4907 = vsel %vm377, %v4902, %v4904
        %v4908 = vsel %vm377, %v4904, %v346
        %4911 = vrot.lane.b32.xlu0 %v309, 120
        %v4912 = vpop.permute.xlu0 %4911
        %4913 = vrot.lane.b32.xlu0 %v310, 120
        %v4914 = vpop.permute.xlu0 %4913
        %v4915 = vsel %vm3302, %v3331, %v4912
        %v4916 = vsel %vm3302, %v4912, %v4914
        %4917 = vrot.lane.b32.xlu0 %v307, 112
        %v4918 = vpop.permute.xlu0 %4917
        %4919 = vrot.lane.b32.xlu0 %v308, 112
        %v4920 = vpop.permute.xlu0 %4919
        %4921 = vrot.lane.b32.xlu0 %v309, 112
        %v4922 = vpop.permute.xlu0 %4921
        %4923 = vrot.lane.b32.xlu0 %v310, 112
        %v4924 = vpop.permute.xlu0 %4923
        %v4925 = vsel %vm377, %v376, %v4918
        %v4926 = vsel %vm377, %v4918, %v4920
        %v4927 = vsel %vm377, %v4920, %v4922
        %v4928 = vsel %vm377, %v4922, %v4924
        %s4929 = scalar_lea.vmem [#allocation5], 32
        %v4930 = vld [vmem:[%s4929] sm:$0xff]
        %v4931 = vld [vmem:[%s4929 + $0x8] sm:$0xff]
        %s4932 = scalar_lea.vmem %s4, 48
        %v4933 = vld [vmem:[%s4932] sm:$0xff]
        %v4934 = vld [vmem:[%s4932 + $0x8] sm:$0xff]
        %4936 = vset.pattern.permute.xlu0 0
        %4937 = vperm.xlu0 %4936, %v4933
        %v4938 = vpop.permute.xlu0 %4937
        %4941 = vset.pattern.permute.xlu0 0
        %4942 = vperm.xlu0 %4941, %v4934
        %v4943 = vpop.permute.xlu0 %4942
        %4945 = vrot.lane.b32.xlu0 %v4895, 120
        %v4946 = vpop.permute.xlu0 %4945
        %4947 = vrot.lane.b32.xlu0 %v4896, 120
        %v4948 = vpop.permute.xlu0 %4947
        %4949 = vrot.lane.b32.xlu0 %v3303, 120
        %v4950 = vpop.permute.xlu0 %4949
        %4951 = vrot.lane.b32.xlu0 %v3304, 120
        %v4952 = vpop.permute.xlu0 %4951
        %4953 = vrot.lane.b32.xlu0 %v3305, 120
        %v4954 = vpop.permute.xlu0 %4953
        %4955 = vrot.lane.b32.xlu0 %v3306, 120
        %v4956 = vpop.permute.xlu0 %4955
        %4957 = vrot.lane.b32.xlu0 %v3307, 120
        %v4958 = vpop.permute.xlu0 %4957
        %4959 = vrot.lane.b32.xlu0 %v3308, 120
        %v4960 = vpop.permute.xlu0 %4959
        %4961 = vrot.lane.b32.xlu0 %v3309, 120
        %v4962 = vpop.permute.xlu0 %4961
        %4963 = vrot.lane.b32.xlu0 %v3310, 120
        %v4964 = vpop.permute.xlu0 %4963
        %4965 = vrot.lane.b32.xlu0 %v3311, 120
        %v4966 = vpop.permute.xlu0 %4965
        %4967 = vrot.lane.b32.xlu0 %v3312, 120
        %v4968 = vpop.permute.xlu0 %4967
        %4969 = vrot.lane.b32.xlu0 %v3313, 120
        %v4970 = vpop.permute.xlu0 %4969
        %4971 = vrot.lane.b32.xlu0 %v3314, 120
        %v4972 = vpop.permute.xlu0 %4971
        %4973 = vrot.lane.b32.xlu0 %v3315, 120
        %v4974 = vpop.permute.xlu0 %4973
        %4975 = vrot.lane.b32.xlu0 %v3297, 120
        %v4976 = vpop.permute.xlu0 %4975
        %4977 = vrot.lane.b32.xlu0 %v4905, 120
        %v4978 = vpop.permute.xlu0 %4977
        %4979 = vrot.lane.b32.xlu0 %v4906, 120
        %v4980 = vpop.permute.xlu0 %4979
        %4981 = vrot.lane.b32.xlu0 %v4907, 120
        %v4982 = vpop.permute.xlu0 %4981
        %4983 = vrot.lane.b32.xlu0 %v4908, 120
        %v4984 = vpop.permute.xlu0 %4983
        %4985 = vrot.lane.b32.xlu0 %v378, 120
        %v4986 = vpop.permute.xlu0 %4985
        %4987 = vrot.lane.b32.xlu0 %v379, 120
        %v4988 = vpop.permute.xlu0 %4987
        %4989 = vrot.lane.b32.xlu0 %v380, 120
        %v4990 = vpop.permute.xlu0 %4989
        %4991 = vrot.lane.b32.xlu0 %v381, 120
        %v4992 = vpop.permute.xlu0 %4991
        %4993 = vrot.lane.b32.xlu0 %v382, 120
        %v4994 = vpop.permute.xlu0 %4993
        %4995 = vrot.lane.b32.xlu0 %v383, 120
        %v4996 = vpop.permute.xlu0 %4995
        %4997 = vrot.lane.b32.xlu0 %v384, 120
        %v4998 = vpop.permute.xlu0 %4997
        %4999 = vrot.lane.b32.xlu0 %v385, 120
        %v5000 = vpop.permute.xlu0 %4999
        %5001 = vrot.lane.b32.xlu0 %v386, 120
        %v5002 = vpop.permute.xlu0 %5001
        %5003 = vrot.lane.b32.xlu0 %v387, 120
        %v5004 = vpop.permute.xlu0 %5003
        %5005 = vrot.lane.b32.xlu0 %v388, 120
        %v5006 = vpop.permute.xlu0 %5005
        %5007 = vrot.lane.b32.xlu0 %v368, 120
        %v5008 = vpop.permute.xlu0 %5007
        %5009 = vrot.lane.b32.xlu0 %v3316, 120
        %v5010 = vpop.permute.xlu0 %5009
        %5011 = vrot.lane.b32.xlu0 %v3317, 120
        %v5012 = vpop.permute.xlu0 %5011
        %5013 = vrot.lane.b32.xlu0 %v3322, 120
        %v5014 = vpop.permute.xlu0 %5013
        %5015 = vrot.lane.b32.xlu0 %v3323, 120
        %v5016 = vpop.permute.xlu0 %5015
        %5017 = vrot.lane.b32.xlu0 %v3321, 120
        %v5018 = vpop.permute.xlu0 %5017
        %5019 = vrot.lane.b32.xlu0 %v389, 120
        %v5020 = vpop.permute.xlu0 %5019
        %5021 = vrot.lane.b32.xlu0 %v390, 120
        %v5022 = vpop.permute.xlu0 %5021
        %5023 = vrot.lane.b32.xlu0 %v391, 120
        %v5024 = vpop.permute.xlu0 %5023
        %5025 = vrot.lane.b32.xlu0 %v392, 120
        %v5026 = vpop.permute.xlu0 %5025
        %5027 = vrot.lane.b32.xlu0 %v376, 120
        %v5028 = vpop.permute.xlu0 %5027
        %5029 = vrot.lane.b32.xlu0 %v3332, 120
        %v5030 = vpop.permute.xlu0 %5029
        %5031 = vrot.lane.b32.xlu0 %v3333, 120
        %v5032 = vpop.permute.xlu0 %5031
        %5033 = vrot.lane.b32.xlu0 %v4915, 120
        %v5034 = vpop.permute.xlu0 %5033
        %5035 = vrot.lane.b32.xlu0 %v4916, 120
        %v5036 = vpop.permute.xlu0 %5035
        %5037 = vrot.lane.b32.xlu0 %v4914, 120
        %v5038 = vpop.permute.xlu0 %5037
        %5039 = vrot.lane.b32.xlu0 %v4925, 120
        %v5040 = vpop.permute.xlu0 %5039
        %5041 = vrot.lane.b32.xlu0 %v4926, 120
        %v5042 = vpop.permute.xlu0 %5041
        %5043 = vrot.lane.b32.xlu0 %v4927, 120
        %v5044 = vpop.permute.xlu0 %5043
        %5045 = vrot.lane.b32.xlu0 %v4928, 120
        %v5046 = vpop.permute.xlu0 %5045
        %5047 = vrot.lane.b32.xlu0 %v4924, 120
        %v5048 = vpop.permute.xlu0 %5047
        %v5049 = vsel %vm3302, %v4946, %v4948
        %v5050 = vsel %vm3302, %v4948, %v4950
        %v5051 = vsel %vm3302, %v4950, %v4952
        %v5052 = vsel %vm3302, %v4952, %v4954
        %v5053 = vsel %vm3302, %v4954, %v4956
        %v5054 = vsel %vm3302, %v4956, %v4958
        %v5055 = vsel %vm3302, %v4958, %v4960
        %v5056 = vsel %vm3302, %v4960, %v4962
        %v5057 = vsel %vm3302, %v4962, %v4964
        %v5058 = vsel %vm3302, %v4964, %v4966
        %v5059 = vsel %vm3302, %v4966, %v4968
        %v5060 = vsel %vm3302, %v4968, %v4970
        %v5061 = vsel %vm3302, %v4970, %v4972
        %v5062 = vsel %vm3302, %v4972, %v4974
        %v5063 = vsel %vm3302, %v4974, %v4976
        %v5064 = vsel %vm3302, %v4978, %v4980
        %v5065 = vsel %vm3302, %v4980, %v4982
        %v5066 = vsel %vm3302, %v4982, %v4984
        %v5067 = vsel %vm3302, %v4984, %v4986
        %v5068 = vsel %vm3302, %v4986, %v4988
        %v5069 = vsel %vm3302, %v4988, %v4990
        %v5070 = vsel %vm3302, %v4990, %v4992
        %v5071 = vsel %vm3302, %v4992, %v4994
        %v5072 = vsel %vm3302, %v4994, %v4996
        %v5073 = vsel %vm3302, %v4996, %v4998
        %v5074 = vsel %vm3302, %v4998, %v5000
        %v5075 = vsel %vm3302, %v5000, %v5002
        %v5076 = vsel %vm3302, %v5002, %v5004
        %v5077 = vsel %vm3302, %v5004, %v5006
        %v5078 = vsel %vm3302, %v5006, %v5008
        %v5079 = vsel %vm3302, %v4974, %v5010
        %v5080 = vsel %vm3302, %v5010, %v5012
        %v5081 = vsel %vm3302, %v5012, %v5014
        %v5082 = vsel %vm3302, %v5014, %v5016
        %v5083 = vsel %vm3302, %v5016, %v5018
        %v5084 = vsel %vm3302, %v5006, %v5020
        %v5085 = vsel %vm3302, %v5020, %v5022
        %v5086 = vsel %vm3302, %v5022, %v5024
        %v5087 = vsel %vm3302, %v5024, %v5026
        %v5088 = vsel %vm3302, %v5026, %v5028
        %v5089 = vsel %vm3302, %v5016, %v5030
        %v5090 = vsel %vm3302, %v5030, %v5032
        %v5091 = vsel %vm3302, %v5032, %v5034
        %v5092 = vsel %vm3302, %v5034, %v5036
        %v5093 = vsel %vm3302, %v5036, %v5038
        %v5094 = vsel %vm3302, %v5026, %v5040
        %v5095 = vsel %vm3302, %v5040, %v5042
        %v5096 = vsel %vm3302, %v5042, %v5044
        %v5097 = vsel %vm3302, %v5044, %v5046
        %v5098 = vsel %vm3302, %v5046, %v5048
        %v5182 = vsel %vm1395, %v4930, 0
        %v5185 = vsel %vm1395, %v4931, 0
        %5187 = vmatprep.subr.mxu0 %v4896
        %5188 = vmatpush1.msra.mxu0 %v4895
        %5189 = vmatprep.subr.mxu0 %v5050
        %5190 = vmatpush1.msra.mxu0 %v5049
        %5191 = vmatprep.subr.mxu0 %v5065
        %5192 = vmatpush1.msra.mxu0 %v5064
        %5193 = vmatprep.subr.mxu0 %v3306
        %5194 = vmatpush1.msra.mxu0 %v3305
        %5195 = vmatprep.subr.mxu0 %v5054
        %5196 = vmatpush1.msra.mxu0 %v5053
        %5197 = vmatprep.subr.mxu0 %v5069
        %5198 = vmatpush1.msra.mxu0 %v5068
        %5199 = vmatprep.subr.mxu0 %v3310
        %5200 = vmatpush1.msra.mxu0 %v3309
        %5201 = vmatprep.subr.mxu0 %v5058
        %5202 = vmatpush1.msra.mxu0 %v5057
        %5203 = vmatprep.subr.mxu0 %v5073
        %5204 = vmatpush1.msra.mxu0 %v5072
        %5205 = vmatprep.subr.mxu0 0.0
        %5206 = vmatpush1.msra.mxu0 0.0
        %5207 = vmatprep.subr.mxu0 0.0
        %5208 = vmatpush1.msra.mxu0 0.0
        %5209 = vmatprep.subr.mxu0 0.0
        %5210 = vmatpush1.msra.mxu0 0.0
        %5211 = vmatprep.subr.mxu0 0.0
        %5212 = vmatpush1.msra.mxu0 0.0
        %5213 = vmatprep.subr.mxu0 0.0
        %5214 = vmatpush1.msra.mxu0 0.0
        %5215 = vmatprep.subr.mxu0 0.0
        %5216 = vmatpush1.msra.mxu0 0.0
        %5217 = vmatprep.subr.mxu0 0.0
        %5218 = vmatpush1.msra.mxu0 0.0
        %5219 = vmatprep.subr.mxu0 0.0
        %5220 = vmatpush1.msra.mxu0 0.0
        %5221 = vmatprep.subr.mxu0 0.0
        %5222 = vmatpush1.msra.mxu0 0.0
        %5223 = vmatprep.subr.mxu0 0.0
        %5224 = vmatpush1.msra.mxu0 0.0
        %5225 = vmatprep.subr.mxu0 0.0
        %5226 = vmatpush1.msra.mxu0 0.0
        %5227 = vmatprep.subr.mxu0 0.0
        %5228 = vmatpush1.msra.mxu0 0.0
        %5229 = vmatprep.subr.mxu0 0.0
        %5230 = vmatpush1.msra.mxu0 0.0
        %5231 = vmatprep.subr.mxu0 0.0
        %5232 = vmatpush1.msra.mxu0 0.0
        %5233 = vmatprep.subr.mxu0 0.0
        %5234 = vmatpush1.msra.mxu0 0.0
        %5235 = vmatprep.subr.mxu0 0.0
        %5236 = vmatpush1.msra.mxu0 0.0
        %5237 = vmatprep.subr.mxu0 0.0
        %5238 = vmatpush1.msra.mxu0 0.0
        %5239 = vmatprep.subr.mxu0 0.0
        %5240 = vmatpush1.msra.mxu0 0.0
        %5241 = vmatprep.subr.mxu0 0.0
        %5242 = vmatpush1.msra.mxu0 0.0
        %5243 = vmatprep.subr.mxu0 0.0
        %5244 = vmatpush1.msra.mxu0 0.0
        %5245 = vmatprep.subr.mxu0 0.0
        %5246 = vmatpush1.msra.mxu0 0.0
        %5247 = vmatprep.subr.mxu0 0.0
        %5248 = vmatpush1.msra.mxu0 0.0
        %5249 = vmatprep.subr.mxu0 0.0
        %5250 = vmatpush1.msra.mxu0 0.0
        %5251 = vmatprep.mubr.f32.mxu0 0.0
        %5252 = vmatmul.mubr.f32.gmra.mrb[0].mxu0 %v5182
        %v5253 = vpop.f32.mrb[0].mxu0
        %v5254 = vadd.f32 %v4938, %v5253
        %v5255 = vpop.f32.mrb[0].mxu0
        %v5256 = vadd.f32 %v4938, %v5255
        %5257 = vmatprep.mubr.f32.mxu0 0.0
        %5258 = vmatmul.mubr.f32.gmra.mrb[0].mxu0 %v5185
        %v5259 = vpop.f32.mrb[0].mxu0
        %v5260 = vadd.f32 %v4943, %v5259
        %v5261 = vpop.f32.mrb[0].mxu0
        %v5262 = vadd.f32 %v4943, %v5261
        %5263 = vdwg.mxu0
        %5264 = vmatprep.subr.mxu0 %v3304
        %5265 = vmatpush1.msra.mxu0 %v3303
        %5266 = vmatprep.subr.mxu0 %v5052
        %5267 = vmatpush1.msra.mxu0 %v5051
        %5268 = vmatprep.subr.mxu0 %v5067
        %5269 = vmatpush1.msra.mxu0 %v5066
        %5270 = vmatprep.subr.mxu0 %v3308
        %5271 = vmatpush1.msra.mxu0 %v3307
        %5272 = vmatprep.subr.mxu0 %v5056
        %5273 = vmatpush1.msra.mxu0 %v5055
        %5274 = vmatprep.subr.mxu0 %v5071
        %5275 = vmatpush1.msra.mxu0 %v5070
        %5276 = vmatprep.subr.mxu0 %v3312
        %5277 = vmatpush1.msra.mxu0 %v3311
        %5278 = vmatprep.subr.mxu0 %v5060
        %5279 = vmatpush1.msra.mxu0 %v5059
        %5280 = vmatprep.subr.mxu0 %v5075
        %5281 = vmatpush1.msra.mxu0 %v5074
        %5282 = vmatprep.subr.mxu0 0.0
        %5283 = vmatpush1.msra.mxu0 0.0
        %5284 = vmatprep.subr.mxu0 0.0
        %5285 = vmatpush1.msra.mxu0 0.0
        %5286 = vmatprep.subr.mxu0 0.0
        %5287 = vmatpush1.msra.mxu0 0.0
        %5288 = vmatprep.subr.mxu0 0.0
        %5289 = vmatpush1.msra.mxu0 0.0
        %5290 = vmatprep.subr.mxu0 0.0
        %5291 = vmatpush1.msra.mxu0 0.0
        %5292 = vmatprep.subr.mxu0 0.0
        %5293 = vmatpush1.msra.mxu0 0.0
        %5294 = vmatprep.subr.mxu0 0.0
        %5295 = vmatpush1.msra.mxu0 0.0
        %5296 = vmatprep.subr.mxu0 0.0
        %5297 = vmatpush1.msra.mxu0 0.0
        %5298 = vmatprep.subr.mxu0 0.0
        %5299 = vmatpush1.msra.mxu0 0.0
        %5300 = vmatprep.subr.mxu0 0.0
        %5301 = vmatpush1.msra.mxu0 0.0
        %5302 = vmatprep.subr.mxu0 0.0
        %5303 = vmatpush1.msra.mxu0 0.0
        %5304 = vmatprep.subr.mxu0 0.0
        %5305 = vmatpush1.msra.mxu0 0.0
        %5306 = vmatprep.subr.mxu0 0.0
        %5307 = vmatpush1.msra.mxu0 0.0
        %5308 = vmatprep.subr.mxu0 0.0
        %5309 = vmatpush1.msra.mxu0 0.0
        %5310 = vmatprep.subr.mxu0 0.0
        %5311 = vmatpush1.msra.mxu0 0.0
        %5312 = vmatprep.subr.mxu0 0.0
        %5313 = vmatpush1.msra.mxu0 0.0
        %5314 = vmatprep.subr.mxu0 0.0
        %5315 = vmatpush1.msra.mxu0 0.0
        %5316 = vmatprep.subr.mxu0 0.0
        %5317 = vmatpush1.msra.mxu0 0.0
        %5318 = vmatprep.subr.mxu0 0.0
        %5319 = vmatpush1.msra.mxu0 0.0
        %5320 = vmatprep.subr.mxu0 0.0
        %5321 = vmatpush1.msra.mxu0 0.0
        %5322 = vmatprep.subr.mxu0 0.0
        %5323 = vmatpush1.msra.mxu0 0.0
        %5324 = vmatprep.subr.mxu0 0.0
        %5325 = vmatpush1.msra.mxu0 0.0
        %5326 = vmatprep.subr.mxu0 0.0
        %5327 = vmatpush1.msra.mxu0 0.0
        %5328 = vmatprep.mubr.f32.mxu0 0.0
        %5329 = vmatmul.mubr.f32.gmra.mrb[0].mxu0 %v5182
        %v5330 = vpop.f32.mrb[0].mxu0
        %v5331 = vadd.f32 %v4938, %v5330
        %v5332 = vpop.f32.mrb[0].mxu0
        %v5333 = vadd.f32 %v4938, %v5332
        %5334 = vmatprep.mubr.f32.mxu0 0.0
        %5335 = vmatmul.mubr.f32.gmra.mrb[0].mxu0 %v5185
        %v5336 = vpop.f32.mrb[0].mxu0
        %v5337 = vadd.f32 %v4943, %v5336
        %v5338 = vpop.f32.mrb[0].mxu0
        %v5339 = vadd.f32 %v4943, %v5338
        %5340 = vdwg.mxu0
        %5341 = vmatprep.subr.mxu0 %v3306
        %5342 = vmatpush1.msra.mxu0 %v3305
        %5343 = vmatprep.subr.mxu0 %v5054
        %5344 = vmatpush1.msra.mxu0 %v5053
        %5345 = vmatprep.subr.mxu0 %v5069
        %5346 = vmatpush1.msra.mxu0 %v5068
        %5347 = vmatprep.subr.mxu0 %v3310
        %5348 = vmatpush1.msra.mxu0 %v3309
        %5349 = vmatprep.subr.mxu0 %v5058
        %5350 = vmatpush1.msra.mxu0 %v5057
        %5351 = vmatprep.subr.mxu0 %v5073
        %5352 = vmatpush1.msra.mxu0 %v5072
        %5353 = vmatprep.subr.mxu0 %v3314
        %5354 = vmatpush1.msra.mxu0 %v3313
        %5355 = vmatprep.subr.mxu0 %v5062
        %5356 = vmatpush1.msra.mxu0 %v5061
        %5357 = vmatprep.subr.mxu0 %v5077
        %5358 = vmatpush1.msra.mxu0 %v5076
        %5359 = vmatprep.subr.mxu0 0.0
        %5360 = vmatpush1.msra.mxu0 0.0
        %5361 = vmatprep.subr.mxu0 0.0
        %5362 = vmatpush1.msra.mxu0 0.0
        %5363 = vmatprep.subr.mxu0 0.0
        %5364 = vmatpush1.msra.mxu0 0.0
        %5365 = vmatprep.subr.mxu0 0.0
        %5366 = vmatpush1.msra.mxu0 0.0
        %5367 = vmatprep.subr.mxu0 0.0
        %5368 = vmatpush1.msra.mxu0 0.0
        %5369 = vmatprep.subr.mxu0 0.0
        %5370 = vmatpush1.msra.mxu0 0.0
        %5371 = vmatprep.subr.mxu0 0.0
        %5372 = vmatpush1.msra.mxu0 0.0
        %5373 = vmatprep.subr.mxu0 0.0
        %5374 = vmatpush1.msra.mxu0 0.0
        %5375 = vmatprep.subr.mxu0 0.0
        %5376 = vmatpush1.msra.mxu0 0.0
        %5377 = vmatprep.subr.mxu0 0.0
        %5378 = vmatpush1.msra.mxu0 0.0
        %5379 = vmatprep.subr.mxu0 0.0
        %5380 = vmatpush1.msra.mxu0 0.0
        %5381 = vmatprep.subr.mxu0 0.0
        %5382 = vmatpush1.msra.mxu0 0.0
        %5383 = vmatprep.subr.mxu0 0.0
        %5384 = vmatpush1.msra.mxu0 0.0
        %5385 = vmatprep.subr.mxu0 0.0
        %5386 = vmatpush1.msra.mxu0 0.0
        %5387 = vmatprep.subr.mxu0 0.0
        %5388 = vmatpush1.msra.mxu0 0.0
        %5389 = vmatprep.subr.mxu0 0.0
        %5390 = vmatpush1.msra.mxu0 0.0
        %5391 = vmatprep.subr.mxu0 0.0
        %5392 = vmatpush1.msra.mxu0 0.0
        %5393 = vmatprep.subr.mxu0 0.0
        %5394 = vmatpush1.msra.mxu0 0.0
        %5395 = vmatprep.subr.mxu0 0.0
        %5396 = vmatpush1.msra.mxu0 0.0
        %5397 = vmatprep.subr.mxu0 0.0
        %5398 = vmatpush1.msra.mxu0 0.0
        %5399 = vmatprep.subr.mxu0 0.0
        %5400 = vmatpush1.msra.mxu0 0.0
        %5401 = vmatprep.subr.mxu0 0.0
        %5402 = vmatpush1.msra.mxu0 0.0
        %5403 = vmatprep.subr.mxu0 0.0
        %5404 = vmatpush1.msra.mxu0 0.0
        %5405 = vmatprep.mubr.f32.mxu0 0.0
        %5406 = vmatmul.mubr.f32.gmra.mrb[0].mxu0 %v5182
        %v5407 = vpop.f32.mrb[0].mxu0
        %v5408 = vadd.f32 %v4938, %v5407
        %v5409 = vpop.f32.mrb[0].mxu0
        %v5410 = vadd.f32 %v4938, %v5409
        %5411 = vmatprep.mubr.f32.mxu0 0.0
        %5412 = vmatmul.mubr.f32.gmra.mrb[0].mxu0 %v5185
        %v5413 = vpop.f32.mrb[0].mxu0
        %v5414 = vadd.f32 %v4943, %v5413
        %v5415 = vpop.f32.mrb[0].mxu0
        %v5416 = vadd.f32 %v4943, %v5415
        %5417 = vdwg.mxu0
        %5418 = vmatprep.subr.mxu0 %v3308
        %5419 = vmatpush1.msra.mxu0 %v3307
        %5420 = vmatprep.subr.mxu0 %v5056
        %5421 = vmatpush1.msra.mxu0 %v5055
        %5422 = vmatprep.subr.mxu0 %v5071
        %5423 = vmatpush1.msra.mxu0 %v5070
        %5424 = vmatprep.subr.mxu0 %v3312
        %5425 = vmatpush1.msra.mxu0 %v3311
        %5426 = vmatprep.subr.mxu0 %v5060
        %5427 = vmatpush1.msra.mxu0 %v5059
        %5428 = vmatprep.subr.mxu0 %v5075
        %5429 = vmatpush1.msra.mxu0 %v5074
        %5430 = vmatprep.subr.mxu0 %v3316
        %5431 = vmatpush1.msra.mxu0 %v3315
        %5432 = vmatprep.subr.mxu0 %v5080
        %5433 = vmatpush1.msra.mxu0 %v5079
        %5434 = vmatprep.subr.mxu0 %v5085
        %5435 = vmatpush1.msra.mxu0 %v5084
        %5436 = vmatprep.subr.mxu0 0.0
        %5437 = vmatpush1.msra.mxu0 0.0
        %5438 = vmatprep.subr.mxu0 0.0
        %5439 = vmatpush1.msra.mxu0 0.0
        %5440 = vmatprep.subr.mxu0 0.0
        %5441 = vmatpush1.msra.mxu0 0.0
        %5442 = vmatprep.subr.mxu0 0.0
        %5443 = vmatpush1.msra.mxu0 0.0
        %5444 = vmatprep.subr.mxu0 0.0
        %5445 = vmatpush1.msra.mxu0 0.0
        %5446 = vmatprep.subr.mxu0 0.0
        %5447 = vmatpush1.msra.mxu0 0.0
        %5448 = vmatprep.subr.mxu0 0.0
        %5449 = vmatpush1.msra.mxu0 0.0
        %5450 = vmatprep.subr.mxu0 0.0
        %5451 = vmatpush1.msra.mxu0 0.0
        %5452 = vmatprep.subr.mxu0 0.0
        %5453 = vmatpush1.msra.mxu0 0.0
        %5454 = vmatprep.subr.mxu0 0.0
        %5455 = vmatpush1.msra.mxu0 0.0
        %5456 = vmatprep.subr.mxu0 0.0
        %5457 = vmatpush1.msra.mxu0 0.0
        %5458 = vmatprep.subr.mxu0 0.0
        %5459 = vmatpush1.msra.mxu0 0.0
        %5460 = vmatprep.subr.mxu0 0.0
        %5461 = vmatpush1.msra.mxu0 0.0
        %5462 = vmatprep.subr.mxu0 0.0
        %5463 = vmatpush1.msra.mxu0 0.0
        %5464 = vmatprep.subr.mxu0 0.0
        %5465 = vmatpush1.msra.mxu0 0.0
        %5466 = vmatprep.subr.mxu0 0.0
        %5467 = vmatpush1.msra.mxu0 0.0
        %5468 = vmatprep.subr.mxu0 0.0
        %5469 = vmatpush1.msra.mxu0 0.0
        %5470 = vmatprep.subr.mxu0 0.0
        %5471 = vmatpush1.msra.mxu0 0.0
        %5472 = vmatprep.subr.mxu0 0.0
        %5473 = vmatpush1.msra.mxu0 0.0
        %5474 = vmatprep.subr.mxu0 0.0
        %5475 = vmatpush1.msra.mxu0 0.0
        %5476 = vmatprep.subr.mxu0 0.0
        %5477 = vmatpush1.msra.mxu0 0.0
        %5478 = vmatprep.subr.mxu0 0.0
        %5479 = vmatpush1.msra.mxu0 0.0
        %5480 = vmatprep.subr.mxu0 0.0
        %5481 = vmatpush1.msra.mxu0 0.0
        %5482 = vmatprep.mubr.f32.mxu0 0.0
        %5483 = vmatmul.mubr.f32.gmra.mrb[0].mxu0 %v5182
        %v5484 = vpop.f32.mrb[0].mxu0
        %v5485 = vadd.f32 %v4938, %v5484
        %v5486 = vpop.f32.mrb[0].mxu0
        %v5487 = vadd.f32 %v4938, %v5486
        %5488 = vmatprep.mubr.f32.mxu0 0.0
        %5489 = vmatmul.mubr.f32.gmra.mrb[0].mxu0 %v5185
        %v5490 = vpop.f32.mrb[0].mxu0
        %v5491 = vadd.f32 %v4943, %v5490
        %v5492 = vpop.f32.mrb[0].mxu0
        %v5493 = vadd.f32 %v4943, %v5492
        %5494 = vdwg.mxu0
        %5495 = vmatprep.subr.mxu0 %v3310
        %5496 = vmatpush1.msra.mxu0 %v3309
        %5497 = vmatprep.subr.mxu0 %v5058
        %5498 = vmatpush1.msra.mxu0 %v5057
        %5499 = vmatprep.subr.mxu0 %v5073
        %5500 = vmatpush1.msra.mxu0 %v5072
        %5501 = vmatprep.subr.mxu0 %v3314
        %5502 = vmatpush1.msra.mxu0 %v3313
        %5503 = vmatprep.subr.mxu0 %v5062
        %5504 = vmatpush1.msra.mxu0 %v5061
        %5505 = vmatprep.subr.mxu0 %v5077
        %5506 = vmatpush1.msra.mxu0 %v5076
        %5507 = vmatprep.subr.mxu0 %v3322
        %5508 = vmatpush1.msra.mxu0 %v3317
        %5509 = vmatprep.subr.mxu0 %v5082
        %5510 = vmatpush1.msra.mxu0 %v5081
        %5511 = vmatprep.subr.mxu0 %v5087
        %5512 = vmatpush1.msra.mxu0 %v5086
        %5513 = vmatprep.subr.mxu0 0.0
        %5514 = vmatpush1.msra.mxu0 0.0
        %5515 = vmatprep.subr.mxu0 0.0
        %5516 = vmatpush1.msra.mxu0 0.0
        %5517 = vmatprep.subr.mxu0 0.0
        %5518 = vmatpush1.msra.mxu0 0.0
        %5519 = vmatprep.subr.mxu0 0.0
        %5520 = vmatpush1.msra.mxu0 0.0
        %5521 = vmatprep.subr.mxu0 0.0
        %5522 = vmatpush1.msra.mxu0 0.0
        %5523 = vmatprep.subr.mxu0 0.0
        %5524 = vmatpush1.msra.mxu0 0.0
        %5525 = vmatprep.subr.mxu0 0.0
        %5526 = vmatpush1.msra.mxu0 0.0
        %5527 = vmatprep.subr.mxu0 0.0
        %5528 = vmatpush1.msra.mxu0 0.0
        %5529 = vmatprep.subr.mxu0 0.0
        %5530 = vmatpush1.msra.mxu0 0.0
        %5531 = vmatprep.subr.mxu0 0.0
        %5532 = vmatpush1.msra.mxu0 0.0
        %5533 = vmatprep.subr.mxu0 0.0
        %5534 = vmatpush1.msra.mxu0 0.0
        %5535 = vmatprep.subr.mxu0 0.0
        %5536 = vmatpush1.msra.mxu0 0.0
        %5537 = vmatprep.subr.mxu0 0.0
        %5538 = vmatpush1.msra.mxu0 0.0
        %5539 = vmatprep.subr.mxu0 0.0
        %5540 = vmatpush1.msra.mxu0 0.0
        %5541 = vmatprep.subr.mxu0 0.0
        %5542 = vmatpush1.msra.mxu0 0.0
        %5543 = vmatprep.subr.mxu0 0.0
        %5544 = vmatpush1.msra.mxu0 0.0
        %5545 = vmatprep.subr.mxu0 0.0
        %5546 = vmatpush1.msra.mxu0 0.0
        %5547 = vmatprep.subr.mxu0 0.0
        %5548 = vmatpush1.msra.mxu0 0.0
        %5549 = vmatprep.subr.mxu0 0.0
        %5550 = vmatpush1.msra.mxu0 0.0
        %5551 = vmatprep.subr.mxu0 0.0
        %5552 = vmatpush1.msra.mxu0 0.0
        %5553 = vmatprep.subr.mxu0 0.0
        %5554 = vmatpush1.msra.mxu0 0.0
        %5555 = vmatprep.subr.mxu0 0.0
        %5556 = vmatpush1.msra.mxu0 0.0
        %5557 = vmatprep.subr.mxu0 0.0
        %5558 = vmatpush1.msra.mxu0 0.0
        %5559 = vmatprep.mubr.f32.mxu0 0.0
        %5560 = vmatmul.mubr.f32.gmra.mrb[0].mxu0 %v5182
        %v5561 = vpop.f32.mrb[0].mxu0
        %v5562 = vadd.f32 %v4938, %v5561
        %v5563 = vpop.f32.mrb[0].mxu0
        %v5564 = vadd.f32 %v4938, %v5563
        %5565 = vmatprep.mubr.f32.mxu0 0.0
        %5566 = vmatmul.mubr.f32.gmra.mrb[0].mxu0 %v5185
        %v5567 = vpop.f32.mrb[0].mxu0
        %v5568 = vadd.f32 %v4943, %v5567
        %v5569 = vpop.f32.mrb[0].mxu0
        %v5570 = vadd.f32 %v4943, %v5569
        %5571 = vdwg.mxu0
        %5572 = vmatprep.subr.mxu0 %v3312
        %5573 = vmatpush1.msra.mxu0 %v3311
        %5574 = vmatprep.subr.mxu0 %v5060
        %5575 = vmatpush1.msra.mxu0 %v5059
        %5576 = vmatprep.subr.mxu0 %v5075
        %5577 = vmatpush1.msra.mxu0 %v5074
        %5578 = vmatprep.subr.mxu0 %v3316
        %5579 = vmatpush1.msra.mxu0 %v3315
        %5580 = vmatprep.subr.mxu0 %v5080
        %5581 = vmatpush1.msra.mxu0 %v5079
        %5582 = vmatprep.subr.mxu0 %v5085
        %5583 = vmatpush1.msra.mxu0 %v5084
        %5584 = vmatprep.subr.mxu0 %v3332
        %5585 = vmatpush1.msra.mxu0 %v3323
        %5586 = vmatprep.subr.mxu0 %v5090
        %5587 = vmatpush1.msra.mxu0 %v5089
        %5588 = vmatprep.subr.mxu0 %v5095
        %5589 = vmatpush1.msra.mxu0 %v5094
        %5590 = vmatprep.subr.mxu0 0.0
        %5591 = vmatpush1.msra.mxu0 0.0
        %5592 = vmatprep.subr.mxu0 0.0
        %5593 = vmatpush1.msra.mxu0 0.0
        %5594 = vmatprep.subr.mxu0 0.0
        %5595 = vmatpush1.msra.mxu0 0.0
        %5596 = vmatprep.subr.mxu0 0.0
        %5597 = vmatpush1.msra.mxu0 0.0
        %5598 = vmatprep.subr.mxu0 0.0
        %5599 = vmatpush1.msra.mxu0 0.0
        %5600 = vmatprep.subr.mxu0 0.0
        %5601 = vmatpush1.msra.mxu0 0.0
        %5602 = vmatprep.subr.mxu0 0.0
        %5603 = vmatpush1.msra.mxu0 0.0
        %5604 = vmatprep.subr.mxu0 0.0
        %5605 = vmatpush1.msra.mxu0 0.0
        %5606 = vmatprep.subr.mxu0 0.0
        %5607 = vmatpush1.msra.mxu0 0.0
        %5608 = vmatprep.subr.mxu0 0.0
        %5609 = vmatpush1.msra.mxu0 0.0
        %5610 = vmatprep.subr.mxu0 0.0
        %5611 = vmatpush1.msra.mxu0 0.0
        %5612 = vmatprep.subr.mxu0 0.0
        %5613 = vmatpush1.msra.mxu0 0.0
        %5614 = vmatprep.subr.mxu0 0.0
        %5615 = vmatpush1.msra.mxu0 0.0
        %5616 = vmatprep.subr.mxu0 0.0
        %5617 = vmatpush1.msra.mxu0 0.0
        %5618 = vmatprep.subr.mxu0 0.0
        %5619 = vmatpush1.msra.mxu0 0.0
        %5620 = vmatprep.subr.mxu0 0.0
        %5621 = vmatpush1.msra.mxu0 0.0
        %5622 = vmatprep.subr.mxu0 0.0
        %5623 = vmatpush1.msra.mxu0 0.0
        %5624 = vmatprep.subr.mxu0 0.0
        %5625 = vmatpush1.msra.mxu0 0.0
        %5626 = vmatprep.subr.mxu0 0.0
        %5627 = vmatpush1.msra.mxu0 0.0
        %5628 = vmatprep.subr.mxu0 0.0
        %5629 = vmatpush1.msra.mxu0 0.0
        %5630 = vmatprep.subr.mxu0 0.0
        %5631 = vmatpush1.msra.mxu0 0.0
        %5632 = vmatprep.subr.mxu0 0.0
        %5633 = vmatpush1.msra.mxu0 0.0
        %5634 = vmatprep.subr.mxu0 0.0
        %5635 = vmatpush1.msra.mxu0 0.0
        %5636 = vmatprep.mubr.f32.mxu0 0.0
        %5637 = vmatmul.mubr.f32.gmra.mrb[0].mxu0 %v5182
        %v5638 = vpop.f32.mrb[0].mxu0
        %v5639 = vadd.f32 %v4938, %v5638
        %v5640 = vpop.f32.mrb[0].mxu0
        %v5641 = vadd.f32 %v4938, %v5640
        %5642 = vmatprep.mubr.f32.mxu0 0.0
        %5643 = vmatmul.mubr.f32.gmra.mrb[0].mxu0 %v5185
        %v5644 = vpop.f32.mrb[0].mxu0
        %v5645 = vadd.f32 %v4943, %v5644
        %v5646 = vpop.f32.mrb[0].mxu0
        %v5647 = vadd.f32 %v4943, %v5646
        %5648 = vdwg.mxu0
        %5649 = vmatprep.subr.mxu0 %v3314
        %5650 = vmatpush1.msra.mxu0 %v3313
        %5651 = vmatprep.subr.mxu0 %v5062
        %5652 = vmatpush1.msra.mxu0 %v5061
        %5653 = vmatprep.subr.mxu0 %v5077
        %5654 = vmatpush1.msra.mxu0 %v5076
        %5655 = vmatprep.subr.mxu0 %v3322
        %5656 = vmatpush1.msra.mxu0 %v3317
        %5657 = vmatprep.subr.mxu0 %v5082
        %5658 = vmatpush1.msra.mxu0 %v5081
        %5659 = vmatprep.subr.mxu0 %v5087
        %5660 = vmatpush1.msra.mxu0 %v5086
        %5661 = vmatprep.subr.mxu0 %v4915
        %5662 = vmatpush1.msra.mxu0 %v3333
        %5663 = vmatprep.subr.mxu0 %v5092
        %5664 = vmatpush1.msra.mxu0 %v5091
        %5665 = vmatprep.subr.mxu0 %v5097
        %5666 = vmatpush1.msra.mxu0 %v5096
        %5667 = vmatprep.subr.mxu0 0.0
        %5668 = vmatpush1.msra.mxu0 0.0
        %5669 = vmatprep.subr.mxu0 0.0
        %5670 = vmatpush1.msra.mxu0 0.0
        %5671 = vmatprep.subr.mxu0 0.0
        %5672 = vmatpush1.msra.mxu0 0.0
        %5673 = vmatprep.subr.mxu0 0.0
        %5674 = vmatpush1.msra.mxu0 0.0
        %5675 = vmatprep.subr.mxu0 0.0
        %5676 = vmatpush1.msra.mxu0 0.0
        %5677 = vmatprep.subr.mxu0 0.0
        %5678 = vmatpush1.msra.mxu0 0.0
        %5679 = vmatprep.subr.mxu0 0.0
        %5680 = vmatpush1.msra.mxu0 0.0
        %5681 = vmatprep.subr.mxu0 0.0
        %5682 = vmatpush1.msra.mxu0 0.0
        %5683 = vmatprep.subr.mxu0 0.0
        %5684 = vmatpush1.msra.mxu0 0.0
        %5685 = vmatprep.subr.mxu0 0.0
        %5686 = vmatpush1.msra.mxu0 0.0
        %5687 = vmatprep.subr.mxu0 0.0
        %5688 = vmatpush1.msra.mxu0 0.0
        %5689 = vmatprep.subr.mxu0 0.0
        %5690 = vmatpush1.msra.mxu0 0.0
        %5691 = vmatprep.subr.mxu0 0.0
        %5692 = vmatpush1.msra.mxu0 0.0
        %5693 = vmatprep.subr.mxu0 0.0
        %5694 = vmatpush1.msra.mxu0 0.0
        %5695 = vmatprep.subr.mxu0 0.0
        %5696 = vmatpush1.msra.mxu0 0.0
        %5697 = vmatprep.subr.mxu0 0.0
        %5698 = vmatpush1.msra.mxu0 0.0
        %5699 = vmatprep.subr.mxu0 0.0
        %5700 = vmatpush1.msra.mxu0 0.0
        %5701 = vmatprep.subr.mxu0 0.0
        %5702 = vmatpush1.msra.mxu0 0.0
        %5703 = vmatprep.subr.mxu0 0.0
        %5704 = vmatpush1.msra.mxu0 0.0
        %5705 = vmatprep.subr.mxu0 0.0
        %5706 = vmatpush1.msra.mxu0 0.0
        %5707 = vmatprep.subr.mxu0 0.0
        %5708 = vmatpush1.msra.mxu0 0.0
        %5709 = vmatprep.subr.mxu0 0.0
        %5710 = vmatpush1.msra.mxu0 0.0
        %5711 = vmatprep.subr.mxu0 0.0
        %5712 = vmatpush1.msra.mxu0 0.0
        %5713 = vmatprep.mubr.f32.mxu0 0.0
        %5714 = vmatmul.mubr.f32.gmra.mrb[0].mxu0 %v5182
        %v5715 = vpop.f32.mrb[0].mxu0
        %v5716 = vadd.f32 %v4938, %v5715
        %v5717 = vpop.f32.mrb[0].mxu0
        %v5718 = vadd.f32 %v4938, %v5717
        %5719 = vmatprep.mubr.f32.mxu0 0.0
        %5720 = vmatmul.mubr.f32.gmra.mrb[0].mxu0 %v5185
        %v5721 = vpop.f32.mrb[0].mxu0
        %v5722 = vadd.f32 %v4943, %v5721
        %v5723 = vpop.f32.mrb[0].mxu0
        %v5724 = vadd.f32 %v4943, %v5723
        %5725 = vdwg.mxu0
        %5726 = vmatprep.subr.mxu0 %v3297
        %5727 = vmatpush1.msra.mxu0 %v3315
        %5728 = vmatprep.subr.mxu0 %v4976
        %5729 = vmatpush1.msra.mxu0 %v5063
        %5730 = vmatprep.subr.mxu0 %v5008
        %5731 = vmatpush1.msra.mxu0 %v5078
        %5732 = vmatprep.subr.mxu0 %v3321
        %5733 = vmatpush1.msra.mxu0 %v3323
        %5734 = vmatprep.subr.mxu0 %v5018
        %5735 = vmatpush1.msra.mxu0 %v5083
        %5736 = vmatprep.subr.mxu0 %v5028
        %5737 = vmatpush1.msra.mxu0 %v5088
        %5738 = vmatprep.subr.mxu0 %v4914
        %5739 = vmatpush1.msra.mxu0 %v4916
        %5740 = vmatprep.subr.mxu0 %v5038
        %5741 = vmatpush1.msra.mxu0 %v5093
        %5742 = vmatprep.subr.mxu0 %v5048
        %5743 = vmatpush1.msra.mxu0 %v5098
        %5744 = vmatprep.subr.mxu0 0.0
        %5745 = vmatpush1.msra.mxu0 0.0
        %5746 = vmatprep.subr.mxu0 0.0
        %5747 = vmatpush1.msra.mxu0 0.0
        %5748 = vmatprep.subr.mxu0 0.0
        %5749 = vmatpush1.msra.mxu0 0.0
        %5750 = vmatprep.subr.mxu0 0.0
        %5751 = vmatpush1.msra.mxu0 0.0
        %5752 = vmatprep.subr.mxu0 0.0
        %5753 = vmatpush1.msra.mxu0 0.0
        %5754 = vmatprep.subr.mxu0 0.0
        %5755 = vmatpush1.msra.mxu0 0.0
        %5756 = vmatprep.subr.mxu0 0.0
        %5757 = vmatpush1.msra.mxu0 0.0
        %5758 = vmatprep.subr.mxu0 0.0
        %5759 = vmatpush1.msra.mxu0 0.0
        %5760 = vmatprep.subr.mxu0 0.0
        %5761 = vmatpush1.msra.mxu0 0.0
        %5762 = vmatprep.subr.mxu0 0.0
        %5763 = vmatpush1.msra.mxu0 0.0
        %5764 = vmatprep.subr.mxu0 0.0
        %5765 = vmatpush1.msra.mxu0 0.0
        %5766 = vmatprep.subr.mxu0 0.0
        %5767 = vmatpush1.msra.mxu0 0.0
        %5768 = vmatprep.subr.mxu0 0.0
        %5769 = vmatpush1.msra.mxu0 0.0
        %5770 = vmatprep.subr.mxu0 0.0
        %5771 = vmatpush1.msra.mxu0 0.0
        %5772 = vmatprep.subr.mxu0 0.0
        %5773 = vmatpush1.msra.mxu0 0.0
        %5774 = vmatprep.subr.mxu0 0.0
        %5775 = vmatpush1.msra.mxu0 0.0
        %5776 = vmatprep.subr.mxu0 0.0
        %5777 = vmatpush1.msra.mxu0 0.0
        %5778 = vmatprep.subr.mxu0 0.0
        %5779 = vmatpush1.msra.mxu0 0.0
        %5780 = vmatprep.subr.mxu0 0.0
        %5781 = vmatpush1.msra.mxu0 0.0
        %5782 = vmatprep.subr.mxu0 0.0
        %5783 = vmatpush1.msra.mxu0 0.0
        %5784 = vmatprep.subr.mxu0 0.0
        %5785 = vmatpush1.msra.mxu0 0.0
        %5786 = vmatprep.subr.mxu0 0.0
        %5787 = vmatpush1.msra.mxu0 0.0
        %5788 = vmatprep.subr.mxu0 0.0
        %5789 = vmatpush1.msra.mxu0 0.0
        %5790 = vmatprep.mubr.f32.mxu0 0.0
        %5791 = vmatmul.mubr.f32.gmra.mrb[0].mxu0 %v5182
        %v5792 = vpop.f32.mrb[0].mxu0
        %v5793 = vadd.f32 %v4938, %v5792
        %v5794 = vpop.f32.mrb[0].mxu0
        %v5795 = vadd.f32 %v4938, %v5794
        %5796 = vmatprep.mubr.f32.mxu0 0.0
        %5797 = vmatmul.mubr.f32.gmra.mrb[0].mxu0 %v5185
        %v5798 = vpop.f32.mrb[0].mxu0
        %v5799 = vadd.f32 %v4943, %v5798
        %v5800 = vpop.f32.mrb[0].mxu0
        %v5801 = vadd.f32 %v4943, %v5800
        %5802 = vdwg.mxu0
        %s5803 = scalar_lea.vmem %s3, 48
        %v5804 = vld [vmem:[%s5803] sm:$0xff]
        %v5805 = vld [vmem:[%s5803 + $0x8] sm:$0xff]
        %v5807 = vsel %vm2021, %v5804, 0
        %v5810 = vsel %vm2021, %v5805, 0
        %5812 = vmatprep.subr.mxu0 %v5256
        %5813 = vmatpush1.msra.mxu0 %v5254
        %5814 = vmatprep.subr.mxu0 %v5262
        %5815 = vmatpush1.msra.mxu0 %v5260
        %5816 = vmatprep.subr.mxu0 0.0
        %5817 = vmatpush1.msra.mxu0 0.0
        %5818 = vmatprep.subr.mxu0 0.0
        %5819 = vmatpush1.msra.mxu0 0.0
        %5820 = vmatprep.subr.mxu0 0.0
        %5821 = vmatpush1.msra.mxu0 0.0
        %5822 = vmatprep.subr.mxu0 0.0
        %5823 = vmatpush1.msra.mxu0 0.0
        %5824 = vmatprep.subr.mxu0 0.0
        %5825 = vmatpush1.msra.mxu0 0.0
        %5826 = vmatprep.subr.mxu0 0.0
        %5827 = vmatpush1.msra.mxu0 0.0
        %5828 = vmatprep.subr.mxu0 0.0
        %5829 = vmatpush1.msra.mxu0 0.0
        %5830 = vmatprep.subr.mxu0 0.0
        %5831 = vmatpush1.msra.mxu0 0.0
        %5832 = vmatprep.subr.mxu0 0.0
        %5833 = vmatpush1.msra.mxu0 0.0
        %5834 = vmatprep.subr.mxu0 0.0
        %5835 = vmatpush1.msra.mxu0 0.0
        %5836 = vmatprep.subr.mxu0 0.0
        %5837 = vmatpush1.msra.mxu0 0.0
        %5838 = vmatprep.subr.mxu0 0.0
        %5839 = vmatpush1.msra.mxu0 0.0
        %5840 = vmatprep.subr.mxu0 0.0
        %5841 = vmatpush1.msra.mxu0 0.0
        %5842 = vmatprep.subr.mxu0 0.0
        %5843 = vmatpush1.msra.mxu0 0.0
        %5844 = vmatprep.subr.mxu0 0.0
        %5845 = vmatpush1.msra.mxu0 0.0
        %5846 = vmatprep.subr.mxu0 0.0
        %5847 = vmatpush1.msra.mxu0 0.0
        %5848 = vmatprep.subr.mxu0 0.0
        %5849 = vmatpush1.msra.mxu0 0.0
        %5850 = vmatprep.subr.mxu0 0.0
        %5851 = vmatpush1.msra.mxu0 0.0
        %5852 = vmatprep.subr.mxu0 0.0
        %5853 = vmatpush1.msra.mxu0 0.0
        %5854 = vmatprep.subr.mxu0 0.0
        %5855 = vmatpush1.msra.mxu0 0.0
        %5856 = vmatprep.subr.mxu0 0.0
        %5857 = vmatpush1.msra.mxu0 0.0
        %5858 = vmatprep.subr.mxu0 0.0
        %5859 = vmatpush1.msra.mxu0 0.0
        %5860 = vmatprep.subr.mxu0 0.0
        %5861 = vmatpush1.msra.mxu0 0.0
        %5862 = vmatprep.subr.mxu0 0.0
        %5863 = vmatpush1.msra.mxu0 0.0
        %5864 = vmatprep.subr.mxu0 0.0
        %5865 = vmatpush1.msra.mxu0 0.0
        %5866 = vmatprep.subr.mxu0 0.0
        %5867 = vmatpush1.msra.mxu0 0.0
        %5868 = vmatprep.subr.mxu0 0.0
        %5869 = vmatpush1.msra.mxu0 0.0
        %5870 = vmatprep.subr.mxu0 0.0
        %5871 = vmatpush1.msra.mxu0 0.0
        %5872 = vmatprep.subr.mxu0 0.0
        %5873 = vmatpush1.msra.mxu0 0.0
        %5874 = vmatprep.subr.mxu0 0.0
        %5875 = vmatpush1.msra.mxu0 0.0
        %5876 = vmatprep.mubr.f32.mxu0 0.0
        %5877 = vmatmul.mubr.f32.gmra.mrb[0].mxu0 %v5807
        %v5878 = vpop.f32.mrb[0].mxu0
        %v5879 = vadd.f32 0.0, %v5878
        %v5880 = vpop.f32.mrb[0].mxu0
        %v5881 = vadd.f32 0.0, %v5880
        %5882 = vmatprep.mubr.f32.mxu0 0.0
        %5883 = vmatmul.mubr.f32.gmra.mrb[0].mxu0 %v5810
        %v5884 = vpop.f32.mrb[0].mxu0
        %v5885 = vadd.f32 0.0, %v5884
        %v5886 = vpop.f32.mrb[0].mxu0
        %v5887 = vadd.f32 0.0, %v5886
        %5888 = vdwg.mxu0
        %5889 = vmatprep.subr.mxu0 %v5333
        %5890 = vmatpush1.msra.mxu0 %v5331
        %5891 = vmatprep.subr.mxu0 %v5339
        %5892 = vmatpush1.msra.mxu0 %v5337
        %5893 = vmatprep.subr.mxu0 0.0
        %5894 = vmatpush1.msra.mxu0 0.0
        %5895 = vmatprep.subr.mxu0 0.0
        %5896 = vmatpush1.msra.mxu0 0.0
        %5897 = vmatprep.subr.mxu0 0.0
        %5898 = vmatpush1.msra.mxu0 0.0
        %5899 = vmatprep.subr.mxu0 0.0
        %5900 = vmatpush1.msra.mxu0 0.0
        %5901 = vmatprep.subr.mxu0 0.0
        %5902 = vmatpush1.msra.mxu0 0.0
        %5903 = vmatprep.subr.mxu0 0.0
        %5904 = vmatpush1.msra.mxu0 0.0
        %5905 = vmatprep.subr.mxu0 0.0
        %5906 = vmatpush1.msra.mxu0 0.0
        %5907 = vmatprep.subr.mxu0 0.0
        %5908 = vmatpush1.msra.mxu0 0.0
        %5909 = vmatprep.subr.mxu0 0.0
        %5910 = vmatpush1.msra.mxu0 0.0
        %5911 = vmatprep.subr.mxu0 0.0
        %5912 = vmatpush1.msra.mxu0 0.0
        %5913 = vmatprep.subr.mxu0 0.0
        %5914 = vmatpush1.msra.mxu0 0.0
        %5915 = vmatprep.subr.mxu0 0.0
        %5916 = vmatpush1.msra.mxu0 0.0
        %5917 = vmatprep.subr.mxu0 0.0
        %5918 = vmatpush1.msra.mxu0 0.0
        %5919 = vmatprep.subr.mxu0 0.0
        %5920 = vmatpush1.msra.mxu0 0.0
        %5921 = vmatprep.subr.mxu0 0.0
        %5922 = vmatpush1.msra.mxu0 0.0
        %5923 = vmatprep.subr.mxu0 0.0
        %5924 = vmatpush1.msra.mxu0 0.0
        %5925 = vmatprep.subr.mxu0 0.0
        %5926 = vmatpush1.msra.mxu0 0.0
        %5927 = vmatprep.subr.mxu0 0.0
        %5928 = vmatpush1.msra.mxu0 0.0
        %5929 = vmatprep.subr.mxu0 0.0
        %5930 = vmatpush1.msra.mxu0 0.0
        %5931 = vmatprep.subr.mxu0 0.0
        %5932 = vmatpush1.msra.mxu0 0.0
        %5933 = vmatprep.subr.mxu0 0.0
        %5934 = vmatpush1.msra.mxu0 0.0
        %5935 = vmatprep.subr.mxu0 0.0
        %5936 = vmatpush1.msra.mxu0 0.0
        %5937 = vmatprep.subr.mxu0 0.0
        %5938 = vmatpush1.msra.mxu0 0.0
        %5939 = vmatprep.subr.mxu0 0.0
        %5940 = vmatpush1.msra.mxu0 0.0
        %5941 = vmatprep.subr.mxu0 0.0
        %5942 = vmatpush1.msra.mxu0 0.0
        %5943 = vmatprep.subr.mxu0 0.0
        %5944 = vmatpush1.msra.mxu0 0.0
        %5945 = vmatprep.subr.mxu0 0.0
        %5946 = vmatpush1.msra.mxu0 0.0
        %5947 = vmatprep.subr.mxu0 0.0
        %5948 = vmatpush1.msra.mxu0 0.0
        %5949 = vmatprep.subr.mxu0 0.0
        %5950 = vmatpush1.msra.mxu0 0.0
        %5951 = vmatprep.subr.mxu0 0.0
        %5952 = vmatpush1.msra.mxu0 0.0
        %5953 = vmatprep.mubr.f32.mxu0 0.0
        %5954 = vmatmul.mubr.f32.gmra.mrb[0].mxu0 %v5807
        %v5955 = vpop.f32.mrb[0].mxu0
        %v5956 = vadd.f32 0.0, %v5955
        %v5957 = vpop.f32.mrb[0].mxu0
        %v5958 = vadd.f32 0.0, %v5957
        %5959 = vmatprep.mubr.f32.mxu0 0.0
        %5960 = vmatmul.mubr.f32.gmra.mrb[0].mxu0 %v5810
        %v5961 = vpop.f32.mrb[0].mxu0
        %v5962 = vadd.f32 0.0, %v5961
        %v5963 = vpop.f32.mrb[0].mxu0
        %v5964 = vadd.f32 0.0, %v5963
        %5965 = vdwg.mxu0
        %5966 = vmatprep.subr.mxu0 %v5410
        %5967 = vmatpush1.msra.mxu0 %v5408
        %5968 = vmatprep.subr.mxu0 %v5416
        %5969 = vmatpush1.msra.mxu0 %v5414
        %5970 = vmatprep.subr.mxu0 0.0
        %5971 = vmatpush1.msra.mxu0 0.0
        %5972 = vmatprep.subr.mxu0 0.0
        %5973 = vmatpush1.msra.mxu0 0.0
        %5974 = vmatprep.subr.mxu0 0.0
        %5975 = vmatpush1.msra.mxu0 0.0
        %5976 = vmatprep.subr.mxu0 0.0
        %5977 = vmatpush1.msra.mxu0 0.0
        %5978 = vmatprep.subr.mxu0 0.0
        %5979 = vmatpush1.msra.mxu0 0.0
        %5980 = vmatprep.subr.mxu0 0.0
        %5981 = vmatpush1.msra.mxu0 0.0
        %5982 = vmatprep.subr.mxu0 0.0
        %5983 = vmatpush1.msra.mxu0 0.0
        %5984 = vmatprep.subr.mxu0 0.0
        %5985 = vmatpush1.msra.mxu0 0.0
        %5986 = vmatprep.subr.mxu0 0.0
        %5987 = vmatpush1.msra.mxu0 0.0
        %5988 = vmatprep.subr.mxu0 0.0
        %5989 = vmatpush1.msra.mxu0 0.0
        %5990 = vmatprep.subr.mxu0 0.0
        %5991 = vmatpush1.msra.mxu0 0.0
        %5992 = vmatprep.subr.mxu0 0.0
        %5993 = vmatpush1.msra.mxu0 0.0
        %5994 = vmatprep.subr.mxu0 0.0
        %5995 = vmatpush1.msra.mxu0 0.0
        %5996 = vmatprep.subr.mxu0 0.0
        %5997 = vmatpush1.msra.mxu0 0.0
        %5998 = vmatprep.subr.mxu0 0.0
        %5999 = vmatpush1.msra.mxu0 0.0
        %6000 = vmatprep.subr.mxu0 0.0
        %6001 = vmatpush1.msra.mxu0 0.0
        %6002 = vmatprep.subr.mxu0 0.0
        %6003 = vmatpush1.msra.mxu0 0.0
        %6004 = vmatprep.subr.mxu0 0.0
        %6005 = vmatpush1.msra.mxu0 0.0
        %6006 = vmatprep.subr.mxu0 0.0
        %6007 = vmatpush1.msra.mxu0 0.0
        %6008 = vmatprep.subr.mxu0 0.0
        %6009 = vmatpush1.msra.mxu0 0.0
        %6010 = vmatprep.subr.mxu0 0.0
        %6011 = vmatpush1.msra.mxu0 0.0
        %6012 = vmatprep.subr.mxu0 0.0
        %6013 = vmatpush1.msra.mxu0 0.0
        %6014 = vmatprep.subr.mxu0 0.0
        %6015 = vmatpush1.msra.mxu0 0.0
        %6016 = vmatprep.subr.mxu0 0.0
        %6017 = vmatpush1.msra.mxu0 0.0
        %6018 = vmatprep.subr.mxu0 0.0
        %6019 = vmatpush1.msra.mxu0 0.0
        %6020 = vmatprep.subr.mxu0 0.0
        %6021 = vmatpush1.msra.mxu0 0.0
        %6022 = vmatprep.subr.mxu0 0.0
        %6023 = vmatpush1.msra.mxu0 0.0
        %6024 = vmatprep.subr.mxu0 0.0
        %6025 = vmatpush1.msra.mxu0 0.0
        %6026 = vmatprep.subr.mxu0 0.0
        %6027 = vmatpush1.msra.mxu0 0.0
        %6028 = vmatprep.subr.mxu0 0.0
        %6029 = vmatpush1.msra.mxu0 0.0
        %6030 = vmatprep.mubr.f32.mxu0 0.0
        %6031 = vmatmul.mubr.f32.gmra.mrb[0].mxu0 %v5807
        %v6032 = vpop.f32.mrb[0].mxu0
        %v6033 = vadd.f32 0.0, %v6032
        %v6034 = vpop.f32.mrb[0].mxu0
        %v6035 = vadd.f32 0.0, %v6034
        %6036 = vmatprep.mubr.f32.mxu0 0.0
        %6037 = vmatmul.mubr.f32.gmra.mrb[0].mxu0 %v5810
        %v6038 = vpop.f32.mrb[0].mxu0
        %v6039 = vadd.f32 0.0, %v6038
        %v6040 = vpop.f32.mrb[0].mxu0
        %v6041 = vadd.f32 0.0, %v6040
        %6042 = vdwg.mxu0
        %6043 = vmatprep.subr.mxu0 %v5487
        %6044 = vmatpush1.msra.mxu0 %v5485
        %6045 = vmatprep.subr.mxu0 %v5493
        %6046 = vmatpush1.msra.mxu0 %v5491
        %6047 = vmatprep.subr.mxu0 0.0
        %6048 = vmatpush1.msra.mxu0 0.0
        %6049 = vmatprep.subr.mxu0 0.0
        %6050 = vmatpush1.msra.mxu0 0.0
        %6051 = vmatprep.subr.mxu0 0.0
        %6052 = vmatpush1.msra.mxu0 0.0
        %6053 = vmatprep.subr.mxu0 0.0
        %6054 = vmatpush1.msra.mxu0 0.0
        %6055 = vmatprep.subr.mxu0 0.0
        %6056 = vmatpush1.msra.mxu0 0.0
        %6057 = vmatprep.subr.mxu0 0.0
        %6058 = vmatpush1.msra.mxu0 0.0
        %6059 = vmatprep.subr.mxu0 0.0
        %6060 = vmatpush1.msra.mxu0 0.0
        %6061 = vmatprep.subr.mxu0 0.0
        %6062 = vmatpush1.msra.mxu0 0.0
        %6063 = vmatprep.subr.mxu0 0.0
        %6064 = vmatpush1.msra.mxu0 0.0
        %6065 = vmatprep.subr.mxu0 0.0
        %6066 = vmatpush1.msra.mxu0 0.0
        %6067 = vmatprep.subr.mxu0 0.0
        %6068 = vmatpush1.msra.mxu0 0.0
        %6069 = vmatprep.subr.mxu0 0.0
        %6070 = vmatpush1.msra.mxu0 0.0
        %6071 = vmatprep.subr.mxu0 0.0
        %6072 = vmatpush1.msra.mxu0 0.0
        %6073 = vmatprep.subr.mxu0 0.0
        %6074 = vmatpush1.msra.mxu0 0.0
        %6075 = vmatprep.subr.mxu0 0.0
        %6076 = vmatpush1.msra.mxu0 0.0
        %6077 = vmatprep.subr.mxu0 0.0
        %6078 = vmatpush1.msra.mxu0 0.0
        %6079 = vmatprep.subr.mxu0 0.0
        %6080 = vmatpush1.msra.mxu0 0.0
        %6081 = vmatprep.subr.mxu0 0.0
        %6082 = vmatpush1.msra.mxu0 0.0
        %6083 = vmatprep.subr.mxu0 0.0
        %6084 = vmatpush1.msra.mxu0 0.0
        %6085 = vmatprep.subr.mxu0 0.0
        %6086 = vmatpush1.msra.mxu0 0.0
        %6087 = vmatprep.subr.mxu0 0.0
        %6088 = vmatpush1.msra.mxu0 0.0
        %6089 = vmatprep.subr.mxu0 0.0
        %6090 = vmatpush1.msra.mxu0 0.0
        %6091 = vmatprep.subr.mxu0 0.0
        %6092 = vmatpush1.msra.mxu0 0.0
        %6093 = vmatprep.subr.mxu0 0.0
        %6094 = vmatpush1.msra.mxu0 0.0
        %6095 = vmatprep.subr.mxu0 0.0
        %6096 = vmatpush1.msra.mxu0 0.0
        %6097 = vmatprep.subr.mxu0 0.0
        %6098 = vmatpush1.msra.mxu0 0.0
        %6099 = vmatprep.subr.mxu0 0.0
        %6100 = vmatpush1.msra.mxu0 0.0
        %6101 = vmatprep.subr.mxu0 0.0
        %6102 = vmatpush1.msra.mxu0 0.0
        %6103 = vmatprep.subr.mxu0 0.0
        %6104 = vmatpush1.msra.mxu0 0.0
        %6105 = vmatprep.subr.mxu0 0.0
        %6106 = vmatpush1.msra.mxu0 0.0
        %6107 = vmatprep.mubr.f32.mxu0 0.0
        %6108 = vmatmul.mubr.f32.gmra.mrb[0].mxu0 %v5807
        %v6109 = vpop.f32.mrb[0].mxu0
        %v6110 = vadd.f32 0.0, %v6109
        %v6111 = vpop.f32.mrb[0].mxu0
        %v6112 = vadd.f32 0.0, %v6111
        %6113 = vmatprep.mubr.f32.mxu0 0.0
        %6114 = vmatmul.mubr.f32.gmra.mrb[0].mxu0 %v5810
        %v6115 = vpop.f32.mrb[0].mxu0
        %v6116 = vadd.f32 0.0, %v6115
        %v6117 = vpop.f32.mrb[0].mxu0
        %v6118 = vadd.f32 0.0, %v6117
        %6119 = vdwg.mxu0
        %6120 = vmatprep.subr.mxu0 %v5564
        %6121 = vmatpush1.msra.mxu0 %v5562
        %6122 = vmatprep.subr.mxu0 %v5570
        %6123 = vmatpush1.msra.mxu0 %v5568
        %6124 = vmatprep.subr.mxu0 0.0
        %6125 = vmatpush1.msra.mxu0 0.0
        %6126 = vmatprep.subr.mxu0 0.0
        %6127 = vmatpush1.msra.mxu0 0.0
        %6128 = vmatprep.subr.mxu0 0.0
        %6129 = vmatpush1.msra.mxu0 0.0
        %6130 = vmatprep.subr.mxu0 0.0
        %6131 = vmatpush1.msra.mxu0 0.0
        %6132 = vmatprep.subr.mxu0 0.0
        %6133 = vmatpush1.msra.mxu0 0.0
        %6134 = vmatprep.subr.mxu0 0.0
        %6135 = vmatpush1.msra.mxu0 0.0
        %6136 = vmatprep.subr.mxu0 0.0
        %6137 = vmatpush1.msra.mxu0 0.0
        %6138 = vmatprep.subr.mxu0 0.0
        %6139 = vmatpush1.msra.mxu0 0.0
        %6140 = vmatprep.subr.mxu0 0.0
        %6141 = vmatpush1.msra.mxu0 0.0
        %6142 = vmatprep.subr.mxu0 0.0
        %6143 = vmatpush1.msra.mxu0 0.0
        %6144 = vmatprep.subr.mxu0 0.0
        %6145 = vmatpush1.msra.mxu0 0.0
        %6146 = vmatprep.subr.mxu0 0.0
        %6147 = vmatpush1.msra.mxu0 0.0
        %6148 = vmatprep.subr.mxu0 0.0
        %6149 = vmatpush1.msra.mxu0 0.0
        %6150 = vmatprep.subr.mxu0 0.0
        %6151 = vmatpush1.msra.mxu0 0.0
        %6152 = vmatprep.subr.mxu0 0.0
        %6153 = vmatpush1.msra.mxu0 0.0
        %6154 = vmatprep.subr.mxu0 0.0
        %6155 = vmatpush1.msra.mxu0 0.0
        %6156 = vmatprep.subr.mxu0 0.0
        %6157 = vmatpush1.msra.mxu0 0.0
        %6158 = vmatprep.subr.mxu0 0.0
        %6159 = vmatpush1.msra.mxu0 0.0
        %6160 = vmatprep.subr.mxu0 0.0
        %6161 = vmatpush1.msra.mxu0 0.0
        %6162 = vmatprep.subr.mxu0 0.0
        %6163 = vmatpush1.msra.mxu0 0.0
        %6164 = vmatprep.subr.mxu0 0.0
        %6165 = vmatpush1.msra.mxu0 0.0
        %6166 = vmatprep.subr.mxu0 0.0
        %6167 = vmatpush1.msra.mxu0 0.0
        %6168 = vmatprep.subr.mxu0 0.0
        %6169 = vmatpush1.msra.mxu0 0.0
        %6170 = vmatprep.subr.mxu0 0.0
        %6171 = vmatpush1.msra.mxu0 0.0
        %6172 = vmatprep.subr.mxu0 0.0
        %6173 = vmatpush1.msra.mxu0 0.0
        %6174 = vmatprep.subr.mxu0 0.0
        %6175 = vmatpush1.msra.mxu0 0.0
        %6176 = vmatprep.subr.mxu0 0.0
        %6177 = vmatpush1.msra.mxu0 0.0
        %6178 = vmatprep.subr.mxu0 0.0
        %6179 = vmatpush1.msra.mxu0 0.0
        %6180 = vmatprep.subr.mxu0 0.0
        %6181 = vmatpush1.msra.mxu0 0.0
        %6182 = vmatprep.subr.mxu0 0.0
        %6183 = vmatpush1.msra.mxu0 0.0
        %6184 = vmatprep.mubr.f32.mxu0 0.0
        %6185 = vmatmul.mubr.f32.gmra.mrb[0].mxu0 %v5807
        %v6186 = vpop.f32.mrb[0].mxu0
        %v6187 = vadd.f32 0.0, %v6186
        %v6188 = vpop.f32.mrb[0].mxu0
        %v6189 = vadd.f32 0.0, %v6188
        %6190 = vmatprep.mubr.f32.mxu0 0.0
        %6191 = vmatmul.mubr.f32.gmra.mrb[0].mxu0 %v5810
        %v6192 = vpop.f32.mrb[0].mxu0
        %v6193 = vadd.f32 0.0, %v6192
        %v6194 = vpop.f32.mrb[0].mxu0
        %v6195 = vadd.f32 0.0, %v6194
        %6196 = vdwg.mxu0
        %6197 = vmatprep.subr.mxu0 %v5641
        %6198 = vmatpush1.msra.mxu0 %v5639
        %6199 = vmatprep.subr.mxu0 %v5647
        %6200 = vmatpush1.msra.mxu0 %v5645
        %6201 = vmatprep.subr.mxu0 0.0
        %6202 = vmatpush1.msra.mxu0 0.0
        %6203 = vmatprep.subr.mxu0 0.0
        %6204 = vmatpush1.msra.mxu0 0.0
        %6205 = vmatprep.subr.mxu0 0.0
        %6206 = vmatpush1.msra.mxu0 0.0
        %6207 = vmatprep.subr.mxu0 0.0
        %6208 = vmatpush1.msra.mxu0 0.0
        %6209 = vmatprep.subr.mxu0 0.0
        %6210 = vmatpush1.msra.mxu0 0.0
        %6211 = vmatprep.subr.mxu0 0.0
        %6212 = vmatpush1.msra.mxu0 0.0
        %6213 = vmatprep.subr.mxu0 0.0
        %6214 = vmatpush1.msra.mxu0 0.0
        %6215 = vmatprep.subr.mxu0 0.0
        %6216 = vmatpush1.msra.mxu0 0.0
        %6217 = vmatprep.subr.mxu0 0.0
        %6218 = vmatpush1.msra.mxu0 0.0
        %6219 = vmatprep.subr.mxu0 0.0
        %6220 = vmatpush1.msra.mxu0 0.0
        %6221 = vmatprep.subr.mxu0 0.0
        %6222 = vmatpush1.msra.mxu0 0.0
        %6223 = vmatprep.subr.mxu0 0.0
        %6224 = vmatpush1.msra.mxu0 0.0
        %6225 = vmatprep.subr.mxu0 0.0
        %6226 = vmatpush1.msra.mxu0 0.0
        %6227 = vmatprep.subr.mxu0 0.0
        %6228 = vmatpush1.msra.mxu0 0.0
        %6229 = vmatprep.subr.mxu0 0.0
        %6230 = vmatpush1.msra.mxu0 0.0
        %6231 = vmatprep.subr.mxu0 0.0
        %6232 = vmatpush1.msra.mxu0 0.0
        %6233 = vmatprep.subr.mxu0 0.0
        %6234 = vmatpush1.msra.mxu0 0.0
        %6235 = vmatprep.subr.mxu0 0.0
        %6236 = vmatpush1.msra.mxu0 0.0
        %6237 = vmatprep.subr.mxu0 0.0
        %6238 = vmatpush1.msra.mxu0 0.0
        %6239 = vmatprep.subr.mxu0 0.0
        %6240 = vmatpush1.msra.mxu0 0.0
        %6241 = vmatprep.subr.mxu0 0.0
        %6242 = vmatpush1.msra.mxu0 0.0
        %6243 = vmatprep.subr.mxu0 0.0
        %6244 = vmatpush1.msra.mxu0 0.0
        %6245 = vmatprep.subr.mxu0 0.0
        %6246 = vmatpush1.msra.mxu0 0.0
        %6247 = vmatprep.subr.mxu0 0.0
        %6248 = vmatpush1.msra.mxu0 0.0
        %6249 = vmatprep.subr.mxu0 0.0
        %6250 = vmatpush1.msra.mxu0 0.0
        %6251 = vmatprep.subr.mxu0 0.0
        %6252 = vmatpush1.msra.mxu0 0.0
        %6253 = vmatprep.subr.mxu0 0.0
        %6254 = vmatpush1.msra.mxu0 0.0
        %6255 = vmatprep.subr.mxu0 0.0
        %6256 = vmatpush1.msra.mxu0 0.0
        %6257 = vmatprep.subr.mxu0 0.0
        %6258 = vmatpush1.msra.mxu0 0.0
        %6259 = vmatprep.subr.mxu0 0.0
        %6260 = vmatpush1.msra.mxu0 0.0
        %6261 = vmatprep.mubr.f32.mxu0 0.0
        %6262 = vmatmul.mubr.f32.gmra.mrb[0].mxu0 %v5807
        %v6263 = vpop.f32.mrb[0].mxu0
        %v6264 = vadd.f32 0.0, %v6263
        %v6265 = vpop.f32.mrb[0].mxu0
        %v6266 = vadd.f32 0.0, %v6265
        %6267 = vmatprep.mubr.f32.mxu0 0.0
        %6268 = vmatmul.mubr.f32.gmra.mrb[0].mxu0 %v5810
        %v6269 = vpop.f32.mrb[0].mxu0
        %v6270 = vadd.f32 0.0, %v6269
        %v6271 = vpop.f32.mrb[0].mxu0
        %v6272 = vadd.f32 0.0, %v6271
        %6273 = vdwg.mxu0
        %6274 = vmatprep.subr.mxu0 %v5718
        %6275 = vmatpush1.msra.mxu0 %v5716
        %6276 = vmatprep.subr.mxu0 %v5724
        %6277 = vmatpush1.msra.mxu0 %v5722
        %6278 = vmatprep.subr.mxu0 0.0
        %6279 = vmatpush1.msra.mxu0 0.0
        %6280 = vmatprep.subr.mxu0 0.0
        %6281 = vmatpush1.msra.mxu0 0.0
        %6282 = vmatprep.subr.mxu0 0.0
        %6283 = vmatpush1.msra.mxu0 0.0
        %6284 = vmatprep.subr.mxu0 0.0
        %6285 = vmatpush1.msra.mxu0 0.0
        %6286 = vmatprep.subr.mxu0 0.0
        %6287 = vmatpush1.msra.mxu0 0.0
        %6288 = vmatprep.subr.mxu0 0.0
        %6289 = vmatpush1.msra.mxu0 0.0
        %6290 = vmatprep.subr.mxu0 0.0
        %6291 = vmatpush1.msra.mxu0 0.0
        %6292 = vmatprep.subr.mxu0 0.0
        %6293 = vmatpush1.msra.mxu0 0.0
        %6294 = vmatprep.subr.mxu0 0.0
        %6295 = vmatpush1.msra.mxu0 0.0
        %6296 = vmatprep.subr.mxu0 0.0
        %6297 = vmatpush1.msra.mxu0 0.0
        %6298 = vmatprep.subr.mxu0 0.0
        %6299 = vmatpush1.msra.mxu0 0.0
        %6300 = vmatprep.subr.mxu0 0.0
        %6301 = vmatpush1.msra.mxu0 0.0
        %6302 = vmatprep.subr.mxu0 0.0
        %6303 = vmatpush1.msra.mxu0 0.0
        %6304 = vmatprep.subr.mxu0 0.0
        %6305 = vmatpush1.msra.mxu0 0.0
        %6306 = vmatprep.subr.mxu0 0.0
        %6307 = vmatpush1.msra.mxu0 0.0
        %6308 = vmatprep.subr.mxu0 0.0
        %6309 = vmatpush1.msra.mxu0 0.0
        %6310 = vmatprep.subr.mxu0 0.0
        %6311 = vmatpush1.msra.mxu0 0.0
        %6312 = vmatprep.subr.mxu0 0.0
        %6313 = vmatpush1.msra.mxu0 0.0
        %6314 = vmatprep.subr.mxu0 0.0
        %6315 = vmatpush1.msra.mxu0 0.0
        %6316 = vmatprep.subr.mxu0 0.0
        %6317 = vmatpush1.msra.mxu0 0.0
        %6318 = vmatprep.subr.mxu0 0.0
        %6319 = vmatpush1.msra.mxu0 0.0
        %6320 = vmatprep.subr.mxu0 0.0
        %6321 = vmatpush1.msra.mxu0 0.0
        %6322 = vmatprep.subr.mxu0 0.0
        %6323 = vmatpush1.msra.mxu0 0.0
        %6324 = vmatprep.subr.mxu0 0.0
        %6325 = vmatpush1.msra.mxu0 0.0
        %6326 = vmatprep.subr.mxu0 0.0
        %6327 = vmatpush1.msra.mxu0 0.0
        %6328 = vmatprep.subr.mxu0 0.0
        %6329 = vmatpush1.msra.mxu0 0.0
        %6330 = vmatprep.subr.mxu0 0.0
        %6331 = vmatpush1.msra.mxu0 0.0
        %6332 = vmatprep.subr.mxu0 0.0
        %6333 = vmatpush1.msra.mxu0 0.0
        %6334 = vmatprep.subr.mxu0 0.0
        %6335 = vmatpush1.msra.mxu0 0.0
        %6336 = vmatprep.subr.mxu0 0.0
        %6337 = vmatpush1.msra.mxu0 0.0
        %6338 = vmatprep.mubr.f32.mxu0 0.0
        %6339 = vmatmul.mubr.f32.gmra.mrb[0].mxu0 %v5807
        %v6340 = vpop.f32.mrb[0].mxu0
        %v6341 = vadd.f32 0.0, %v6340
        %v6342 = vpop.f32.mrb[0].mxu0
        %v6343 = vadd.f32 0.0, %v6342
        %6344 = vmatprep.mubr.f32.mxu0 0.0
        %6345 = vmatmul.mubr.f32.gmra.mrb[0].mxu0 %v5810
        %v6346 = vpop.f32.mrb[0].mxu0
        %v6347 = vadd.f32 0.0, %v6346
        %v6348 = vpop.f32.mrb[0].mxu0
        %v6349 = vadd.f32 0.0, %v6348
        %6350 = vdwg.mxu0
        %6351 = vmatprep.subr.mxu0 %v5795
        %6352 = vmatpush1.msra.mxu0 %v5793
        %6353 = vmatprep.subr.mxu0 %v5801
        %6354 = vmatpush1.msra.mxu0 %v5799
        %6355 = vmatprep.subr.mxu0 0.0
        %6356 = vmatpush1.msra.mxu0 0.0
        %6357 = vmatprep.subr.mxu0 0.0
        %6358 = vmatpush1.msra.mxu0 0.0
        %6359 = vmatprep.subr.mxu0 0.0
        %6360 = vmatpush1.msra.mxu0 0.0
        %6361 = vmatprep.subr.mxu0 0.0
        %6362 = vmatpush1.msra.mxu0 0.0
        %6363 = vmatprep.subr.mxu0 0.0
        %6364 = vmatpush1.msra.mxu0 0.0
        %6365 = vmatprep.subr.mxu0 0.0
        %6366 = vmatpush1.msra.mxu0 0.0
        %6367 = vmatprep.subr.mxu0 0.0
        %6368 = vmatpush1.msra.mxu0 0.0
        %6369 = vmatprep.subr.mxu0 0.0
        %6370 = vmatpush1.msra.mxu0 0.0
        %6371 = vmatprep.subr.mxu0 0.0
        %6372 = vmatpush1.msra.mxu0 0.0
        %6373 = vmatprep.subr.mxu0 0.0
        %6374 = vmatpush1.msra.mxu0 0.0
        %6375 = vmatprep.subr.mxu0 0.0
        %6376 = vmatpush1.msra.mxu0 0.0
        %6377 = vmatprep.subr.mxu0 0.0
        %6378 = vmatpush1.msra.mxu0 0.0
        %6379 = vmatprep.subr.mxu0 0.0
        %6380 = vmatpush1.msra.mxu0 0.0
        %6381 = vmatprep.subr.mxu0 0.0
        %6382 = vmatpush1.msra.mxu0 0.0
        %6383 = vmatprep.subr.mxu0 0.0
        %6384 = vmatpush1.msra.mxu0 0.0
        %6385 = vmatprep.subr.mxu0 0.0
        %6386 = vmatpush1.msra.mxu0 0.0
        %6387 = vmatprep.subr.mxu0 0.0
        %6388 = vmatpush1.msra.mxu0 0.0
        %6389 = vmatprep.subr.mxu0 0.0
        %6390 = vmatpush1.msra.mxu0 0.0
        %6391 = vmatprep.subr.mxu0 0.0
        %6392 = vmatpush1.msra.mxu0 0.0
        %6393 = vmatprep.subr.mxu0 0.0
        %6394 = vmatpush1.msra.mxu0 0.0
        %6395 = vmatprep.subr.mxu0 0.0
        %6396 = vmatpush1.msra.mxu0 0.0
        %6397 = vmatprep.subr.mxu0 0.0
        %6398 = vmatpush1.msra.mxu0 0.0
        %6399 = vmatprep.subr.mxu0 0.0
        %6400 = vmatpush1.msra.mxu0 0.0
        %6401 = vmatprep.subr.mxu0 0.0
        %6402 = vmatpush1.msra.mxu0 0.0
        %6403 = vmatprep.subr.mxu0 0.0
        %6404 = vmatpush1.msra.mxu0 0.0
        %6405 = vmatprep.subr.mxu0 0.0
        %6406 = vmatpush1.msra.mxu0 0.0
        %6407 = vmatprep.subr.mxu0 0.0
        %6408 = vmatpush1.msra.mxu0 0.0
        %6409 = vmatprep.subr.mxu0 0.0
        %6410 = vmatpush1.msra.mxu0 0.0
        %6411 = vmatprep.subr.mxu0 0.0
        %6412 = vmatpush1.msra.mxu0 0.0
        %6413 = vmatprep.subr.mxu0 0.0
        %6414 = vmatpush1.msra.mxu0 0.0
        %6415 = vmatprep.mubr.f32.mxu0 0.0
        %6416 = vmatmul.mubr.f32.gmra.mrb[0].mxu0 %v5807
        %v6417 = vpop.f32.mrb[0].mxu0
        %v6418 = vadd.f32 0.0, %v6417
        %v6419 = vpop.f32.mrb[0].mxu0
        %v6420 = vadd.f32 0.0, %v6419
        %6421 = vmatprep.mubr.f32.mxu0 0.0
        %6422 = vmatmul.mubr.f32.gmra.mrb[0].mxu0 %v5810
        %v6423 = vpop.f32.mrb[0].mxu0
        %v6424 = vadd.f32 0.0, %v6423
        %v6425 = vpop.f32.mrb[0].mxu0
        %v6426 = vadd.f32 0.0, %v6425
        %6427 = vdwg.mxu0
        %v6428 = vadd.f32 %v4857, %v5879
        %v6429 = vadd.f32 %v4858, %v5881
        %v6430 = vadd.f32 %v4859, %v5956
        %v6431 = vadd.f32 %v4860, %v5958
        %v6432 = vadd.f32 %v4861, %v6033
        %v6433 = vadd.f32 %v4862, %v6035
        %v6434 = vadd.f32 %v4863, %v6110
        %v6435 = vadd.f32 %v4864, %v6112
        %v6436 = vadd.f32 %v4865, %v6187
        %v6437 = vadd.f32 %v4866, %v6189
        %v6438 = vadd.f32 %v4867, %v6264
        %v6439 = vadd.f32 %v4868, %v6266
        %v6440 = vadd.f32 %v4869, %v6341
        %v6441 = vadd.f32 %v4870, %v6343
        %v6442 = vadd.f32 %v4871, %v6418
        %v6443 = vadd.f32 %v4872, %v6420
        %v6444 = vadd.f32 %v4873, %v5885
        %v6445 = vadd.f32 %v4874, %v5887
        %v6446 = vadd.f32 %v4875, %v5962
        %v6447 = vadd.f32 %v4876, %v5964
        %v6448 = vadd.f32 %v4877, %v6039
        %v6449 = vadd.f32 %v4878, %v6041
        %v6450 = vadd.f32 %v4879, %v6116
        %v6451 = vadd.f32 %v4880, %v6118
        %v6452 = vadd.f32 %v4881, %v6193
        %v6453 = vadd.f32 %v4882, %v6195
        %v6454 = vadd.f32 %v4883, %v6270
        %v6455 = vadd.f32 %v4884, %v6272
        %v6456 = vadd.f32 %v4885, %v6347
        %v6457 = vadd.f32 %v4886, %v6349
        %v6458 = vadd.f32 %v4887, %v6424
        %v6459 = vadd.f32 %v4888, %v6426
        %6464 = vrot.lane.b32.xlu0 %v283, 112
        %v6465 = vpop.permute.xlu0 %6464
        %6466 = vrot.lane.b32.xlu0 %v284, 112
        %v6467 = vpop.permute.xlu0 %6466
        %6468 = vrot.lane.b32.xlu0 %v285, 112
        %v6469 = vpop.permute.xlu0 %6468
        %6470 = vrot.lane.b32.xlu0 %v286, 112
        %v6471 = vpop.permute.xlu0 %6470
        %v6472 = vsel %vm377, %v6465, %v6467
        %v6473 = vsel %vm377, %v6467, %v6469
        %v6474 = vsel %vm377, %v6469, %v6471
        %v6475 = vsel %vm377, %v6471, %v4898
        %6485 = vrot.lane.b32.xlu0 %v283, 96
        %v6486 = vpop.permute.xlu0 %6485
        %6487 = vrot.lane.b32.xlu0 %v284, 96
        %v6488 = vpop.permute.xlu0 %6487
        %6489 = vrot.lane.b32.xlu0 %v285, 96
        %v6490 = vpop.permute.xlu0 %6489
        %6491 = vrot.lane.b32.xlu0 %v286, 96
        %v6492 = vpop.permute.xlu0 %6491
        %6493 = vrot.lane.b32.xlu0 %v287, 96
        %v6494 = vpop.permute.xlu0 %6493
        %6495 = vrot.lane.b32.xlu0 %v288, 96
        %v6496 = vpop.permute.xlu0 %6495
        %6497 = vrot.lane.b32.xlu0 %v289, 96
        %v6498 = vpop.permute.xlu0 %6497
        %6499 = vrot.lane.b32.xlu0 %v290, 96
        %v6500 = vpop.permute.xlu0 %6499
        %6501 = vrot.lane.b32.xlu0 %v291, 96
        %v6502 = vpop.permute.xlu0 %6501
        %6503 = vrot.lane.b32.xlu0 %v292, 96
        %v6504 = vpop.permute.xlu0 %6503
        %6505 = vrot.lane.b32.xlu0 %v293, 96
        %v6506 = vpop.permute.xlu0 %6505
        %6507 = vrot.lane.b32.xlu0 %v294, 96
        %v6508 = vpop.permute.xlu0 %6507
        %6509 = vrot.lane.b32.xlu0 %v295, 96
        %v6510 = vpop.permute.xlu0 %6509
        %6511 = vrot.lane.b32.xlu0 %v296, 96
        %v6512 = vpop.permute.xlu0 %6511
        %6513 = vrot.lane.b32.xlu0 %v297, 96
        %v6514 = vpop.permute.xlu0 %6513
        %6515 = vrot.lane.b32.xlu0 %v298, 96
        %v6516 = vpop.permute.xlu0 %6515
        %vm6517 = vcmask 785408
        %v6518 = vsel %vm6517, %v6486, %v6488
        %v6519 = vsel %vm6517, %v6488, %v6490
        %v6520 = vsel %vm6517, %v6490, %v6492
        %v6521 = vsel %vm6517, %v6492, %v6494
        %v6522 = vsel %vm6517, %v6494, %v6496
        %v6523 = vsel %vm6517, %v6496, %v6498
        %v6524 = vsel %vm6517, %v6498, %v6500
        %v6525 = vsel %vm6517, %v6500, %v6502
        %v6526 = vsel %vm6517, %v6502, %v6504
        %v6527 = vsel %vm6517, %v6504, %v6506
        %v6528 = vsel %vm6517, %v6506, %v6508
        %v6529 = vsel %vm6517, %v6508, %v6510
        %v6530 = vsel %vm6517, %v6510, %v6512
        %v6531 = vsel %vm6517, %v6512, %v6514
        %v6532 = vsel %vm6517, %v6514, %v6516
        %6549 = vrot.lane.b32.xlu0 %v299, 96
        %v6550 = vpop.permute.xlu0 %6549
        %6551 = vrot.lane.b32.xlu0 %v300, 96
        %v6552 = vpop.permute.xlu0 %6551
        %6553 = vrot.lane.b32.xlu0 %v301, 96
        %v6554 = vpop.permute.xlu0 %6553
        %6555 = vrot.lane.b32.xlu0 %v302, 96
        %v6556 = vpop.permute.xlu0 %6555
        %6557 = vrot.lane.b32.xlu0 %v303, 96
        %v6558 = vpop.permute.xlu0 %6557
        %6559 = vrot.lane.b32.xlu0 %v304, 96
        %v6560 = vpop.permute.xlu0 %6559
        %6561 = vrot.lane.b32.xlu0 %v305, 96
        %v6562 = vpop.permute.xlu0 %6561
        %6563 = vrot.lane.b32.xlu0 %v306, 96
        %v6564 = vpop.permute.xlu0 %6563
        %v6565 = vsel %vm6517, %v6516, %v6550
        %v6566 = vsel %vm6517, %v6550, %v6552
        %v6567 = vsel %vm6517, %v6552, %v6554
        %v6568 = vsel %vm6517, %v6554, %v6556
        %v6569 = vsel %vm6517, %v6556, %v6558
        %v6570 = vsel %vm6517, %v6558, %v6560
        %v6571 = vsel %vm6517, %v6560, %v6562
        %v6572 = vsel %vm6517, %v6562, %v6564
        %6586 = vrot.lane.b32.xlu0 %v311, 112
        %v6587 = vpop.permute.xlu0 %6586
        %6588 = vrot.lane.b32.xlu0 %v312, 112
        %v6589 = vpop.permute.xlu0 %6588
        %6590 = vrot.lane.b32.xlu0 %v313, 112
        %v6591 = vpop.permute.xlu0 %6590
        %6592 = vrot.lane.b32.xlu0 %v314, 112
        %v6593 = vpop.permute.xlu0 %6592
        %v6594 = vsel %vm377, %v4924, %v6587
        %v6595 = vsel %vm377, %v6587, %v6589
        %v6596 = vsel %vm377, %v6589, %v6591
        %v6597 = vsel %vm377, %v6591, %v6593
        %6607 = vrot.lane.b32.xlu0 %v307, 96
        %v6608 = vpop.permute.xlu0 %6607
        %6609 = vrot.lane.b32.xlu0 %v308, 96
        %v6610 = vpop.permute.xlu0 %6609
        %6611 = vrot.lane.b32.xlu0 %v309, 96
        %v6612 = vpop.permute.xlu0 %6611
        %6613 = vrot.lane.b32.xlu0 %v310, 96
        %v6614 = vpop.permute.xlu0 %6613
        %6615 = vrot.lane.b32.xlu0 %v311, 96
        %v6616 = vpop.permute.xlu0 %6615
        %6617 = vrot.lane.b32.xlu0 %v312, 96
        %v6618 = vpop.permute.xlu0 %6617
        %6619 = vrot.lane.b32.xlu0 %v313, 96
        %v6620 = vpop.permute.xlu0 %6619
        %6621 = vrot.lane.b32.xlu0 %v314, 96
        %v6622 = vpop.permute.xlu0 %6621
        %v6623 = vsel %vm6517, %v6564, %v6608
        %v6624 = vsel %vm6517, %v6608, %v6610
        %v6625 = vsel %vm6517, %v6610, %v6612
        %v6626 = vsel %vm6517, %v6612, %v6614
        %v6627 = vsel %vm6517, %v6614, %v6616
        %v6628 = vsel %vm6517, %v6616, %v6618
        %v6629 = vsel %vm6517, %v6618, %v6620
        %v6630 = vsel %vm6517, %v6620, %v6622
        %s6640 = scalar_lea.vmem [#allocation5], 48
        %v6641 = vld [vmem:[%s6640] sm:$0xff]
        %v6642 = vld [vmem:[%s6640 + $0x8] sm:$0xff]
        %s6643 = scalar_lea.vmem %s4, 64
        %v6644 = vld [vmem:[%s6643] sm:$0xff]
        %v6645 = vld [vmem:[%s6643 + $0x8] sm:$0xff]
        %6647 = vset.pattern.permute.xlu0 0
        %6648 = vperm.xlu0 %6647, %v6644
        %v6649 = vpop.permute.xlu0 %6648
        %6652 = vset.pattern.permute.xlu0 0
        %6653 = vperm.xlu0 %6652, %v6645
        %v6654 = vpop.permute.xlu0 %6653
        %v6657 = vsel %vm1395, %v6641, 0
        %v6660 = vsel %vm1395, %v6642, 0
        %6662 = vmatprep.subr.mxu0 %v284
        %6663 = vmatpush1.msra.mxu0 %v283
        %6664 = vmatprep.subr.mxu0 %v6473
        %6665 = vmatpush1.msra.mxu0 %v6472
        %6666 = vmatprep.subr.mxu0 %v6519
        %6667 = vmatpush1.msra.mxu0 %v6518
        %6668 = vmatprep.subr.mxu0 %v292
        %6669 = vmatpush1.msra.mxu0 %v291
        %6670 = vmatprep.subr.mxu0 %v379
        %6671 = vmatpush1.msra.mxu0 %v378
        %6672 = vmatprep.subr.mxu0 %v6527
        %6673 = vmatpush1.msra.mxu0 %v6526
        %6674 = vmatprep.subr.mxu0 %v300
        %6675 = vmatpush1.msra.mxu0 %v299
        %6676 = vmatprep.subr.mxu0 %v387
        %6677 = vmatpush1.msra.mxu0 %v386
        %6678 = vmatprep.subr.mxu0 %v6567
        %6679 = vmatpush1.msra.mxu0 %v6566
        %6680 = vmatprep.subr.mxu0 0.0
        %6681 = vmatpush1.msra.mxu0 0.0
        %6682 = vmatprep.subr.mxu0 0.0
        %6683 = vmatpush1.msra.mxu0 0.0
        %6684 = vmatprep.subr.mxu0 0.0
        %6685 = vmatpush1.msra.mxu0 0.0
        %6686 = vmatprep.subr.mxu0 0.0
        %6687 = vmatpush1.msra.mxu0 0.0
        %6688 = vmatprep.subr.mxu0 0.0
        %6689 = vmatpush1.msra.mxu0 0.0
        %6690 = vmatprep.subr.mxu0 0.0
        %6691 = vmatpush1.msra.mxu0 0.0
        %6692 = vmatprep.subr.mxu0 0.0
        %6693 = vmatpush1.msra.mxu0 0.0
        %6694 = vmatprep.subr.mxu0 0.0
        %6695 = vmatpush1.msra.mxu0 0.0
        %6696 = vmatprep.subr.mxu0 0.0
        %6697 = vmatpush1.msra.mxu0 0.0
        %6698 = vmatprep.subr.mxu0 0.0
        %6699 = vmatpush1.msra.mxu0 0.0
        %6700 = vmatprep.subr.mxu0 0.0
        %6701 = vmatpush1.msra.mxu0 0.0
        %6702 = vmatprep.subr.mxu0 0.0
        %6703 = vmatpush1.msra.mxu0 0.0
        %6704 = vmatprep.subr.mxu0 0.0
        %6705 = vmatpush1.msra.mxu0 0.0
        %6706 = vmatprep.subr.mxu0 0.0
        %6707 = vmatpush1.msra.mxu0 0.0
        %6708 = vmatprep.subr.mxu0 0.0
        %6709 = vmatpush1.msra.mxu0 0.0
        %6710 = vmatprep.subr.mxu0 0.0
        %6711 = vmatpush1.msra.mxu0 0.0
        %6712 = vmatprep.subr.mxu0 0.0
        %6713 = vmatpush1.msra.mxu0 0.0
        %6714 = vmatprep.subr.mxu0 0.0
        %6715 = vmatpush1.msra.mxu0 0.0
        %6716 = vmatprep.subr.mxu0 0.0
        %6717 = vmatpush1.msra.mxu0 0.0
        %6718 = vmatprep.subr.mxu0 0.0
        %6719 = vmatpush1.msra.mxu0 0.0
        %6720 = vmatprep.subr.mxu0 0.0
        %6721 = vmatpush1.msra.mxu0 0.0
        %6722 = vmatprep.subr.mxu0 0.0
        %6723 = vmatpush1.msra.mxu0 0.0
        %6724 = vmatprep.subr.mxu0 0.0
        %6725 = vmatpush1.msra.mxu0 0.0
        %6726 = vmatprep.mubr.f32.mxu0 0.0
        %6727 = vmatmul.mubr.f32.gmra.mrb[0].mxu0 %v6657
        %v6728 = vpop.f32.mrb[0].mxu0
        %v6729 = vadd.f32 %v6649, %v6728
        %v6730 = vpop.f32.mrb[0].mxu0
        %v6731 = vadd.f32 %v6649, %v6730
        %6732 = vmatprep.mubr.f32.mxu0 0.0
        %6733 = vmatmul.mubr.f32.gmra.mrb[0].mxu0 %v6660
        %v6734 = vpop.f32.mrb[0].mxu0
        %v6735 = vadd.f32 %v6654, %v6734
        %v6736 = vpop.f32.mrb[0].mxu0
        %v6737 = vadd.f32 %v6654, %v6736
        %6738 = vdwg.mxu0
        %6739 = vmatprep.subr.mxu0 %v286
        %6740 = vmatpush1.msra.mxu0 %v285
        %6741 = vmatprep.subr.mxu0 %v6475
        %6742 = vmatpush1.msra.mxu0 %v6474
        %6743 = vmatprep.subr.mxu0 %v6521
        %6744 = vmatpush1.msra.mxu0 %v6520
        %6745 = vmatprep.subr.mxu0 %v294
        %6746 = vmatpush1.msra.mxu0 %v293
        %6747 = vmatprep.subr.mxu0 %v381
        %6748 = vmatpush1.msra.mxu0 %v380
        %6749 = vmatprep.subr.mxu0 %v6529
        %6750 = vmatpush1.msra.mxu0 %v6528
        %6751 = vmatprep.subr.mxu0 %v302
        %6752 = vmatpush1.msra.mxu0 %v301
        %6753 = vmatprep.subr.mxu0 %v389
        %6754 = vmatpush1.msra.mxu0 %v388
        %6755 = vmatprep.subr.mxu0 %v6569
        %6756 = vmatpush1.msra.mxu0 %v6568
        %6757 = vmatprep.subr.mxu0 0.0
        %6758 = vmatpush1.msra.mxu0 0.0
        %6759 = vmatprep.subr.mxu0 0.0
        %6760 = vmatpush1.msra.mxu0 0.0
        %6761 = vmatprep.subr.mxu0 0.0
        %6762 = vmatpush1.msra.mxu0 0.0
        %6763 = vmatprep.subr.mxu0 0.0
        %6764 = vmatpush1.msra.mxu0 0.0
        %6765 = vmatprep.subr.mxu0 0.0
        %6766 = vmatpush1.msra.mxu0 0.0
        %6767 = vmatprep.subr.mxu0 0.0
        %6768 = vmatpush1.msra.mxu0 0.0
        %6769 = vmatprep.subr.mxu0 0.0
        %6770 = vmatpush1.msra.mxu0 0.0
        %6771 = vmatprep.subr.mxu0 0.0
        %6772 = vmatpush1.msra.mxu0 0.0
        %6773 = vmatprep.subr.mxu0 0.0
        %6774 = vmatpush1.msra.mxu0 0.0
        %6775 = vmatprep.subr.mxu0 0.0
        %6776 = vmatpush1.msra.mxu0 0.0
        %6777 = vmatprep.subr.mxu0 0.0
        %6778 = vmatpush1.msra.mxu0 0.0
        %6779 = vmatprep.subr.mxu0 0.0
        %6780 = vmatpush1.msra.mxu0 0.0
        %6781 = vmatprep.subr.mxu0 0.0
        %6782 = vmatpush1.msra.mxu0 0.0
        %6783 = vmatprep.subr.mxu0 0.0
        %6784 = vmatpush1.msra.mxu0 0.0
        %6785 = vmatprep.subr.mxu0 0.0
        %6786 = vmatpush1.msra.mxu0 0.0
        %6787 = vmatprep.subr.mxu0 0.0
        %6788 = vmatpush1.msra.mxu0 0.0
        %6789 = vmatprep.subr.mxu0 0.0
        %6790 = vmatpush1.msra.mxu0 0.0
        %6791 = vmatprep.subr.mxu0 0.0
        %6792 = vmatpush1.msra.mxu0 0.0
        %6793 = vmatprep.subr.mxu0 0.0
        %6794 = vmatpush1.msra.mxu0 0.0
        %6795 = vmatprep.subr.mxu0 0.0
        %6796 = vmatpush1.msra.mxu0 0.0
        %6797 = vmatprep.subr.mxu0 0.0
        %6798 = vmatpush1.msra.mxu0 0.0
        %6799 = vmatprep.subr.mxu0 0.0
        %6800 = vmatpush1.msra.mxu0 0.0
        %6801 = vmatprep.subr.mxu0 0.0
        %6802 = vmatpush1.msra.mxu0 0.0
        %6803 = vmatprep.mubr.f32.mxu0 0.0
        %6804 = vmatmul.mubr.f32.gmra.mrb[0].mxu0 %v6657
        %v6805 = vpop.f32.mrb[0].mxu0
        %v6806 = vadd.f32 %v6649, %v6805
        %v6807 = vpop.f32.mrb[0].mxu0
        %v6808 = vadd.f32 %v6649, %v6807
        %6809 = vmatprep.mubr.f32.mxu0 0.0
        %6810 = vmatmul.mubr.f32.gmra.mrb[0].mxu0 %v6660
        %v6811 = vpop.f32.mrb[0].mxu0
        %v6812 = vadd.f32 %v6654, %v6811
        %v6813 = vpop.f32.mrb[0].mxu0
        %v6814 = vadd.f32 %v6654, %v6813
        %6815 = vdwg.mxu0
        %6816 = vmatprep.subr.mxu0 %v288
        %6817 = vmatpush1.msra.mxu0 %v287
        %6818 = vmatprep.subr.mxu0 %v4906
        %6819 = vmatpush1.msra.mxu0 %v4905
        %6820 = vmatprep.subr.mxu0 %v6523
        %6821 = vmatpush1.msra.mxu0 %v6522
        %6822 = vmatprep.subr.mxu0 %v296
        %6823 = vmatpush1.msra.mxu0 %v295
        %6824 = vmatprep.subr.mxu0 %v383
        %6825 = vmatpush1.msra.mxu0 %v382
        %6826 = vmatprep.subr.mxu0 %v6531
        %6827 = vmatpush1.msra.mxu0 %v6530
        %6828 = vmatprep.subr.mxu0 %v304
        %6829 = vmatpush1.msra.mxu0 %v303
        %6830 = vmatprep.subr.mxu0 %v391
        %6831 = vmatpush1.msra.mxu0 %v390
        %6832 = vmatprep.subr.mxu0 %v6571
        %6833 = vmatpush1.msra.mxu0 %v6570
        %6834 = vmatprep.subr.mxu0 0.0
        %6835 = vmatpush1.msra.mxu0 0.0
        %6836 = vmatprep.subr.mxu0 0.0
        %6837 = vmatpush1.msra.mxu0 0.0
        %6838 = vmatprep.subr.mxu0 0.0
        %6839 = vmatpush1.msra.mxu0 0.0
        %6840 = vmatprep.subr.mxu0 0.0
        %6841 = vmatpush1.msra.mxu0 0.0
        %6842 = vmatprep.subr.mxu0 0.0
        %6843 = vmatpush1.msra.mxu0 0.0
        %6844 = vmatprep.subr.mxu0 0.0
        %6845 = vmatpush1.msra.mxu0 0.0
        %6846 = vmatprep.subr.mxu0 0.0
        %6847 = vmatpush1.msra.mxu0 0.0
        %6848 = vmatprep.subr.mxu0 0.0
        %6849 = vmatpush1.msra.mxu0 0.0
        %6850 = vmatprep.subr.mxu0 0.0
        %6851 = vmatpush1.msra.mxu0 0.0
        %6852 = vmatprep.subr.mxu0 0.0
        %6853 = vmatpush1.msra.mxu0 0.0
        %6854 = vmatprep.subr.mxu0 0.0
        %6855 = vmatpush1.msra.mxu0 0.0
        %6856 = vmatprep.subr.mxu0 0.0
        %6857 = vmatpush1.msra.mxu0 0.0
        %6858 = vmatprep.subr.mxu0 0.0
        %6859 = vmatpush1.msra.mxu0 0.0
        %6860 = vmatprep.subr.mxu0 0.0
        %6861 = vmatpush1.msra.mxu0 0.0
        %6862 = vmatprep.subr.mxu0 0.0
        %6863 = vmatpush1.msra.mxu0 0.0
        %6864 = vmatprep.subr.mxu0 0.0
        %6865 = vmatpush1.msra.mxu0 0.0
        %6866 = vmatprep.subr.mxu0 0.0
        %6867 = vmatpush1.msra.mxu0 0.0
        %6868 = vmatprep.subr.mxu0 0.0
        %6869 = vmatpush1.msra.mxu0 0.0
        %6870 = vmatprep.subr.mxu0 0.0
        %6871 = vmatpush1.msra.mxu0 0.0
        %6872 = vmatprep.subr.mxu0 0.0
        %6873 = vmatpush1.msra.mxu0 0.0
        %6874 = vmatprep.subr.mxu0 0.0
        %6875 = vmatpush1.msra.mxu0 0.0
        %6876 = vmatprep.subr.mxu0 0.0
        %6877 = vmatpush1.msra.mxu0 0.0
        %6878 = vmatprep.subr.mxu0 0.0
        %6879 = vmatpush1.msra.mxu0 0.0
        %6880 = vmatprep.mubr.f32.mxu0 0.0
        %6881 = vmatmul.mubr.f32.gmra.mrb[0].mxu0 %v6657
        %v6882 = vpop.f32.mrb[0].mxu0
        %v6883 = vadd.f32 %v6649, %v6882
        %v6884 = vpop.f32.mrb[0].mxu0
        %v6885 = vadd.f32 %v6649, %v6884
        %6886 = vmatprep.mubr.f32.mxu0 0.0
        %6887 = vmatmul.mubr.f32.gmra.mrb[0].mxu0 %v6660
        %v6888 = vpop.f32.mrb[0].mxu0
        %v6889 = vadd.f32 %v6654, %v6888
        %v6890 = vpop.f32.mrb[0].mxu0
        %v6891 = vadd.f32 %v6654, %v6890
        %6892 = vdwg.mxu0
        %6893 = vmatprep.subr.mxu0 %v290
        %6894 = vmatpush1.msra.mxu0 %v289
        %6895 = vmatprep.subr.mxu0 %v4908
        %6896 = vmatpush1.msra.mxu0 %v4907
        %6897 = vmatprep.subr.mxu0 %v6525
        %6898 = vmatpush1.msra.mxu0 %v6524
        %6899 = vmatprep.subr.mxu0 %v298
        %6900 = vmatpush1.msra.mxu0 %v297
        %6901 = vmatprep.subr.mxu0 %v385
        %6902 = vmatpush1.msra.mxu0 %v384
        %6903 = vmatprep.subr.mxu0 %v6565
        %6904 = vmatpush1.msra.mxu0 %v6532
        %6905 = vmatprep.subr.mxu0 %v306
        %6906 = vmatpush1.msra.mxu0 %v305
        %6907 = vmatprep.subr.mxu0 %v4925
        %6908 = vmatpush1.msra.mxu0 %v392
        %6909 = vmatprep.subr.mxu0 %v6623
        %6910 = vmatpush1.msra.mxu0 %v6572
        %6911 = vmatprep.subr.mxu0 0.0
        %6912 = vmatpush1.msra.mxu0 0.0
        %6913 = vmatprep.subr.mxu0 0.0
        %6914 = vmatpush1.msra.mxu0 0.0
        %6915 = vmatprep.subr.mxu0 0.0
        %6916 = vmatpush1.msra.mxu0 0.0
        %6917 = vmatprep.subr.mxu0 0.0
        %6918 = vmatpush1.msra.mxu0 0.0
        %6919 = vmatprep.subr.mxu0 0.0
        %6920 = vmatpush1.msra.mxu0 0.0
        %6921 = vmatprep.subr.mxu0 0.0
        %6922 = vmatpush1.msra.mxu0 0.0
        %6923 = vmatprep.subr.mxu0 0.0
        %6924 = vmatpush1.msra.mxu0 0.0
        %6925 = vmatprep.subr.mxu0 0.0
        %6926 = vmatpush1.msra.mxu0 0.0
        %6927 = vmatprep.subr.mxu0 0.0
        %6928 = vmatpush1.msra.mxu0 0.0
        %6929 = vmatprep.subr.mxu0 0.0
        %6930 = vmatpush1.msra.mxu0 0.0
        %6931 = vmatprep.subr.mxu0 0.0
        %6932 = vmatpush1.msra.mxu0 0.0
        %6933 = vmatprep.subr.mxu0 0.0
        %6934 = vmatpush1.msra.mxu0 0.0
        %6935 = vmatprep.subr.mxu0 0.0
        %6936 = vmatpush1.msra.mxu0 0.0
        %6937 = vmatprep.subr.mxu0 0.0
        %6938 = vmatpush1.msra.mxu0 0.0
        %6939 = vmatprep.subr.mxu0 0.0
        %6940 = vmatpush1.msra.mxu0 0.0
        %6941 = vmatprep.subr.mxu0 0.0
        %6942 = vmatpush1.msra.mxu0 0.0
        %6943 = vmatprep.subr.mxu0 0.0
        %6944 = vmatpush1.msra.mxu0 0.0
        %6945 = vmatprep.subr.mxu0 0.0
        %6946 = vmatpush1.msra.mxu0 0.0
        %6947 = vmatprep.subr.mxu0 0.0
        %6948 = vmatpush1.msra.mxu0 0.0
        %6949 = vmatprep.subr.mxu0 0.0
        %6950 = vmatpush1.msra.mxu0 0.0
        %6951 = vmatprep.subr.mxu0 0.0
        %6952 = vmatpush1.msra.mxu0 0.0
        %6953 = vmatprep.subr.mxu0 0.0
        %6954 = vmatpush1.msra.mxu0 0.0
        %6955 = vmatprep.subr.mxu0 0.0
        %6956 = vmatpush1.msra.mxu0 0.0
        %6957 = vmatprep.mubr.f32.mxu0 0.0
        %6958 = vmatmul.mubr.f32.gmra.mrb[0].mxu0 %v6657
        %v6959 = vpop.f32.mrb[0].mxu0
        %v6960 = vadd.f32 %v6649, %v6959
        %v6961 = vpop.f32.mrb[0].mxu0
        %v6962 = vadd.f32 %v6649, %v6961
        %6963 = vmatprep.mubr.f32.mxu0 0.0
        %6964 = vmatmul.mubr.f32.gmra.mrb[0].mxu0 %v6660
        %v6965 = vpop.f32.mrb[0].mxu0
        %v6966 = vadd.f32 %v6654, %v6965
        %v6967 = vpop.f32.mrb[0].mxu0
        %v6968 = vadd.f32 %v6654, %v6967
        %6969 = vdwg.mxu0
        %6970 = vmatprep.subr.mxu0 %v292
        %6971 = vmatpush1.msra.mxu0 %v291
        %6972 = vmatprep.subr.mxu0 %v379
        %6973 = vmatpush1.msra.mxu0 %v378
        %6974 = vmatprep.subr.mxu0 %v6527
        %6975 = vmatpush1.msra.mxu0 %v6526
        %6976 = vmatprep.subr.mxu0 %v300
        %6977 = vmatpush1.msra.mxu0 %v299
        %6978 = vmatprep.subr.mxu0 %v387
        %6979 = vmatpush1.msra.mxu0 %v386
        %6980 = vmatprep.subr.mxu0 %v6567
        %6981 = vmatpush1.msra.mxu0 %v6566
        %6982 = vmatprep.subr.mxu0 %v308
        %6983 = vmatpush1.msra.mxu0 %v307
        %6984 = vmatprep.subr.mxu0 %v4927
        %6985 = vmatpush1.msra.mxu0 %v4926
        %6986 = vmatprep.subr.mxu0 %v6625
        %6987 = vmatpush1.msra.mxu0 %v6624
        %6988 = vmatprep.subr.mxu0 0.0
        %6989 = vmatpush1.msra.mxu0 0.0
        %6990 = vmatprep.subr.mxu0 0.0
        %6991 = vmatpush1.msra.mxu0 0.0
        %6992 = vmatprep.subr.mxu0 0.0
        %6993 = vmatpush1.msra.mxu0 0.0
        %6994 = vmatprep.subr.mxu0 0.0
        %6995 = vmatpush1.msra.mxu0 0.0
        %6996 = vmatprep.subr.mxu0 0.0
        %6997 = vmatpush1.msra.mxu0 0.0
        %6998 = vmatprep.subr.mxu0 0.0
        %6999 = vmatpush1.msra.mxu0 0.0
        %7000 = vmatprep.subr.mxu0 0.0
        %7001 = vmatpush1.msra.mxu0 0.0
        %7002 = vmatprep.subr.mxu0 0.0
        %7003 = vmatpush1.msra.mxu0 0.0
        %7004 = vmatprep.subr.mxu0 0.0
        %7005 = vmatpush1.msra.mxu0 0.0
        %7006 = vmatprep.subr.mxu0 0.0
        %7007 = vmatpush1.msra.mxu0 0.0
        %7008 = vmatprep.subr.mxu0 0.0
        %7009 = vmatpush1.msra.mxu0 0.0
        %7010 = vmatprep.subr.mxu0 0.0
        %7011 = vmatpush1.msra.mxu0 0.0
        %7012 = vmatprep.subr.mxu0 0.0
        %7013 = vmatpush1.msra.mxu0 0.0
        %7014 = vmatprep.subr.mxu0 0.0
        %7015 = vmatpush1.msra.mxu0 0.0
        %7016 = vmatprep.subr.mxu0 0.0
        %7017 = vmatpush1.msra.mxu0 0.0
        %7018 = vmatprep.subr.mxu0 0.0
        %7019 = vmatpush1.msra.mxu0 0.0
        %7020 = vmatprep.subr.mxu0 0.0
        %7021 = vmatpush1.msra.mxu0 0.0
        %7022 = vmatprep.subr.mxu0 0.0
        %7023 = vmatpush1.msra.mxu0 0.0
        %7024 = vmatprep.subr.mxu0 0.0
        %7025 = vmatpush1.msra.mxu0 0.0
        %7026 = vmatprep.subr.mxu0 0.0
        %7027 = vmatpush1.msra.mxu0 0.0
        %7028 = vmatprep.subr.mxu0 0.0
        %7029 = vmatpush1.msra.mxu0 0.0
        %7030 = vmatprep.subr.mxu0 0.0
        %7031 = vmatpush1.msra.mxu0 0.0
        %7032 = vmatprep.subr.mxu0 0.0
        %7033 = vmatpush1.msra.mxu0 0.0
        %7034 = vmatprep.mubr.f32.mxu0 0.0
        %7035 = vmatmul.mubr.f32.gmra.mrb[0].mxu0 %v6657
        %v7036 = vpop.f32.mrb[0].mxu0
        %v7037 = vadd.f32 %v6649, %v7036
        %v7038 = vpop.f32.mrb[0].mxu0
        %v7039 = vadd.f32 %v6649, %v7038
        %7040 = vmatprep.mubr.f32.mxu0 0.0
        %7041 = vmatmul.mubr.f32.gmra.mrb[0].mxu0 %v6660
        %v7042 = vpop.f32.mrb[0].mxu0
        %v7043 = vadd.f32 %v6654, %v7042
        %v7044 = vpop.f32.mrb[0].mxu0
        %v7045 = vadd.f32 %v6654, %v7044
        %7046 = vdwg.mxu0
        %7047 = vmatprep.subr.mxu0 %v294
        %7048 = vmatpush1.msra.mxu0 %v293
        %7049 = vmatprep.subr.mxu0 %v381
        %7050 = vmatpush1.msra.mxu0 %v380
        %7051 = vmatprep.subr.mxu0 %v6529
        %7052 = vmatpush1.msra.mxu0 %v6528
        %7053 = vmatprep.subr.mxu0 %v302
        %7054 = vmatpush1.msra.mxu0 %v301
        %7055 = vmatprep.subr.mxu0 %v389
        %7056 = vmatpush1.msra.mxu0 %v388
        %7057 = vmatprep.subr.mxu0 %v6569
        %7058 = vmatpush1.msra.mxu0 %v6568
        %7059 = vmatprep.subr.mxu0 %v310
        %7060 = vmatpush1.msra.mxu0 %v309
        %7061 = vmatprep.subr.mxu0 %v6594
        %7062 = vmatpush1.msra.mxu0 %v4928
        %7063 = vmatprep.subr.mxu0 %v6627
        %7064 = vmatpush1.msra.mxu0 %v6626
        %7065 = vmatprep.subr.mxu0 0.0
        %7066 = vmatpush1.msra.mxu0 0.0
        %7067 = vmatprep.subr.mxu0 0.0
        %7068 = vmatpush1.msra.mxu0 0.0
        %7069 = vmatprep.subr.mxu0 0.0
        %7070 = vmatpush1.msra.mxu0 0.0
        %7071 = vmatprep.subr.mxu0 0.0
        %7072 = vmatpush1.msra.mxu0 0.0
        %7073 = vmatprep.subr.mxu0 0.0
        %7074 = vmatpush1.msra.mxu0 0.0
        %7075 = vmatprep.subr.mxu0 0.0
        %7076 = vmatpush1.msra.mxu0 0.0
        %7077 = vmatprep.subr.mxu0 0.0
        %7078 = vmatpush1.msra.mxu0 0.0
        %7079 = vmatprep.subr.mxu0 0.0
        %7080 = vmatpush1.msra.mxu0 0.0
        %7081 = vmatprep.subr.mxu0 0.0
        %7082 = vmatpush1.msra.mxu0 0.0
        %7083 = vmatprep.subr.mxu0 0.0
        %7084 = vmatpush1.msra.mxu0 0.0
        %7085 = vmatprep.subr.mxu0 0.0
        %7086 = vmatpush1.msra.mxu0 0.0
        %7087 = vmatprep.subr.mxu0 0.0
        %7088 = vmatpush1.msra.mxu0 0.0
        %7089 = vmatprep.subr.mxu0 0.0
        %7090 = vmatpush1.msra.mxu0 0.0
        %7091 = vmatprep.subr.mxu0 0.0
        %7092 = vmatpush1.msra.mxu0 0.0
        %7093 = vmatprep.subr.mxu0 0.0
        %7094 = vmatpush1.msra.mxu0 0.0
        %7095 = vmatprep.subr.mxu0 0.0
        %7096 = vmatpush1.msra.mxu0 0.0
        %7097 = vmatprep.subr.mxu0 0.0
        %7098 = vmatpush1.msra.mxu0 0.0
        %7099 = vmatprep.subr.mxu0 0.0
        %7100 = vmatpush1.msra.mxu0 0.0
        %7101 = vmatprep.subr.mxu0 0.0
        %7102 = vmatpush1.msra.mxu0 0.0
        %7103 = vmatprep.subr.mxu0 0.0
        %7104 = vmatpush1.msra.mxu0 0.0
        %7105 = vmatprep.subr.mxu0 0.0
        %7106 = vmatpush1.msra.mxu0 0.0
        %7107 = vmatprep.subr.mxu0 0.0
        %7108 = vmatpush1.msra.mxu0 0.0
        %7109 = vmatprep.subr.mxu0 0.0
        %7110 = vmatpush1.msra.mxu0 0.0
        %7111 = vmatprep.mubr.f32.mxu0 0.0
        %7112 = vmatmul.mubr.f32.gmra.mrb[0].mxu0 %v6657
        %v7113 = vpop.f32.mrb[0].mxu0
        %v7114 = vadd.f32 %v6649, %v7113
        %v7115 = vpop.f32.mrb[0].mxu0
        %v7116 = vadd.f32 %v6649, %v7115
        %7117 = vmatprep.mubr.f32.mxu0 0.0
        %7118 = vmatmul.mubr.f32.gmra.mrb[0].mxu0 %v6660
        %v7119 = vpop.f32.mrb[0].mxu0
        %v7120 = vadd.f32 %v6654, %v7119
        %v7121 = vpop.f32.mrb[0].mxu0
        %v7122 = vadd.f32 %v6654, %v7121
        %7123 = vdwg.mxu0
        %7124 = vmatprep.subr.mxu0 %v296
        %7125 = vmatpush1.msra.mxu0 %v295
        %7126 = vmatprep.subr.mxu0 %v383
        %7127 = vmatpush1.msra.mxu0 %v382
        %7128 = vmatprep.subr.mxu0 %v6531
        %7129 = vmatpush1.msra.mxu0 %v6530
        %7130 = vmatprep.subr.mxu0 %v304
        %7131 = vmatpush1.msra.mxu0 %v303
        %7132 = vmatprep.subr.mxu0 %v391
        %7133 = vmatpush1.msra.mxu0 %v390
        %7134 = vmatprep.subr.mxu0 %v6571
        %7135 = vmatpush1.msra.mxu0 %v6570
        %7136 = vmatprep.subr.mxu0 %v312
        %7137 = vmatpush1.msra.mxu0 %v311
        %7138 = vmatprep.subr.mxu0 %v6596
        %7139 = vmatpush1.msra.mxu0 %v6595
        %7140 = vmatprep.subr.mxu0 %v6629
        %7141 = vmatpush1.msra.mxu0 %v6628
        %7142 = vmatprep.subr.mxu0 0.0
        %7143 = vmatpush1.msra.mxu0 0.0
        %7144 = vmatprep.subr.mxu0 0.0
        %7145 = vmatpush1.msra.mxu0 0.0
        %7146 = vmatprep.subr.mxu0 0.0
        %7147 = vmatpush1.msra.mxu0 0.0
        %7148 = vmatprep.subr.mxu0 0.0
        %7149 = vmatpush1.msra.mxu0 0.0
        %7150 = vmatprep.subr.mxu0 0.0
        %7151 = vmatpush1.msra.mxu0 0.0
        %7152 = vmatprep.subr.mxu0 0.0
        %7153 = vmatpush1.msra.mxu0 0.0
        %7154 = vmatprep.subr.mxu0 0.0
        %7155 = vmatpush1.msra.mxu0 0.0
        %7156 = vmatprep.subr.mxu0 0.0
        %7157 = vmatpush1.msra.mxu0 0.0
        %7158 = vmatprep.subr.mxu0 0.0
        %7159 = vmatpush1.msra.mxu0 0.0
        %7160 = vmatprep.subr.mxu0 0.0
        %7161 = vmatpush1.msra.mxu0 0.0
        %7162 = vmatprep.subr.mxu0 0.0
        %7163 = vmatpush1.msra.mxu0 0.0
        %7164 = vmatprep.subr.mxu0 0.0
        %7165 = vmatpush1.msra.mxu0 0.0
        %7166 = vmatprep.subr.mxu0 0.0
        %7167 = vmatpush1.msra.mxu0 0.0
        %7168 = vmatprep.subr.mxu0 0.0
        %7169 = vmatpush1.msra.mxu0 0.0
        %7170 = vmatprep.subr.mxu0 0.0
        %7171 = vmatpush1.msra.mxu0 0.0
        %7172 = vmatprep.subr.mxu0 0.0
        %7173 = vmatpush1.msra.mxu0 0.0
        %7174 = vmatprep.subr.mxu0 0.0
        %7175 = vmatpush1.msra.mxu0 0.0
        %7176 = vmatprep.subr.mxu0 0.0
        %7177 = vmatpush1.msra.mxu0 0.0
        %7178 = vmatprep.subr.mxu0 0.0
        %7179 = vmatpush1.msra.mxu0 0.0
        %7180 = vmatprep.subr.mxu0 0.0
        %7181 = vmatpush1.msra.mxu0 0.0
        %7182 = vmatprep.subr.mxu0 0.0
        %7183 = vmatpush1.msra.mxu0 0.0
        %7184 = vmatprep.subr.mxu0 0.0
        %7185 = vmatpush1.msra.mxu0 0.0
        %7186 = vmatprep.subr.mxu0 0.0
        %7187 = vmatpush1.msra.mxu0 0.0
        %7188 = vmatprep.mubr.f32.mxu0 0.0
        %7189 = vmatmul.mubr.f32.gmra.mrb[0].mxu0 %v6657
        %v7190 = vpop.f32.mrb[0].mxu0
        %v7191 = vadd.f32 %v6649, %v7190
        %v7192 = vpop.f32.mrb[0].mxu0
        %v7193 = vadd.f32 %v6649, %v7192
        %7194 = vmatprep.mubr.f32.mxu0 0.0
        %7195 = vmatmul.mubr.f32.gmra.mrb[0].mxu0 %v6660
        %v7196 = vpop.f32.mrb[0].mxu0
        %v7197 = vadd.f32 %v6654, %v7196
        %v7198 = vpop.f32.mrb[0].mxu0
        %v7199 = vadd.f32 %v6654, %v7198
        %7200 = vdwg.mxu0
        %7201 = vmatprep.subr.mxu0 %v298
        %7202 = vmatpush1.msra.mxu0 %v297
        %7203 = vmatprep.subr.mxu0 %v360
        %7204 = vmatpush1.msra.mxu0 %v384
        %7205 = vmatprep.subr.mxu0 %v6516
        %7206 = vmatpush1.msra.mxu0 %v6532
        %7207 = vmatprep.subr.mxu0 %v306
        %7208 = vmatpush1.msra.mxu0 %v305
        %7209 = vmatprep.subr.mxu0 %v376
        %7210 = vmatpush1.msra.mxu0 %v392
        %7211 = vmatprep.subr.mxu0 %v6564
        %7212 = vmatpush1.msra.mxu0 %v6572
        %7213 = vmatprep.subr.mxu0 %v314
        %7214 = vmatpush1.msra.mxu0 %v313
        %7215 = vmatprep.subr.mxu0 %v6593
        %7216 = vmatpush1.msra.mxu0 %v6597
        %7217 = vmatprep.subr.mxu0 %v6622
        %7218 = vmatpush1.msra.mxu0 %v6630
        %7219 = vmatprep.subr.mxu0 0.0
        %7220 = vmatpush1.msra.mxu0 0.0
        %7221 = vmatprep.subr.mxu0 0.0
        %7222 = vmatpush1.msra.mxu0 0.0
        %7223 = vmatprep.subr.mxu0 0.0
        %7224 = vmatpush1.msra.mxu0 0.0
        %7225 = vmatprep.subr.mxu0 0.0
        %7226 = vmatpush1.msra.mxu0 0.0
        %7227 = vmatprep.subr.mxu0 0.0
        %7228 = vmatpush1.msra.mxu0 0.0
        %7229 = vmatprep.subr.mxu0 0.0
        %7230 = vmatpush1.msra.mxu0 0.0
        %7231 = vmatprep.subr.mxu0 0.0
        %7232 = vmatpush1.msra.mxu0 0.0
        %7233 = vmatprep.subr.mxu0 0.0
        %7234 = vmatpush1.msra.mxu0 0.0
        %7235 = vmatprep.subr.mxu0 0.0
        %7236 = vmatpush1.msra.mxu0 0.0
        %7237 = vmatprep.subr.mxu0 0.0
        %7238 = vmatpush1.msra.mxu0 0.0
        %7239 = vmatprep.subr.mxu0 0.0
        %7240 = vmatpush1.msra.mxu0 0.0
        %7241 = vmatprep.subr.mxu0 0.0
        %7242 = vmatpush1.msra.mxu0 0.0
        %7243 = vmatprep.subr.mxu0 0.0
        %7244 = vmatpush1.msra.mxu0 0.0
        %7245 = vmatprep.subr.mxu0 0.0
        %7246 = vmatpush1.msra.mxu0 0.0
        %7247 = vmatprep.subr.mxu0 0.0
        %7248 = vmatpush1.msra.mxu0 0.0
        %7249 = vmatprep.subr.mxu0 0.0
        %7250 = vmatpush1.msra.mxu0 0.0
        %7251 = vmatprep.subr.mxu0 0.0
        %7252 = vmatpush1.msra.mxu0 0.0
        %7253 = vmatprep.subr.mxu0 0.0
        %7254 = vmatpush1.msra.mxu0 0.0
        %7255 = vmatprep.subr.mxu0 0.0
        %7256 = vmatpush1.msra.mxu0 0.0
        %7257 = vmatprep.subr.mxu0 0.0
        %7258 = vmatpush1.msra.mxu0 0.0
        %7259 = vmatprep.subr.mxu0 0.0
        %7260 = vmatpush1.msra.mxu0 0.0
        %7261 = vmatprep.subr.mxu0 0.0
        %7262 = vmatpush1.msra.mxu0 0.0
        %7263 = vmatprep.subr.mxu0 0.0
        %7264 = vmatpush1.msra.mxu0 0.0
        %7265 = vmatprep.mubr.f32.mxu0 0.0
        %7266 = vmatmul.mubr.f32.gmra.mrb[0].mxu0 %v6657
        %v7267 = vpop.f32.mrb[0].mxu0
        %v7268 = vadd.f32 %v6649, %v7267
        %v7269 = vpop.f32.mrb[0].mxu0
        %v7270 = vadd.f32 %v6649, %v7269
        %7271 = vmatprep.mubr.f32.mxu0 0.0
        %7272 = vmatmul.mubr.f32.gmra.mrb[0].mxu0 %v6660
        %v7273 = vpop.f32.mrb[0].mxu0
        %v7274 = vadd.f32 %v6654, %v7273
        %v7275 = vpop.f32.mrb[0].mxu0
        %v7276 = vadd.f32 %v6654, %v7275
        %7277 = vdwg.mxu0
        %s7278 = scalar_lea.vmem %s3, 64
        %v7279 = vld [vmem:[%s7278] sm:$0xff]
        %v7280 = vld [vmem:[%s7278 + $0x8] sm:$0xff]
        %v7282 = vsel %vm2021, %v7279, 0
        %v7285 = vsel %vm2021, %v7280, 0
        %7287 = vmatprep.subr.mxu0 %v6731
        %7288 = vmatpush1.msra.mxu0 %v6729
        %7289 = vmatprep.subr.mxu0 %v6737
        %7290 = vmatpush1.msra.mxu0 %v6735
        %7291 = vmatprep.subr.mxu0 0.0
        %7292 = vmatpush1.msra.mxu0 0.0
        %7293 = vmatprep.subr.mxu0 0.0
        %7294 = vmatpush1.msra.mxu0 0.0
        %7295 = vmatprep.subr.mxu0 0.0
        %7296 = vmatpush1.msra.mxu0 0.0
        %7297 = vmatprep.subr.mxu0 0.0
        %7298 = vmatpush1.msra.mxu0 0.0
        %7299 = vmatprep.subr.mxu0 0.0
        %7300 = vmatpush1.msra.mxu0 0.0
        %7301 = vmatprep.subr.mxu0 0.0
        %7302 = vmatpush1.msra.mxu0 0.0
        %7303 = vmatprep.subr.mxu0 0.0
        %7304 = vmatpush1.msra.mxu0 0.0
        %7305 = vmatprep.subr.mxu0 0.0
        %7306 = vmatpush1.msra.mxu0 0.0
        %7307 = vmatprep.subr.mxu0 0.0
        %7308 = vmatpush1.msra.mxu0 0.0
        %7309 = vmatprep.subr.mxu0 0.0
        %7310 = vmatpush1.msra.mxu0 0.0
        %7311 = vmatprep.subr.mxu0 0.0
        %7312 = vmatpush1.msra.mxu0 0.0
        %7313 = vmatprep.subr.mxu0 0.0
        %7314 = vmatpush1.msra.mxu0 0.0
        %7315 = vmatprep.subr.mxu0 0.0
        %7316 = vmatpush1.msra.mxu0 0.0
        %7317 = vmatprep.subr.mxu0 0.0
        %7318 = vmatpush1.msra.mxu0 0.0
        %7319 = vmatprep.subr.mxu0 0.0
        %7320 = vmatpush1.msra.mxu0 0.0
        %7321 = vmatprep.subr.mxu0 0.0
        %7322 = vmatpush1.msra.mxu0 0.0
        %7323 = vmatprep.subr.mxu0 0.0
        %7324 = vmatpush1.msra.mxu0 0.0
        %7325 = vmatprep.subr.mxu0 0.0
        %7326 = vmatpush1.msra.mxu0 0.0
        %7327 = vmatprep.subr.mxu0 0.0
        %7328 = vmatpush1.msra.mxu0 0.0
        %7329 = vmatprep.subr.mxu0 0.0
        %7330 = vmatpush1.msra.mxu0 0.0
        %7331 = vmatprep.subr.mxu0 0.0
        %7332 = vmatpush1.msra.mxu0 0.0
        %7333 = vmatprep.subr.mxu0 0.0
        %7334 = vmatpush1.msra.mxu0 0.0
        %7335 = vmatprep.subr.mxu0 0.0
        %7336 = vmatpush1.msra.mxu0 0.0
        %7337 = vmatprep.subr.mxu0 0.0
        %7338 = vmatpush1.msra.mxu0 0.0
        %7339 = vmatprep.subr.mxu0 0.0
        %7340 = vmatpush1.msra.mxu0 0.0
        %7341 = vmatprep.subr.mxu0 0.0
        %7342 = vmatpush1.msra.mxu0 0.0
        %7343 = vmatprep.subr.mxu0 0.0
        %7344 = vmatpush1.msra.mxu0 0.0
        %7345 = vmatprep.subr.mxu0 0.0
        %7346 = vmatpush1.msra.mxu0 0.0
        %7347 = vmatprep.subr.mxu0 0.0
        %7348 = vmatpush1.msra.mxu0 0.0
        %7349 = vmatprep.subr.mxu0 0.0
        %7350 = vmatpush1.msra.mxu0 0.0
        %7351 = vmatprep.mubr.f32.mxu0 0.0
        %7352 = vmatmul.mubr.f32.gmra.mrb[0].mxu0 %v7282
        %v7353 = vpop.f32.mrb[0].mxu0
        %v7354 = vadd.f32 0.0, %v7353
        %v7355 = vpop.f32.mrb[0].mxu0
        %v7356 = vadd.f32 0.0, %v7355
        %7357 = vmatprep.mubr.f32.mxu0 0.0
        %7358 = vmatmul.mubr.f32.gmra.mrb[0].mxu0 %v7285
        %v7359 = vpop.f32.mrb[0].mxu0
        %v7360 = vadd.f32 0.0, %v7359
        %v7361 = vpop.f32.mrb[0].mxu0
        %v7362 = vadd.f32 0.0, %v7361
        %7363 = vdwg.mxu0
        %7364 = vmatprep.subr.mxu0 %v6808
        %7365 = vmatpush1.msra.mxu0 %v6806
        %7366 = vmatprep.subr.mxu0 %v6814
        %7367 = vmatpush1.msra.mxu0 %v6812
        %7368 = vmatprep.subr.mxu0 0.0
        %7369 = vmatpush1.msra.mxu0 0.0
        %7370 = vmatprep.subr.mxu0 0.0
        %7371 = vmatpush1.msra.mxu0 0.0
        %7372 = vmatprep.subr.mxu0 0.0
        %7373 = vmatpush1.msra.mxu0 0.0
        %7374 = vmatprep.subr.mxu0 0.0
        %7375 = vmatpush1.msra.mxu0 0.0
        %7376 = vmatprep.subr.mxu0 0.0
        %7377 = vmatpush1.msra.mxu0 0.0
        %7378 = vmatprep.subr.mxu0 0.0
        %7379 = vmatpush1.msra.mxu0 0.0
        %7380 = vmatprep.subr.mxu0 0.0
        %7381 = vmatpush1.msra.mxu0 0.0
        %7382 = vmatprep.subr.mxu0 0.0
        %7383 = vmatpush1.msra.mxu0 0.0
        %7384 = vmatprep.subr.mxu0 0.0
        %7385 = vmatpush1.msra.mxu0 0.0
        %7386 = vmatprep.subr.mxu0 0.0
        %7387 = vmatpush1.msra.mxu0 0.0
        %7388 = vmatprep.subr.mxu0 0.0
        %7389 = vmatpush1.msra.mxu0 0.0
        %7390 = vmatprep.subr.mxu0 0.0
        %7391 = vmatpush1.msra.mxu0 0.0
        %7392 = vmatprep.subr.mxu0 0.0
        %7393 = vmatpush1.msra.mxu0 0.0
        %7394 = vmatprep.subr.mxu0 0.0
        %7395 = vmatpush1.msra.mxu0 0.0
        %7396 = vmatprep.subr.mxu0 0.0
        %7397 = vmatpush1.msra.mxu0 0.0
        %7398 = vmatprep.subr.mxu0 0.0
        %7399 = vmatpush1.msra.mxu0 0.0
        %7400 = vmatprep.subr.mxu0 0.0
        %7401 = vmatpush1.msra.mxu0 0.0
        %7402 = vmatprep.subr.mxu0 0.0
        %7403 = vmatpush1.msra.mxu0 0.0
        %7404 = vmatprep.subr.mxu0 0.0
        %7405 = vmatpush1.msra.mxu0 0.0
        %7406 = vmatprep.subr.mxu0 0.0
        %7407 = vmatpush1.msra.mxu0 0.0
        %7408 = vmatprep.subr.mxu0 0.0
        %7409 = vmatpush1.msra.mxu0 0.0
        %7410 = vmatprep.subr.mxu0 0.0
        %7411 = vmatpush1.msra.mxu0 0.0
        %7412 = vmatprep.subr.mxu0 0.0
        %7413 = vmatpush1.msra.mxu0 0.0
        %7414 = vmatprep.subr.mxu0 0.0
        %7415 = vmatpush1.msra.mxu0 0.0
        %7416 = vmatprep.subr.mxu0 0.0
        %7417 = vmatpush1.msra.mxu0 0.0
        %7418 = vmatprep.subr.mxu0 0.0
        %7419 = vmatpush1.msra.mxu0 0.0
        %7420 = vmatprep.subr.mxu0 0.0
        %7421 = vmatpush1.msra.mxu0 0.0
        %7422 = vmatprep.subr.mxu0 0.0
        %7423 = vmatpush1.msra.mxu0 0.0
        %7424 = vmatprep.subr.mxu0 0.0
        %7425 = vmatpush1.msra.mxu0 0.0
        %7426 = vmatprep.subr.mxu0 0.0
        %7427 = vmatpush1.msra.mxu0 0.0
        %7428 = vmatprep.mubr.f32.mxu0 0.0
        %7429 = vmatmul.mubr.f32.gmra.mrb[0].mxu0 %v7282
        %v7430 = vpop.f32.mrb[0].mxu0
        %v7431 = vadd.f32 0.0, %v7430
        %v7432 = vpop.f32.mrb[0].mxu0
        %v7433 = vadd.f32 0.0, %v7432
        %7434 = vmatprep.mubr.f32.mxu0 0.0
        %7435 = vmatmul.mubr.f32.gmra.mrb[0].mxu0 %v7285
        %v7436 = vpop.f32.mrb[0].mxu0
        %v7437 = vadd.f32 0.0, %v7436
        %v7438 = vpop.f32.mrb[0].mxu0
        %v7439 = vadd.f32 0.0, %v7438
        %7440 = vdwg.mxu0
        %7441 = vmatprep.subr.mxu0 %v6885
        %7442 = vmatpush1.msra.mxu0 %v6883
        %7443 = vmatprep.subr.mxu0 %v6891
        %7444 = vmatpush1.msra.mxu0 %v6889
        %7445 = vmatprep.subr.mxu0 0.0
        %7446 = vmatpush1.msra.mxu0 0.0
        %7447 = vmatprep.subr.mxu0 0.0
        %7448 = vmatpush1.msra.mxu0 0.0
        %7449 = vmatprep.subr.mxu0 0.0
        %7450 = vmatpush1.msra.mxu0 0.0
        %7451 = vmatprep.subr.mxu0 0.0
        %7452 = vmatpush1.msra.mxu0 0.0
        %7453 = vmatprep.subr.mxu0 0.0
        %7454 = vmatpush1.msra.mxu0 0.0
        %7455 = vmatprep.subr.mxu0 0.0
        %7456 = vmatpush1.msra.mxu0 0.0
        %7457 = vmatprep.subr.mxu0 0.0
        %7458 = vmatpush1.msra.mxu0 0.0
        %7459 = vmatprep.subr.mxu0 0.0
        %7460 = vmatpush1.msra.mxu0 0.0
        %7461 = vmatprep.subr.mxu0 0.0
        %7462 = vmatpush1.msra.mxu0 0.0
        %7463 = vmatprep.subr.mxu0 0.0
        %7464 = vmatpush1.msra.mxu0 0.0
        %7465 = vmatprep.subr.mxu0 0.0
        %7466 = vmatpush1.msra.mxu0 0.0
        %7467 = vmatprep.subr.mxu0 0.0
        %7468 = vmatpush1.msra.mxu0 0.0
        %7469 = vmatprep.subr.mxu0 0.0
        %7470 = vmatpush1.msra.mxu0 0.0
        %7471 = vmatprep.subr.mxu0 0.0
        %7472 = vmatpush1.msra.mxu0 0.0
        %7473 = vmatprep.subr.mxu0 0.0
        %7474 = vmatpush1.msra.mxu0 0.0
        %7475 = vmatprep.subr.mxu0 0.0
        %7476 = vmatpush1.msra.mxu0 0.0
        %7477 = vmatprep.subr.mxu0 0.0
        %7478 = vmatpush1.msra.mxu0 0.0
        %7479 = vmatprep.subr.mxu0 0.0
        %7480 = vmatpush1.msra.mxu0 0.0
        %7481 = vmatprep.subr.mxu0 0.0
        %7482 = vmatpush1.msra.mxu0 0.0
        %7483 = vmatprep.subr.mxu0 0.0
        %7484 = vmatpush1.msra.mxu0 0.0
        %7485 = vmatprep.subr.mxu0 0.0
        %7486 = vmatpush1.msra.mxu0 0.0
        %7487 = vmatprep.subr.mxu0 0.0
        %7488 = vmatpush1.msra.mxu0 0.0
        %7489 = vmatprep.subr.mxu0 0.0
        %7490 = vmatpush1.msra.mxu0 0.0
        %7491 = vmatprep.subr.mxu0 0.0
        %7492 = vmatpush1.msra.mxu0 0.0
        %7493 = vmatprep.subr.mxu0 0.0
        %7494 = vmatpush1.msra.mxu0 0.0
        %7495 = vmatprep.subr.mxu0 0.0
        %7496 = vmatpush1.msra.mxu0 0.0
        %7497 = vmatprep.subr.mxu0 0.0
        %7498 = vmatpush1.msra.mxu0 0.0
        %7499 = vmatprep.subr.mxu0 0.0
        %7500 = vmatpush1.msra.mxu0 0.0
        %7501 = vmatprep.subr.mxu0 0.0
        %7502 = vmatpush1.msra.mxu0 0.0
        %7503 = vmatprep.subr.mxu0 0.0
        %7504 = vmatpush1.msra.mxu0 0.0
        %7505 = vmatprep.mubr.f32.mxu0 0.0
        %7506 = vmatmul.mubr.f32.gmra.mrb[0].mxu0 %v7282
        %v7507 = vpop.f32.mrb[0].mxu0
        %v7508 = vadd.f32 0.0, %v7507
        %v7509 = vpop.f32.mrb[0].mxu0
        %v7510 = vadd.f32 0.0, %v7509
        %7511 = vmatprep.mubr.f32.mxu0 0.0
        %7512 = vmatmul.mubr.f32.gmra.mrb[0].mxu0 %v7285
        %v7513 = vpop.f32.mrb[0].mxu0
        %v7514 = vadd.f32 0.0, %v7513
        %v7515 = vpop.f32.mrb[0].mxu0
        %v7516 = vadd.f32 0.0, %v7515
        %7517 = vdwg.mxu0
        %7518 = vmatprep.subr.mxu0 %v6962
        %7519 = vmatpush1.msra.mxu0 %v6960
        %7520 = vmatprep.subr.mxu0 %v6968
        %7521 = vmatpush1.msra.mxu0 %v6966
        %7522 = vmatprep.subr.mxu0 0.0
        %7523 = vmatpush1.msra.mxu0 0.0
        %7524 = vmatprep.subr.mxu0 0.0
        %7525 = vmatpush1.msra.mxu0 0.0
        %7526 = vmatprep.subr.mxu0 0.0
        %7527 = vmatpush1.msra.mxu0 0.0
        %7528 = vmatprep.subr.mxu0 0.0
        %7529 = vmatpush1.msra.mxu0 0.0
        %7530 = vmatprep.subr.mxu0 0.0
        %7531 = vmatpush1.msra.mxu0 0.0
        %7532 = vmatprep.subr.mxu0 0.0
        %7533 = vmatpush1.msra.mxu0 0.0
        %7534 = vmatprep.subr.mxu0 0.0
        %7535 = vmatpush1.msra.mxu0 0.0
        %7536 = vmatprep.subr.mxu0 0.0
        %7537 = vmatpush1.msra.mxu0 0.0
        %7538 = vmatprep.subr.mxu0 0.0
        %7539 = vmatpush1.msra.mxu0 0.0
        %7540 = vmatprep.subr.mxu0 0.0
        %7541 = vmatpush1.msra.mxu0 0.0
        %7542 = vmatprep.subr.mxu0 0.0
        %7543 = vmatpush1.msra.mxu0 0.0
        %7544 = vmatprep.subr.mxu0 0.0
        %7545 = vmatpush1.msra.mxu0 0.0
        %7546 = vmatprep.subr.mxu0 0.0
        %7547 = vmatpush1.msra.mxu0 0.0
        %7548 = vmatprep.subr.mxu0 0.0
        %7549 = vmatpush1.msra.mxu0 0.0
        %7550 = vmatprep.subr.mxu0 0.0
        %7551 = vmatpush1.msra.mxu0 0.0
        %7552 = vmatprep.subr.mxu0 0.0
        %7553 = vmatpush1.msra.mxu0 0.0
        %7554 = vmatprep.subr.mxu0 0.0
        %7555 = vmatpush1.msra.mxu0 0.0
        %7556 = vmatprep.subr.mxu0 0.0
        %7557 = vmatpush1.msra.mxu0 0.0
        %7558 = vmatprep.subr.mxu0 0.0
        %7559 = vmatpush1.msra.mxu0 0.0
        %7560 = vmatprep.subr.mxu0 0.0
        %7561 = vmatpush1.msra.mxu0 0.0
        %7562 = vmatprep.subr.mxu0 0.0
        %7563 = vmatpush1.msra.mxu0 0.0
        %7564 = vmatprep.subr.mxu0 0.0
        %7565 = vmatpush1.msra.mxu0 0.0
        %7566 = vmatprep.subr.mxu0 0.0
        %7567 = vmatpush1.msra.mxu0 0.0
        %7568 = vmatprep.subr.mxu0 0.0
        %7569 = vmatpush1.msra.mxu0 0.0
        %7570 = vmatprep.subr.mxu0 0.0
        %7571 = vmatpush1.msra.mxu0 0.0
        %7572 = vmatprep.subr.mxu0 0.0
        %7573 = vmatpush1.msra.mxu0 0.0
        %7574 = vmatprep.subr.mxu0 0.0
        %7575 = vmatpush1.msra.mxu0 0.0
        %7576 = vmatprep.subr.mxu0 0.0
        %7577 = vmatpush1.msra.mxu0 0.0
        %7578 = vmatprep.subr.mxu0 0.0
        %7579 = vmatpush1.msra.mxu0 0.0
        %7580 = vmatprep.subr.mxu0 0.0
        %7581 = vmatpush1.msra.mxu0 0.0
        %7582 = vmatprep.mubr.f32.mxu0 0.0
        %7583 = vmatmul.mubr.f32.gmra.mrb[0].mxu0 %v7282
        %v7584 = vpop.f32.mrb[0].mxu0
        %v7585 = vadd.f32 0.0, %v7584
        %v7586 = vpop.f32.mrb[0].mxu0
        %v7587 = vadd.f32 0.0, %v7586
        %7588 = vmatprep.mubr.f32.mxu0 0.0
        %7589 = vmatmul.mubr.f32.gmra.mrb[0].mxu0 %v7285
        %v7590 = vpop.f32.mrb[0].mxu0
        %v7591 = vadd.f32 0.0, %v7590
        %v7592 = vpop.f32.mrb[0].mxu0
        %v7593 = vadd.f32 0.0, %v7592
        %7594 = vdwg.mxu0
        %7595 = vmatprep.subr.mxu0 %v7039
        %7596 = vmatpush1.msra.mxu0 %v7037
        %7597 = vmatprep.subr.mxu0 %v7045
        %7598 = vmatpush1.msra.mxu0 %v7043
        %7599 = vmatprep.subr.mxu0 0.0
        %7600 = vmatpush1.msra.mxu0 0.0
        %7601 = vmatprep.subr.mxu0 0.0
        %7602 = vmatpush1.msra.mxu0 0.0
        %7603 = vmatprep.subr.mxu0 0.0
        %7604 = vmatpush1.msra.mxu0 0.0
        %7605 = vmatprep.subr.mxu0 0.0
        %7606 = vmatpush1.msra.mxu0 0.0
        %7607 = vmatprep.subr.mxu0 0.0
        %7608 = vmatpush1.msra.mxu0 0.0
        %7609 = vmatprep.subr.mxu0 0.0
        %7610 = vmatpush1.msra.mxu0 0.0
        %7611 = vmatprep.subr.mxu0 0.0
        %7612 = vmatpush1.msra.mxu0 0.0
        %7613 = vmatprep.subr.mxu0 0.0
        %7614 = vmatpush1.msra.mxu0 0.0
        %7615 = vmatprep.subr.mxu0 0.0
        %7616 = vmatpush1.msra.mxu0 0.0
        %7617 = vmatprep.subr.mxu0 0.0
        %7618 = vmatpush1.msra.mxu0 0.0
        %7619 = vmatprep.subr.mxu0 0.0
        %7620 = vmatpush1.msra.mxu0 0.0
        %7621 = vmatprep.subr.mxu0 0.0
        %7622 = vmatpush1.msra.mxu0 0.0
        %7623 = vmatprep.subr.mxu0 0.0
        %7624 = vmatpush1.msra.mxu0 0.0
        %7625 = vmatprep.subr.mxu0 0.0
        %7626 = vmatpush1.msra.mxu0 0.0
        %7627 = vmatprep.subr.mxu0 0.0
        %7628 = vmatpush1.msra.mxu0 0.0
        %7629 = vmatprep.subr.mxu0 0.0
        %7630 = vmatpush1.msra.mxu0 0.0
        %7631 = vmatprep.subr.mxu0 0.0
        %7632 = vmatpush1.msra.mxu0 0.0
        %7633 = vmatprep.subr.mxu0 0.0
        %7634 = vmatpush1.msra.mxu0 0.0
        %7635 = vmatprep.subr.mxu0 0.0
        %7636 = vmatpush1.msra.mxu0 0.0
        %7637 = vmatprep.subr.mxu0 0.0
        %7638 = vmatpush1.msra.mxu0 0.0
        %7639 = vmatprep.subr.mxu0 0.0
        %7640 = vmatpush1.msra.mxu0 0.0
        %7641 = vmatprep.subr.mxu0 0.0
        %7642 = vmatpush1.msra.mxu0 0.0
        %7643 = vmatprep.subr.mxu0 0.0
        %7644 = vmatpush1.msra.mxu0 0.0
        %7645 = vmatprep.subr.mxu0 0.0
        %7646 = vmatpush1.msra.mxu0 0.0
        %7647 = vmatprep.subr.mxu0 0.0
        %7648 = vmatpush1.msra.mxu0 0.0
        %7649 = vmatprep.subr.mxu0 0.0
        %7650 = vmatpush1.msra.mxu0 0.0
        %7651 = vmatprep.subr.mxu0 0.0
        %7652 = vmatpush1.msra.mxu0 0.0
        %7653 = vmatprep.subr.mxu0 0.0
        %7654 = vmatpush1.msra.mxu0 0.0
        %7655 = vmatprep.subr.mxu0 0.0
        %7656 = vmatpush1.msra.mxu0 0.0
        %7657 = vmatprep.subr.mxu0 0.0
        %7658 = vmatpush1.msra.mxu0 0.0
        %7659 = vmatprep.mubr.f32.mxu0 0.0
        %7660 = vmatmul.mubr.f32.gmra.mrb[0].mxu0 %v7282
        %v7661 = vpop.f32.mrb[0].mxu0
        %v7662 = vadd.f32 0.0, %v7661
        %v7663 = vpop.f32.mrb[0].mxu0
        %v7664 = vadd.f32 0.0, %v7663
        %7665 = vmatprep.mubr.f32.mxu0 0.0
        %7666 = vmatmul.mubr.f32.gmra.mrb[0].mxu0 %v7285
        %v7667 = vpop.f32.mrb[0].mxu0
        %v7668 = vadd.f32 0.0, %v7667
        %v7669 = vpop.f32.mrb[0].mxu0
        %v7670 = vadd.f32 0.0, %v7669
        %7671 = vdwg.mxu0
        %7672 = vmatprep.subr.mxu0 %v7116
        %7673 = vmatpush1.msra.mxu0 %v7114
        %7674 = vmatprep.subr.mxu0 %v7122
        %7675 = vmatpush1.msra.mxu0 %v7120
        %7676 = vmatprep.subr.mxu0 0.0
        %7677 = vmatpush1.msra.mxu0 0.0
        %7678 = vmatprep.subr.mxu0 0.0
        %7679 = vmatpush1.msra.mxu0 0.0
        %7680 = vmatprep.subr.mxu0 0.0
        %7681 = vmatpush1.msra.mxu0 0.0
        %7682 = vmatprep.subr.mxu0 0.0
        %7683 = vmatpush1.msra.mxu0 0.0
        %7684 = vmatprep.subr.mxu0 0.0
        %7685 = vmatpush1.msra.mxu0 0.0
        %7686 = vmatprep.subr.mxu0 0.0
        %7687 = vmatpush1.msra.mxu0 0.0
        %7688 = vmatprep.subr.mxu0 0.0
        %7689 = vmatpush1.msra.mxu0 0.0
        %7690 = vmatprep.subr.mxu0 0.0
        %7691 = vmatpush1.msra.mxu0 0.0
        %7692 = vmatprep.subr.mxu0 0.0
        %7693 = vmatpush1.msra.mxu0 0.0
        %7694 = vmatprep.subr.mxu0 0.0
        %7695 = vmatpush1.msra.mxu0 0.0
        %7696 = vmatprep.subr.mxu0 0.0
        %7697 = vmatpush1.msra.mxu0 0.0
        %7698 = vmatprep.subr.mxu0 0.0
        %7699 = vmatpush1.msra.mxu0 0.0
        %7700 = vmatprep.subr.mxu0 0.0
        %7701 = vmatpush1.msra.mxu0 0.0
        %7702 = vmatprep.subr.mxu0 0.0
        %7703 = vmatpush1.msra.mxu0 0.0
        %7704 = vmatprep.subr.mxu0 0.0
        %7705 = vmatpush1.msra.mxu0 0.0
        %7706 = vmatprep.subr.mxu0 0.0
        %7707 = vmatpush1.msra.mxu0 0.0
        %7708 = vmatprep.subr.mxu0 0.0
        %7709 = vmatpush1.msra.mxu0 0.0
        %7710 = vmatprep.subr.mxu0 0.0
        %7711 = vmatpush1.msra.mxu0 0.0
        %7712 = vmatprep.subr.mxu0 0.0
        %7713 = vmatpush1.msra.mxu0 0.0
        %7714 = vmatprep.subr.mxu0 0.0
        %7715 = vmatpush1.msra.mxu0 0.0
        %7716 = vmatprep.subr.mxu0 0.0
        %7717 = vmatpush1.msra.mxu0 0.0
        %7718 = vmatprep.subr.mxu0 0.0
        %7719 = vmatpush1.msra.mxu0 0.0
        %7720 = vmatprep.subr.mxu0 0.0
        %7721 = vmatpush1.msra.mxu0 0.0
        %7722 = vmatprep.subr.mxu0 0.0
        %7723 = vmatpush1.msra.mxu0 0.0
        %7724 = vmatprep.subr.mxu0 0.0
        %7725 = vmatpush1.msra.mxu0 0.0
        %7726 = vmatprep.subr.mxu0 0.0
        %7727 = vmatpush1.msra.mxu0 0.0
        %7728 = vmatprep.subr.mxu0 0.0
        %7729 = vmatpush1.msra.mxu0 0.0
        %7730 = vmatprep.subr.mxu0 0.0
        %7731 = vmatpush1.msra.mxu0 0.0
        %7732 = vmatprep.subr.mxu0 0.0
        %7733 = vmatpush1.msra.mxu0 0.0
        %7734 = vmatprep.subr.mxu0 0.0
        %7735 = vmatpush1.msra.mxu0 0.0
        %7736 = vmatprep.mubr.f32.mxu0 0.0
        %7737 = vmatmul.mubr.f32.gmra.mrb[0].mxu0 %v7282
        %v7738 = vpop.f32.mrb[0].mxu0
        %v7739 = vadd.f32 0.0, %v7738
        %v7740 = vpop.f32.mrb[0].mxu0
        %v7741 = vadd.f32 0.0, %v7740
        %7742 = vmatprep.mubr.f32.mxu0 0.0
        %7743 = vmatmul.mubr.f32.gmra.mrb[0].mxu0 %v7285
        %v7744 = vpop.f32.mrb[0].mxu0
        %v7745 = vadd.f32 0.0, %v7744
        %v7746 = vpop.f32.mrb[0].mxu0
        %v7747 = vadd.f32 0.0, %v7746
        %7748 = vdwg.mxu0
        %7749 = vmatprep.subr.mxu0 %v7193
        %7750 = vmatpush1.msra.mxu0 %v7191
        %7751 = vmatprep.subr.mxu0 %v7199
        %7752 = vmatpush1.msra.mxu0 %v7197
        %7753 = vmatprep.subr.mxu0 0.0
        %7754 = vmatpush1.msra.mxu0 0.0
        %7755 = vmatprep.subr.mxu0 0.0
        %7756 = vmatpush1.msra.mxu0 0.0
        %7757 = vmatprep.subr.mxu0 0.0
        %7758 = vmatpush1.msra.mxu0 0.0
        %7759 = vmatprep.subr.mxu0 0.0
        %7760 = vmatpush1.msra.mxu0 0.0
        %7761 = vmatprep.subr.mxu0 0.0
        %7762 = vmatpush1.msra.mxu0 0.0
        %7763 = vmatprep.subr.mxu0 0.0
        %7764 = vmatpush1.msra.mxu0 0.0
        %7765 = vmatprep.subr.mxu0 0.0
        %7766 = vmatpush1.msra.mxu0 0.0
        %7767 = vmatprep.subr.mxu0 0.0
        %7768 = vmatpush1.msra.mxu0 0.0
        %7769 = vmatprep.subr.mxu0 0.0
        %7770 = vmatpush1.msra.mxu0 0.0
        %7771 = vmatprep.subr.mxu0 0.0
        %7772 = vmatpush1.msra.mxu0 0.0
        %7773 = vmatprep.subr.mxu0 0.0
        %7774 = vmatpush1.msra.mxu0 0.0
        %7775 = vmatprep.subr.mxu0 0.0
        %7776 = vmatpush1.msra.mxu0 0.0
        %7777 = vmatprep.subr.mxu0 0.0
        %7778 = vmatpush1.msra.mxu0 0.0
        %7779 = vmatprep.subr.mxu0 0.0
        %7780 = vmatpush1.msra.mxu0 0.0
        %7781 = vmatprep.subr.mxu0 0.0
        %7782 = vmatpush1.msra.mxu0 0.0
        %7783 = vmatprep.subr.mxu0 0.0
        %7784 = vmatpush1.msra.mxu0 0.0
        %7785 = vmatprep.subr.mxu0 0.0
        %7786 = vmatpush1.msra.mxu0 0.0
        %7787 = vmatprep.subr.mxu0 0.0
        %7788 = vmatpush1.msra.mxu0 0.0
        %7789 = vmatprep.subr.mxu0 0.0
        %7790 = vmatpush1.msra.mxu0 0.0
        %7791 = vmatprep.subr.mxu0 0.0
        %7792 = vmatpush1.msra.mxu0 0.0
        %7793 = vmatprep.subr.mxu0 0.0
        %7794 = vmatpush1.msra.mxu0 0.0
        %7795 = vmatprep.subr.mxu0 0.0
        %7796 = vmatpush1.msra.mxu0 0.0
        %7797 = vmatprep.subr.mxu0 0.0
        %7798 = vmatpush1.msra.mxu0 0.0
        %7799 = vmatprep.subr.mxu0 0.0
        %7800 = vmatpush1.msra.mxu0 0.0
        %7801 = vmatprep.subr.mxu0 0.0
        %7802 = vmatpush1.msra.mxu0 0.0
        %7803 = vmatprep.subr.mxu0 0.0
        %7804 = vmatpush1.msra.mxu0 0.0
        %7805 = vmatprep.subr.mxu0 0.0
        %7806 = vmatpush1.msra.mxu0 0.0
        %7807 = vmatprep.subr.mxu0 0.0
        %7808 = vmatpush1.msra.mxu0 0.0
        %7809 = vmatprep.subr.mxu0 0.0
        %7810 = vmatpush1.msra.mxu0 0.0
        %7811 = vmatprep.subr.mxu0 0.0
        %7812 = vmatpush1.msra.mxu0 0.0
        %7813 = vmatprep.mubr.f32.mxu0 0.0
        %7814 = vmatmul.mubr.f32.gmra.mrb[0].mxu0 %v7282
        %v7815 = vpop.f32.mrb[0].mxu0
        %v7816 = vadd.f32 0.0, %v7815
        %v7817 = vpop.f32.mrb[0].mxu0
        %v7818 = vadd.f32 0.0, %v7817
        %7819 = vmatprep.mubr.f32.mxu0 0.0
        %7820 = vmatmul.mubr.f32.gmra.mrb[0].mxu0 %v7285
        %v7821 = vpop.f32.mrb[0].mxu0
        %v7822 = vadd.f32 0.0, %v7821
        %v7823 = vpop.f32.mrb[0].mxu0
        %v7824 = vadd.f32 0.0, %v7823
        %7825 = vdwg.mxu0
        %7826 = vmatprep.subr.mxu0 %v7270
        %7827 = vmatpush1.msra.mxu0 %v7268
        %7828 = vmatprep.subr.mxu0 %v7276
        %7829 = vmatpush1.msra.mxu0 %v7274
        %7830 = vmatprep.subr.mxu0 0.0
        %7831 = vmatpush1.msra.mxu0 0.0
        %7832 = vmatprep.subr.mxu0 0.0
        %7833 = vmatpush1.msra.mxu0 0.0
        %7834 = vmatprep.subr.mxu0 0.0
        %7835 = vmatpush1.msra.mxu0 0.0
        %7836 = vmatprep.subr.mxu0 0.0
        %7837 = vmatpush1.msra.mxu0 0.0
        %7838 = vmatprep.subr.mxu0 0.0
        %7839 = vmatpush1.msra.mxu0 0.0
        %7840 = vmatprep.subr.mxu0 0.0
        %7841 = vmatpush1.msra.mxu0 0.0
        %7842 = vmatprep.subr.mxu0 0.0
        %7843 = vmatpush1.msra.mxu0 0.0
        %7844 = vmatprep.subr.mxu0 0.0
        %7845 = vmatpush1.msra.mxu0 0.0
        %7846 = vmatprep.subr.mxu0 0.0
        %7847 = vmatpush1.msra.mxu0 0.0
        %7848 = vmatprep.subr.mxu0 0.0
        %7849 = vmatpush1.msra.mxu0 0.0
        %7850 = vmatprep.subr.mxu0 0.0
        %7851 = vmatpush1.msra.mxu0 0.0
        %7852 = vmatprep.subr.mxu0 0.0
        %7853 = vmatpush1.msra.mxu0 0.0
        %7854 = vmatprep.subr.mxu0 0.0
        %7855 = vmatpush1.msra.mxu0 0.0
        %7856 = vmatprep.subr.mxu0 0.0
        %7857 = vmatpush1.msra.mxu0 0.0
        %7858 = vmatprep.subr.mxu0 0.0
        %7859 = vmatpush1.msra.mxu0 0.0
        %7860 = vmatprep.subr.mxu0 0.0
        %7861 = vmatpush1.msra.mxu0 0.0
        %7862 = vmatprep.subr.mxu0 0.0
        %7863 = vmatpush1.msra.mxu0 0.0
        %7864 = vmatprep.subr.mxu0 0.0
        %7865 = vmatpush1.msra.mxu0 0.0
        %7866 = vmatprep.subr.mxu0 0.0
        %7867 = vmatpush1.msra.mxu0 0.0
        %7868 = vmatprep.subr.mxu0 0.0
        %7869 = vmatpush1.msra.mxu0 0.0
        %7870 = vmatprep.subr.mxu0 0.0
        %7871 = vmatpush1.msra.mxu0 0.0
        %7872 = vmatprep.subr.mxu0 0.0
        %7873 = vmatpush1.msra.mxu0 0.0
        %7874 = vmatprep.subr.mxu0 0.0
        %7875 = vmatpush1.msra.mxu0 0.0
        %7876 = vmatprep.subr.mxu0 0.0
        %7877 = vmatpush1.msra.mxu0 0.0
        %7878 = vmatprep.subr.mxu0 0.0
        %7879 = vmatpush1.msra.mxu0 0.0
        %7880 = vmatprep.subr.mxu0 0.0
        %7881 = vmatpush1.msra.mxu0 0.0
        %7882 = vmatprep.subr.mxu0 0.0
        %7883 = vmatpush1.msra.mxu0 0.0
        %7884 = vmatprep.subr.mxu0 0.0
        %7885 = vmatpush1.msra.mxu0 0.0
        %7886 = vmatprep.subr.mxu0 0.0
        %7887 = vmatpush1.msra.mxu0 0.0
        %7888 = vmatprep.subr.mxu0 0.0
        %7889 = vmatpush1.msra.mxu0 0.0
        %7890 = vmatprep.mubr.f32.mxu0 0.0
        %7891 = vmatmul.mubr.f32.gmra.mrb[0].mxu0 %v7282
        %v7892 = vpop.f32.mrb[0].mxu0
        %v7893 = vadd.f32 0.0, %v7892
        %v7894 = vpop.f32.mrb[0].mxu0
        %v7895 = vadd.f32 0.0, %v7894
        %7896 = vmatprep.mubr.f32.mxu0 0.0
        %7897 = vmatmul.mubr.f32.gmra.mrb[0].mxu0 %v7285
        %v7898 = vpop.f32.mrb[0].mxu0
        %v7899 = vadd.f32 0.0, %v7898
        %v7900 = vpop.f32.mrb[0].mxu0
        %v7901 = vadd.f32 0.0, %v7900
        %7902 = vdwg.mxu0
        %v7903 = vadd.f32 %v6428, %v7354
        %v7904 = vadd.f32 %v6429, %v7356
        %v7905 = vadd.f32 %v6430, %v7431
        %v7906 = vadd.f32 %v6431, %v7433
        %v7907 = vadd.f32 %v6432, %v7508
        %v7908 = vadd.f32 %v6433, %v7510
        %v7909 = vadd.f32 %v6434, %v7585
        %v7910 = vadd.f32 %v6435, %v7587
        %v7911 = vadd.f32 %v6436, %v7662
        %v7912 = vadd.f32 %v6437, %v7664
        %v7913 = vadd.f32 %v6438, %v7739
        %v7914 = vadd.f32 %v6439, %v7741
        %v7915 = vadd.f32 %v6440, %v7816
        %v7916 = vadd.f32 %v6441, %v7818
        %v7917 = vadd.f32 %v6442, %v7893
        %v7918 = vadd.f32 %v6443, %v7895
        %v7919 = vadd.f32 %v6444, %v7360
        %v7920 = vadd.f32 %v6445, %v7362
        %v7921 = vadd.f32 %v6446, %v7437
        %v7922 = vadd.f32 %v6447, %v7439
        %v7923 = vadd.f32 %v6448, %v7514
        %v7924 = vadd.f32 %v6449, %v7516
        %v7925 = vadd.f32 %v6450, %v7591
        %v7926 = vadd.f32 %v6451, %v7593
        %v7927 = vadd.f32 %v6452, %v7668
        %v7928 = vadd.f32 %v6453, %v7670
        %v7929 = vadd.f32 %v6454, %v7745
        %v7930 = vadd.f32 %v6455, %v7747
        %v7931 = vadd.f32 %v6456, %v7822
        %v7932 = vadd.f32 %v6457, %v7824
        %v7933 = vadd.f32 %v6458, %v7899
        %v7934 = vadd.f32 %v6459, %v7901
        %v7935 = vld [vmem:[%s5] sm:$0xff]
        %v7936 = vld [vmem:[%s5 + $0x8] sm:$0xff]
        %7938 = vset.pattern.permute.xlu0 0
        %7939 = vperm.xlu0 %7938, %v7935
        %v7940 = vpop.permute.xlu0 %7939
        %7943 = vset.pattern.permute.xlu0 0
        %7944 = vperm.xlu0 %7943, %v7936
        %v7945 = vpop.permute.xlu0 %7944
        %v7947 = vadd.f32 %v7903, %v7940
        %v7948 = vadd.f32 %v7904, %v7940
        %v7949 = vadd.f32 %v7905, %v7940
        %v7950 = vadd.f32 %v7906, %v7940
        %v7951 = vadd.f32 %v7907, %v7940
        %v7952 = vadd.f32 %v7908, %v7940
        %v7953 = vadd.f32 %v7909, %v7940
        %v7954 = vadd.f32 %v7910, %v7940
        %v7955 = vadd.f32 %v7911, %v7940
        %v7956 = vadd.f32 %v7912, %v7940
        %v7957 = vadd.f32 %v7913, %v7940
        %v7958 = vadd.f32 %v7914, %v7940
        %v7959 = vadd.f32 %v7915, %v7940
        %v7960 = vadd.f32 %v7916, %v7940
        %v7961 = vadd.f32 %v7917, %v7940
        %v7962 = vadd.f32 %v7918, %v7940
        %v7963 = vadd.f32 %v7919, %v7945
        %v7964 = vadd.f32 %v7920, %v7945
        %v7965 = vadd.f32 %v7921, %v7945
        %v7966 = vadd.f32 %v7922, %v7945
        %v7967 = vadd.f32 %v7923, %v7945
        %v7968 = vadd.f32 %v7924, %v7945
        %v7969 = vadd.f32 %v7925, %v7945
        %v7970 = vadd.f32 %v7926, %v7945
        %v7971 = vadd.f32 %v7927, %v7945
        %v7972 = vadd.f32 %v7928, %v7945
        %v7973 = vadd.f32 %v7929, %v7945
        %v7974 = vadd.f32 %v7930, %v7945
        %v7975 = vadd.f32 %v7931, %v7945
        %v7976 = vadd.f32 %v7932, %v7945
        %v7977 = vadd.f32 %v7933, %v7945
        %v7978 = vadd.f32 %v7934, %v7945
        %7979 = vst [vmem:[%s282] sm:$0xff] %v7947
        %7980 = vst [vmem:[%s282 + $0x8] sm:$0xff] %v7948
        %7981 = vst [vmem:[%s282 + $0x10] sm:$0xff] %v7949
        %7982 = vst [vmem:[%s282 + $0x18] sm:$0xff] %v7950
        %7983 = vst [vmem:[%s282 + $0x20] sm:$0xff] %v7951
        %7984 = vst [vmem:[%s282 + $0x28] sm:$0xff] %v7952
        %7985 = vst [vmem:[%s282 + $0x30] sm:$0xff] %v7953
        %7986 = vst [vmem:[%s282 + $0x38] sm:$0xff] %v7954
        %7987 = vst [vmem:[%s282 + $0x40] sm:$0xff] %v7955
        %7988 = vst [vmem:[%s282 + $0x48] sm:$0xff] %v7956
        %7989 = vst [vmem:[%s282 + $0x50] sm:$0xff] %v7957
        %7990 = vst [vmem:[%s282 + $0x58] sm:$0xff] %v7958
        %7991 = vst [vmem:[%s282 + $0x60] sm:$0xff] %v7959
        %7992 = vst [vmem:[%s282 + $0x68] sm:$0xff] %v7960
        %7993 = vst [vmem:[%s282 + $0x70] sm:$0xff] %v7961
        %7994 = vst.msk [vmem:[%s282 + $0x78] sm:$0xff] %vm6517, %v7962
        %7995 = vst [vmem:[%s282 + $0x80] sm:$0xff] %v7963
        %7996 = vst [vmem:[%s282 + $0x88] sm:$0xff] %v7964
        %7997 = vst [vmem:[%s282 + $0x90] sm:$0xff] %v7965
        %7998 = vst [vmem:[%s282 + $0x98] sm:$0xff] %v7966
        %7999 = vst [vmem:[%s282 + $0xa0] sm:$0xff] %v7967
        %8000 = vst [vmem:[%s282 + $0xa8] sm:$0xff] %v7968
        %8001 = vst [vmem:[%s282 + $0xb0] sm:$0xff] %v7969
        %8002 = vst [vmem:[%s282 + $0xb8] sm:$0xff] %v7970
        %8003 = vst [vmem:[%s282 + $0xc0] sm:$0xff] %v7971
        %8004 = vst [vmem:[%s282 + $0xc8] sm:$0xff] %v7972
        %8005 = vst [vmem:[%s282 + $0xd0] sm:$0xff] %v7973
        %8006 = vst [vmem:[%s282 + $0xd8] sm:$0xff] %v7974
        %8007 = vst [vmem:[%s282 + $0xe0] sm:$0xff] %v7975
        %8008 = vst [vmem:[%s282 + $0xe8] sm:$0xff] %v7976
        %8009 = vst [vmem:[%s282 + $0xf0] sm:$0xff] %v7977
        %8010 = vst.msk [vmem:[%s282 + $0xf8] sm:$0xff] %vm6517, %v7978
        %s8011 = sand.u32 %s163, 1
        %s8012 = scalar_lea.sflag [#allocation4], %s8011
        %s8013 = sand.u32 %s163, 1
        %s8014 = smul.addr %s8013, 256
        %s8015 = scalar_lea.vmem [#allocation7], %s8014
        // Predicated region
        $region53: #{tpu_custom_call.1} parent=43 // pred_check
          %p8016 = pneg %p173
        $region54: #{tpu_custom_call.1} parent=43 // pred_check_branch
          %8018 = sbr.rel (%p8016) target = $region56
        $region55: #{tpu_custom_call.1} parent=43 // pred_region
          %s8020 = ssub.s32 4096, 4096
          %8021 = vsyncadd %s8012, %s8020
          %s8022 = smul.addr %s24, 32
          %s8023 = smul.addr %s8022, 128
          %s8024 = scalar_lea.hbm %s6, %s8023
          %s8025 = sshll.u32 %s8015, 4
          %s8026 = int_to_ptr.vmem [resolvable:$true] %s8025
          %8031 = dma.vmem_to_hbm [thread:$0]  %s8026, 4096, %s8024, %s8012, 2048, 2048, 128
        $region56: #{tpu_custom_call.1} parent=43 // pred_fallthru
          _
      $region44: #{tpu_custom_call.1} parent=5 // pred_fallthru
        _
      %p8032 = scmp.le.s32.totalorder 2, %s19
      // Predicated region
      $region57: #{tpu_custom_call.1} parent=5 // pred_check
        %p8033 = pneg %p8032
      $region58: #{tpu_custom_call.1} parent=5 // pred_check_branch
        %8035 = sbr.rel (%p8033) target = $region60
      $region59: #{tpu_custom_call.1} parent=5 // pred_region
        %s8036 = ssub.s32 %s19, 2
        // Predicated region
        $region61: #{tpu_custom_call.1} parent=59 // pred_check
          %p8037 = pneg %p179
        $region62: #{tpu_custom_call.1} parent=59 // pred_check_branch
          %8039 = sbr.rel (%p8037) target = $region64
        $region63: #{tpu_custom_call.1} parent=59 // pred_region
          %s8040 = sand.u32 %s164, 1
          %s8041 = scalar_lea.sflag [#allocation4], %s8040
          %s8042 = sand.u32 %s164, 1
          %s8043 = smul.addr %s8042, 256
          %s8044 = scalar_lea.vmem [#allocation7], %s8043
          %8045 = dma.done %s8041, 4096
        $region64: #{tpu_custom_call.1} parent=59 // pred_fallthru
          _
      $region60: #{tpu_custom_call.1} parent=5 // pred_fallthru
        _
    $region6: #{tpu_custom_call.1} parent=1 // loop_footer
      %s23 = sadd.s32 1, %s19
    $region7: #{tpu_custom_call.1} parent=1 // loop_footer_branch
      %18 = sbr.rel target = $region3
    $region8: #{tpu_custom_call.1} parent=1 // loop_exit
      _
    %8046 = vsyncpa [#allocation3], 1
    %s8047 = scalar_lea.sflag [#allocation3], 1
    %8048 = vsyncpa %s8047, 1
    %8049 = vsyncpa [#allocation6], 1
    %8050 = vsyncpa [#allocation4], 1
    %s8051 = scalar_lea.sflag [#allocation4], 1
    %8052 = vsyncpa %s8051, 1

</llo_original>
